<compile_context>
chip_gen: v6e
topology: v6e:2x2x1
jax: 0.10.0
libtpu: 0.0.40
codegen_flags: <defaults>
</compile_context>

<pallas_src>
import jax
import jax.numpy as jnp
from jax import lax
from jax.experimental import pallas as pl
from jax.experimental.pallas import tpu as pltpu


# -----------------------------------------------------------------------------
# Pallas kernel: conv3x3 -> BN -> LeakyReLU -> conv3x3 -> BN -> +res -> LeakyReLU
# One batch element per grid step.
# -----------------------------------------------------------------------------
def basic_block_kernel(x_ref, w1_ref, s1_ref, b1_ref, w2_ref, s2_ref, b2_ref,
                       out_ref, xpad_ref, col_ref):
    _, H, W, Cp = x_ref.shape

    # Zero only the 1-pixel halo of the padded scratch; the interior is always
    # fully overwritten below, so no full-buffer zero fill is needed.
    xpad_ref[0:1, :, :] = jnp.zeros((1, W + 2, Cp), jnp.float32)
    xpad_ref[H + 1:H + 2, :, :] = jnp.zeros((1, W + 2, Cp), jnp.float32)
    xpad_ref[1:H + 1, 0:1, :] = jnp.zeros((H, 1, Cp), jnp.float32)
    xpad_ref[1:H + 1, W + 1:W + 2, :] = jnp.zeros((H, 1, Cp), jnp.float32)

    x = x_ref[0]  # (H, W, Cp)

    def conv3x3(w_ref):
        # Build the im2col slab once: (H*W, 9*Cp), then a single K = 9*Cp MXU
        # contraction instead of 9 small accumulating matmuls.
        for k in range(9):
            ky, kx = divmod(k, 3)
            patch = xpad_ref[ky:ky + H, kx:kx + W, :].reshape(H * W, Cp)
            col_ref[:, k * Cp:(k + 1) * Cp] = patch
        return jnp.dot(col_ref[...], w_ref[...],
                       preferred_element_type=jnp.float32)

    # ---- conv1 -> bn1 (folded affine) -> LeakyReLU(0.1) ----------------------
    xpad_ref[1:H + 1, 1:W + 1, :] = x
    acc1 = conv3x3(w1_ref)
    h1 = acc1 * s1_ref[...] + b1_ref[...]
    h1 = jnp.maximum(h1, 0.1 * h1)
    # Dropout2d(0.1): identity in eval mode.
    # TODO(synk): training-mode channel-dropout randomness not reproduced.

    # ---- conv2 -> bn2 -> + identity shortcut -> LeakyReLU(0.1) ---------------
    # Reuse the padded scratch; its halo is still zero.
    xpad_ref[1:H + 1, 1:W + 1, :] = h1.reshape(H, W, Cp)
    acc2 = conv3x3(w2_ref)
    h2 = acc2 * s2_ref[...] + b2_ref[...]
    out = h2 + x.reshape(H * W, Cp)      # identity shortcut (stride=1, Cin==Cout)
    out = jnp.maximum(out, 0.1 * out)
    out_ref[...] = out.reshape(1, H, W, Cp)


# -----------------------------------------------------------------------------
# Wrapper: NCHW <-> lane-padded NHWC glue + pallas_call with a batch grid
# -----------------------------------------------------------------------------
def basic_block_forward(x_nchw, w1_mat, s1, b1, w2_mat, s2, b2):
    N, C, H, W = x_nchw.shape
    Cp = s1.shape[-1]

    # NCHW -> NHWC, channels zero-padded to the 128-lane width.
    x_nhwc = jnp.transpose(x_nchw, (0, 2, 3, 1)).astype(jnp.float32)
    x_p = jnp.pad(x_nhwc, ((0, 0), (0, 0), (0, 0), (0, Cp - C)))

    flops_per_step = 2 * (H * W) * (9 * Cp) * Cp * 2          # two convs
    bytes_per_step = 4 * (2 * H * W * Cp + 2 * 9 * Cp * Cp + 4 * Cp)

    out = pl.pallas_call(
        basic_block_kernel,
        out_shape=jax.ShapeDtypeStruct((N, H, W, Cp), jnp.float32),
        grid_spec=pltpu.PrefetchScalarGridSpec(
            num_scalar_prefetch=0,
            grid=(N,),
            in_specs=[
                pl.BlockSpec((1, H, W, Cp), lambda n: (n, 0, 0, 0)),   # x
                pl.BlockSpec((9 * Cp, Cp), lambda n: (0, 0)),          # w1 (fetched once)
                pl.BlockSpec((1, Cp), lambda n: (0, 0)),               # s1
                pl.BlockSpec((1, Cp), lambda n: (0, 0)),               # b1
                pl.BlockSpec((9 * Cp, Cp), lambda n: (0, 0)),          # w2
                pl.BlockSpec((1, Cp), lambda n: (0, 0)),               # s2
                pl.BlockSpec((1, Cp), lambda n: (0, 0)),               # b2
            ],
            out_specs=pl.BlockSpec((1, H, W, Cp), lambda n: (n, 0, 0, 0)),
            scratch_shapes=[
                pltpu.VMEM((H + 2, W + 2, Cp), jnp.float32),   # padded activation
                pltpu.VMEM((H * W, 9 * Cp), jnp.float32),      # im2col slab
            ],
        ),
        compiler_params=pltpu.CompilerParams(
            dimension_semantics=("parallel",),      # megacore over batch
            vmem_limit_bytes=32 * 1024 * 1024,      # fits v5e/v6e/v7x budgets
        ),
        cost_estimate=pl.CostEstimate(
            flops=N * flops_per_step,
            transcendentals=0,
            bytes_accessed=N * bytes_per_step),
    )(x_p, w1_mat, s1, b1, w2_mat, s2, b2)

    out = out[..., :C]                              # drop channel padding
    return jnp.transpose(out, (0, 3, 1, 2))         # back to NCHW


# -----------------------------------------------------------------------------
# Parameter packing: fold BN, repack conv weights OIHW -> (9*Cp, Cp)
# -----------------------------------------------------------------------------
def pack_params(conv1_w, g1, be1, m1, v1, conv2_w, g2, be2, m2, v2,
                eps=1e-5, lane=128):
    Cout, Cin, _, _ = conv1_w.shape
    Cp = max(lane, ((max(Cin, Cout) + lane - 1) // lane) * lane)

    def conv_to_mat(w):
        # OIHW -> (3,3,Cin,Cout) -> zero-pad channels -> (9*Cp, Cp)
        t = jnp.transpose(w, (2, 3, 1, 0))
        t = jnp.pad(t, ((0, 0), (0, 0), (0, Cp - w.shape[1]), (0, Cp - w.shape[0])))
        return t.reshape(9 * Cp, Cp)

    def bn_fold(g, be, m, v):
        s = g / jnp.sqrt(v + eps)
        b = be - m * s
        s = jnp.pad(s, (0, Cp - s.shape[0])).reshape(1, Cp)
        b = jnp.pad(b, (0, Cp - b.shape[0])).reshape(1, Cp)
        return s, b

    w1 = conv_to_mat(conv1_w)
    w2 = conv_to_mat(conv2_w)
    s1, b1 = bn_fold(g1, be1, m1, v1)
    s2, b2 = bn_fold(g2, be2, m2, v2)
    return w1, s1, b1, w2, s2, b2


# -----------------------------------------------------------------------------
# Pure-JAX reference (lax.conv) for correctness checking
# -----------------------------------------------------------------------------
def reference_forward(x, cw1, g1, be1, m1, v1, cw2, g2, be2, m2, v2, eps=1e-5):
    def bn(y, g, be, m, v):
        sc = g / jnp.sqrt(v + eps)
        return y * sc[None, :, None, None] + (be - m * sc)[None, :, None, None]

    def lrelu(y):
        return jnp.where(y >= 0, y, 0.1 * y)

    dn = lax.conv_dimension_numbers(x.shape, cw1.shape, ('NCHW', 'OIHW', 'NCHW'))
    y = lax.conv_general_dilated(x, cw1, (1, 1), 'SAME', dimension_numbers=dn)
    y = lrelu(bn(y, g1, be1, m1, v1))
    y = lax.conv_general_dilated(y, cw2, (1, 1), 'SAME', dimension_numbers=dn)
    y = bn(y, g2, be2, m2, v2)
    return lrelu(y + x)


if __name__ == "__main__":
    # Shapes consistent with BasicBlock(in_planes=4, planes=4, stride=1)
    # TODO(synk): stride!=1 / in_planes!=planes option-A/B shortcuts not
    # implemented (identity shortcut only, as exercised by these shapes).
    N, C, H, W = 2, 4, 16, 16
    eps = 1e-5

    key = jax.random.PRNGKey(0)
    keys = jax.random.split(key, 12)

    x = jax.random.normal(keys[0], (N, C, H, W), jnp.float32)

    # conv weights in PyTorch OIHW convention (no bias)
    conv1_w = 0.1 * jax.random.normal(keys[1], (C, C, 3, 3), jnp.float32)
    conv2_w = 0.1 * jax.random.normal(keys[2], (C, C, 3, 3), jnp.float32)

    # BatchNorm parameters / running stats (deterministic, non-trivial)
    g1 = 1.0 + 0.1 * jax.random.normal(keys[3], (C,), jnp.float32)
    be1 = 0.1 * jax.random.normal(keys[4], (C,), jnp.float32)
    m1 = 0.1 * jax.random.normal(keys[5], (C,), jnp.float32)
    v1 = 0.5 + 0.5 * jnp.abs(jax.random.normal(keys[6], (C,), jnp.float32))
    g2 = 1.0 + 0.1 * jax.random.normal(keys[7], (C,), jnp.float32)
    be2 = 0.1 * jax.random.normal(keys[8], (C,), jnp.float32)
    m2 = 0.1 * jax.random.normal(keys[9], (C,), jnp.float32)
    v2 = 0.5 + 0.5 * jnp.abs(jax.random.normal(keys[10], (C,), jnp.float32))

    w1_mat, s1, b1, w2_mat, s2, b2 = pack_params(
        conv1_w, g1, be1, m1, v1, conv2_w, g2, be2, m2, v2, eps=eps)

    fwd = jax.jit(basic_block_forward)
    out = fwd(x, w1_mat, s1, b1, w2_mat, s2, b2)
    out = jax.block_until_ready(out)

    ref = reference_forward(x, conv1_w, g1, be1, m1, v1,
                            conv2_w, g2, be2, m2, v2, eps)
    ref = jax.block_until_ready(ref)

    assert out.shape == (N, C, H, W)
    assert jnp.allclose(out, ref, rtol=2e-4, atol=2e-4), (
        f"max abs err {jnp.max(jnp.abs(out - ref))}")

    print("KERNEL_OK")
</pallas_src>

<mosaic_0001>
module attributes {stable_mosaic.version = 11 : i64} {
  func.func @basic_block_kernel(%arg0: i32, %arg1: memref<1x16x16x128xf32, #tpu.memory_space<vmem>>, %arg2: memref<1152x128xf32, #tpu.memory_space<vmem>>, %arg3: memref<1x128xf32, #tpu.memory_space<vmem>>, %arg4: memref<1x128xf32, #tpu.memory_space<vmem>>, %arg5: memref<1152x128xf32, #tpu.memory_space<vmem>>, %arg6: memref<1x128xf32, #tpu.memory_space<vmem>>, %arg7: memref<1x128xf32, #tpu.memory_space<vmem>>, %arg8: memref<1x16x16x128xf32, #tpu.memory_space<vmem>>, %arg9: memref<18x18x128xf32, #tpu.memory_space<vmem>>, %arg10: memref<256x1152xf32, #tpu.memory_space<vmem>>) attributes {dimension_semantics = [#tpu.dimension_semantics<parallel>], iteration_bounds = array<i64: 2>, scalar_prefetch = 0 : i64, scratch_operands = 2 : i64, tpu.core_type = #tpu.core_type<tc>, window_params = [{transform_indices = @transform_0, window_bounds = array<i64: 1, 16, 16, 128>}, {pipeline_mode = #tpu.pipeline_mode<synchronous>, transform_indices = @transform_1, window_bounds = array<i64: 1152, 128>}, {pipeline_mode = #tpu.pipeline_mode<synchronous>, transform_indices = @transform_2, window_bounds = array<i64: 1, 128>}, {pipeline_mode = #tpu.pipeline_mode<synchronous>, transform_indices = @transform_3, window_bounds = array<i64: 1, 128>}, {pipeline_mode = #tpu.pipeline_mode<synchronous>, transform_indices = @transform_4, window_bounds = array<i64: 1152, 128>}, {pipeline_mode = #tpu.pipeline_mode<synchronous>, transform_indices = @transform_5, window_bounds = array<i64: 1, 128>}, {pipeline_mode = #tpu.pipeline_mode<synchronous>, transform_indices = @transform_6, window_bounds = array<i64: 1, 128>}, {transform_indices = @transform_7, window_bounds = array<i64: 1, 16, 16, 128>}]} {
    %cst = arith.constant 0.000000e+00 : f32
    %0 = vector.broadcast %cst : f32 to vector<1x18x128xf32>
    %c0 = arith.constant 0 : index
    %c0_0 = arith.constant 0 : index
    %c0_1 = arith.constant 0 : index
    %1 = vector.load %arg9[%c0, %c0_0, %c0_1] : memref<18x18x128xf32, #tpu.memory_space<vmem>>, vector<1x18x128xf32>
    tpu.vector_store %arg9[%c0, %c0_0, %c0_1], %0 {strides = array<i32>} : memref<18x18x128xf32, #tpu.memory_space<vmem>>, vector<1x18x128xf32>,
    %cst_2 = arith.constant 0.000000e+00 : f32
    %2 = vector.broadcast %cst_2 : f32 to vector<1x18x128xf32>
    %c17 = arith.constant 17 : index
    %c0_3 = arith.constant 0 : index
    %c0_4 = arith.constant 0 : index
    %3 = vector.load %arg9[%c17, %c0_3, %c0_4] : memref<18x18x128xf32, #tpu.memory_space<vmem>>, vector<1x18x128xf32>
    tpu.vector_store %arg9[%c17, %c0_3, %c0_4], %2 {strides = array<i32>} : memref<18x18x128xf32, #tpu.memory_space<vmem>>, vector<1x18x128xf32>,
    %cst_5 = arith.constant 0.000000e+00 : f32
    %4 = vector.broadcast %cst_5 : f32 to vector<16x1x128xf32>
    %c1 = arith.constant 1 : index
    %c0_6 = arith.constant 0 : index
    %c0_7 = arith.constant 0 : index
    %5 = vector.load %arg9[%c1, %c0_6, %c0_7] : memref<18x18x128xf32, #tpu.memory_space<vmem>>, vector<16x1x128xf32>
    tpu.vector_store %arg9[%c1, %c0_6, %c0_7], %4 {strides = array<i32>} : memref<18x18x128xf32, #tpu.memory_space<vmem>>, vector<16x1x128xf32>,
    %cst_8 = arith.constant 0.000000e+00 : f32
    %6 = vector.broadcast %cst_8 : f32 to vector<16x1x128xf32>
    %c1_9 = arith.constant 1 : index
    %c17_10 = arith.constant 17 : index
    %c0_11 = arith.constant 0 : index
    %7 = vector.load %arg9[%c1_9, %c17_10, %c0_11] : memref<18x18x128xf32, #tpu.memory_space<vmem>>, vector<16x1x128xf32>
    tpu.vector_store %arg9[%c1_9, %c17_10, %c0_11], %6 {strides = array<i32>} : memref<18x18x128xf32, #tpu.memory_space<vmem>>, vector<16x1x128xf32>,
    %c0_12 = arith.constant 0 : index
    %c0_13 = arith.constant 0 : index
    %c0_14 = arith.constant 0 : index
    %c0_15 = arith.constant 0 : index
    %8 = vector.load %arg1[%c0_12, %c0_13, %c0_14, %c0_15] : memref<1x16x16x128xf32, #tpu.memory_space<vmem>>, vector<1x16x16x128xf32>
    %9 = vector.shape_cast %8 : vector<1x16x16x128xf32> to vector<16x16x128xf32>
    %c1_16 = arith.constant 1 : index
    %c1_17 = arith.constant 1 : index
    %c0_18 = arith.constant 0 : index
    %10 = vector.load %arg9[%c1_16, %c1_17, %c0_18] : memref<18x18x128xf32, #tpu.memory_space<vmem>>, vector<16x16x128xf32>
    tpu.vector_store %arg9[%c1_16, %c1_17, %c0_18], %9 {strides = array<i32>} : memref<18x18x128xf32, #tpu.memory_space<vmem>>, vector<16x16x128xf32>,
    %c0_19 = arith.constant 0 : index
    %c0_20 = arith.constant 0 : index
    %c0_21 = arith.constant 0 : index
    %11 = vector.load %arg9[%c0_19, %c0_20, %c0_21] : memref<18x18x128xf32, #tpu.memory_space<vmem>>, vector<16x16x128xf32>
    %12 = vector.shape_cast %11 : vector<16x16x128xf32> to vector<256x128xf32>
    %c0_22 = arith.constant 0 : index
    %c0_23 = arith.constant 0 : index
    %13 = vector.load %arg10[%c0_22, %c0_23] : memref<256x1152xf32, #tpu.memory_space<vmem>>, vector<256x128xf32>
    tpu.vector_store %arg10[%c0_22, %c0_23], %12 {strides = array<i32>} : memref<256x1152xf32, #tpu.memory_space<vmem>>, vector<256x128xf32>,
    %c0_24 = arith.constant 0 : index
    %c1_25 = arith.constant 1 : index
    %c0_26 = arith.constant 0 : index
    %14 = vector.load %arg9[%c0_24, %c1_25, %c0_26] : memref<18x18x128xf32, #tpu.memory_space<vmem>>, vector<16x16x128xf32>
    %15 = vector.shape_cast %14 : vector<16x16x128xf32> to vector<256x128xf32>
    %c0_27 = arith.constant 0 : index
    %c128 = arith.constant 128 : index
    %16 = vector.load %arg10[%c0_27, %c128] : memref<256x1152xf32, #tpu.memory_space<vmem>>, vector<256x128xf32>
    tpu.vector_store %arg10[%c0_27, %c128], %15 {strides = array<i32>} : memref<256x1152xf32, #tpu.memory_space<vmem>>, vector<256x128xf32>,
    %c0_28 = arith.constant 0 : index
    %c2 = arith.constant 2 : index
    %c0_29 = arith.constant 0 : index
    %17 = vector.load %arg9[%c0_28, %c2, %c0_29] : memref<18x18x128xf32, #tpu.memory_space<vmem>>, vector<16x16x128xf32>
    %18 = vector.shape_cast %17 : vector<16x16x128xf32> to vector<256x128xf32>
    %c0_30 = arith.constant 0 : index
    %c256 = arith.constant 256 : index
    %19 = vector.load %arg10[%c0_30, %c256] : memref<256x1152xf32, #tpu.memory_space<vmem>>, vector<256x128xf32>
    tpu.vector_store %arg10[%c0_30, %c256], %18 {strides = array<i32>} : memref<256x1152xf32, #tpu.memory_space<vmem>>, vector<256x128xf32>,
    %c1_31 = arith.constant 1 : index
    %c0_32 = arith.constant 0 : index
    %c0_33 = arith.constant 0 : index
    %20 = vector.load %arg9[%c1_31, %c0_32, %c0_33] : memref<18x18x128xf32, #tpu.memory_space<vmem>>, vector<16x16x128xf32>
    %21 = vector.shape_cast %20 : vector<16x16x128xf32> to vector<256x128xf32>
    %c0_34 = arith.constant 0 : index
    %c384 = arith.constant 384 : index
    %22 = vector.load %arg10[%c0_34, %c384] : memref<256x1152xf32, #tpu.memory_space<vmem>>, vector<256x128xf32>
    tpu.vector_store %arg10[%c0_34, %c384], %21 {strides = array<i32>} : memref<256x1152xf32, #tpu.memory_space<vmem>>, vector<256x128xf32>,
    %c1_35 = arith.constant 1 : index
    %c1_36 = arith.constant 1 : index
    %c0_37 = arith.constant 0 : index
    %23 = vector.load %arg9[%c1_35, %c1_36, %c0_37] : memref<18x18x128xf32, #tpu.memory_space<vmem>>, vector<16x16x128xf32>
    %24 = vector.shape_cast %23 : vector<16x16x128xf32> to vector<256x128xf32>
    %c0_38 = arith.constant 0 : index
    %c512 = arith.constant 512 : index
    %25 = vector.load %arg10[%c0_38, %c512] : memref<256x1152xf32, #tpu.memory_space<vmem>>, vector<256x128xf32>
    tpu.vector_store %arg10[%c0_38, %c512], %24 {strides = array<i32>} : memref<256x1152xf32, #tpu.memory_space<vmem>>, vector<256x128xf32>,
    %c1_39 = arith.constant 1 : index
    %c2_40 = arith.constant 2 : index
    %c0_41 = arith.constant 0 : index
    %26 = vector.load %arg9[%c1_39, %c2_40, %c0_41] : memref<18x18x128xf32, #tpu.memory_space<vmem>>, vector<16x16x128xf32>
    %27 = vector.shape_cast %26 : vector<16x16x128xf32> to vector<256x128xf32>
    %c0_42 = arith.constant 0 : index
    %c640 = arith.constant 640 : index
    %28 = vector.load %arg10[%c0_42, %c640] : memref<256x1152xf32, #tpu.memory_space<vmem>>, vector<256x128xf32>
    tpu.vector_store %arg10[%c0_42, %c640], %27 {strides = array<i32>} : memref<256x1152xf32, #tpu.memory_space<vmem>>, vector<256x128xf32>,
    %c2_43 = arith.constant 2 : index
    %c0_44 = arith.constant 0 : index
    %c0_45 = arith.constant 0 : index
    %29 = vector.load %arg9[%c2_43, %c0_44, %c0_45] : memref<18x18x128xf32, #tpu.memory_space<vmem>>, vector<16x16x128xf32>
    %30 = vector.shape_cast %29 : vector<16x16x128xf32> to vector<256x128xf32>
    %c0_46 = arith.constant 0 : index
    %c768 = arith.constant 768 : index
    %31 = vector.load %arg10[%c0_46, %c768] : memref<256x1152xf32, #tpu.memory_space<vmem>>, vector<256x128xf32>
    tpu.vector_store %arg10[%c0_46, %c768], %30 {strides = array<i32>} : memref<256x1152xf32, #tpu.memory_space<vmem>>, vector<256x128xf32>,
    %c2_47 = arith.constant 2 : index
    %c1_48 = arith.constant 1 : index
    %c0_49 = arith.constant 0 : index
    %32 = vector.load %arg9[%c2_47, %c1_48, %c0_49] : memref<18x18x128xf32, #tpu.memory_space<vmem>>, vector<16x16x128xf32>
    %33 = vector.shape_cast %32 : vector<16x16x128xf32> to vector<256x128xf32>
    %c0_50 = arith.constant 0 : index
    %c896 = arith.constant 896 : index
    %34 = vector.load %arg10[%c0_50, %c896] : memref<256x1152xf32, #tpu.memory_space<vmem>>, vector<256x128xf32>
    tpu.vector_store %arg10[%c0_50, %c896], %33 {strides = array<i32>} : memref<256x1152xf32, #tpu.memory_space<vmem>>, vector<256x128xf32>,
    %c2_51 = arith.constant 2 : index
    %c2_52 = arith.constant 2 : index
    %c0_53 = arith.constant 0 : index
    %35 = vector.load %arg9[%c2_51, %c2_52, %c0_53] : memref<18x18x128xf32, #tpu.memory_space<vmem>>, vector<16x16x128xf32>
    %36 = vector.shape_cast %35 : vector<16x16x128xf32> to vector<256x128xf32>
    %c0_54 = arith.constant 0 : index
    %c1024 = arith.constant 1024 : index
    %37 = vector.load %arg10[%c0_54, %c1024] : memref<256x1152xf32, #tpu.memory_space<vmem>>, vector<256x128xf32>
    tpu.vector_store %arg10[%c0_54, %c1024], %36 {strides = array<i32>} : memref<256x1152xf32, #tpu.memory_space<vmem>>, vector<256x128xf32>,
    %c0_55 = arith.constant 0 : index
    %c0_56 = arith.constant 0 : index
    %38 = vector.load %arg10[%c0_55, %c0_56] : memref<256x1152xf32, #tpu.memory_space<vmem>>, vector<256x1152xf32>
    %c0_57 = arith.constant 0 : index
    %c0_58 = arith.constant 0 : index
    %39 = vector.load %arg2[%c0_57, %c0_58] : memref<1152x128xf32, #tpu.memory_space<vmem>>, vector<1152x128xf32>
    %cst_59 = arith.constant dense<0.000000e+00> : vector<256x128xf32>
    %40 = tpu.matmul %38, %39, %cst_59 {dimension_numbers = #tpu.dot_dimension_numbers<[1], [0], [0], [1], [0, 0, 1, 1], [], []>} : vector<256x1152xf32>, vector<1152x128xf32>, vector<256x128xf32> -> vector<256x128xf32>
    %c0_60 = arith.constant 0 : index
    %c0_61 = arith.constant 0 : index
    %41 = vector.load %arg3[%c0_60, %c0_61] : memref<1x128xf32, #tpu.memory_space<vmem>>, vector<1x128xf32>
    %42 = vector.broadcast %41 : vector<1x128xf32> to vector<256x128xf32>
    %43 = arith.mulf %40, %42 : vector<256x128xf32>
    %c0_62 = arith.constant 0 : index
    %c0_63 = arith.constant 0 : index
    %44 = vector.load %arg4[%c0_62, %c0_63] : memref<1x128xf32, #tpu.memory_space<vmem>>, vector<1x128xf32>
    %45 = vector.broadcast %44 : vector<1x128xf32> to vector<256x128xf32>
    %46 = arith.addf %43, %45 : vector<256x128xf32>
    %cst_64 = arith.constant 1.000000e-01 : f32
    %47 = vector.broadcast %cst_64 : f32 to vector<256x128xf32>
    %48 = arith.mulf %47, %46 : vector<256x128xf32>
    %49 = arith.maximumf %46, %48 : vector<256x128xf32>
    %50 = vector.shape_cast %49 : vector<256x128xf32> to vector<16x16x128xf32>
    %c1_65 = arith.constant 1 : index
    %c1_66 = arith.constant 1 : index
    %c0_67 = arith.constant 0 : index
    %51 = vector.load %arg9[%c1_65, %c1_66, %c0_67] : memref<18x18x128xf32, #tpu.memory_space<vmem>>, vector<16x16x128xf32>
    tpu.vector_store %arg9[%c1_65, %c1_66, %c0_67], %50 {strides = array<i32>} : memref<18x18x128xf32, #tpu.memory_space<vmem>>, vector<16x16x128xf32>,
    %c0_68 = arith.constant 0 : index
    %c0_69 = arith.constant 0 : index
    %c0_70 = arith.constant 0 : index
    %52 = vector.load %arg9[%c0_68, %c0_69, %c0_70] : memref<18x18x128xf32, #tpu.memory_space<vmem>>, vector<16x16x128xf32>
    %53 = vector.shape_cast %52 : vector<16x16x128xf32> to vector<256x128xf32>
    %c0_71 = arith.constant 0 : index
    %c0_72 = arith.constant 0 : index
    %54 = vector.load %arg10[%c0_71, %c0_72] : memref<256x1152xf32, #tpu.memory_space<vmem>>, vector<256x128xf32>
    tpu.vector_store %arg10[%c0_71, %c0_72], %53 {strides = array<i32>} : memref<256x1152xf32, #tpu.memory_space<vmem>>, vector<256x128xf32>,
    %c0_73 = arith.constant 0 : index
    %c1_74 = arith.constant 1 : index
    %c0_75 = arith.constant 0 : index
    %55 = vector.load %arg9[%c0_73, %c1_74, %c0_75] : memref<18x18x128xf32, #tpu.memory_space<vmem>>, vector<16x16x128xf32>
    %56 = vector.shape_cast %55 : vector<16x16x128xf32> to vector<256x128xf32>
    %c0_76 = arith.constant 0 : index
    %c128_77 = arith.constant 128 : index
    %57 = vector.load %arg10[%c0_76, %c128_77] : memref<256x1152xf32, #tpu.memory_space<vmem>>, vector<256x128xf32>
    tpu.vector_store %arg10[%c0_76, %c128_77], %56 {strides = array<i32>} : memref<256x1152xf32, #tpu.memory_space<vmem>>, vector<256x128xf32>,
    %c0_78 = arith.constant 0 : index
    %c2_79 = arith.constant 2 : index
    %c0_80 = arith.constant 0 : index
    %58 = vector.load %arg9[%c0_78, %c2_79, %c0_80] : memref<18x18x128xf32, #tpu.memory_space<vmem>>, vector<16x16x128xf32>
    %59 = vector.shape_cast %58 : vector<16x16x128xf32> to vector<256x128xf32>
    %c0_81 = arith.constant 0 : index
    %c256_82 = arith.constant 256 : index
    %60 = vector.load %arg10[%c0_81, %c256_82] : memref<256x1152xf32, #tpu.memory_space<vmem>>, vector<256x128xf32>
    tpu.vector_store %arg10[%c0_81, %c256_82], %59 {strides = array<i32>} : memref<256x1152xf32, #tpu.memory_space<vmem>>, vector<256x128xf32>,
    %c1_83 = arith.constant 1 : index
    %c0_84 = arith.constant 0 : index
    %c0_85 = arith.constant 0 : index
    %61 = vector.load %arg9[%c1_83, %c0_84, %c0_85] : memref<18x18x128xf32, #tpu.memory_space<vmem>>, vector<16x16x128xf32>
    %62 = vector.shape_cast %61 : vector<16x16x128xf32> to vector<256x128xf32>
    %c0_86 = arith.constant 0 : index
    %c384_87 = arith.constant 384 : index
    %63 = vector.load %arg10[%c0_86, %c384_87] : memref<256x1152xf32, #tpu.memory_space<vmem>>, vector<256x128xf32>
    tpu.vector_store %arg10[%c0_86, %c384_87], %62 {strides = array<i32>} : memref<256x1152xf32, #tpu.memory_space<vmem>>, vector<256x128xf32>,
    %c1_88 = arith.constant 1 : index
    %c1_89 = arith.constant 1 : index
    %c0_90 = arith.constant 0 : index
    %64 = vector.load %arg9[%c1_88, %c1_89, %c0_90] : memref<18x18x128xf32, #tpu.memory_space<vmem>>, vector<16x16x128xf32>
    %65 = vector.shape_cast %64 : vector<16x16x128xf32> to vector<256x128xf32>
    %c0_91 = arith.constant 0 : index
    %c512_92 = arith.constant 512 : index
    %66 = vector.load %arg10[%c0_91, %c512_92] : memref<256x1152xf32, #tpu.memory_space<vmem>>, vector<256x128xf32>
    tpu.vector_store %arg10[%c0_91, %c512_92], %65 {strides = array<i32>} : memref<256x1152xf32, #tpu.memory_space<vmem>>, vector<256x128xf32>,
    %c1_93 = arith.constant 1 : index
    %c2_94 = arith.constant 2 : index
    %c0_95 = arith.constant 0 : index
    %67 = vector.load %arg9[%c1_93, %c2_94, %c0_95] : memref<18x18x128xf32, #tpu.memory_space<vmem>>, vector<16x16x128xf32>
    %68 = vector.shape_cast %67 : vector<16x16x128xf32> to vector<256x128xf32>
    %c0_96 = arith.constant 0 : index
    %c640_97 = arith.constant 640 : index
    %69 = vector.load %arg10[%c0_96, %c640_97] : memref<256x1152xf32, #tpu.memory_space<vmem>>, vector<256x128xf32>
    tpu.vector_store %arg10[%c0_96, %c640_97], %68 {strides = array<i32>} : memref<256x1152xf32, #tpu.memory_space<vmem>>, vector<256x128xf32>,
    %c2_98 = arith.constant 2 : index
    %c0_99 = arith.constant 0 : index
    %c0_100 = arith.constant 0 : index
    %70 = vector.load %arg9[%c2_98, %c0_99, %c0_100] : memref<18x18x128xf32, #tpu.memory_space<vmem>>, vector<16x16x128xf32>
    %71 = vector.shape_cast %70 : vector<16x16x128xf32> to vector<256x128xf32>
    %c0_101 = arith.constant 0 : index
    %c768_102 = arith.constant 768 : index
    %72 = vector.load %arg10[%c0_101, %c768_102] : memref<256x1152xf32, #tpu.memory_space<vmem>>, vector<256x128xf32>
    tpu.vector_store %arg10[%c0_101, %c768_102], %71 {strides = array<i32>} : memref<256x1152xf32, #tpu.memory_space<vmem>>, vector<256x128xf32>,
    %c2_103 = arith.constant 2 : index
    %c1_104 = arith.constant 1 : index
    %c0_105 = arith.constant 0 : index
    %73 = vector.load %arg9[%c2_103, %c1_104, %c0_105] : memref<18x18x128xf32, #tpu.memory_space<vmem>>, vector<16x16x128xf32>
    %74 = vector.shape_cast %73 : vector<16x16x128xf32> to vector<256x128xf32>
    %c0_106 = arith.constant 0 : index
    %c896_107 = arith.constant 896 : index
    %75 = vector.load %arg10[%c0_106, %c896_107] : memref<256x1152xf32, #tpu.memory_space<vmem>>, vector<256x128xf32>
    tpu.vector_store %arg10[%c0_106, %c896_107], %74 {strides = array<i32>} : memref<256x1152xf32, #tpu.memory_space<vmem>>, vector<256x128xf32>,
    %c2_108 = arith.constant 2 : index
    %c2_109 = arith.constant 2 : index
    %c0_110 = arith.constant 0 : index
    %76 = vector.load %arg9[%c2_108, %c2_109, %c0_110] : memref<18x18x128xf32, #tpu.memory_space<vmem>>, vector<16x16x128xf32>
    %77 = vector.shape_cast %76 : vector<16x16x128xf32> to vector<256x128xf32>
    %c0_111 = arith.constant 0 : index
    %c1024_112 = arith.constant 1024 : index
    %78 = vector.load %arg10[%c0_111, %c1024_112] : memref<256x1152xf32, #tpu.memory_space<vmem>>, vector<256x128xf32>
    tpu.vector_store %arg10[%c0_111, %c1024_112], %77 {strides = array<i32>} : memref<256x1152xf32, #tpu.memory_space<vmem>>, vector<256x128xf32>,
    %c0_113 = arith.constant 0 : index
    %c0_114 = arith.constant 0 : index
    %79 = vector.load %arg10[%c0_113, %c0_114] : memref<256x1152xf32, #tpu.memory_space<vmem>>, vector<256x1152xf32>
    %c0_115 = arith.constant 0 : index
    %c0_116 = arith.constant 0 : index
    %80 = vector.load %arg5[%c0_115, %c0_116] : memref<1152x128xf32, #tpu.memory_space<vmem>>, vector<1152x128xf32>
    %cst_117 = arith.constant dense<0.000000e+00> : vector<256x128xf32>
    %81 = tpu.matmul %79, %80, %cst_117 {dimension_numbers = #tpu.dot_dimension_numbers<[1], [0], [0], [1], [0, 0, 1, 1], [], []>} : vector<256x1152xf32>, vector<1152x128xf32>, vector<256x128xf32> -> vector<256x128xf32>
    %c0_118 = arith.constant 0 : index
    %c0_119 = arith.constant 0 : index
    %82 = vector.load %arg6[%c0_118, %c0_119] : memref<1x128xf32, #tpu.memory_space<vmem>>, vector<1x128xf32>
    %83 = vector.broadcast %82 : vector<1x128xf32> to vector<256x128xf32>
    %84 = arith.mulf %81, %83 : vector<256x128xf32>
    %c0_120 = arith.constant 0 : index
    %c0_121 = arith.constant 0 : index
    %85 = vector.load %arg7[%c0_120, %c0_121] : memref<1x128xf32, #tpu.memory_space<vmem>>, vector<1x128xf32>
    %86 = vector.broadcast %85 : vector<1x128xf32> to vector<256x128xf32>
    %87 = arith.addf %84, %86 : vector<256x128xf32>
    %88 = vector.shape_cast %9 : vector<16x16x128xf32> to vector<256x128xf32>
    %89 = arith.addf %87, %88 : vector<256x128xf32>
    %cst_122 = arith.constant 1.000000e-01 : f32
    %90 = vector.broadcast %cst_122 : f32 to vector<256x128xf32>
    %91 = arith.mulf %90, %89 : vector<256x128xf32>
    %92 = arith.maximumf %89, %91 : vector<256x128xf32>
    %93 = vector.shape_cast %92 : vector<256x128xf32> to vector<1x16x16x128xf32>
    %c0_123 = arith.constant 0 : index
    %c0_124 = arith.constant 0 : index
    %c0_125 = arith.constant 0 : index
    %c0_126 = arith.constant 0 : index
    %94 = vector.load %arg8[%c0_123, %c0_124, %c0_125, %c0_126] : memref<1x16x16x128xf32, #tpu.memory_space<vmem>>, vector<1x16x16x128xf32>
    tpu.vector_store %arg8[%c0_123, %c0_124, %c0_125, %c0_126], %93 {strides = array<i32>} : memref<1x16x16x128xf32, #tpu.memory_space<vmem>>, vector<1x16x16x128xf32>,
    return
  }
  func.func @transform_0(%arg0: i32) -> (i32, i32, i32, i32) {
    %c0_i32 = arith.constant 0 : i32
    %c0_i32_0 = arith.constant 0 : i32
    %c0_i32_1 = arith.constant 0 : i32
    %c0_i32_2 = arith.constant 0 : i32
    return %arg0, %c0_i32, %c0_i32_0, %c0_i32_1 : i32, i32, i32, i32
  }
  func.func @transform_1(%arg0: i32) -> (i32, i32) {
    %c0_i32 = arith.constant 0 : i32
    %c0_i32_0 = arith.constant 0 : i32
    %c0_i32_1 = arith.constant 0 : i32
    return %c0_i32, %c0_i32_0 : i32, i32
  }
  func.func @transform_2(%arg0: i32) -> (i32, i32) {
    %c0_i32 = arith.constant 0 : i32
    %c0_i32_0 = arith.constant 0 : i32
    %c0_i32_1 = arith.constant 0 : i32
    return %c0_i32, %c0_i32_0 : i32, i32
  }
  func.func @transform_3(%arg0: i32) -> (i32, i32) {
    %c0_i32 = arith.constant 0 : i32
    %c0_i32_0 = arith.constant 0 : i32
    %c0_i32_1 = arith.constant 0 : i32
    return %c0_i32, %c0_i32_0 : i32, i32
  }
  func.func @transform_4(%arg0: i32) -> (i32, i32) {
    %c0_i32 = arith.constant 0 : i32
    %c0_i32_0 = arith.constant 0 : i32
    %c0_i32_1 = arith.constant 0 : i32
    return %c0_i32, %c0_i32_0 : i32, i32
  }
  func.func @transform_5(%arg0: i32) -> (i32, i32) {
    %c0_i32 = arith.constant 0 : i32
    %c0_i32_0 = arith.constant 0 : i32
    %c0_i32_1 = arith.constant 0 : i32
    return %c0_i32, %c0_i32_0 : i32, i32
  }
  func.func @transform_6(%arg0: i32) -> (i32, i32) {
    %c0_i32 = arith.constant 0 : i32
    %c0_i32_0 = arith.constant 0 : i32
    %c0_i32_1 = arith.constant 0 : i32
    return %c0_i32, %c0_i32_0 : i32, i32
  }
  func.func @transform_7(%arg0: i32) -> (i32, i32, i32, i32) {
    %c0_i32 = arith.constant 0 : i32
    %c0_i32_0 = arith.constant 0 : i32
    %c0_i32_1 = arith.constant 0 : i32
    %c0_i32_2 = arith.constant 0 : i32
    return %arg0, %c0_i32, %c0_i32_0, %c0_i32_1 : i32, i32, i32, i32
  }
}

</mosaic_0001>

<llo_original>
// kernel: basic_block_forward.1
$region0: #{basic_block_forward.1}
  #allocation0 [shape = 'u32[]', space=smem, size = 0x4, offset = 0x4, fixed_abs, tag = 'smem constant byte address 0x4 - core index']
  #allocation1 [shape = 'u32[144,128]{1,0:T(1,128)}', space=vmem, size = 0x12000, scoped, tag = 'internal scratch']
  #allocation2 [shape = 'f32[18,18,128]{2,1,0:T(8,128)}', space=vmem, size = 0x36000, scoped, tag = 'scratch operand']
  #allocation3 [shape = 'f32[256,1152]{1,0:T(8,128)}', space=vmem, size = 0x120000, scoped, tag = 'scratch operand']
  %s0 = inlined_call_operand.vmem [shape: f32[2,16,16,128], index: 0, kind: input, shape index: {}]
  %s1 = inlined_call_operand.vmem [shape: f32[1152,128], index: 1, kind: input, shape index: {}]
  %s2 = inlined_call_operand.vmem [shape: f32[1,128], index: 2, kind: input, shape index: {}]
  %s3 = inlined_call_operand.vmem [shape: f32[1,128], index: 3, kind: input, shape index: {}]
  %s4 = inlined_call_operand.hbm [shape: f32[1152,128], index: 4, kind: input, shape index: {}]
  %s5 = inlined_call_operand.vmem [shape: f32[1,128], index: 5, kind: input, shape index: {}]
  %s6 = inlined_call_operand.vmem [shape: f32[1,128], index: 6, kind: input, shape index: {}]
  %s7 = inlined_call_operand.vmem [shape: f32[2,16,16,128], index: 7, kind: output, shape index: {}]
  %s8 = sld [smem:[#allocation0]]
  $region65: #{basic_block_forward.1} parent=0
    _
  %s10 = ssub.s32 1, %s8
  %s11 = scalar_select 0, %s10, %s8
  $region1: #{basic_block_forward.1} parent=0
    #allocation4 [shape = 'u8[589824]{0}', space=vmem, size = 0x90000, scoped, tag = 'input window, operand 4, single buffered']
    #allocation5 [shape = 's32[2]{0}', space=sflag, size = 0x8, scoped, tag = 'scoped memory for basic_block_forward.1']
    %12 = vsyncpa [#allocation5], 0
    loop: start=0, step=1, limit=4
    $region2: #{basic_block_forward.1} parent=1 // loop_pre_header
      _
    $region3: #{basic_block_forward.1} parent=1 // loop_header
      %s14 = sphi 0, %s18
      %p15 = scmp.ge.s32.totalorder %s14, 4
      %s24 = sphi 0, %s26
      %s27 = sphi 0, %s24
      %s28 = sphi 0, %s27
      %s44 = sphi 0, %s28
      %s48 = sphi 0, %s48
      %s50 = sphi 0, %s48
      %s51 = sphi 0, %s50
      %s65 = sphi 0, %s51
      %s69 = sphi 0, %s69
      %s71 = sphi 0, %s69
      %s72 = sphi 0, %s71
      %s86 = sphi 0, %s72
      %s90 = sphi 0, %s90
      %s92 = sphi 0, %s90
      %s93 = sphi 0, %s92
      %s107 = sphi 0, %s93
      %s111 = sphi 0, %s111
      %s113 = sphi 0, %s111
      %s114 = sphi 0, %s113
      %s128 = sphi 0, %s114
      %s132 = sphi 0, %s132
      %s134 = sphi 0, %s132
      %s135 = sphi 0, %s134
      %s149 = sphi 0, %s135
      %s153 = sphi 0, %s153
      %s155 = sphi 0, %s153
      %s156 = sphi 0, %s155
      %s170 = sphi 0, %s156
      %s176 = sphi 0, %s178
      %s179 = sphi 0, %s176
      %s180 = sphi 0, %s179
      %s196 = sphi 0, %s180
    $region4: #{basic_block_forward.1} parent=1 // loop_header_branch
      %17 = sbr.rel (%p15) target = $region8
    $region5: #{basic_block_forward.1} parent=1 // loop_body
      %s19 = ssub.s32 %s14, 1
      %s20 = ssub.s32 %s14, 2
      %s21 = sadd.s32 %s14, 1
      %s22 = ssub.s32 %s14, %s21
      %p23 = scmp.eq.s32.totalorder %s22, 0
      %s25 = sadd.s32 %s24, 1
      %s26 = scalar_select %p23, %s24, %s25
      %p29 = pneg %p23
      %p30 = scmp.eq.s32.totalorder %s14, 1
      %p31 = por %p29, %p30
      %p32 = scmp.ne.s32.totalorder %s24, %s27
      %p33 = scmp.eq.s32.totalorder %s14, 0
      %p34 = por %p32, %p33
      %p35 = scmp.ne.s32.totalorder %s24, %s27
      %p36 = scmp.eq.s32.totalorder %s19, 1
      %p37 = por %p35, %p36
      %p38 = scmp.ne.s32.totalorder %s27, %s28
      %p39 = scmp.eq.s32.totalorder %s19, 0
      %p40 = por %p38, %p39
      %p41 = scmp.ne.s32.totalorder %s27, %s28
      %p42 = scmp.eq.s32.totalorder %s20, 1
      %p43 = por %p41, %p42
      %p45 = scmp.ne.s32.totalorder %s28, %s44
      %p46 = scmp.eq.s32.totalorder %s20, 0
      %p47 = por %p45, %p46
      %s49 = sadd.s32 %s48, 1
      %p52 = scmp.eq.s32.totalorder %s14, 1
      %p53 = scmp.ne.s32.totalorder %s48, %s50
      %p54 = scmp.eq.s32.totalorder %s14, 0
      %p55 = por %p53, %p54
      %p56 = scmp.ne.s32.totalorder %s48, %s50
      %p57 = scmp.eq.s32.totalorder %s19, 1
      %p58 = por %p56, %p57
      %p59 = scmp.ne.s32.totalorder %s50, %s51
      %p60 = scmp.eq.s32.totalorder %s19, 0
      %p61 = por %p59, %p60
      %p62 = scmp.ne.s32.totalorder %s50, %s51
      %p63 = scmp.eq.s32.totalorder %s20, 1
      %p64 = por %p62, %p63
      %p66 = scmp.ne.s32.totalorder %s51, %s65
      %p67 = scmp.eq.s32.totalorder %s20, 0
      %p68 = por %p66, %p67
      %s70 = sadd.s32 %s69, 1
      %p73 = scmp.eq.s32.totalorder %s14, 1
      %p74 = scmp.ne.s32.totalorder %s69, %s71
      %p75 = scmp.eq.s32.totalorder %s14, 0
      %p76 = por %p74, %p75
      %p77 = scmp.ne.s32.totalorder %s69, %s71
      %p78 = scmp.eq.s32.totalorder %s19, 1
      %p79 = por %p77, %p78
      %p80 = scmp.ne.s32.totalorder %s71, %s72
      %p81 = scmp.eq.s32.totalorder %s19, 0
      %p82 = por %p80, %p81
      %p83 = scmp.ne.s32.totalorder %s71, %s72
      %p84 = scmp.eq.s32.totalorder %s20, 1
      %p85 = por %p83, %p84
      %p87 = scmp.ne.s32.totalorder %s72, %s86
      %p88 = scmp.eq.s32.totalorder %s20, 0
      %p89 = por %p87, %p88
      %s91 = sadd.s32 %s90, 1
      %p94 = scmp.eq.s32.totalorder %s14, 1
      %p95 = scmp.ne.s32.totalorder %s90, %s92
      %p96 = scmp.eq.s32.totalorder %s14, 0
      %p97 = por %p95, %p96
      %p98 = scmp.ne.s32.totalorder %s90, %s92
      %p99 = scmp.eq.s32.totalorder %s19, 1
      %p100 = por %p98, %p99
      %p101 = scmp.ne.s32.totalorder %s92, %s93
      %p102 = scmp.eq.s32.totalorder %s19, 0
      %p103 = por %p101, %p102
      %p104 = scmp.ne.s32.totalorder %s92, %s93
      %p105 = scmp.eq.s32.totalorder %s20, 1
      %p106 = por %p104, %p105
      %p108 = scmp.ne.s32.totalorder %s93, %s107
      %p109 = scmp.eq.s32.totalorder %s20, 0
      %p110 = por %p108, %p109
      %s112 = sadd.s32 %s111, 1
      %p115 = scmp.eq.s32.totalorder %s14, 1
      %p116 = scmp.ne.s32.totalorder %s111, %s113
      %p117 = scmp.eq.s32.totalorder %s14, 0
      %p118 = por %p116, %p117
      %p119 = scmp.ne.s32.totalorder %s111, %s113
      %p120 = scmp.eq.s32.totalorder %s19, 1
      %p121 = por %p119, %p120
      %p122 = scmp.ne.s32.totalorder %s113, %s114
      %p123 = scmp.eq.s32.totalorder %s19, 0
      %p124 = por %p122, %p123
      %p125 = scmp.ne.s32.totalorder %s113, %s114
      %p126 = scmp.eq.s32.totalorder %s20, 1
      %p127 = por %p125, %p126
      %p129 = scmp.ne.s32.totalorder %s114, %s128
      %p130 = scmp.eq.s32.totalorder %s20, 0
      %p131 = por %p129, %p130
      %s133 = sadd.s32 %s132, 1
      %p136 = scmp.eq.s32.totalorder %s14, 1
      %p137 = scmp.ne.s32.totalorder %s132, %s134
      %p138 = scmp.eq.s32.totalorder %s14, 0
      %p139 = por %p137, %p138
      %p140 = scmp.ne.s32.totalorder %s132, %s134
      %p141 = scmp.eq.s32.totalorder %s19, 1
      %p142 = por %p140, %p141
      %p143 = scmp.ne.s32.totalorder %s134, %s135
      %p144 = scmp.eq.s32.totalorder %s19, 0
      %p145 = por %p143, %p144
      %p146 = scmp.ne.s32.totalorder %s134, %s135
      %p147 = scmp.eq.s32.totalorder %s20, 1
      %p148 = por %p146, %p147
      %p150 = scmp.ne.s32.totalorder %s135, %s149
      %p151 = scmp.eq.s32.totalorder %s20, 0
      %p152 = por %p150, %p151
      %s154 = sadd.s32 %s153, 1
      %p157 = scmp.eq.s32.totalorder %s14, 1
      %p158 = scmp.ne.s32.totalorder %s153, %s155
      %p159 = scmp.eq.s32.totalorder %s14, 0
      %p160 = por %p158, %p159
      %p161 = scmp.ne.s32.totalorder %s153, %s155
      %p162 = scmp.eq.s32.totalorder %s19, 1
      %p163 = por %p161, %p162
      %p164 = scmp.ne.s32.totalorder %s155, %s156
      %p165 = scmp.eq.s32.totalorder %s19, 0
      %p166 = por %p164, %p165
      %p167 = scmp.ne.s32.totalorder %s155, %s156
      %p168 = scmp.eq.s32.totalorder %s20, 1
      %p169 = por %p167, %p168
      %p171 = scmp.ne.s32.totalorder %s156, %s170
      %p172 = scmp.eq.s32.totalorder %s20, 0
      %p173 = por %p171, %p172
      %s174 = ssub.s32 %s14, %s21
      %p175 = scmp.eq.s32.totalorder %s174, 0
      %s177 = sadd.s32 %s176, 1
      %s178 = scalar_select %p175, %s176, %s177
      %p181 = pneg %p175
      %p182 = scmp.eq.s32.totalorder %s14, 1
      %p183 = por %p181, %p182
      %p184 = scmp.ne.s32.totalorder %s176, %s179
      %p185 = scmp.eq.s32.totalorder %s14, 0
      %p186 = por %p184, %p185
      %p187 = scmp.ne.s32.totalorder %s176, %s179
      %p188 = scmp.eq.s32.totalorder %s19, 1
      %p189 = por %p187, %p188
      %p190 = scmp.ne.s32.totalorder %s179, %s180
      %p191 = scmp.eq.s32.totalorder %s19, 0
      %p192 = por %p190, %p191
      %p193 = scmp.ne.s32.totalorder %s179, %s180
      %p194 = scmp.eq.s32.totalorder %s20, 1
      %p195 = por %p193, %p194
      %p197 = scmp.ne.s32.totalorder %s180, %s196
      %p198 = scmp.eq.s32.totalorder %s20, 0
      %p199 = por %p197, %p198
      %p200 = scmp.le.s32.totalorder 1, %s14
      %p201 = scmp.lt.s32.totalorder %s14, 3
      %p202 = pnand %p200, %p201
      %p203 = pneg %p202
      // Predicated region
      $region9: #{basic_block_forward.1} parent=5 // pred_check
        _
      $region10: #{basic_block_forward.1} parent=5 // pred_check_branch
        %205 = sbr.rel (%p202) target = $region12
      $region11: #{basic_block_forward.1} parent=5 // pred_region
        %s206 = ssub.s32 %s14, 1
        // Predicated region
        $region13: #{basic_block_forward.1} parent=11 // pred_check
          %p207 = pneg %p61
        $region14: #{basic_block_forward.1} parent=11 // pred_check_branch
          %209 = sbr.rel (%p207) target = $region16
        $region15: #{basic_block_forward.1} parent=11 // pred_region
          _
        $region16: #{basic_block_forward.1} parent=11 // pred_fallthru
          _
        // Predicated region
        $region17: #{basic_block_forward.1} parent=11 // pred_check
          %p210 = pneg %p82
        $region18: #{basic_block_forward.1} parent=11 // pred_check_branch
          %212 = sbr.rel (%p210) target = $region20
        $region19: #{basic_block_forward.1} parent=11 // pred_region
          _
        $region20: #{basic_block_forward.1} parent=11 // pred_fallthru
          _
        // Predicated region
        $region21: #{basic_block_forward.1} parent=11 // pred_check
          %p213 = pneg %p103
        $region22: #{basic_block_forward.1} parent=11 // pred_check_branch
          %215 = sbr.rel (%p213) target = $region24
        $region23: #{basic_block_forward.1} parent=11 // pred_region
          _
        $region24: #{basic_block_forward.1} parent=11 // pred_fallthru
          _
        // Predicated region
        $region25: #{basic_block_forward.1} parent=11 // pred_check
          %p216 = pneg %p124
        $region26: #{basic_block_forward.1} parent=11 // pred_check_branch
          %218 = sbr.rel (%p216) target = $region28
        $region27: #{basic_block_forward.1} parent=11 // pred_region
          %s220 = ssub.s32 18432, 18432
          %221 = vsyncadd [#allocation5], %s220
          %s222 = sshll.u32 [#allocation4], 4
          %s223 = int_to_ptr.vmem [resolvable:$true] %s222
          %228 = dma.hbm_to_vmem [thread:$0]  %s4, 18432, %s223, [#allocation5], 128, 128, 8
        $region28: #{basic_block_forward.1} parent=11 // pred_fallthru
          _
        // Predicated region
        $region29: #{basic_block_forward.1} parent=11 // pred_check
          %p229 = pneg %p145
        $region30: #{basic_block_forward.1} parent=11 // pred_check_branch
          %231 = sbr.rel (%p229) target = $region32
        $region31: #{basic_block_forward.1} parent=11 // pred_region
          _
        $region32: #{basic_block_forward.1} parent=11 // pred_fallthru
          _
        // Predicated region
        $region33: #{basic_block_forward.1} parent=11 // pred_check
          %p232 = pneg %p166
        $region34: #{basic_block_forward.1} parent=11 // pred_check_branch
          %234 = sbr.rel (%p232) target = $region36
        $region35: #{basic_block_forward.1} parent=11 // pred_region
          _
        $region36: #{basic_block_forward.1} parent=11 // pred_fallthru
          _
      $region12: #{basic_block_forward.1} parent=5 // pred_fallthru
        _
      %p235 = scmp.lt.s32.totalorder %s14, 2
      // Predicated region
      $region37: #{basic_block_forward.1} parent=5 // pred_check
        %p236 = pneg %p235
      $region38: #{basic_block_forward.1} parent=5 // pred_check_branch
        %238 = sbr.rel (%p236) target = $region40
      $region39: #{basic_block_forward.1} parent=5 // pred_region
        // Predicated region
        $region41: #{basic_block_forward.1} parent=39 // pred_check
          %p239 = pneg %p34
        $region42: #{basic_block_forward.1} parent=39 // pred_check_branch
          %241 = sbr.rel (%p239) target = $region44
        $region43: #{basic_block_forward.1} parent=39 // pred_region
          %p242 = scmp.lt.s32.totalorder %s14, 1
          %s243 = scalar_select %p242, %s14, 1
          %s244 = smul.addr %s243, 32
          %s245 = smul.addr %s244, 8
          %s246 = scalar_lea.vmem %s0, %s245
        $region44: #{basic_block_forward.1} parent=39 // pred_fallthru
          _
      $region40: #{basic_block_forward.1} parent=5 // pred_fallthru
        _
      %p247 = scmp.le.s32.totalorder 1, %s14
      %p248 = scmp.lt.s32.totalorder %s14, 3
      %p249 = pnand %p247, %p248
      %p250 = pneg %p249
      // Predicated region
      $region45: #{basic_block_forward.1} parent=5 // pred_check
        _
      $region46: #{basic_block_forward.1} parent=5 // pred_check_branch
        %252 = sbr.rel (%p249) target = $region48
      $region47: #{basic_block_forward.1} parent=5 // pred_region
        %s253 = ssub.s32 %s14, 1
        // Predicated region
        $region49: #{basic_block_forward.1} parent=47 // pred_check
          %p254 = pneg %p124
        $region50: #{basic_block_forward.1} parent=47 // pred_check_branch
          %256 = sbr.rel (%p254) target = $region52
        $region51: #{basic_block_forward.1} parent=47 // pred_region
          %257 = dma.done [#allocation5], 18432
        $region52: #{basic_block_forward.1} parent=47 // pred_fallthru
          _
        %p258 = scmp.lt.s32.totalorder %s19, 1
        %s259 = scalar_select %p258, %s19, 1
        %s260 = smul.addr %s259, 32
        %s261 = smul.addr %s260, 8
        %s262 = scalar_lea.vmem %s0, %s261
        %p263 = pneg %p40
        %p264 = pneg %p37
        %p265 = pneg %p61
        %p266 = pneg %p58
        %p267 = pneg %p82
        %p268 = pneg %p79
        %p269 = pneg %p103
        %p270 = pneg %p100
        %p271 = pneg %p124
        %p272 = pneg %p121
        %p273 = pneg %p145
        %p274 = pneg %p142
        %p275 = pneg %p166
        %p276 = pneg %p163
        %p277 = pneg %p192
        %p278 = pneg %p189
        %p279 = scmp.lt.s32.totalorder %s19, 1
        %s280 = scalar_select %p279, %s19, 1
        %s281 = smul.addr %s280, 32
        %s282 = smul.addr %s281, 8
        %s283 = scalar_lea.vmem %s7, %s282
        %p284 = scmp.lt.s32.totalorder %s19, 1
        %s285 = scalar_select %p284, %s19, 1
        %s286 = smul.addr %s285, 32
        %s287 = smul.addr %s286, 8
        %s288 = scalar_lea.vmem %s0, %s287
        %p289 = scmp.lt.s32.totalorder %s19, 1
        %s290 = scalar_select %p289, %s19, 1
        %s291 = smul.addr %s290, 32
        %s292 = smul.addr %s291, 8
        %s293 = scalar_lea.vmem %s7, %s292
        %294 = vst [vmem:[#allocation2] sm:$0xff] 0.0
        %295 = vst [vmem:[#allocation2 + $0x8] sm:$0xff] 0.0
        %296 = vst [vmem:[#allocation2 + $0x10] sm:$0x3] 0.0
        %s297 = scalar_lea.vmem [#allocation2], 408
        %298 = vst [vmem:[%s297] sm:$0xff] 0.0
        %299 = vst [vmem:[%s297 + $0x8] sm:$0xff] 0.0
        %300 = vst [vmem:[%s297 + $0x10] sm:$0x3] 0.0
        %s301 = scalar_lea.vmem [#allocation2], 24
        %302 = vst [vmem:[%s301] sm:$0x1] 0.0
        %303 = vst [vmem:[%s301 + $0x18] sm:$0x1] 0.0
        %304 = vst [vmem:[%s301 + $0x30] sm:$0x1] 0.0
        %305 = vst [vmem:[%s301 + $0x48] sm:$0x1] 0.0
        %306 = vst [vmem:[%s301 + $0x60] sm:$0x1] 0.0
        %307 = vst [vmem:[%s301 + $0x78] sm:$0x1] 0.0
        %308 = vst [vmem:[%s301 + $0x90] sm:$0x1] 0.0
        %309 = vst [vmem:[%s301 + $0xa8] sm:$0x1] 0.0
        %310 = vst [vmem:[%s301 + $0xc0] sm:$0x1] 0.0
        %311 = vst [vmem:[%s301 + $0xd8] sm:$0x1] 0.0
        %312 = vst [vmem:[%s301 + $0xf0] sm:$0x1] 0.0
        %313 = vst [vmem:[%s301 + $0x108] sm:$0x1] 0.0
        %314 = vst [vmem:[%s301 + $0x120] sm:$0x1] 0.0
        %315 = vst [vmem:[%s301 + $0x138] sm:$0x1] 0.0
        %316 = vst [vmem:[%s301 + $0x150] sm:$0x1] 0.0
        %317 = vst [vmem:[%s301 + $0x168] sm:$0x1] 0.0
        %318 = vst [vmem:[%s301 + $0x11] sm:$0x1] 0.0
        %319 = vst [vmem:[%s301 + $0x29] sm:$0x1] 0.0
        %320 = vst [vmem:[%s301 + $0x41] sm:$0x1] 0.0
        %321 = vst [vmem:[%s301 + $0x59] sm:$0x1] 0.0
        %322 = vst [vmem:[%s301 + $0x71] sm:$0x1] 0.0
        %323 = vst [vmem:[%s301 + $0x89] sm:$0x1] 0.0
        %324 = vst [vmem:[%s301 + $0xa1] sm:$0x1] 0.0
        %325 = vst [vmem:[%s301 + $0xb9] sm:$0x1] 0.0
        %326 = vst [vmem:[%s301 + $0xd1] sm:$0x1] 0.0
        %327 = vst [vmem:[%s301 + $0xe9] sm:$0x1] 0.0
        %328 = vst [vmem:[%s301 + $0x101] sm:$0x1] 0.0
        %329 = vst [vmem:[%s301 + $0x119] sm:$0x1] 0.0
        %330 = vst [vmem:[%s301 + $0x131] sm:$0x1] 0.0
        %331 = vst [vmem:[%s301 + $0x149] sm:$0x1] 0.0
        %332 = vst [vmem:[%s301 + $0x161] sm:$0x1] 0.0
        %333 = vst [vmem:[%s301 + $0x179] sm:$0x1] 0.0
        %v334 = vld [vmem:[%s288] sm:$0xff]
        %v335 = vld [vmem:[%s288 + $0x8] sm:$0xff]
        %v336 = vld [vmem:[%s288 + $0x10] sm:$0xff]
        %v337 = vld [vmem:[%s288 + $0x18] sm:$0xff]
        %v338 = vld [vmem:[%s288 + $0x20] sm:$0xff]
        %v339 = vld [vmem:[%s288 + $0x28] sm:$0xff]
        %v340 = vld [vmem:[%s288 + $0x30] sm:$0xff]
        %v341 = vld [vmem:[%s288 + $0x38] sm:$0xff]
        %v342 = vld [vmem:[%s288 + $0x40] sm:$0xff]
        %v343 = vld [vmem:[%s288 + $0x48] sm:$0xff]
        %v344 = vld [vmem:[%s288 + $0x50] sm:$0xff]
        %v345 = vld [vmem:[%s288 + $0x58] sm:$0xff]
        %v346 = vld [vmem:[%s288 + $0x60] sm:$0xff]
        %v347 = vld [vmem:[%s288 + $0x68] sm:$0xff]
        %v348 = vld [vmem:[%s288 + $0x70] sm:$0xff]
        %v349 = vld [vmem:[%s288 + $0x78] sm:$0xff]
        %v350 = vld [vmem:[%s288 + $0x80] sm:$0xff]
        %v351 = vld [vmem:[%s288 + $0x88] sm:$0xff]
        %v352 = vld [vmem:[%s288 + $0x90] sm:$0xff]
        %v353 = vld [vmem:[%s288 + $0x98] sm:$0xff]
        %v354 = vld [vmem:[%s288 + $0xa0] sm:$0xff]
        %v355 = vld [vmem:[%s288 + $0xa8] sm:$0xff]
        %v356 = vld [vmem:[%s288 + $0xb0] sm:$0xff]
        %v357 = vld [vmem:[%s288 + $0xb8] sm:$0xff]
        %v358 = vld [vmem:[%s288 + $0xc0] sm:$0xff]
        %v359 = vld [vmem:[%s288 + $0xc8] sm:$0xff]
        %v360 = vld [vmem:[%s288 + $0xd0] sm:$0xff]
        %v361 = vld [vmem:[%s288 + $0xd8] sm:$0xff]
        %v362 = vld [vmem:[%s288 + $0xe0] sm:$0xff]
        %v363 = vld [vmem:[%s288 + $0xe8] sm:$0xff]
        %v364 = vld [vmem:[%s288 + $0xf0] sm:$0xff]
        %v365 = vld [vmem:[%s288 + $0xf8] sm:$0xff]
        %366 = vst [vmem:[%s301 + $0x1] sm:$0xff] %v334
        %367 = vst [vmem:[%s301 + $0x9] sm:$0xff] %v335
        %368 = vst [vmem:[%s301 + $0x19] sm:$0xff] %v336
        %369 = vst [vmem:[%s301 + $0x21] sm:$0xff] %v337
        %370 = vst [vmem:[%s301 + $0x31] sm:$0xff] %v338
        %371 = vst [vmem:[%s301 + $0x39] sm:$0xff] %v339
        %372 = vst [vmem:[%s301 + $0x49] sm:$0xff] %v340
        %373 = vst [vmem:[%s301 + $0x51] sm:$0xff] %v341
        %374 = vst [vmem:[%s301 + $0x61] sm:$0xff] %v342
        %375 = vst [vmem:[%s301 + $0x69] sm:$0xff] %v343
        %376 = vst [vmem:[%s301 + $0x79] sm:$0xff] %v344
        %377 = vst [vmem:[%s301 + $0x81] sm:$0xff] %v345
        %378 = vst [vmem:[%s301 + $0x91] sm:$0xff] %v346
        %379 = vst [vmem:[%s301 + $0x99] sm:$0xff] %v347
        %380 = vst [vmem:[%s301 + $0xa9] sm:$0xff] %v348
        %381 = vst [vmem:[%s301 + $0xb1] sm:$0xff] %v349
        %382 = vst [vmem:[%s301 + $0xc1] sm:$0xff] %v350
        %383 = vst [vmem:[%s301 + $0xc9] sm:$0xff] %v351
        %384 = vst [vmem:[%s301 + $0xd9] sm:$0xff] %v352
        %385 = vst [vmem:[%s301 + $0xe1] sm:$0xff] %v353
        %386 = vst [vmem:[%s301 + $0xf1] sm:$0xff] %v354
        %387 = vst [vmem:[%s301 + $0xf9] sm:$0xff] %v355
        %388 = vst [vmem:[%s301 + $0x109] sm:$0xff] %v356
        %389 = vst [vmem:[%s301 + $0x111] sm:$0xff] %v357
        %390 = vst [vmem:[%s301 + $0x121] sm:$0xff] %v358
        %391 = vst [vmem:[%s301 + $0x129] sm:$0xff] %v359
        %392 = vst [vmem:[%s301 + $0x139] sm:$0xff] %v360
        %393 = vst [vmem:[%s301 + $0x141] sm:$0xff] %v361
        %394 = vst [vmem:[%s301 + $0x151] sm:$0xff] %v362
        %395 = vst [vmem:[%s301 + $0x159] sm:$0xff] %v363
        %396 = vst [vmem:[%s301 + $0x169] sm:$0xff] %v364
        %397 = vst [vmem:[%s301 + $0x171] sm:$0xff] %v365
        %v398 = vld [vmem:[#allocation2] sm:$0xff]
        %v399 = vld [vmem:[#allocation2 + $0x8] sm:$0xff]
        %v400 = vld [vmem:[#allocation2 + $0x18] sm:$0xff]
        %v401 = vld [vmem:[#allocation2 + $0x20] sm:$0xff]
        %v402 = vld [vmem:[#allocation2 + $0x30] sm:$0xff]
        %v403 = vld [vmem:[#allocation2 + $0x38] sm:$0xff]
        %v404 = vld [vmem:[#allocation2 + $0x48] sm:$0xff]
        %v405 = vld [vmem:[#allocation2 + $0x50] sm:$0xff]
        %v406 = vld [vmem:[#allocation2 + $0x60] sm:$0xff]
        %v407 = vld [vmem:[#allocation2 + $0x68] sm:$0xff]
        %v408 = vld [vmem:[#allocation2 + $0x78] sm:$0xff]
        %v409 = vld [vmem:[#allocation2 + $0x80] sm:$0xff]
        %v410 = vld [vmem:[#allocation2 + $0x90] sm:$0xff]
        %v411 = vld [vmem:[#allocation2 + $0x98] sm:$0xff]
        %v412 = vld [vmem:[#allocation2 + $0xa8] sm:$0xff]
        %v413 = vld [vmem:[#allocation2 + $0xb0] sm:$0xff]
        %v414 = vld [vmem:[#allocation2 + $0xc0] sm:$0xff]
        %v415 = vld [vmem:[#allocation2 + $0xc8] sm:$0xff]
        %v416 = vld [vmem:[#allocation2 + $0xd8] sm:$0xff]
        %v417 = vld [vmem:[#allocation2 + $0xe0] sm:$0xff]
        %v418 = vld [vmem:[#allocation2 + $0xf0] sm:$0xff]
        %v419 = vld [vmem:[#allocation2 + $0xf8] sm:$0xff]
        %v420 = vld [vmem:[#allocation2 + $0x108] sm:$0xff]
        %v421 = vld [vmem:[#allocation2 + $0x110] sm:$0xff]
        %v422 = vld [vmem:[#allocation2 + $0x120] sm:$0xff]
        %v423 = vld [vmem:[#allocation2 + $0x128] sm:$0xff]
        %v424 = vld [vmem:[#allocation2 + $0x138] sm:$0xff]
        %v425 = vld [vmem:[#allocation2 + $0x140] sm:$0xff]
        %v426 = vld [vmem:[#allocation2 + $0x150] sm:$0xff]
        %v427 = vld [vmem:[#allocation2 + $0x158] sm:$0xff]
        %v428 = vld [vmem:[#allocation2 + $0x168] sm:$0xff]
        %v429 = vld [vmem:[#allocation2 + $0x170] sm:$0xff]
        %430 = vst [vmem:[#allocation3] sm:$0xff] %v398
        %431 = vst [vmem:[#allocation3 + $0x48] sm:$0xff] %v399
        %432 = vst [vmem:[#allocation3 + $0x90] sm:$0xff] %v400
        %433 = vst [vmem:[#allocation3 + $0xd8] sm:$0xff] %v401
        %434 = vst [vmem:[#allocation3 + $0x120] sm:$0xff] %v402
        %435 = vst [vmem:[#allocation3 + $0x168] sm:$0xff] %v403
        %436 = vst [vmem:[#allocation3 + $0x1b0] sm:$0xff] %v404
        %437 = vst [vmem:[#allocation3 + $0x1f8] sm:$0xff] %v405
        %438 = vst [vmem:[#allocation3 + $0x240] sm:$0xff] %v406
        %439 = vst [vmem:[#allocation3 + $0x288] sm:$0xff] %v407
        %440 = vst [vmem:[#allocation3 + $0x2d0] sm:$0xff] %v408
        %441 = vst [vmem:[#allocation3 + $0x318] sm:$0xff] %v409
        %442 = vst [vmem:[#allocation3 + $0x360] sm:$0xff] %v410
        %443 = vst [vmem:[#allocation3 + $0x3a8] sm:$0xff] %v411
        %444 = vst [vmem:[#allocation3 + $0x3f0] sm:$0xff] %v412
        %445 = vst [vmem:[#allocation3 + $0x438] sm:$0xff] %v413
        %446 = vst [vmem:[#allocation3 + $0x480] sm:$0xff] %v414
        %447 = vst [vmem:[#allocation3 + $0x4c8] sm:$0xff] %v415
        %448 = vst [vmem:[#allocation3 + $0x510] sm:$0xff] %v416
        %449 = vst [vmem:[#allocation3 + $0x558] sm:$0xff] %v417
        %450 = vst [vmem:[#allocation3 + $0x5a0] sm:$0xff] %v418
        %451 = vst [vmem:[#allocation3 + $0x5e8] sm:$0xff] %v419
        %452 = vst [vmem:[#allocation3 + $0x630] sm:$0xff] %v420
        %453 = vst [vmem:[#allocation3 + $0x678] sm:$0xff] %v421
        %454 = vst [vmem:[#allocation3 + $0x6c0] sm:$0xff] %v422
        %455 = vst [vmem:[#allocation3 + $0x708] sm:$0xff] %v423
        %456 = vst [vmem:[#allocation3 + $0x750] sm:$0xff] %v424
        %457 = vst [vmem:[#allocation3 + $0x798] sm:$0xff] %v425
        %458 = vst [vmem:[#allocation3 + $0x7e0] sm:$0xff] %v426
        %459 = vst [vmem:[#allocation3 + $0x828] sm:$0xff] %v427
        %460 = vst [vmem:[#allocation3 + $0x870] sm:$0xff] %v428
        %461 = vst [vmem:[#allocation3 + $0x8b8] sm:$0xff] %v429
        %v462 = vld [vmem:[#allocation2 + $0x1] sm:$0xff]
        %v463 = vld [vmem:[#allocation2 + $0x9] sm:$0xff]
        %v464 = vld [vmem:[#allocation2 + $0x19] sm:$0xff]
        %v465 = vld [vmem:[#allocation2 + $0x21] sm:$0xff]
        %v466 = vld [vmem:[#allocation2 + $0x31] sm:$0xff]
        %v467 = vld [vmem:[#allocation2 + $0x39] sm:$0xff]
        %v468 = vld [vmem:[#allocation2 + $0x49] sm:$0xff]
        %v469 = vld [vmem:[#allocation2 + $0x51] sm:$0xff]
        %v470 = vld [vmem:[#allocation2 + $0x61] sm:$0xff]
        %v471 = vld [vmem:[#allocation2 + $0x69] sm:$0xff]
        %v472 = vld [vmem:[#allocation2 + $0x79] sm:$0xff]
        %v473 = vld [vmem:[#allocation2 + $0x81] sm:$0xff]
        %v474 = vld [vmem:[#allocation2 + $0x91] sm:$0xff]
        %v475 = vld [vmem:[#allocation2 + $0x99] sm:$0xff]
        %v476 = vld [vmem:[#allocation2 + $0xa9] sm:$0xff]
        %v477 = vld [vmem:[#allocation2 + $0xb1] sm:$0xff]
        %v478 = vld [vmem:[#allocation2 + $0xc1] sm:$0xff]
        %v479 = vld [vmem:[#allocation2 + $0xc9] sm:$0xff]
        %v480 = vld [vmem:[#allocation2 + $0xd9] sm:$0xff]
        %v481 = vld [vmem:[#allocation2 + $0xe1] sm:$0xff]
        %v482 = vld [vmem:[#allocation2 + $0xf1] sm:$0xff]
        %v483 = vld [vmem:[#allocation2 + $0xf9] sm:$0xff]
        %v484 = vld [vmem:[#allocation2 + $0x109] sm:$0xff]
        %v485 = vld [vmem:[#allocation2 + $0x111] sm:$0xff]
        %v486 = vld [vmem:[#allocation2 + $0x121] sm:$0xff]
        %v487 = vld [vmem:[#allocation2 + $0x129] sm:$0xff]
        %v488 = vld [vmem:[#allocation2 + $0x139] sm:$0xff]
        %v489 = vld [vmem:[#allocation2 + $0x141] sm:$0xff]
        %v490 = vld [vmem:[#allocation2 + $0x151] sm:$0xff]
        %v491 = vld [vmem:[#allocation2 + $0x159] sm:$0xff]
        %v492 = vld [vmem:[#allocation2 + $0x169] sm:$0xff]
        %v493 = vld [vmem:[#allocation2 + $0x171] sm:$0xff]
        %494 = vst [vmem:[#allocation3 + $0x8] sm:$0xff] %v462
        %495 = vst [vmem:[#allocation3 + $0x50] sm:$0xff] %v463
        %496 = vst [vmem:[#allocation3 + $0x98] sm:$0xff] %v464
        %497 = vst [vmem:[#allocation3 + $0xe0] sm:$0xff] %v465
        %498 = vst [vmem:[#allocation3 + $0x128] sm:$0xff] %v466
        %499 = vst [vmem:[#allocation3 + $0x170] sm:$0xff] %v467
        %500 = vst [vmem:[#allocation3 + $0x1b8] sm:$0xff] %v468
        %501 = vst [vmem:[#allocation3 + $0x200] sm:$0xff] %v469
        %502 = vst [vmem:[#allocation3 + $0x248] sm:$0xff] %v470
        %503 = vst [vmem:[#allocation3 + $0x290] sm:$0xff] %v471
        %504 = vst [vmem:[#allocation3 + $0x2d8] sm:$0xff] %v472
        %505 = vst [vmem:[#allocation3 + $0x320] sm:$0xff] %v473
        %506 = vst [vmem:[#allocation3 + $0x368] sm:$0xff] %v474
        %507 = vst [vmem:[#allocation3 + $0x3b0] sm:$0xff] %v475
        %508 = vst [vmem:[#allocation3 + $0x3f8] sm:$0xff] %v476
        %509 = vst [vmem:[#allocation3 + $0x440] sm:$0xff] %v477
        %510 = vst [vmem:[#allocation3 + $0x488] sm:$0xff] %v478
        %511 = vst [vmem:[#allocation3 + $0x4d0] sm:$0xff] %v479
        %512 = vst [vmem:[#allocation3 + $0x518] sm:$0xff] %v480
        %513 = vst [vmem:[#allocation3 + $0x560] sm:$0xff] %v481
        %514 = vst [vmem:[#allocation3 + $0x5a8] sm:$0xff] %v482
        %515 = vst [vmem:[#allocation3 + $0x5f0] sm:$0xff] %v483
        %516 = vst [vmem:[#allocation3 + $0x638] sm:$0xff] %v484
        %517 = vst [vmem:[#allocation3 + $0x680] sm:$0xff] %v485
        %518 = vst [vmem:[#allocation3 + $0x6c8] sm:$0xff] %v486
        %519 = vst [vmem:[#allocation3 + $0x710] sm:$0xff] %v487
        %520 = vst [vmem:[#allocation3 + $0x758] sm:$0xff] %v488
        %521 = vst [vmem:[#allocation3 + $0x7a0] sm:$0xff] %v489
        %522 = vst [vmem:[#allocation3 + $0x7e8] sm:$0xff] %v490
        %523 = vst [vmem:[#allocation3 + $0x830] sm:$0xff] %v491
        %524 = vst [vmem:[#allocation3 + $0x878] sm:$0xff] %v492
        %525 = vst [vmem:[#allocation3 + $0x8c0] sm:$0xff] %v493
        %v526 = vld [vmem:[#allocation2 + $0x2] sm:$0xff]
        %v527 = vld [vmem:[#allocation2 + $0xa] sm:$0xff]
        %v528 = vld [vmem:[#allocation2 + $0x1a] sm:$0xff]
        %v529 = vld [vmem:[#allocation2 + $0x22] sm:$0xff]
        %v530 = vld [vmem:[#allocation2 + $0x32] sm:$0xff]
        %v531 = vld [vmem:[#allocation2 + $0x3a] sm:$0xff]
        %v532 = vld [vmem:[#allocation2 + $0x4a] sm:$0xff]
        %v533 = vld [vmem:[#allocation2 + $0x52] sm:$0xff]
        %v534 = vld [vmem:[#allocation2 + $0x62] sm:$0xff]
        %v535 = vld [vmem:[#allocation2 + $0x6a] sm:$0xff]
        %v536 = vld [vmem:[#allocation2 + $0x7a] sm:$0xff]
        %v537 = vld [vmem:[#allocation2 + $0x82] sm:$0xff]
        %v538 = vld [vmem:[#allocation2 + $0x92] sm:$0xff]
        %v539 = vld [vmem:[#allocation2 + $0x9a] sm:$0xff]
        %v540 = vld [vmem:[#allocation2 + $0xaa] sm:$0xff]
        %v541 = vld [vmem:[#allocation2 + $0xb2] sm:$0xff]
        %v542 = vld [vmem:[#allocation2 + $0xc2] sm:$0xff]
        %v543 = vld [vmem:[#allocation2 + $0xca] sm:$0xff]
        %v544 = vld [vmem:[#allocation2 + $0xda] sm:$0xff]
        %v545 = vld [vmem:[#allocation2 + $0xe2] sm:$0xff]
        %v546 = vld [vmem:[#allocation2 + $0xf2] sm:$0xff]
        %v547 = vld [vmem:[#allocation2 + $0xfa] sm:$0xff]
        %v548 = vld [vmem:[#allocation2 + $0x10a] sm:$0xff]
        %v549 = vld [vmem:[#allocation2 + $0x112] sm:$0xff]
        %v550 = vld [vmem:[#allocation2 + $0x122] sm:$0xff]
        %v551 = vld [vmem:[#allocation2 + $0x12a] sm:$0xff]
        %v552 = vld [vmem:[#allocation2 + $0x13a] sm:$0xff]
        %v553 = vld [vmem:[#allocation2 + $0x142] sm:$0xff]
        %v554 = vld [vmem:[#allocation2 + $0x152] sm:$0xff]
        %v555 = vld [vmem:[#allocation2 + $0x15a] sm:$0xff]
        %v556 = vld [vmem:[#allocation2 + $0x16a] sm:$0xff]
        %v557 = vld [vmem:[#allocation2 + $0x172] sm:$0xff]
        %558 = vst [vmem:[#allocation3 + $0x10] sm:$0xff] %v526
        %559 = vst [vmem:[#allocation3 + $0x58] sm:$0xff] %v527
        %560 = vst [vmem:[#allocation3 + $0xa0] sm:$0xff] %v528
        %561 = vst [vmem:[#allocation3 + $0xe8] sm:$0xff] %v529
        %562 = vst [vmem:[#allocation3 + $0x130] sm:$0xff] %v530
        %563 = vst [vmem:[#allocation3 + $0x178] sm:$0xff] %v531
        %564 = vst [vmem:[#allocation3 + $0x1c0] sm:$0xff] %v532
        %565 = vst [vmem:[#allocation3 + $0x208] sm:$0xff] %v533
        %566 = vst [vmem:[#allocation3 + $0x250] sm:$0xff] %v534
        %567 = vst [vmem:[#allocation3 + $0x298] sm:$0xff] %v535
        %568 = vst [vmem:[#allocation3 + $0x2e0] sm:$0xff] %v536
        %569 = vst [vmem:[#allocation3 + $0x328] sm:$0xff] %v537
        %570 = vst [vmem:[#allocation3 + $0x370] sm:$0xff] %v538
        %571 = vst [vmem:[#allocation3 + $0x3b8] sm:$0xff] %v539
        %572 = vst [vmem:[#allocation3 + $0x400] sm:$0xff] %v540
        %573 = vst [vmem:[#allocation3 + $0x448] sm:$0xff] %v541
        %574 = vst [vmem:[#allocation3 + $0x490] sm:$0xff] %v542
        %575 = vst [vmem:[#allocation3 + $0x4d8] sm:$0xff] %v543
        %576 = vst [vmem:[#allocation3 + $0x520] sm:$0xff] %v544
        %577 = vst [vmem:[#allocation3 + $0x568] sm:$0xff] %v545
        %578 = vst [vmem:[#allocation3 + $0x5b0] sm:$0xff] %v546
        %579 = vst [vmem:[#allocation3 + $0x5f8] sm:$0xff] %v547
        %580 = vst [vmem:[#allocation3 + $0x640] sm:$0xff] %v548
        %581 = vst [vmem:[#allocation3 + $0x688] sm:$0xff] %v549
        %582 = vst [vmem:[#allocation3 + $0x6d0] sm:$0xff] %v550
        %583 = vst [vmem:[#allocation3 + $0x718] sm:$0xff] %v551
        %584 = vst [vmem:[#allocation3 + $0x760] sm:$0xff] %v552
        %585 = vst [vmem:[#allocation3 + $0x7a8] sm:$0xff] %v553
        %586 = vst [vmem:[#allocation3 + $0x7f0] sm:$0xff] %v554
        %587 = vst [vmem:[#allocation3 + $0x838] sm:$0xff] %v555
        %588 = vst [vmem:[#allocation3 + $0x880] sm:$0xff] %v556
        %589 = vst [vmem:[#allocation3 + $0x8c8] sm:$0xff] %v557
        %v590 = vld [vmem:[%s301] sm:$0xff]
        %v591 = vld [vmem:[%s301 + $0x8] sm:$0xff]
        %v592 = vld [vmem:[%s301 + $0x18] sm:$0xff]
        %v593 = vld [vmem:[%s301 + $0x20] sm:$0xff]
        %v594 = vld [vmem:[%s301 + $0x30] sm:$0xff]
        %v595 = vld [vmem:[%s301 + $0x38] sm:$0xff]
        %v596 = vld [vmem:[%s301 + $0x48] sm:$0xff]
        %v597 = vld [vmem:[%s301 + $0x50] sm:$0xff]
        %v598 = vld [vmem:[%s301 + $0x60] sm:$0xff]
        %v599 = vld [vmem:[%s301 + $0x68] sm:$0xff]
        %v600 = vld [vmem:[%s301 + $0x78] sm:$0xff]
        %v601 = vld [vmem:[%s301 + $0x80] sm:$0xff]
        %v602 = vld [vmem:[%s301 + $0x90] sm:$0xff]
        %v603 = vld [vmem:[%s301 + $0x98] sm:$0xff]
        %v604 = vld [vmem:[%s301 + $0xa8] sm:$0xff]
        %v605 = vld [vmem:[%s301 + $0xb0] sm:$0xff]
        %v606 = vld [vmem:[%s301 + $0xc0] sm:$0xff]
        %v607 = vld [vmem:[%s301 + $0xc8] sm:$0xff]
        %v608 = vld [vmem:[%s301 + $0xd8] sm:$0xff]
        %v609 = vld [vmem:[%s301 + $0xe0] sm:$0xff]
        %v610 = vld [vmem:[%s301 + $0xf0] sm:$0xff]
        %v611 = vld [vmem:[%s301 + $0xf8] sm:$0xff]
        %v612 = vld [vmem:[%s301 + $0x108] sm:$0xff]
        %v613 = vld [vmem:[%s301 + $0x110] sm:$0xff]
        %v614 = vld [vmem:[%s301 + $0x120] sm:$0xff]
        %v615 = vld [vmem:[%s301 + $0x128] sm:$0xff]
        %v616 = vld [vmem:[%s301 + $0x138] sm:$0xff]
        %v617 = vld [vmem:[%s301 + $0x140] sm:$0xff]
        %v618 = vld [vmem:[%s301 + $0x150] sm:$0xff]
        %v619 = vld [vmem:[%s301 + $0x158] sm:$0xff]
        %v620 = vld [vmem:[%s301 + $0x168] sm:$0xff]
        %v621 = vld [vmem:[%s301 + $0x170] sm:$0xff]
        %622 = vst [vmem:[#allocation3 + $0x18] sm:$0xff] %v590
        %623 = vst [vmem:[#allocation3 + $0x60] sm:$0xff] %v591
        %624 = vst [vmem:[#allocation3 + $0xa8] sm:$0xff] %v592
        %625 = vst [vmem:[#allocation3 + $0xf0] sm:$0xff] %v593
        %626 = vst [vmem:[#allocation3 + $0x138] sm:$0xff] %v594
        %627 = vst [vmem:[#allocation3 + $0x180] sm:$0xff] %v595
        %628 = vst [vmem:[#allocation3 + $0x1c8] sm:$0xff] %v596
        %629 = vst [vmem:[#allocation3 + $0x210] sm:$0xff] %v597
        %630 = vst [vmem:[#allocation3 + $0x258] sm:$0xff] %v598
        %631 = vst [vmem:[#allocation3 + $0x2a0] sm:$0xff] %v599
        %632 = vst [vmem:[#allocation3 + $0x2e8] sm:$0xff] %v600
        %633 = vst [vmem:[#allocation3 + $0x330] sm:$0xff] %v601
        %634 = vst [vmem:[#allocation3 + $0x378] sm:$0xff] %v602
        %635 = vst [vmem:[#allocation3 + $0x3c0] sm:$0xff] %v603
        %636 = vst [vmem:[#allocation3 + $0x408] sm:$0xff] %v604
        %637 = vst [vmem:[#allocation3 + $0x450] sm:$0xff] %v605
        %638 = vst [vmem:[#allocation3 + $0x498] sm:$0xff] %v606
        %639 = vst [vmem:[#allocation3 + $0x4e0] sm:$0xff] %v607
        %640 = vst [vmem:[#allocation3 + $0x528] sm:$0xff] %v608
        %641 = vst [vmem:[#allocation3 + $0x570] sm:$0xff] %v609
        %642 = vst [vmem:[#allocation3 + $0x5b8] sm:$0xff] %v610
        %643 = vst [vmem:[#allocation3 + $0x600] sm:$0xff] %v611
        %644 = vst [vmem:[#allocation3 + $0x648] sm:$0xff] %v612
        %645 = vst [vmem:[#allocation3 + $0x690] sm:$0xff] %v613
        %646 = vst [vmem:[#allocation3 + $0x6d8] sm:$0xff] %v614
        %647 = vst [vmem:[#allocation3 + $0x720] sm:$0xff] %v615
        %648 = vst [vmem:[#allocation3 + $0x768] sm:$0xff] %v616
        %649 = vst [vmem:[#allocation3 + $0x7b0] sm:$0xff] %v617
        %650 = vst [vmem:[#allocation3 + $0x7f8] sm:$0xff] %v618
        %651 = vst [vmem:[#allocation3 + $0x840] sm:$0xff] %v619
        %652 = vst [vmem:[#allocation3 + $0x888] sm:$0xff] %v620
        %653 = vst [vmem:[#allocation3 + $0x8d0] sm:$0xff] %v621
        %v654 = vld [vmem:[%s301 + $0x1] sm:$0xff]
        %v655 = vld [vmem:[%s301 + $0x9] sm:$0xff]
        %v656 = vld [vmem:[%s301 + $0x19] sm:$0xff]
        %v657 = vld [vmem:[%s301 + $0x21] sm:$0xff]
        %v658 = vld [vmem:[%s301 + $0x31] sm:$0xff]
        %v659 = vld [vmem:[%s301 + $0x39] sm:$0xff]
        %v660 = vld [vmem:[%s301 + $0x49] sm:$0xff]
        %v661 = vld [vmem:[%s301 + $0x51] sm:$0xff]
        %v662 = vld [vmem:[%s301 + $0x61] sm:$0xff]
        %v663 = vld [vmem:[%s301 + $0x69] sm:$0xff]
        %v664 = vld [vmem:[%s301 + $0x79] sm:$0xff]
        %v665 = vld [vmem:[%s301 + $0x81] sm:$0xff]
        %v666 = vld [vmem:[%s301 + $0x91] sm:$0xff]
        %v667 = vld [vmem:[%s301 + $0x99] sm:$0xff]
        %v668 = vld [vmem:[%s301 + $0xa9] sm:$0xff]
        %v669 = vld [vmem:[%s301 + $0xb1] sm:$0xff]
        %v670 = vld [vmem:[%s301 + $0xc1] sm:$0xff]
        %v671 = vld [vmem:[%s301 + $0xc9] sm:$0xff]
        %v672 = vld [vmem:[%s301 + $0xd9] sm:$0xff]
        %v673 = vld [vmem:[%s301 + $0xe1] sm:$0xff]
        %v674 = vld [vmem:[%s301 + $0xf1] sm:$0xff]
        %v675 = vld [vmem:[%s301 + $0xf9] sm:$0xff]
        %v676 = vld [vmem:[%s301 + $0x109] sm:$0xff]
        %v677 = vld [vmem:[%s301 + $0x111] sm:$0xff]
        %v678 = vld [vmem:[%s301 + $0x121] sm:$0xff]
        %v679 = vld [vmem:[%s301 + $0x129] sm:$0xff]
        %v680 = vld [vmem:[%s301 + $0x139] sm:$0xff]
        %v681 = vld [vmem:[%s301 + $0x141] sm:$0xff]
        %v682 = vld [vmem:[%s301 + $0x151] sm:$0xff]
        %v683 = vld [vmem:[%s301 + $0x159] sm:$0xff]
        %v684 = vld [vmem:[%s301 + $0x169] sm:$0xff]
        %v685 = vld [vmem:[%s301 + $0x171] sm:$0xff]
        %686 = vst [vmem:[#allocation3 + $0x20] sm:$0xff] %v654
        %687 = vst [vmem:[#allocation3 + $0x68] sm:$0xff] %v655
        %688 = vst [vmem:[#allocation3 + $0xb0] sm:$0xff] %v656
        %689 = vst [vmem:[#allocation3 + $0xf8] sm:$0xff] %v657
        %690 = vst [vmem:[#allocation3 + $0x140] sm:$0xff] %v658
        %691 = vst [vmem:[#allocation3 + $0x188] sm:$0xff] %v659
        %692 = vst [vmem:[#allocation3 + $0x1d0] sm:$0xff] %v660
        %693 = vst [vmem:[#allocation3 + $0x218] sm:$0xff] %v661
        %694 = vst [vmem:[#allocation3 + $0x260] sm:$0xff] %v662
        %695 = vst [vmem:[#allocation3 + $0x2a8] sm:$0xff] %v663
        %696 = vst [vmem:[#allocation3 + $0x2f0] sm:$0xff] %v664
        %697 = vst [vmem:[#allocation3 + $0x338] sm:$0xff] %v665
        %698 = vst [vmem:[#allocation3 + $0x380] sm:$0xff] %v666
        %699 = vst [vmem:[#allocation3 + $0x3c8] sm:$0xff] %v667
        %700 = vst [vmem:[#allocation3 + $0x410] sm:$0xff] %v668
        %701 = vst [vmem:[#allocation3 + $0x458] sm:$0xff] %v669
        %702 = vst [vmem:[#allocation3 + $0x4a0] sm:$0xff] %v670
        %703 = vst [vmem:[#allocation3 + $0x4e8] sm:$0xff] %v671
        %704 = vst [vmem:[#allocation3 + $0x530] sm:$0xff] %v672
        %705 = vst [vmem:[#allocation3 + $0x578] sm:$0xff] %v673
        %706 = vst [vmem:[#allocation3 + $0x5c0] sm:$0xff] %v674
        %707 = vst [vmem:[#allocation3 + $0x608] sm:$0xff] %v675
        %708 = vst [vmem:[#allocation3 + $0x650] sm:$0xff] %v676
        %709 = vst [vmem:[#allocation3 + $0x698] sm:$0xff] %v677
        %710 = vst [vmem:[#allocation3 + $0x6e0] sm:$0xff] %v678
        %711 = vst [vmem:[#allocation3 + $0x728] sm:$0xff] %v679
        %712 = vst [vmem:[#allocation3 + $0x770] sm:$0xff] %v680
        %713 = vst [vmem:[#allocation3 + $0x7b8] sm:$0xff] %v681
        %714 = vst [vmem:[#allocation3 + $0x800] sm:$0xff] %v682
        %715 = vst [vmem:[#allocation3 + $0x848] sm:$0xff] %v683
        %716 = vst [vmem:[#allocation3 + $0x890] sm:$0xff] %v684
        %717 = vst [vmem:[#allocation3 + $0x8d8] sm:$0xff] %v685
        %v718 = vld [vmem:[%s301 + $0x2] sm:$0xff]
        %v719 = vld [vmem:[%s301 + $0xa] sm:$0xff]
        %v720 = vld [vmem:[%s301 + $0x1a] sm:$0xff]
        %v721 = vld [vmem:[%s301 + $0x22] sm:$0xff]
        %v722 = vld [vmem:[%s301 + $0x32] sm:$0xff]
        %v723 = vld [vmem:[%s301 + $0x3a] sm:$0xff]
        %v724 = vld [vmem:[%s301 + $0x4a] sm:$0xff]
        %v725 = vld [vmem:[%s301 + $0x52] sm:$0xff]
        %v726 = vld [vmem:[%s301 + $0x62] sm:$0xff]
        %v727 = vld [vmem:[%s301 + $0x6a] sm:$0xff]
        %v728 = vld [vmem:[%s301 + $0x7a] sm:$0xff]
        %v729 = vld [vmem:[%s301 + $0x82] sm:$0xff]
        %v730 = vld [vmem:[%s301 + $0x92] sm:$0xff]
        %v731 = vld [vmem:[%s301 + $0x9a] sm:$0xff]
        %v732 = vld [vmem:[%s301 + $0xaa] sm:$0xff]
        %v733 = vld [vmem:[%s301 + $0xb2] sm:$0xff]
        %v734 = vld [vmem:[%s301 + $0xc2] sm:$0xff]
        %v735 = vld [vmem:[%s301 + $0xca] sm:$0xff]
        %v736 = vld [vmem:[%s301 + $0xda] sm:$0xff]
        %v737 = vld [vmem:[%s301 + $0xe2] sm:$0xff]
        %v738 = vld [vmem:[%s301 + $0xf2] sm:$0xff]
        %v739 = vld [vmem:[%s301 + $0xfa] sm:$0xff]
        %v740 = vld [vmem:[%s301 + $0x10a] sm:$0xff]
        %v741 = vld [vmem:[%s301 + $0x112] sm:$0xff]
        %v742 = vld [vmem:[%s301 + $0x122] sm:$0xff]
        %v743 = vld [vmem:[%s301 + $0x12a] sm:$0xff]
        %v744 = vld [vmem:[%s301 + $0x13a] sm:$0xff]
        %v745 = vld [vmem:[%s301 + $0x142] sm:$0xff]
        %v746 = vld [vmem:[%s301 + $0x152] sm:$0xff]
        %v747 = vld [vmem:[%s301 + $0x15a] sm:$0xff]
        %v748 = vld [vmem:[%s301 + $0x16a] sm:$0xff]
        %v749 = vld [vmem:[%s301 + $0x172] sm:$0xff]
        %750 = vst [vmem:[#allocation3 + $0x28] sm:$0xff] %v718
        %751 = vst [vmem:[#allocation3 + $0x70] sm:$0xff] %v719
        %752 = vst [vmem:[#allocation3 + $0xb8] sm:$0xff] %v720
        %753 = vst [vmem:[#allocation3 + $0x100] sm:$0xff] %v721
        %754 = vst [vmem:[#allocation3 + $0x148] sm:$0xff] %v722
        %755 = vst [vmem:[#allocation3 + $0x190] sm:$0xff] %v723
        %756 = vst [vmem:[#allocation3 + $0x1d8] sm:$0xff] %v724
        %757 = vst [vmem:[#allocation3 + $0x220] sm:$0xff] %v725
        %758 = vst [vmem:[#allocation3 + $0x268] sm:$0xff] %v726
        %759 = vst [vmem:[#allocation3 + $0x2b0] sm:$0xff] %v727
        %760 = vst [vmem:[#allocation3 + $0x2f8] sm:$0xff] %v728
        %761 = vst [vmem:[#allocation3 + $0x340] sm:$0xff] %v729
        %762 = vst [vmem:[#allocation3 + $0x388] sm:$0xff] %v730
        %763 = vst [vmem:[#allocation3 + $0x3d0] sm:$0xff] %v731
        %764 = vst [vmem:[#allocation3 + $0x418] sm:$0xff] %v732
        %765 = vst [vmem:[#allocation3 + $0x460] sm:$0xff] %v733
        %766 = vst [vmem:[#allocation3 + $0x4a8] sm:$0xff] %v734
        %767 = vst [vmem:[#allocation3 + $0x4f0] sm:$0xff] %v735
        %768 = vst [vmem:[#allocation3 + $0x538] sm:$0xff] %v736
        %769 = vst [vmem:[#allocation3 + $0x580] sm:$0xff] %v737
        %770 = vst [vmem:[#allocation3 + $0x5c8] sm:$0xff] %v738
        %771 = vst [vmem:[#allocation3 + $0x610] sm:$0xff] %v739
        %772 = vst [vmem:[#allocation3 + $0x658] sm:$0xff] %v740
        %773 = vst [vmem:[#allocation3 + $0x6a0] sm:$0xff] %v741
        %774 = vst [vmem:[#allocation3 + $0x6e8] sm:$0xff] %v742
        %775 = vst [vmem:[#allocation3 + $0x730] sm:$0xff] %v743
        %776 = vst [vmem:[#allocation3 + $0x778] sm:$0xff] %v744
        %777 = vst [vmem:[#allocation3 + $0x7c0] sm:$0xff] %v745
        %778 = vst [vmem:[#allocation3 + $0x808] sm:$0xff] %v746
        %779 = vst [vmem:[#allocation3 + $0x850] sm:$0xff] %v747
        %780 = vst [vmem:[#allocation3 + $0x898] sm:$0xff] %v748
        %781 = vst [vmem:[#allocation3 + $0x8e0] sm:$0xff] %v749
        %s782 = scalar_lea.vmem [#allocation2], 48
        %v783 = vld [vmem:[%s782] sm:$0xff]
        %v784 = vld [vmem:[%s782 + $0x8] sm:$0xff]
        %v785 = vld [vmem:[%s782 + $0x18] sm:$0xff]
        %v786 = vld [vmem:[%s782 + $0x20] sm:$0xff]
        %v787 = vld [vmem:[%s782 + $0x30] sm:$0xff]
        %v788 = vld [vmem:[%s782 + $0x38] sm:$0xff]
        %v789 = vld [vmem:[%s782 + $0x48] sm:$0xff]
        %v790 = vld [vmem:[%s782 + $0x50] sm:$0xff]
        %v791 = vld [vmem:[%s782 + $0x60] sm:$0xff]
        %v792 = vld [vmem:[%s782 + $0x68] sm:$0xff]
        %v793 = vld [vmem:[%s782 + $0x78] sm:$0xff]
        %v794 = vld [vmem:[%s782 + $0x80] sm:$0xff]
        %v795 = vld [vmem:[%s782 + $0x90] sm:$0xff]
        %v796 = vld [vmem:[%s782 + $0x98] sm:$0xff]
        %v797 = vld [vmem:[%s782 + $0xa8] sm:$0xff]
        %v798 = vld [vmem:[%s782 + $0xb0] sm:$0xff]
        %v799 = vld [vmem:[%s782 + $0xc0] sm:$0xff]
        %v800 = vld [vmem:[%s782 + $0xc8] sm:$0xff]
        %v801 = vld [vmem:[%s782 + $0xd8] sm:$0xff]
        %v802 = vld [vmem:[%s782 + $0xe0] sm:$0xff]
        %v803 = vld [vmem:[%s782 + $0xf0] sm:$0xff]
        %v804 = vld [vmem:[%s782 + $0xf8] sm:$0xff]
        %v805 = vld [vmem:[%s782 + $0x108] sm:$0xff]
        %v806 = vld [vmem:[%s782 + $0x110] sm:$0xff]
        %v807 = vld [vmem:[%s782 + $0x120] sm:$0xff]
        %v808 = vld [vmem:[%s782 + $0x128] sm:$0xff]
        %v809 = vld [vmem:[%s782 + $0x138] sm:$0xff]
        %v810 = vld [vmem:[%s782 + $0x140] sm:$0xff]
        %v811 = vld [vmem:[%s782 + $0x150] sm:$0xff]
        %v812 = vld [vmem:[%s782 + $0x158] sm:$0xff]
        %v813 = vld [vmem:[%s782 + $0x168] sm:$0xff]
        %v814 = vld [vmem:[%s782 + $0x170] sm:$0xff]
        %815 = vst [vmem:[#allocation3 + $0x30] sm:$0xff] %v783
        %816 = vst [vmem:[#allocation3 + $0x78] sm:$0xff] %v784
        %817 = vst [vmem:[#allocation3 + $0xc0] sm:$0xff] %v785
        %818 = vst [vmem:[#allocation3 + $0x108] sm:$0xff] %v786
        %819 = vst [vmem:[#allocation3 + $0x150] sm:$0xff] %v787
        %820 = vst [vmem:[#allocation3 + $0x198] sm:$0xff] %v788
        %821 = vst [vmem:[#allocation3 + $0x1e0] sm:$0xff] %v789
        %822 = vst [vmem:[#allocation3 + $0x228] sm:$0xff] %v790
        %823 = vst [vmem:[#allocation3 + $0x270] sm:$0xff] %v791
        %824 = vst [vmem:[#allocation3 + $0x2b8] sm:$0xff] %v792
        %825 = vst [vmem:[#allocation3 + $0x300] sm:$0xff] %v793
        %826 = vst [vmem:[#allocation3 + $0x348] sm:$0xff] %v794
        %827 = vst [vmem:[#allocation3 + $0x390] sm:$0xff] %v795
        %828 = vst [vmem:[#allocation3 + $0x3d8] sm:$0xff] %v796
        %829 = vst [vmem:[#allocation3 + $0x420] sm:$0xff] %v797
        %830 = vst [vmem:[#allocation3 + $0x468] sm:$0xff] %v798
        %831 = vst [vmem:[#allocation3 + $0x4b0] sm:$0xff] %v799
        %832 = vst [vmem:[#allocation3 + $0x4f8] sm:$0xff] %v800
        %833 = vst [vmem:[#allocation3 + $0x540] sm:$0xff] %v801
        %834 = vst [vmem:[#allocation3 + $0x588] sm:$0xff] %v802
        %835 = vst [vmem:[#allocation3 + $0x5d0] sm:$0xff] %v803
        %836 = vst [vmem:[#allocation3 + $0x618] sm:$0xff] %v804
        %837 = vst [vmem:[#allocation3 + $0x660] sm:$0xff] %v805
        %838 = vst [vmem:[#allocation3 + $0x6a8] sm:$0xff] %v806
        %839 = vst [vmem:[#allocation3 + $0x6f0] sm:$0xff] %v807
        %840 = vst [vmem:[#allocation3 + $0x738] sm:$0xff] %v808
        %841 = vst [vmem:[#allocation3 + $0x780] sm:$0xff] %v809
        %842 = vst [vmem:[#allocation3 + $0x7c8] sm:$0xff] %v810
        %843 = vst [vmem:[#allocation3 + $0x810] sm:$0xff] %v811
        %844 = vst [vmem:[#allocation3 + $0x858] sm:$0xff] %v812
        %845 = vst [vmem:[#allocation3 + $0x8a0] sm:$0xff] %v813
        %846 = vst [vmem:[#allocation3 + $0x8e8] sm:$0xff] %v814
        %v847 = vld [vmem:[%s782 + $0x1] sm:$0xff]
        %v848 = vld [vmem:[%s782 + $0x9] sm:$0xff]
        %v849 = vld [vmem:[%s782 + $0x19] sm:$0xff]
        %v850 = vld [vmem:[%s782 + $0x21] sm:$0xff]
        %v851 = vld [vmem:[%s782 + $0x31] sm:$0xff]
        %v852 = vld [vmem:[%s782 + $0x39] sm:$0xff]
        %v853 = vld [vmem:[%s782 + $0x49] sm:$0xff]
        %v854 = vld [vmem:[%s782 + $0x51] sm:$0xff]
        %v855 = vld [vmem:[%s782 + $0x61] sm:$0xff]
        %v856 = vld [vmem:[%s782 + $0x69] sm:$0xff]
        %v857 = vld [vmem:[%s782 + $0x79] sm:$0xff]
        %v858 = vld [vmem:[%s782 + $0x81] sm:$0xff]
        %v859 = vld [vmem:[%s782 + $0x91] sm:$0xff]
        %v860 = vld [vmem:[%s782 + $0x99] sm:$0xff]
        %v861 = vld [vmem:[%s782 + $0xa9] sm:$0xff]
        %v862 = vld [vmem:[%s782 + $0xb1] sm:$0xff]
        %v863 = vld [vmem:[%s782 + $0xc1] sm:$0xff]
        %v864 = vld [vmem:[%s782 + $0xc9] sm:$0xff]
        %v865 = vld [vmem:[%s782 + $0xd9] sm:$0xff]
        %v866 = vld [vmem:[%s782 + $0xe1] sm:$0xff]
        %v867 = vld [vmem:[%s782 + $0xf1] sm:$0xff]
        %v868 = vld [vmem:[%s782 + $0xf9] sm:$0xff]
        %v869 = vld [vmem:[%s782 + $0x109] sm:$0xff]
        %v870 = vld [vmem:[%s782 + $0x111] sm:$0xff]
        %v871 = vld [vmem:[%s782 + $0x121] sm:$0xff]
        %v872 = vld [vmem:[%s782 + $0x129] sm:$0xff]
        %v873 = vld [vmem:[%s782 + $0x139] sm:$0xff]
        %v874 = vld [vmem:[%s782 + $0x141] sm:$0xff]
        %v875 = vld [vmem:[%s782 + $0x151] sm:$0xff]
        %v876 = vld [vmem:[%s782 + $0x159] sm:$0xff]
        %v877 = vld [vmem:[%s782 + $0x169] sm:$0xff]
        %v878 = vld [vmem:[%s782 + $0x171] sm:$0xff]
        %879 = vst [vmem:[#allocation3 + $0x38] sm:$0xff] %v847
        %880 = vst [vmem:[#allocation3 + $0x80] sm:$0xff] %v848
        %881 = vst [vmem:[#allocation3 + $0xc8] sm:$0xff] %v849
        %882 = vst [vmem:[#allocation3 + $0x110] sm:$0xff] %v850
        %883 = vst [vmem:[#allocation3 + $0x158] sm:$0xff] %v851
        %884 = vst [vmem:[#allocation3 + $0x1a0] sm:$0xff] %v852
        %885 = vst [vmem:[#allocation3 + $0x1e8] sm:$0xff] %v853
        %886 = vst [vmem:[#allocation3 + $0x230] sm:$0xff] %v854
        %887 = vst [vmem:[#allocation3 + $0x278] sm:$0xff] %v855
        %888 = vst [vmem:[#allocation3 + $0x2c0] sm:$0xff] %v856
        %889 = vst [vmem:[#allocation3 + $0x308] sm:$0xff] %v857
        %890 = vst [vmem:[#allocation3 + $0x350] sm:$0xff] %v858
        %891 = vst [vmem:[#allocation3 + $0x398] sm:$0xff] %v859
        %892 = vst [vmem:[#allocation3 + $0x3e0] sm:$0xff] %v860
        %893 = vst [vmem:[#allocation3 + $0x428] sm:$0xff] %v861
        %894 = vst [vmem:[#allocation3 + $0x470] sm:$0xff] %v862
        %895 = vst [vmem:[#allocation3 + $0x4b8] sm:$0xff] %v863
        %896 = vst [vmem:[#allocation3 + $0x500] sm:$0xff] %v864
        %897 = vst [vmem:[#allocation3 + $0x548] sm:$0xff] %v865
        %898 = vst [vmem:[#allocation3 + $0x590] sm:$0xff] %v866
        %899 = vst [vmem:[#allocation3 + $0x5d8] sm:$0xff] %v867
        %900 = vst [vmem:[#allocation3 + $0x620] sm:$0xff] %v868
        %901 = vst [vmem:[#allocation3 + $0x668] sm:$0xff] %v869
        %902 = vst [vmem:[#allocation3 + $0x6b0] sm:$0xff] %v870
        %903 = vst [vmem:[#allocation3 + $0x6f8] sm:$0xff] %v871
        %904 = vst [vmem:[#allocation3 + $0x740] sm:$0xff] %v872
        %905 = vst [vmem:[#allocation3 + $0x788] sm:$0xff] %v873
        %906 = vst [vmem:[#allocation3 + $0x7d0] sm:$0xff] %v874
        %907 = vst [vmem:[#allocation3 + $0x818] sm:$0xff] %v875
        %908 = vst [vmem:[#allocation3 + $0x860] sm:$0xff] %v876
        %909 = vst [vmem:[#allocation3 + $0x8a8] sm:$0xff] %v877
        %910 = vst [vmem:[#allocation3 + $0x8f0] sm:$0xff] %v878
        %v911 = vld [vmem:[%s782 + $0x2] sm:$0xff]
        %v912 = vld [vmem:[%s782 + $0xa] sm:$0xff]
        %v913 = vld [vmem:[%s782 + $0x1a] sm:$0xff]
        %v914 = vld [vmem:[%s782 + $0x22] sm:$0xff]
        %v915 = vld [vmem:[%s782 + $0x32] sm:$0xff]
        %v916 = vld [vmem:[%s782 + $0x3a] sm:$0xff]
        %v917 = vld [vmem:[%s782 + $0x4a] sm:$0xff]
        %v918 = vld [vmem:[%s782 + $0x52] sm:$0xff]
        %v919 = vld [vmem:[%s782 + $0x62] sm:$0xff]
        %v920 = vld [vmem:[%s782 + $0x6a] sm:$0xff]
        %v921 = vld [vmem:[%s782 + $0x7a] sm:$0xff]
        %v922 = vld [vmem:[%s782 + $0x82] sm:$0xff]
        %v923 = vld [vmem:[%s782 + $0x92] sm:$0xff]
        %v924 = vld [vmem:[%s782 + $0x9a] sm:$0xff]
        %v925 = vld [vmem:[%s782 + $0xaa] sm:$0xff]
        %v926 = vld [vmem:[%s782 + $0xb2] sm:$0xff]
        %v927 = vld [vmem:[%s782 + $0xc2] sm:$0xff]
        %v928 = vld [vmem:[%s782 + $0xca] sm:$0xff]
        %v929 = vld [vmem:[%s782 + $0xda] sm:$0xff]
        %v930 = vld [vmem:[%s782 + $0xe2] sm:$0xff]
        %v931 = vld [vmem:[%s782 + $0xf2] sm:$0xff]
        %v932 = vld [vmem:[%s782 + $0xfa] sm:$0xff]
        %v933 = vld [vmem:[%s782 + $0x10a] sm:$0xff]
        %v934 = vld [vmem:[%s782 + $0x112] sm:$0xff]
        %v935 = vld [vmem:[%s782 + $0x122] sm:$0xff]
        %v936 = vld [vmem:[%s782 + $0x12a] sm:$0xff]
        %v937 = vld [vmem:[%s782 + $0x13a] sm:$0xff]
        %v938 = vld [vmem:[%s782 + $0x142] sm:$0xff]
        %v939 = vld [vmem:[%s782 + $0x152] sm:$0xff]
        %v940 = vld [vmem:[%s782 + $0x15a] sm:$0xff]
        %v941 = vld [vmem:[%s782 + $0x16a] sm:$0xff]
        %v942 = vld [vmem:[%s782 + $0x172] sm:$0xff]
        %943 = vst [vmem:[#allocation3 + $0x40] sm:$0xff] %v911
        %944 = vst [vmem:[#allocation3 + $0x88] sm:$0xff] %v912
        %945 = vst [vmem:[#allocation3 + $0xd0] sm:$0xff] %v913
        %946 = vst [vmem:[#allocation3 + $0x118] sm:$0xff] %v914
        %947 = vst [vmem:[#allocation3 + $0x160] sm:$0xff] %v915
        %948 = vst [vmem:[#allocation3 + $0x1a8] sm:$0xff] %v916
        %949 = vst [vmem:[#allocation3 + $0x1f0] sm:$0xff] %v917
        %950 = vst [vmem:[#allocation3 + $0x238] sm:$0xff] %v918
        %951 = vst [vmem:[#allocation3 + $0x280] sm:$0xff] %v919
        %952 = vst [vmem:[#allocation3 + $0x2c8] sm:$0xff] %v920
        %953 = vst [vmem:[#allocation3 + $0x310] sm:$0xff] %v921
        %954 = vst [vmem:[#allocation3 + $0x358] sm:$0xff] %v922
        %955 = vst [vmem:[#allocation3 + $0x3a0] sm:$0xff] %v923
        %956 = vst [vmem:[#allocation3 + $0x3e8] sm:$0xff] %v924
        %957 = vst [vmem:[#allocation3 + $0x430] sm:$0xff] %v925
        %958 = vst [vmem:[#allocation3 + $0x478] sm:$0xff] %v926
        %959 = vst [vmem:[#allocation3 + $0x4c0] sm:$0xff] %v927
        %960 = vst [vmem:[#allocation3 + $0x508] sm:$0xff] %v928
        %961 = vst [vmem:[#allocation3 + $0x550] sm:$0xff] %v929
        %962 = vst [vmem:[#allocation3 + $0x598] sm:$0xff] %v930
        %963 = vst [vmem:[#allocation3 + $0x5e0] sm:$0xff] %v931
        %964 = vst [vmem:[#allocation3 + $0x628] sm:$0xff] %v932
        %965 = vst [vmem:[#allocation3 + $0x670] sm:$0xff] %v933
        %966 = vst [vmem:[#allocation3 + $0x6b8] sm:$0xff] %v934
        %967 = vst [vmem:[#allocation3 + $0x700] sm:$0xff] %v935
        %968 = vst [vmem:[#allocation3 + $0x748] sm:$0xff] %v936
        %969 = vst [vmem:[#allocation3 + $0x790] sm:$0xff] %v937
        %970 = vst [vmem:[#allocation3 + $0x7d8] sm:$0xff] %v938
        %971 = vst [vmem:[#allocation3 + $0x820] sm:$0xff] %v939
        %972 = vst [vmem:[#allocation3 + $0x868] sm:$0xff] %v940
        %973 = vst [vmem:[#allocation3 + $0x8b0] sm:$0xff] %v941
        %974 = vst [vmem:[#allocation3 + $0x8f8] sm:$0xff] %v942
        %v975 = vld [vmem:[#allocation3] sm:$0xff]
        %v976 = vld [vmem:[#allocation3 + $0x8] sm:$0xff]
        %v977 = vld [vmem:[#allocation3 + $0x10] sm:$0xff]
        %v978 = vld [vmem:[#allocation3 + $0x18] sm:$0xff]
        %v979 = vld [vmem:[#allocation3 + $0x20] sm:$0xff]
        %v980 = vld [vmem:[#allocation3 + $0x28] sm:$0xff]
        %v981 = vld [vmem:[#allocation3 + $0x30] sm:$0xff]
        %v982 = vld [vmem:[#allocation3 + $0x38] sm:$0xff]
        %v983 = vld [vmem:[#allocation3 + $0x40] sm:$0xff]
        %v984 = vld [vmem:[#allocation3 + $0x48] sm:$0xff]
        %v985 = vld [vmem:[#allocation3 + $0x50] sm:$0xff]
        %v986 = vld [vmem:[#allocation3 + $0x58] sm:$0xff]
        %v987 = vld [vmem:[#allocation3 + $0x60] sm:$0xff]
        %v988 = vld [vmem:[#allocation3 + $0x68] sm:$0xff]
        %v989 = vld [vmem:[#allocation3 + $0x70] sm:$0xff]
        %v990 = vld [vmem:[#allocation3 + $0x78] sm:$0xff]
        %v991 = vld [vmem:[#allocation3 + $0x80] sm:$0xff]
        %v992 = vld [vmem:[#allocation3 + $0x88] sm:$0xff]
        %v993 = vld [vmem:[#allocation3 + $0x90] sm:$0xff]
        %v994 = vld [vmem:[#allocation3 + $0x98] sm:$0xff]
        %v995 = vld [vmem:[#allocation3 + $0xa0] sm:$0xff]
        %v996 = vld [vmem:[#allocation3 + $0xa8] sm:$0xff]
        %v997 = vld [vmem:[#allocation3 + $0xb0] sm:$0xff]
        %v998 = vld [vmem:[#allocation3 + $0xb8] sm:$0xff]
        %v999 = vld [vmem:[#allocation3 + $0xc0] sm:$0xff]
        %v1000 = vld [vmem:[#allocation3 + $0xc8] sm:$0xff]
        %v1001 = vld [vmem:[#allocation3 + $0xd0] sm:$0xff]
        %v1002 = vld [vmem:[#allocation3 + $0xd8] sm:$0xff]
        %v1003 = vld [vmem:[#allocation3 + $0xe0] sm:$0xff]
        %v1004 = vld [vmem:[#allocation3 + $0xe8] sm:$0xff]
        %v1005 = vld [vmem:[#allocation3 + $0xf0] sm:$0xff]
        %v1006 = vld [vmem:[#allocation3 + $0xf8] sm:$0xff]
        %v1007 = vld [vmem:[#allocation3 + $0x100] sm:$0xff]
        %v1008 = vld [vmem:[#allocation3 + $0x108] sm:$0xff]
        %v1009 = vld [vmem:[#allocation3 + $0x110] sm:$0xff]
        %v1010 = vld [vmem:[#allocation3 + $0x118] sm:$0xff]
        %v1011 = vld [vmem:[#allocation3 + $0x120] sm:$0xff]
        %v1012 = vld [vmem:[#allocation3 + $0x128] sm:$0xff]
        %v1013 = vld [vmem:[#allocation3 + $0x130] sm:$0xff]
        %v1014 = vld [vmem:[#allocation3 + $0x138] sm:$0xff]
        %v1015 = vld [vmem:[#allocation3 + $0x140] sm:$0xff]
        %v1016 = vld [vmem:[#allocation3 + $0x148] sm:$0xff]
        %v1017 = vld [vmem:[#allocation3 + $0x150] sm:$0xff]
        %v1018 = vld [vmem:[#allocation3 + $0x158] sm:$0xff]
        %v1019 = vld [vmem:[#allocation3 + $0x160] sm:$0xff]
        %v1020 = vld [vmem:[#allocation3 + $0x168] sm:$0xff]
        %v1021 = vld [vmem:[#allocation3 + $0x170] sm:$0xff]
        %v1022 = vld [vmem:[#allocation3 + $0x178] sm:$0xff]
        %v1023 = vld [vmem:[#allocation3 + $0x180] sm:$0xff]
        %v1024 = vld [vmem:[#allocation3 + $0x188] sm:$0xff]
        %v1025 = vld [vmem:[#allocation3 + $0x190] sm:$0xff]
        %v1026 = vld [vmem:[#allocation3 + $0x198] sm:$0xff]
        %v1027 = vld [vmem:[#allocation3 + $0x1a0] sm:$0xff]
        %v1028 = vld [vmem:[#allocation3 + $0x1a8] sm:$0xff]
        %v1029 = vld [vmem:[#allocation3 + $0x1b0] sm:$0xff]
        %v1030 = vld [vmem:[#allocation3 + $0x1b8] sm:$0xff]
        %v1031 = vld [vmem:[#allocation3 + $0x1c0] sm:$0xff]
        %v1032 = vld [vmem:[#allocation3 + $0x1c8] sm:$0xff]
        %v1033 = vld [vmem:[#allocation3 + $0x1d0] sm:$0xff]
        %v1034 = vld [vmem:[#allocation3 + $0x1d8] sm:$0xff]
        %v1035 = vld [vmem:[#allocation3 + $0x1e0] sm:$0xff]
        %v1036 = vld [vmem:[#allocation3 + $0x1e8] sm:$0xff]
        %v1037 = vld [vmem:[#allocation3 + $0x1f0] sm:$0xff]
        %v1038 = vld [vmem:[#allocation3 + $0x1f8] sm:$0xff]
        %v1039 = vld [vmem:[#allocation3 + $0x200] sm:$0xff]
        %v1040 = vld [vmem:[#allocation3 + $0x208] sm:$0xff]
        %v1041 = vld [vmem:[#allocation3 + $0x210] sm:$0xff]
        %v1042 = vld [vmem:[#allocation3 + $0x218] sm:$0xff]
        %v1043 = vld [vmem:[#allocation3 + $0x220] sm:$0xff]
        %v1044 = vld [vmem:[#allocation3 + $0x228] sm:$0xff]
        %v1045 = vld [vmem:[#allocation3 + $0x230] sm:$0xff]
        %v1046 = vld [vmem:[#allocation3 + $0x238] sm:$0xff]
        %v1047 = vld [vmem:[#allocation3 + $0x240] sm:$0xff]
        %v1048 = vld [vmem:[#allocation3 + $0x248] sm:$0xff]
        %v1049 = vld [vmem:[#allocation3 + $0x250] sm:$0xff]
        %v1050 = vld [vmem:[#allocation3 + $0x258] sm:$0xff]
        %v1051 = vld [vmem:[#allocation3 + $0x260] sm:$0xff]
        %v1052 = vld [vmem:[#allocation3 + $0x268] sm:$0xff]
        %v1053 = vld [vmem:[#allocation3 + $0x270] sm:$0xff]
        %v1054 = vld [vmem:[#allocation3 + $0x278] sm:$0xff]
        %v1055 = vld [vmem:[#allocation3 + $0x280] sm:$0xff]
        %v1056 = vld [vmem:[#allocation3 + $0x288] sm:$0xff]
        %v1057 = vld [vmem:[#allocation3 + $0x290] sm:$0xff]
        %v1058 = vld [vmem:[#allocation3 + $0x298] sm:$0xff]
        %v1059 = vld [vmem:[#allocation3 + $0x2a0] sm:$0xff]
        %v1060 = vld [vmem:[#allocation3 + $0x2a8] sm:$0xff]
        %v1061 = vld [vmem:[#allocation3 + $0x2b0] sm:$0xff]
        %v1062 = vld [vmem:[#allocation3 + $0x2b8] sm:$0xff]
        %v1063 = vld [vmem:[#allocation3 + $0x2c0] sm:$0xff]
        %v1064 = vld [vmem:[#allocation3 + $0x2c8] sm:$0xff]
        %v1065 = vld [vmem:[#allocation3 + $0x2d0] sm:$0xff]
        %v1066 = vld [vmem:[#allocation3 + $0x2d8] sm:$0xff]
        %v1067 = vld [vmem:[#allocation3 + $0x2e0] sm:$0xff]
        %v1068 = vld [vmem:[#allocation3 + $0x2e8] sm:$0xff]
        %v1069 = vld [vmem:[#allocation3 + $0x2f0] sm:$0xff]
        %v1070 = vld [vmem:[#allocation3 + $0x2f8] sm:$0xff]
        %v1071 = vld [vmem:[#allocation3 + $0x300] sm:$0xff]
        %v1072 = vld [vmem:[#allocation3 + $0x308] sm:$0xff]
        %v1073 = vld [vmem:[#allocation3 + $0x310] sm:$0xff]
        %v1074 = vld [vmem:[#allocation3 + $0x318] sm:$0xff]
        %v1075 = vld [vmem:[#allocation3 + $0x320] sm:$0xff]
        %v1076 = vld [vmem:[#allocation3 + $0x328] sm:$0xff]
        %v1077 = vld [vmem:[#allocation3 + $0x330] sm:$0xff]
        %v1078 = vld [vmem:[#allocation3 + $0x338] sm:$0xff]
        %v1079 = vld [vmem:[#allocation3 + $0x340] sm:$0xff]
        %v1080 = vld [vmem:[#allocation3 + $0x348] sm:$0xff]
        %v1081 = vld [vmem:[#allocation3 + $0x350] sm:$0xff]
        %v1082 = vld [vmem:[#allocation3 + $0x358] sm:$0xff]
        %v1083 = vld [vmem:[#allocation3 + $0x360] sm:$0xff]
        %v1084 = vld [vmem:[#allocation3 + $0x368] sm:$0xff]
        %v1085 = vld [vmem:[#allocation3 + $0x370] sm:$0xff]
        %v1086 = vld [vmem:[#allocation3 + $0x378] sm:$0xff]
        %v1087 = vld [vmem:[#allocation3 + $0x380] sm:$0xff]
        %v1088 = vld [vmem:[#allocation3 + $0x388] sm:$0xff]
        %v1089 = vld [vmem:[#allocation3 + $0x390] sm:$0xff]
        %v1090 = vld [vmem:[#allocation3 + $0x398] sm:$0xff]
        %v1091 = vld [vmem:[#allocation3 + $0x3a0] sm:$0xff]
        %v1092 = vld [vmem:[#allocation3 + $0x3a8] sm:$0xff]
        %v1093 = vld [vmem:[#allocation3 + $0x3b0] sm:$0xff]
        %v1094 = vld [vmem:[#allocation3 + $0x3b8] sm:$0xff]
        %v1095 = vld [vmem:[#allocation3 + $0x3c0] sm:$0xff]
        %v1096 = vld [vmem:[#allocation3 + $0x3c8] sm:$0xff]
        %v1097 = vld [vmem:[#allocation3 + $0x3d0] sm:$0xff]
        %v1098 = vld [vmem:[#allocation3 + $0x3d8] sm:$0xff]
        %v1099 = vld [vmem:[#allocation3 + $0x3e0] sm:$0xff]
        %v1100 = vld [vmem:[#allocation3 + $0x3e8] sm:$0xff]
        %v1101 = vld [vmem:[#allocation3 + $0x3f0] sm:$0xff]
        %v1102 = vld [vmem:[#allocation3 + $0x3f8] sm:$0xff]
        %v1103 = vld [vmem:[#allocation3 + $0x400] sm:$0xff]
        %v1104 = vld [vmem:[#allocation3 + $0x408] sm:$0xff]
        %v1105 = vld [vmem:[#allocation3 + $0x410] sm:$0xff]
        %v1106 = vld [vmem:[#allocation3 + $0x418] sm:$0xff]
        %v1107 = vld [vmem:[#allocation3 + $0x420] sm:$0xff]
        %v1108 = vld [vmem:[#allocation3 + $0x428] sm:$0xff]
        %v1109 = vld [vmem:[#allocation3 + $0x430] sm:$0xff]
        %v1110 = vld [vmem:[#allocation3 + $0x438] sm:$0xff]
        %v1111 = vld [vmem:[#allocation3 + $0x440] sm:$0xff]
        %v1112 = vld [vmem:[#allocation3 + $0x448] sm:$0xff]
        %v1113 = vld [vmem:[#allocation3 + $0x450] sm:$0xff]
        %v1114 = vld [vmem:[#allocation3 + $0x458] sm:$0xff]
        %v1115 = vld [vmem:[#allocation3 + $0x460] sm:$0xff]
        %v1116 = vld [vmem:[#allocation3 + $0x468] sm:$0xff]
        %v1117 = vld [vmem:[#allocation3 + $0x470] sm:$0xff]
        %v1118 = vld [vmem:[#allocation3 + $0x478] sm:$0xff]
        %v1119 = vld [vmem:[#allocation3 + $0x480] sm:$0xff]
        %v1120 = vld [vmem:[#allocation3 + $0x488] sm:$0xff]
        %v1121 = vld [vmem:[#allocation3 + $0x490] sm:$0xff]
        %v1122 = vld [vmem:[#allocation3 + $0x498] sm:$0xff]
        %v1123 = vld [vmem:[#allocation3 + $0x4a0] sm:$0xff]
        %v1124 = vld [vmem:[#allocation3 + $0x4a8] sm:$0xff]
        %v1125 = vld [vmem:[#allocation3 + $0x4b0] sm:$0xff]
        %v1126 = vld [vmem:[#allocation3 + $0x4b8] sm:$0xff]
        %v1127 = vld [vmem:[#allocation3 + $0x4c0] sm:$0xff]
        %v1128 = vld [vmem:[#allocation3 + $0x4c8] sm:$0xff]
        %v1129 = vld [vmem:[#allocation3 + $0x4d0] sm:$0xff]
        %v1130 = vld [vmem:[#allocation3 + $0x4d8] sm:$0xff]
        %v1131 = vld [vmem:[#allocation3 + $0x4e0] sm:$0xff]
        %v1132 = vld [vmem:[#allocation3 + $0x4e8] sm:$0xff]
        %v1133 = vld [vmem:[#allocation3 + $0x4f0] sm:$0xff]
        %v1134 = vld [vmem:[#allocation3 + $0x4f8] sm:$0xff]
        %v1135 = vld [vmem:[#allocation3 + $0x500] sm:$0xff]
        %v1136 = vld [vmem:[#allocation3 + $0x508] sm:$0xff]
        %v1137 = vld [vmem:[#allocation3 + $0x510] sm:$0xff]
        %v1138 = vld [vmem:[#allocation3 + $0x518] sm:$0xff]
        %v1139 = vld [vmem:[#allocation3 + $0x520] sm:$0xff]
        %v1140 = vld [vmem:[#allocation3 + $0x528] sm:$0xff]
        %v1141 = vld [vmem:[#allocation3 + $0x530] sm:$0xff]
        %v1142 = vld [vmem:[#allocation3 + $0x538] sm:$0xff]
        %v1143 = vld [vmem:[#allocation3 + $0x540] sm:$0xff]
        %v1144 = vld [vmem:[#allocation3 + $0x548] sm:$0xff]
        %v1145 = vld [vmem:[#allocation3 + $0x550] sm:$0xff]
        %v1146 = vld [vmem:[#allocation3 + $0x558] sm:$0xff]
        %v1147 = vld [vmem:[#allocation3 + $0x560] sm:$0xff]
        %v1148 = vld [vmem:[#allocation3 + $0x568] sm:$0xff]
        %v1149 = vld [vmem:[#allocation3 + $0x570] sm:$0xff]
        %v1150 = vld [vmem:[#allocation3 + $0x578] sm:$0xff]
        %v1151 = vld [vmem:[#allocation3 + $0x580] sm:$0xff]
        %v1152 = vld [vmem:[#allocation3 + $0x588] sm:$0xff]
        %v1153 = vld [vmem:[#allocation3 + $0x590] sm:$0xff]
        %v1154 = vld [vmem:[#allocation3 + $0x598] sm:$0xff]
        %v1155 = vld [vmem:[#allocation3 + $0x5a0] sm:$0xff]
        %v1156 = vld [vmem:[#allocation3 + $0x5a8] sm:$0xff]
        %v1157 = vld [vmem:[#allocation3 + $0x5b0] sm:$0xff]
        %v1158 = vld [vmem:[#allocation3 + $0x5b8] sm:$0xff]
        %v1159 = vld [vmem:[#allocation3 + $0x5c0] sm:$0xff]
        %v1160 = vld [vmem:[#allocation3 + $0x5c8] sm:$0xff]
        %v1161 = vld [vmem:[#allocation3 + $0x5d0] sm:$0xff]
        %v1162 = vld [vmem:[#allocation3 + $0x5d8] sm:$0xff]
        %v1163 = vld [vmem:[#allocation3 + $0x5e0] sm:$0xff]
        %v1164 = vld [vmem:[#allocation3 + $0x5e8] sm:$0xff]
        %v1165 = vld [vmem:[#allocation3 + $0x5f0] sm:$0xff]
        %v1166 = vld [vmem:[#allocation3 + $0x5f8] sm:$0xff]
        %v1167 = vld [vmem:[#allocation3 + $0x600] sm:$0xff]
        %v1168 = vld [vmem:[#allocation3 + $0x608] sm:$0xff]
        %v1169 = vld [vmem:[#allocation3 + $0x610] sm:$0xff]
        %v1170 = vld [vmem:[#allocation3 + $0x618] sm:$0xff]
        %v1171 = vld [vmem:[#allocation3 + $0x620] sm:$0xff]
        %v1172 = vld [vmem:[#allocation3 + $0x628] sm:$0xff]
        %v1173 = vld [vmem:[#allocation3 + $0x630] sm:$0xff]
        %v1174 = vld [vmem:[#allocation3 + $0x638] sm:$0xff]
        %v1175 = vld [vmem:[#allocation3 + $0x640] sm:$0xff]
        %v1176 = vld [vmem:[#allocation3 + $0x648] sm:$0xff]
        %v1177 = vld [vmem:[#allocation3 + $0x650] sm:$0xff]
        %v1178 = vld [vmem:[#allocation3 + $0x658] sm:$0xff]
        %v1179 = vld [vmem:[#allocation3 + $0x660] sm:$0xff]
        %v1180 = vld [vmem:[#allocation3 + $0x668] sm:$0xff]
        %v1181 = vld [vmem:[#allocation3 + $0x670] sm:$0xff]
        %v1182 = vld [vmem:[#allocation3 + $0x678] sm:$0xff]
        %v1183 = vld [vmem:[#allocation3 + $0x680] sm:$0xff]
        %v1184 = vld [vmem:[#allocation3 + $0x688] sm:$0xff]
        %v1185 = vld [vmem:[#allocation3 + $0x690] sm:$0xff]
        %v1186 = vld [vmem:[#allocation3 + $0x698] sm:$0xff]
        %v1187 = vld [vmem:[#allocation3 + $0x6a0] sm:$0xff]
        %v1188 = vld [vmem:[#allocation3 + $0x6a8] sm:$0xff]
        %v1189 = vld [vmem:[#allocation3 + $0x6b0] sm:$0xff]
        %v1190 = vld [vmem:[#allocation3 + $0x6b8] sm:$0xff]
        %v1191 = vld [vmem:[#allocation3 + $0x6c0] sm:$0xff]
        %v1192 = vld [vmem:[#allocation3 + $0x6c8] sm:$0xff]
        %v1193 = vld [vmem:[#allocation3 + $0x6d0] sm:$0xff]
        %v1194 = vld [vmem:[#allocation3 + $0x6d8] sm:$0xff]
        %v1195 = vld [vmem:[#allocation3 + $0x6e0] sm:$0xff]
        %v1196 = vld [vmem:[#allocation3 + $0x6e8] sm:$0xff]
        %v1197 = vld [vmem:[#allocation3 + $0x6f0] sm:$0xff]
        %v1198 = vld [vmem:[#allocation3 + $0x6f8] sm:$0xff]
        %v1199 = vld [vmem:[#allocation3 + $0x700] sm:$0xff]
        %v1200 = vld [vmem:[#allocation3 + $0x708] sm:$0xff]
        %v1201 = vld [vmem:[#allocation3 + $0x710] sm:$0xff]
        %v1202 = vld [vmem:[#allocation3 + $0x718] sm:$0xff]
        %v1203 = vld [vmem:[#allocation3 + $0x720] sm:$0xff]
        %v1204 = vld [vmem:[#allocation3 + $0x728] sm:$0xff]
        %v1205 = vld [vmem:[#allocation3 + $0x730] sm:$0xff]
        %v1206 = vld [vmem:[#allocation3 + $0x738] sm:$0xff]
        %v1207 = vld [vmem:[#allocation3 + $0x740] sm:$0xff]
        %v1208 = vld [vmem:[#allocation3 + $0x748] sm:$0xff]
        %v1209 = vld [vmem:[#allocation3 + $0x750] sm:$0xff]
        %v1210 = vld [vmem:[#allocation3 + $0x758] sm:$0xff]
        %v1211 = vld [vmem:[#allocation3 + $0x760] sm:$0xff]
        %v1212 = vld [vmem:[#allocation3 + $0x768] sm:$0xff]
        %v1213 = vld [vmem:[#allocation3 + $0x770] sm:$0xff]
        %v1214 = vld [vmem:[#allocation3 + $0x778] sm:$0xff]
        %v1215 = vld [vmem:[#allocation3 + $0x780] sm:$0xff]
        %v1216 = vld [vmem:[#allocation3 + $0x788] sm:$0xff]
        %v1217 = vld [vmem:[#allocation3 + $0x790] sm:$0xff]
        %v1218 = vld [vmem:[#allocation3 + $0x798] sm:$0xff]
        %v1219 = vld [vmem:[#allocation3 + $0x7a0] sm:$0xff]
        %v1220 = vld [vmem:[#allocation3 + $0x7a8] sm:$0xff]
        %v1221 = vld [vmem:[#allocation3 + $0x7b0] sm:$0xff]
        %v1222 = vld [vmem:[#allocation3 + $0x7b8] sm:$0xff]
        %v1223 = vld [vmem:[#allocation3 + $0x7c0] sm:$0xff]
        %v1224 = vld [vmem:[#allocation3 + $0x7c8] sm:$0xff]
        %v1225 = vld [vmem:[#allocation3 + $0x7d0] sm:$0xff]
        %v1226 = vld [vmem:[#allocation3 + $0x7d8] sm:$0xff]
        %v1227 = vld [vmem:[#allocation3 + $0x7e0] sm:$0xff]
        %v1228 = vld [vmem:[#allocation3 + $0x7e8] sm:$0xff]
        %v1229 = vld [vmem:[#allocation3 + $0x7f0] sm:$0xff]
        %v1230 = vld [vmem:[#allocation3 + $0x7f8] sm:$0xff]
        %v1231 = vld [vmem:[#allocation3 + $0x800] sm:$0xff]
        %v1232 = vld [vmem:[#allocation3 + $0x808] sm:$0xff]
        %v1233 = vld [vmem:[#allocation3 + $0x810] sm:$0xff]
        %v1234 = vld [vmem:[#allocation3 + $0x818] sm:$0xff]
        %v1235 = vld [vmem:[#allocation3 + $0x820] sm:$0xff]
        %v1236 = vld [vmem:[#allocation3 + $0x828] sm:$0xff]
        %v1237 = vld [vmem:[#allocation3 + $0x830] sm:$0xff]
        %v1238 = vld [vmem:[#allocation3 + $0x838] sm:$0xff]
        %v1239 = vld [vmem:[#allocation3 + $0x840] sm:$0xff]
        %v1240 = vld [vmem:[#allocation3 + $0x848] sm:$0xff]
        %v1241 = vld [vmem:[#allocation3 + $0x850] sm:$0xff]
        %v1242 = vld [vmem:[#allocation3 + $0x858] sm:$0xff]
        %v1243 = vld [vmem:[#allocation3 + $0x860] sm:$0xff]
        %v1244 = vld [vmem:[#allocation3 + $0x868] sm:$0xff]
        %v1245 = vld [vmem:[#allocation3 + $0x870] sm:$0xff]
        %v1246 = vld [vmem:[#allocation3 + $0x878] sm:$0xff]
        %v1247 = vld [vmem:[#allocation3 + $0x880] sm:$0xff]
        %v1248 = vld [vmem:[#allocation3 + $0x888] sm:$0xff]
        %v1249 = vld [vmem:[#allocation3 + $0x890] sm:$0xff]
        %v1250 = vld [vmem:[#allocation3 + $0x898] sm:$0xff]
        %v1251 = vld [vmem:[#allocation3 + $0x8a0] sm:$0xff]
        %v1252 = vld [vmem:[#allocation3 + $0x8a8] sm:$0xff]
        %v1253 = vld [vmem:[#allocation3 + $0x8b0] sm:$0xff]
        %v1254 = vld [vmem:[#allocation3 + $0x8b8] sm:$0xff]
        %v1255 = vld [vmem:[#allocation3 + $0x8c0] sm:$0xff]
        %v1256 = vld [vmem:[#allocation3 + $0x8c8] sm:$0xff]
        %v1257 = vld [vmem:[#allocation3 + $0x8d0] sm:$0xff]
        %v1258 = vld [vmem:[#allocation3 + $0x8d8] sm:$0xff]
        %v1259 = vld [vmem:[#allocation3 + $0x8e0] sm:$0xff]
        %v1260 = vld [vmem:[#allocation3 + $0x8e8] sm:$0xff]
        %v1261 = vld [vmem:[#allocation3 + $0x8f0] sm:$0xff]
        %v1262 = vld [vmem:[#allocation3 + $0x8f8] sm:$0xff]
        %v1263 = vld [vmem:[%s1] sm:$0xff]
        %v1264 = vld [vmem:[%s1 + $0x8] sm:$0xff]
        %v1265 = vld [vmem:[%s1 + $0x10] sm:$0xff]
        %v1266 = vld [vmem:[%s1 + $0x18] sm:$0xff]
        %v1267 = vld [vmem:[%s1 + $0x20] sm:$0xff]
        %v1268 = vld [vmem:[%s1 + $0x28] sm:$0xff]
        %v1269 = vld [vmem:[%s1 + $0x30] sm:$0xff]
        %v1270 = vld [vmem:[%s1 + $0x38] sm:$0xff]
        %v1271 = vld [vmem:[%s1 + $0x40] sm:$0xff]
        %v1272 = vld [vmem:[%s1 + $0x48] sm:$0xff]
        %v1273 = vld [vmem:[%s1 + $0x50] sm:$0xff]
        %v1274 = vld [vmem:[%s1 + $0x58] sm:$0xff]
        %v1275 = vld [vmem:[%s1 + $0x60] sm:$0xff]
        %v1276 = vld [vmem:[%s1 + $0x68] sm:$0xff]
        %v1277 = vld [vmem:[%s1 + $0x70] sm:$0xff]
        %v1278 = vld [vmem:[%s1 + $0x78] sm:$0xff]
        %v1279 = vld [vmem:[%s1 + $0x80] sm:$0xff]
        %v1280 = vld [vmem:[%s1 + $0x88] sm:$0xff]
        %v1281 = vld [vmem:[%s1 + $0x90] sm:$0xff]
        %v1282 = vld [vmem:[%s1 + $0x98] sm:$0xff]
        %v1283 = vld [vmem:[%s1 + $0xa0] sm:$0xff]
        %v1284 = vld [vmem:[%s1 + $0xa8] sm:$0xff]
        %v1285 = vld [vmem:[%s1 + $0xb0] sm:$0xff]
        %v1286 = vld [vmem:[%s1 + $0xb8] sm:$0xff]
        %v1287 = vld [vmem:[%s1 + $0xc0] sm:$0xff]
        %v1288 = vld [vmem:[%s1 + $0xc8] sm:$0xff]
        %v1289 = vld [vmem:[%s1 + $0xd0] sm:$0xff]
        %v1290 = vld [vmem:[%s1 + $0xd8] sm:$0xff]
        %v1291 = vld [vmem:[%s1 + $0xe0] sm:$0xff]
        %v1292 = vld [vmem:[%s1 + $0xe8] sm:$0xff]
        %v1293 = vld [vmem:[%s1 + $0xf0] sm:$0xff]
        %v1294 = vld [vmem:[%s1 + $0xf8] sm:$0xff]
        %v1295 = vld [vmem:[%s1 + $0x100] sm:$0xff]
        %v1296 = vld [vmem:[%s1 + $0x108] sm:$0xff]
        %v1297 = vld [vmem:[%s1 + $0x110] sm:$0xff]
        %v1298 = vld [vmem:[%s1 + $0x118] sm:$0xff]
        %v1299 = vld [vmem:[%s1 + $0x120] sm:$0xff]
        %v1300 = vld [vmem:[%s1 + $0x128] sm:$0xff]
        %v1301 = vld [vmem:[%s1 + $0x130] sm:$0xff]
        %v1302 = vld [vmem:[%s1 + $0x138] sm:$0xff]
        %v1303 = vld [vmem:[%s1 + $0x140] sm:$0xff]
        %v1304 = vld [vmem:[%s1 + $0x148] sm:$0xff]
        %v1305 = vld [vmem:[%s1 + $0x150] sm:$0xff]
        %v1306 = vld [vmem:[%s1 + $0x158] sm:$0xff]
        %v1307 = vld [vmem:[%s1 + $0x160] sm:$0xff]
        %v1308 = vld [vmem:[%s1 + $0x168] sm:$0xff]
        %v1309 = vld [vmem:[%s1 + $0x170] sm:$0xff]
        %v1310 = vld [vmem:[%s1 + $0x178] sm:$0xff]
        %v1311 = vld [vmem:[%s1 + $0x180] sm:$0xff]
        %v1312 = vld [vmem:[%s1 + $0x188] sm:$0xff]
        %v1313 = vld [vmem:[%s1 + $0x190] sm:$0xff]
        %v1314 = vld [vmem:[%s1 + $0x198] sm:$0xff]
        %v1315 = vld [vmem:[%s1 + $0x1a0] sm:$0xff]
        %v1316 = vld [vmem:[%s1 + $0x1a8] sm:$0xff]
        %v1317 = vld [vmem:[%s1 + $0x1b0] sm:$0xff]
        %v1318 = vld [vmem:[%s1 + $0x1b8] sm:$0xff]
        %v1319 = vld [vmem:[%s1 + $0x1c0] sm:$0xff]
        %v1320 = vld [vmem:[%s1 + $0x1c8] sm:$0xff]
        %v1321 = vld [vmem:[%s1 + $0x1d0] sm:$0xff]
        %v1322 = vld [vmem:[%s1 + $0x1d8] sm:$0xff]
        %v1323 = vld [vmem:[%s1 + $0x1e0] sm:$0xff]
        %v1324 = vld [vmem:[%s1 + $0x1e8] sm:$0xff]
        %v1325 = vld [vmem:[%s1 + $0x1f0] sm:$0xff]
        %v1326 = vld [vmem:[%s1 + $0x1f8] sm:$0xff]
        %v1327 = vld [vmem:[%s1 + $0x200] sm:$0xff]
        %v1328 = vld [vmem:[%s1 + $0x208] sm:$0xff]
        %v1329 = vld [vmem:[%s1 + $0x210] sm:$0xff]
        %v1330 = vld [vmem:[%s1 + $0x218] sm:$0xff]
        %v1331 = vld [vmem:[%s1 + $0x220] sm:$0xff]
        %v1332 = vld [vmem:[%s1 + $0x228] sm:$0xff]
        %v1333 = vld [vmem:[%s1 + $0x230] sm:$0xff]
        %v1334 = vld [vmem:[%s1 + $0x238] sm:$0xff]
        %v1335 = vld [vmem:[%s1 + $0x240] sm:$0xff]
        %v1336 = vld [vmem:[%s1 + $0x248] sm:$0xff]
        %v1337 = vld [vmem:[%s1 + $0x250] sm:$0xff]
        %v1338 = vld [vmem:[%s1 + $0x258] sm:$0xff]
        %v1339 = vld [vmem:[%s1 + $0x260] sm:$0xff]
        %v1340 = vld [vmem:[%s1 + $0x268] sm:$0xff]
        %v1341 = vld [vmem:[%s1 + $0x270] sm:$0xff]
        %v1342 = vld [vmem:[%s1 + $0x278] sm:$0xff]
        %v1343 = vld [vmem:[%s1 + $0x280] sm:$0xff]
        %v1344 = vld [vmem:[%s1 + $0x288] sm:$0xff]
        %v1345 = vld [vmem:[%s1 + $0x290] sm:$0xff]
        %v1346 = vld [vmem:[%s1 + $0x298] sm:$0xff]
        %v1347 = vld [vmem:[%s1 + $0x2a0] sm:$0xff]
        %v1348 = vld [vmem:[%s1 + $0x2a8] sm:$0xff]
        %v1349 = vld [vmem:[%s1 + $0x2b0] sm:$0xff]
        %v1350 = vld [vmem:[%s1 + $0x2b8] sm:$0xff]
        %v1351 = vld [vmem:[%s1 + $0x2c0] sm:$0xff]
        %v1352 = vld [vmem:[%s1 + $0x2c8] sm:$0xff]
        %v1353 = vld [vmem:[%s1 + $0x2d0] sm:$0xff]
        %v1354 = vld [vmem:[%s1 + $0x2d8] sm:$0xff]
        %v1355 = vld [vmem:[%s1 + $0x2e0] sm:$0xff]
        %v1356 = vld [vmem:[%s1 + $0x2e8] sm:$0xff]
        %v1357 = vld [vmem:[%s1 + $0x2f0] sm:$0xff]
        %v1358 = vld [vmem:[%s1 + $0x2f8] sm:$0xff]
        %v1359 = vld [vmem:[%s1 + $0x300] sm:$0xff]
        %v1360 = vld [vmem:[%s1 + $0x308] sm:$0xff]
        %v1361 = vld [vmem:[%s1 + $0x310] sm:$0xff]
        %v1362 = vld [vmem:[%s1 + $0x318] sm:$0xff]
        %v1363 = vld [vmem:[%s1 + $0x320] sm:$0xff]
        %v1364 = vld [vmem:[%s1 + $0x328] sm:$0xff]
        %v1365 = vld [vmem:[%s1 + $0x330] sm:$0xff]
        %v1366 = vld [vmem:[%s1 + $0x338] sm:$0xff]
        %v1367 = vld [vmem:[%s1 + $0x340] sm:$0xff]
        %v1368 = vld [vmem:[%s1 + $0x348] sm:$0xff]
        %v1369 = vld [vmem:[%s1 + $0x350] sm:$0xff]
        %v1370 = vld [vmem:[%s1 + $0x358] sm:$0xff]
        %v1371 = vld [vmem:[%s1 + $0x360] sm:$0xff]
        %v1372 = vld [vmem:[%s1 + $0x368] sm:$0xff]
        %v1373 = vld [vmem:[%s1 + $0x370] sm:$0xff]
        %v1374 = vld [vmem:[%s1 + $0x378] sm:$0xff]
        %v1375 = vld [vmem:[%s1 + $0x380] sm:$0xff]
        %v1376 = vld [vmem:[%s1 + $0x388] sm:$0xff]
        %v1377 = vld [vmem:[%s1 + $0x390] sm:$0xff]
        %v1378 = vld [vmem:[%s1 + $0x398] sm:$0xff]
        %v1379 = vld [vmem:[%s1 + $0x3a0] sm:$0xff]
        %v1380 = vld [vmem:[%s1 + $0x3a8] sm:$0xff]
        %v1381 = vld [vmem:[%s1 + $0x3b0] sm:$0xff]
        %v1382 = vld [vmem:[%s1 + $0x3b8] sm:$0xff]
        %v1383 = vld [vmem:[%s1 + $0x3c0] sm:$0xff]
        %v1384 = vld [vmem:[%s1 + $0x3c8] sm:$0xff]
        %v1385 = vld [vmem:[%s1 + $0x3d0] sm:$0xff]
        %v1386 = vld [vmem:[%s1 + $0x3d8] sm:$0xff]
        %v1387 = vld [vmem:[%s1 + $0x3e0] sm:$0xff]
        %v1388 = vld [vmem:[%s1 + $0x3e8] sm:$0xff]
        %v1389 = vld [vmem:[%s1 + $0x3f0] sm:$0xff]
        %v1390 = vld [vmem:[%s1 + $0x3f8] sm:$0xff]
        %v1391 = vld [vmem:[%s1 + $0x400] sm:$0xff]
        %v1392 = vld [vmem:[%s1 + $0x408] sm:$0xff]
        %v1393 = vld [vmem:[%s1 + $0x410] sm:$0xff]
        %v1394 = vld [vmem:[%s1 + $0x418] sm:$0xff]
        %v1395 = vld [vmem:[%s1 + $0x420] sm:$0xff]
        %v1396 = vld [vmem:[%s1 + $0x428] sm:$0xff]
        %v1397 = vld [vmem:[%s1 + $0x430] sm:$0xff]
        %v1398 = vld [vmem:[%s1 + $0x438] sm:$0xff]
        %v1399 = vld [vmem:[%s1 + $0x440] sm:$0xff]
        %v1400 = vld [vmem:[%s1 + $0x448] sm:$0xff]
        %v1401 = vld [vmem:[%s1 + $0x450] sm:$0xff]
        %v1402 = vld [vmem:[%s1 + $0x458] sm:$0xff]
        %v1403 = vld [vmem:[%s1 + $0x460] sm:$0xff]
        %v1404 = vld [vmem:[%s1 + $0x468] sm:$0xff]
        %v1405 = vld [vmem:[%s1 + $0x470] sm:$0xff]
        %v1406 = vld [vmem:[%s1 + $0x478] sm:$0xff]
        %1407 = vmatprep.subr.mxu0 0.0
        %1408 = vmatpush1.msra.mxu0 %v1278
        %1409 = vmatprep.subr.mxu0 0.0
        %1410 = vmatpush1.msra.mxu0 %v1277
        %1411 = vmatprep.subr.mxu0 0.0
        %1412 = vmatpush1.msra.mxu0 %v1276
        %1413 = vmatprep.subr.mxu0 0.0
        %1414 = vmatpush1.msra.mxu0 %v1275
        %1415 = vmatprep.subr.mxu0 0.0
        %1416 = vmatpush1.msra.mxu0 %v1274
        %1417 = vmatprep.subr.mxu0 0.0
        %1418 = vmatpush1.msra.mxu0 %v1273
        %1419 = vmatprep.subr.mxu0 0.0
        %1420 = vmatpush1.msra.mxu0 %v1272
        %1421 = vmatprep.subr.mxu0 0.0
        %1422 = vmatpush1.msra.mxu0 %v1271
        %1423 = vmatprep.subr.mxu0 0.0
        %1424 = vmatpush1.msra.mxu0 %v1270
        %1425 = vmatprep.subr.mxu0 0.0
        %1426 = vmatpush1.msra.mxu0 %v1269
        %1427 = vmatprep.subr.mxu0 0.0
        %1428 = vmatpush1.msra.mxu0 %v1268
        %1429 = vmatprep.subr.mxu0 0.0
        %1430 = vmatpush1.msra.mxu0 %v1267
        %1431 = vmatprep.subr.mxu0 0.0
        %1432 = vmatpush1.msra.mxu0 %v1266
        %1433 = vmatprep.subr.mxu0 0.0
        %1434 = vmatpush1.msra.mxu0 %v1265
        %1435 = vmatprep.subr.mxu0 0.0
        %1436 = vmatpush1.msra.mxu0 %v1264
        %1437 = vmatprep.subr.mxu0 0.0
        %1438 = vmatpush1.msra.mxu0 %v1263
        %1439 = vmatprep.subr.mxu0 0.0
        %1440 = vmatpush2.msra.mxu0 %v1294
        %1441 = vmatprep.subr.mxu0 0.0
        %1442 = vmatpush2.msra.mxu0 %v1293
        %1443 = vmatprep.subr.mxu0 0.0
        %1444 = vmatpush2.msra.mxu0 %v1292
        %1445 = vmatprep.subr.mxu0 0.0
        %1446 = vmatpush2.msra.mxu0 %v1291
        %1447 = vmatprep.subr.mxu0 0.0
        %1448 = vmatpush2.msra.mxu0 %v1290
        %1449 = vmatprep.subr.mxu0 0.0
        %1450 = vmatpush2.msra.mxu0 %v1289
        %1451 = vmatprep.subr.mxu0 0.0
        %1452 = vmatpush2.msra.mxu0 %v1288
        %1453 = vmatprep.subr.mxu0 0.0
        %1454 = vmatpush2.msra.mxu0 %v1287
        %1455 = vmatprep.subr.mxu0 0.0
        %1456 = vmatpush2.msra.mxu0 %v1286
        %1457 = vmatprep.subr.mxu0 0.0
        %1458 = vmatpush2.msra.mxu0 %v1285
        %1459 = vmatprep.subr.mxu0 0.0
        %1460 = vmatpush2.msra.mxu0 %v1284
        %1461 = vmatprep.subr.mxu0 0.0
        %1462 = vmatpush2.msra.mxu0 %v1283
        %1463 = vmatprep.subr.mxu0 0.0
        %1464 = vmatpush2.msra.mxu0 %v1282
        %1465 = vmatprep.subr.mxu0 0.0
        %1466 = vmatpush2.msra.mxu0 %v1281
        %1467 = vmatprep.subr.mxu0 0.0
        %1468 = vmatpush2.msra.mxu0 %v1280
        %1469 = vmatprep.subr.mxu0 0.0
        %1470 = vmatpush2.msra.mxu0 %v1279
        %1471 = vmatprep.mubr.f32.mxu0 %v976
        %1472 = vmatmul.mubr.f32.gmra.mxu0 %v975
        %v1473 = vpop.f32.mrf.mxu0
        %v1474 = vadd.f32 0.0, %v1473
        %v1475 = vpop.f32.mrf.mxu0
        %1476 = vmatprep.mubr.f32.mxu0 %v985
        %1477 = vmatmul.mubr.f32.gmra.mxu0 %v984
        %v1478 = vpop.f32.mrf.mxu0
        %v1479 = vadd.f32 0.0, %v1478
        %v1480 = vpop.f32.mrf.mxu0
        %1481 = vmatprep.mubr.f32.mxu0 %v994
        %1482 = vmatmul.mubr.f32.gmra.mxu0 %v993
        %v1483 = vpop.f32.mrf.mxu0
        %v1484 = vadd.f32 0.0, %v1483
        %v1485 = vpop.f32.mrf.mxu0
        %1486 = vmatprep.mubr.f32.mxu0 %v1003
        %1487 = vmatmul.mubr.f32.gmra.mxu0 %v1002
        %v1488 = vpop.f32.mrf.mxu0
        %v1489 = vadd.f32 0.0, %v1488
        %v1490 = vpop.f32.mrf.mxu0
        %1491 = vmatprep.mubr.f32.mxu0 %v1012
        %1492 = vmatmul.mubr.f32.gmra.mxu0 %v1011
        %v1493 = vpop.f32.mrf.mxu0
        %v1494 = vadd.f32 0.0, %v1493
        %v1495 = vpop.f32.mrf.mxu0
        %1496 = vmatprep.mubr.f32.mxu0 %v1021
        %1497 = vmatmul.mubr.f32.gmra.mxu0 %v1020
        %v1498 = vpop.f32.mrf.mxu0
        %v1499 = vadd.f32 0.0, %v1498
        %v1500 = vpop.f32.mrf.mxu0
        %1501 = vmatprep.mubr.f32.mxu0 %v1030
        %1502 = vmatmul.mubr.f32.gmra.mxu0 %v1029
        %v1503 = vpop.f32.mrf.mxu0
        %v1504 = vadd.f32 0.0, %v1503
        %v1505 = vpop.f32.mrf.mxu0
        %1506 = vmatprep.mubr.f32.mxu0 %v1039
        %1507 = vmatmul.mubr.f32.gmra.mxu0 %v1038
        %v1508 = vpop.f32.mrf.mxu0
        %v1509 = vadd.f32 0.0, %v1508
        %v1510 = vpop.f32.mrf.mxu0
        %1511 = vmatprep.mubr.f32.mxu0 %v1048
        %1512 = vmatmul.mubr.f32.gmra.mxu0 %v1047
        %v1513 = vpop.f32.mrf.mxu0
        %v1514 = vadd.f32 0.0, %v1513
        %v1515 = vpop.f32.mrf.mxu0
        %1516 = vmatprep.mubr.f32.mxu0 %v1057
        %1517 = vmatmul.mubr.f32.gmra.mxu0 %v1056
        %v1518 = vpop.f32.mrf.mxu0
        %v1519 = vadd.f32 0.0, %v1518
        %v1520 = vpop.f32.mrf.mxu0
        %1521 = vmatprep.mubr.f32.mxu0 %v1066
        %1522 = vmatmul.mubr.f32.gmra.mxu0 %v1065
        %v1523 = vpop.f32.mrf.mxu0
        %v1524 = vadd.f32 0.0, %v1523
        %v1525 = vpop.f32.mrf.mxu0
        %1526 = vmatprep.mubr.f32.mxu0 %v1075
        %1527 = vmatmul.mubr.f32.gmra.mxu0 %v1074
        %v1528 = vpop.f32.mrf.mxu0
        %v1529 = vadd.f32 0.0, %v1528
        %v1530 = vpop.f32.mrf.mxu0
        %1531 = vmatprep.mubr.f32.mxu0 %v1084
        %1532 = vmatmul.mubr.f32.gmra.mxu0 %v1083
        %v1533 = vpop.f32.mrf.mxu0
        %v1534 = vadd.f32 0.0, %v1533
        %v1535 = vpop.f32.mrf.mxu0
        %1536 = vmatprep.mubr.f32.mxu0 %v1093
        %1537 = vmatmul.mubr.f32.gmra.mxu0 %v1092
        %v1538 = vpop.f32.mrf.mxu0
        %v1539 = vadd.f32 0.0, %v1538
        %v1540 = vpop.f32.mrf.mxu0
        %1541 = vmatprep.mubr.f32.mxu0 %v1102
        %1542 = vmatmul.mubr.f32.gmra.mxu0 %v1101
        %v1543 = vpop.f32.mrf.mxu0
        %v1544 = vadd.f32 0.0, %v1543
        %v1545 = vpop.f32.mrf.mxu0
        %1546 = vmatprep.mubr.f32.mxu0 %v1111
        %1547 = vmatmul.mubr.f32.gmra.mxu0 %v1110
        %v1548 = vpop.f32.mrf.mxu0
        %v1549 = vadd.f32 0.0, %v1548
        %v1550 = vpop.f32.mrf.mxu0
        %1551 = vmatprep.mubr.f32.mxu0 %v1120
        %1552 = vmatmul.mubr.f32.gmra.mxu0 %v1119
        %v1553 = vpop.f32.mrf.mxu0
        %v1554 = vadd.f32 0.0, %v1553
        %v1555 = vpop.f32.mrf.mxu0
        %1556 = vmatprep.mubr.f32.mxu0 %v1129
        %1557 = vmatmul.mubr.f32.gmra.mxu0 %v1128
        %v1558 = vpop.f32.mrf.mxu0
        %v1559 = vadd.f32 0.0, %v1558
        %v1560 = vpop.f32.mrf.mxu0
        %1561 = vmatprep.mubr.f32.mxu0 %v1138
        %1562 = vmatmul.mubr.f32.gmra.mxu0 %v1137
        %v1563 = vpop.f32.mrf.mxu0
        %v1564 = vadd.f32 0.0, %v1563
        %v1565 = vpop.f32.mrf.mxu0
        %1566 = vmatprep.mubr.f32.mxu0 %v1147
        %1567 = vmatmul.mubr.f32.gmra.mxu0 %v1146
        %v1568 = vpop.f32.mrf.mxu0
        %v1569 = vadd.f32 0.0, %v1568
        %v1570 = vpop.f32.mrf.mxu0
        %1571 = vmatprep.mubr.f32.mxu0 %v1156
        %1572 = vmatmul.mubr.f32.gmra.mxu0 %v1155
        %v1573 = vpop.f32.mrf.mxu0
        %v1574 = vadd.f32 0.0, %v1573
        %v1575 = vpop.f32.mrf.mxu0
        %1576 = vmatprep.mubr.f32.mxu0 %v1165
        %1577 = vmatmul.mubr.f32.gmra.mxu0 %v1164
        %v1578 = vpop.f32.mrf.mxu0
        %v1579 = vadd.f32 0.0, %v1578
        %v1580 = vpop.f32.mrf.mxu0
        %1581 = vmatprep.mubr.f32.mxu0 %v1174
        %1582 = vmatmul.mubr.f32.gmra.mxu0 %v1173
        %v1583 = vpop.f32.mrf.mxu0
        %v1584 = vadd.f32 0.0, %v1583
        %v1585 = vpop.f32.mrf.mxu0
        %1586 = vmatprep.mubr.f32.mxu0 %v1183
        %1587 = vmatmul.mubr.f32.gmra.mxu0 %v1182
        %v1588 = vpop.f32.mrf.mxu0
        %v1589 = vadd.f32 0.0, %v1588
        %v1590 = vpop.f32.mrf.mxu0
        %1591 = vmatprep.mubr.f32.mxu0 %v1192
        %1592 = vmatmul.mubr.f32.gmra.mxu0 %v1191
        %v1593 = vpop.f32.mrf.mxu0
        %v1594 = vadd.f32 0.0, %v1593
        %v1595 = vpop.f32.mrf.mxu0
        %1596 = vmatprep.mubr.f32.mxu0 %v1201
        %1597 = vmatmul.mubr.f32.gmra.mxu0 %v1200
        %v1598 = vpop.f32.mrf.mxu0
        %v1599 = vadd.f32 0.0, %v1598
        %v1600 = vpop.f32.mrf.mxu0
        %1601 = vmatprep.mubr.f32.mxu0 %v1210
        %1602 = vmatmul.mubr.f32.gmra.mxu0 %v1209
        %v1603 = vpop.f32.mrf.mxu0
        %v1604 = vadd.f32 0.0, %v1603
        %v1605 = vpop.f32.mrf.mxu0
        %1606 = vmatprep.mubr.f32.mxu0 %v1219
        %1607 = vmatmul.mubr.f32.gmra.mxu0 %v1218
        %v1608 = vpop.f32.mrf.mxu0
        %v1609 = vadd.f32 0.0, %v1608
        %v1610 = vpop.f32.mrf.mxu0
        %1611 = vmatprep.mubr.f32.mxu0 %v1228
        %1612 = vmatmul.mubr.f32.gmra.mxu0 %v1227
        %v1613 = vpop.f32.mrf.mxu0
        %v1614 = vadd.f32 0.0, %v1613
        %v1615 = vpop.f32.mrf.mxu0
        %1616 = vmatprep.mubr.f32.mxu0 %v1237
        %1617 = vmatmul.mubr.f32.gmra.mxu0 %v1236
        %v1618 = vpop.f32.mrf.mxu0
        %v1619 = vadd.f32 0.0, %v1618
        %v1620 = vpop.f32.mrf.mxu0
        %1621 = vmatprep.mubr.f32.mxu0 %v1246
        %1622 = vmatmul.mubr.f32.gmra.mxu0 %v1245
        %v1623 = vpop.f32.mrf.mxu0
        %v1624 = vadd.f32 0.0, %v1623
        %v1625 = vpop.f32.mrf.mxu0
        %1626 = vmatprep.mubr.f32.mxu0 %v1255
        %1627 = vmatmul.mubr.f32.gmra.mxu0 %v1254
        %v1628 = vpop.f32.mrf.mxu0
        %v1629 = vadd.f32 0.0, %v1628
        %v1630 = vpop.f32.mrf.mxu0
        %1631 = vdwg.mxu0
        %1632 = vmatprep.subr.mxu0 0.0
        %1633 = vmatpush1.msra.mxu0 %v1310
        %1634 = vmatprep.subr.mxu0 0.0
        %1635 = vmatpush1.msra.mxu0 %v1309
        %1636 = vmatprep.subr.mxu0 0.0
        %1637 = vmatpush1.msra.mxu0 %v1308
        %1638 = vmatprep.subr.mxu0 0.0
        %1639 = vmatpush1.msra.mxu0 %v1307
        %1640 = vmatprep.subr.mxu0 0.0
        %1641 = vmatpush1.msra.mxu0 %v1306
        %1642 = vmatprep.subr.mxu0 0.0
        %1643 = vmatpush1.msra.mxu0 %v1305
        %1644 = vmatprep.subr.mxu0 0.0
        %1645 = vmatpush1.msra.mxu0 %v1304
        %1646 = vmatprep.subr.mxu0 0.0
        %1647 = vmatpush1.msra.mxu0 %v1303
        %1648 = vmatprep.subr.mxu0 0.0
        %1649 = vmatpush1.msra.mxu0 %v1302
        %1650 = vmatprep.subr.mxu0 0.0
        %1651 = vmatpush1.msra.mxu0 %v1301
        %1652 = vmatprep.subr.mxu0 0.0
        %1653 = vmatpush1.msra.mxu0 %v1300
        %1654 = vmatprep.subr.mxu0 0.0
        %1655 = vmatpush1.msra.mxu0 %v1299
        %1656 = vmatprep.subr.mxu0 0.0
        %1657 = vmatpush1.msra.mxu0 %v1298
        %1658 = vmatprep.subr.mxu0 0.0
        %1659 = vmatpush1.msra.mxu0 %v1297
        %1660 = vmatprep.subr.mxu0 0.0
        %1661 = vmatpush1.msra.mxu0 %v1296
        %1662 = vmatprep.subr.mxu0 0.0
        %1663 = vmatpush1.msra.mxu0 %v1295
        %1664 = vmatprep.subr.mxu0 0.0
        %1665 = vmatpush2.msra.mxu0 %v1326
        %1666 = vmatprep.subr.mxu0 0.0
        %1667 = vmatpush2.msra.mxu0 %v1325
        %1668 = vmatprep.subr.mxu0 0.0
        %1669 = vmatpush2.msra.mxu0 %v1324
        %1670 = vmatprep.subr.mxu0 0.0
        %1671 = vmatpush2.msra.mxu0 %v1323
        %1672 = vmatprep.subr.mxu0 0.0
        %1673 = vmatpush2.msra.mxu0 %v1322
        %1674 = vmatprep.subr.mxu0 0.0
        %1675 = vmatpush2.msra.mxu0 %v1321
        %1676 = vmatprep.subr.mxu0 0.0
        %1677 = vmatpush2.msra.mxu0 %v1320
        %1678 = vmatprep.subr.mxu0 0.0
        %1679 = vmatpush2.msra.mxu0 %v1319
        %1680 = vmatprep.subr.mxu0 0.0
        %1681 = vmatpush2.msra.mxu0 %v1318
        %1682 = vmatprep.subr.mxu0 0.0
        %1683 = vmatpush2.msra.mxu0 %v1317
        %1684 = vmatprep.subr.mxu0 0.0
        %1685 = vmatpush2.msra.mxu0 %v1316
        %1686 = vmatprep.subr.mxu0 0.0
        %1687 = vmatpush2.msra.mxu0 %v1315
        %1688 = vmatprep.subr.mxu0 0.0
        %1689 = vmatpush2.msra.mxu0 %v1314
        %1690 = vmatprep.subr.mxu0 0.0
        %1691 = vmatpush2.msra.mxu0 %v1313
        %1692 = vmatprep.subr.mxu0 0.0
        %1693 = vmatpush2.msra.mxu0 %v1312
        %1694 = vmatprep.subr.mxu0 0.0
        %1695 = vmatpush2.msra.mxu0 %v1311
        %1696 = vmatprep.mubr.f32.mxu0 %v978
        %1697 = vmatmul.mubr.f32.gmra.mxu0 %v977
        %v1698 = vpop.f32.mrf.mxu0
        %v1699 = vadd.f32 %v1474, %v1698
        %v1700 = vpop.f32.mrf.mxu0
        %1701 = vmatprep.mubr.f32.mxu0 %v987
        %1702 = vmatmul.mubr.f32.gmra.mxu0 %v986
        %v1703 = vpop.f32.mrf.mxu0
        %v1704 = vadd.f32 %v1479, %v1703
        %v1705 = vpop.f32.mrf.mxu0
        %1706 = vmatprep.mubr.f32.mxu0 %v996
        %1707 = vmatmul.mubr.f32.gmra.mxu0 %v995
        %v1708 = vpop.f32.mrf.mxu0
        %v1709 = vadd.f32 %v1484, %v1708
        %v1710 = vpop.f32.mrf.mxu0
        %1711 = vmatprep.mubr.f32.mxu0 %v1005
        %1712 = vmatmul.mubr.f32.gmra.mxu0 %v1004
        %v1713 = vpop.f32.mrf.mxu0
        %v1714 = vadd.f32 %v1489, %v1713
        %v1715 = vpop.f32.mrf.mxu0
        %1716 = vmatprep.mubr.f32.mxu0 %v1014
        %1717 = vmatmul.mubr.f32.gmra.mxu0 %v1013
        %v1718 = vpop.f32.mrf.mxu0
        %v1719 = vadd.f32 %v1494, %v1718
        %v1720 = vpop.f32.mrf.mxu0
        %1721 = vmatprep.mubr.f32.mxu0 %v1023
        %1722 = vmatmul.mubr.f32.gmra.mxu0 %v1022
        %v1723 = vpop.f32.mrf.mxu0
        %v1724 = vadd.f32 %v1499, %v1723
        %v1725 = vpop.f32.mrf.mxu0
        %1726 = vmatprep.mubr.f32.mxu0 %v1032
        %1727 = vmatmul.mubr.f32.gmra.mxu0 %v1031
        %v1728 = vpop.f32.mrf.mxu0
        %v1729 = vadd.f32 %v1504, %v1728
        %v1730 = vpop.f32.mrf.mxu0
        %1731 = vmatprep.mubr.f32.mxu0 %v1041
        %1732 = vmatmul.mubr.f32.gmra.mxu0 %v1040
        %v1733 = vpop.f32.mrf.mxu0
        %v1734 = vadd.f32 %v1509, %v1733
        %v1735 = vpop.f32.mrf.mxu0
        %1736 = vmatprep.mubr.f32.mxu0 %v1050
        %1737 = vmatmul.mubr.f32.gmra.mxu0 %v1049
        %v1738 = vpop.f32.mrf.mxu0
        %v1739 = vadd.f32 %v1514, %v1738
        %v1740 = vpop.f32.mrf.mxu0
        %1741 = vmatprep.mubr.f32.mxu0 %v1059
        %1742 = vmatmul.mubr.f32.gmra.mxu0 %v1058
        %v1743 = vpop.f32.mrf.mxu0
        %v1744 = vadd.f32 %v1519, %v1743
        %v1745 = vpop.f32.mrf.mxu0
        %1746 = vmatprep.mubr.f32.mxu0 %v1068
        %1747 = vmatmul.mubr.f32.gmra.mxu0 %v1067
        %v1748 = vpop.f32.mrf.mxu0
        %v1749 = vadd.f32 %v1524, %v1748
        %v1750 = vpop.f32.mrf.mxu0
        %1751 = vmatprep.mubr.f32.mxu0 %v1077
        %1752 = vmatmul.mubr.f32.gmra.mxu0 %v1076
        %v1753 = vpop.f32.mrf.mxu0
        %v1754 = vadd.f32 %v1529, %v1753
        %v1755 = vpop.f32.mrf.mxu0
        %1756 = vmatprep.mubr.f32.mxu0 %v1086
        %1757 = vmatmul.mubr.f32.gmra.mxu0 %v1085
        %v1758 = vpop.f32.mrf.mxu0
        %v1759 = vadd.f32 %v1534, %v1758
        %v1760 = vpop.f32.mrf.mxu0
        %1761 = vmatprep.mubr.f32.mxu0 %v1095
        %1762 = vmatmul.mubr.f32.gmra.mxu0 %v1094
        %v1763 = vpop.f32.mrf.mxu0
        %v1764 = vadd.f32 %v1539, %v1763
        %v1765 = vpop.f32.mrf.mxu0
        %1766 = vmatprep.mubr.f32.mxu0 %v1104
        %1767 = vmatmul.mubr.f32.gmra.mxu0 %v1103
        %v1768 = vpop.f32.mrf.mxu0
        %v1769 = vadd.f32 %v1544, %v1768
        %v1770 = vpop.f32.mrf.mxu0
        %1771 = vmatprep.mubr.f32.mxu0 %v1113
        %1772 = vmatmul.mubr.f32.gmra.mxu0 %v1112
        %v1773 = vpop.f32.mrf.mxu0
        %v1774 = vadd.f32 %v1549, %v1773
        %v1775 = vpop.f32.mrf.mxu0
        %1776 = vmatprep.mubr.f32.mxu0 %v1122
        %1777 = vmatmul.mubr.f32.gmra.mxu0 %v1121
        %v1778 = vpop.f32.mrf.mxu0
        %v1779 = vadd.f32 %v1554, %v1778
        %v1780 = vpop.f32.mrf.mxu0
        %1781 = vmatprep.mubr.f32.mxu0 %v1131
        %1782 = vmatmul.mubr.f32.gmra.mxu0 %v1130
        %v1783 = vpop.f32.mrf.mxu0
        %v1784 = vadd.f32 %v1559, %v1783
        %v1785 = vpop.f32.mrf.mxu0
        %1786 = vmatprep.mubr.f32.mxu0 %v1140
        %1787 = vmatmul.mubr.f32.gmra.mxu0 %v1139
        %v1788 = vpop.f32.mrf.mxu0
        %v1789 = vadd.f32 %v1564, %v1788
        %v1790 = vpop.f32.mrf.mxu0
        %1791 = vmatprep.mubr.f32.mxu0 %v1149
        %1792 = vmatmul.mubr.f32.gmra.mxu0 %v1148
        %v1793 = vpop.f32.mrf.mxu0
        %v1794 = vadd.f32 %v1569, %v1793
        %v1795 = vpop.f32.mrf.mxu0
        %1796 = vmatprep.mubr.f32.mxu0 %v1158
        %1797 = vmatmul.mubr.f32.gmra.mxu0 %v1157
        %v1798 = vpop.f32.mrf.mxu0
        %v1799 = vadd.f32 %v1574, %v1798
        %v1800 = vpop.f32.mrf.mxu0
        %1801 = vmatprep.mubr.f32.mxu0 %v1167
        %1802 = vmatmul.mubr.f32.gmra.mxu0 %v1166
        %v1803 = vpop.f32.mrf.mxu0
        %v1804 = vadd.f32 %v1579, %v1803
        %v1805 = vpop.f32.mrf.mxu0
        %1806 = vmatprep.mubr.f32.mxu0 %v1176
        %1807 = vmatmul.mubr.f32.gmra.mxu0 %v1175
        %v1808 = vpop.f32.mrf.mxu0
        %v1809 = vadd.f32 %v1584, %v1808
        %v1810 = vpop.f32.mrf.mxu0
        %1811 = vmatprep.mubr.f32.mxu0 %v1185
        %1812 = vmatmul.mubr.f32.gmra.mxu0 %v1184
        %v1813 = vpop.f32.mrf.mxu0
        %v1814 = vadd.f32 %v1589, %v1813
        %v1815 = vpop.f32.mrf.mxu0
        %1816 = vmatprep.mubr.f32.mxu0 %v1194
        %1817 = vmatmul.mubr.f32.gmra.mxu0 %v1193
        %v1818 = vpop.f32.mrf.mxu0
        %v1819 = vadd.f32 %v1594, %v1818
        %v1820 = vpop.f32.mrf.mxu0
        %1821 = vmatprep.mubr.f32.mxu0 %v1203
        %1822 = vmatmul.mubr.f32.gmra.mxu0 %v1202
        %v1823 = vpop.f32.mrf.mxu0
        %v1824 = vadd.f32 %v1599, %v1823
        %v1825 = vpop.f32.mrf.mxu0
        %1826 = vmatprep.mubr.f32.mxu0 %v1212
        %1827 = vmatmul.mubr.f32.gmra.mxu0 %v1211
        %v1828 = vpop.f32.mrf.mxu0
        %v1829 = vadd.f32 %v1604, %v1828
        %v1830 = vpop.f32.mrf.mxu0
        %1831 = vmatprep.mubr.f32.mxu0 %v1221
        %1832 = vmatmul.mubr.f32.gmra.mxu0 %v1220
        %v1833 = vpop.f32.mrf.mxu0
        %v1834 = vadd.f32 %v1609, %v1833
        %v1835 = vpop.f32.mrf.mxu0
        %1836 = vmatprep.mubr.f32.mxu0 %v1230
        %1837 = vmatmul.mubr.f32.gmra.mxu0 %v1229
        %v1838 = vpop.f32.mrf.mxu0
        %v1839 = vadd.f32 %v1614, %v1838
        %v1840 = vpop.f32.mrf.mxu0
        %1841 = vmatprep.mubr.f32.mxu0 %v1239
        %1842 = vmatmul.mubr.f32.gmra.mxu0 %v1238
        %v1843 = vpop.f32.mrf.mxu0
        %v1844 = vadd.f32 %v1619, %v1843
        %v1845 = vpop.f32.mrf.mxu0
        %1846 = vmatprep.mubr.f32.mxu0 %v1248
        %1847 = vmatmul.mubr.f32.gmra.mxu0 %v1247
        %v1848 = vpop.f32.mrf.mxu0
        %v1849 = vadd.f32 %v1624, %v1848
        %v1850 = vpop.f32.mrf.mxu0
        %1851 = vmatprep.mubr.f32.mxu0 %v1257
        %1852 = vmatmul.mubr.f32.gmra.mxu0 %v1256
        %v1853 = vpop.f32.mrf.mxu0
        %v1854 = vadd.f32 %v1629, %v1853
        %v1855 = vpop.f32.mrf.mxu0
        %1856 = vdwg.mxu0
        %1857 = vmatprep.subr.mxu0 0.0
        %1858 = vmatpush1.msra.mxu0 %v1342
        %1859 = vmatprep.subr.mxu0 0.0
        %1860 = vmatpush1.msra.mxu0 %v1341
        %1861 = vmatprep.subr.mxu0 0.0
        %1862 = vmatpush1.msra.mxu0 %v1340
        %1863 = vmatprep.subr.mxu0 0.0
        %1864 = vmatpush1.msra.mxu0 %v1339
        %1865 = vmatprep.subr.mxu0 0.0
        %1866 = vmatpush1.msra.mxu0 %v1338
        %1867 = vmatprep.subr.mxu0 0.0
        %1868 = vmatpush1.msra.mxu0 %v1337
        %1869 = vmatprep.subr.mxu0 0.0
        %1870 = vmatpush1.msra.mxu0 %v1336
        %1871 = vmatprep.subr.mxu0 0.0
        %1872 = vmatpush1.msra.mxu0 %v1335
        %1873 = vmatprep.subr.mxu0 0.0
        %1874 = vmatpush1.msra.mxu0 %v1334
        %1875 = vmatprep.subr.mxu0 0.0
        %1876 = vmatpush1.msra.mxu0 %v1333
        %1877 = vmatprep.subr.mxu0 0.0
        %1878 = vmatpush1.msra.mxu0 %v1332
        %1879 = vmatprep.subr.mxu0 0.0
        %1880 = vmatpush1.msra.mxu0 %v1331
        %1881 = vmatprep.subr.mxu0 0.0
        %1882 = vmatpush1.msra.mxu0 %v1330
        %1883 = vmatprep.subr.mxu0 0.0
        %1884 = vmatpush1.msra.mxu0 %v1329
        %1885 = vmatprep.subr.mxu0 0.0
        %1886 = vmatpush1.msra.mxu0 %v1328
        %1887 = vmatprep.subr.mxu0 0.0
        %1888 = vmatpush1.msra.mxu0 %v1327
        %1889 = vmatprep.subr.mxu0 0.0
        %1890 = vmatpush2.msra.mxu0 %v1358
        %1891 = vmatprep.subr.mxu0 0.0
        %1892 = vmatpush2.msra.mxu0 %v1357
        %1893 = vmatprep.subr.mxu0 0.0
        %1894 = vmatpush2.msra.mxu0 %v1356
        %1895 = vmatprep.subr.mxu0 0.0
        %1896 = vmatpush2.msra.mxu0 %v1355
        %1897 = vmatprep.subr.mxu0 0.0
        %1898 = vmatpush2.msra.mxu0 %v1354
        %1899 = vmatprep.subr.mxu0 0.0
        %1900 = vmatpush2.msra.mxu0 %v1353
        %1901 = vmatprep.subr.mxu0 0.0
        %1902 = vmatpush2.msra.mxu0 %v1352
        %1903 = vmatprep.subr.mxu0 0.0
        %1904 = vmatpush2.msra.mxu0 %v1351
        %1905 = vmatprep.subr.mxu0 0.0
        %1906 = vmatpush2.msra.mxu0 %v1350
        %1907 = vmatprep.subr.mxu0 0.0
        %1908 = vmatpush2.msra.mxu0 %v1349
        %1909 = vmatprep.subr.mxu0 0.0
        %1910 = vmatpush2.msra.mxu0 %v1348
        %1911 = vmatprep.subr.mxu0 0.0
        %1912 = vmatpush2.msra.mxu0 %v1347
        %1913 = vmatprep.subr.mxu0 0.0
        %1914 = vmatpush2.msra.mxu0 %v1346
        %1915 = vmatprep.subr.mxu0 0.0
        %1916 = vmatpush2.msra.mxu0 %v1345
        %1917 = vmatprep.subr.mxu0 0.0
        %1918 = vmatpush2.msra.mxu0 %v1344
        %1919 = vmatprep.subr.mxu0 0.0
        %1920 = vmatpush2.msra.mxu0 %v1343
        %1921 = vmatprep.mubr.f32.mxu0 %v980
        %1922 = vmatmul.mubr.f32.gmra.mxu0 %v979
        %v1923 = vpop.f32.mrf.mxu0
        %v1924 = vadd.f32 %v1699, %v1923
        %v1925 = vpop.f32.mrf.mxu0
        %1926 = vmatprep.mubr.f32.mxu0 %v989
        %1927 = vmatmul.mubr.f32.gmra.mxu0 %v988
        %v1928 = vpop.f32.mrf.mxu0
        %v1929 = vadd.f32 %v1704, %v1928
        %v1930 = vpop.f32.mrf.mxu0
        %1931 = vmatprep.mubr.f32.mxu0 %v998
        %1932 = vmatmul.mubr.f32.gmra.mxu0 %v997
        %v1933 = vpop.f32.mrf.mxu0
        %v1934 = vadd.f32 %v1709, %v1933
        %v1935 = vpop.f32.mrf.mxu0
        %1936 = vmatprep.mubr.f32.mxu0 %v1007
        %1937 = vmatmul.mubr.f32.gmra.mxu0 %v1006
        %v1938 = vpop.f32.mrf.mxu0
        %v1939 = vadd.f32 %v1714, %v1938
        %v1940 = vpop.f32.mrf.mxu0
        %1941 = vmatprep.mubr.f32.mxu0 %v1016
        %1942 = vmatmul.mubr.f32.gmra.mxu0 %v1015
        %v1943 = vpop.f32.mrf.mxu0
        %v1944 = vadd.f32 %v1719, %v1943
        %v1945 = vpop.f32.mrf.mxu0
        %1946 = vmatprep.mubr.f32.mxu0 %v1025
        %1947 = vmatmul.mubr.f32.gmra.mxu0 %v1024
        %v1948 = vpop.f32.mrf.mxu0
        %v1949 = vadd.f32 %v1724, %v1948
        %v1950 = vpop.f32.mrf.mxu0
        %1951 = vmatprep.mubr.f32.mxu0 %v1034
        %1952 = vmatmul.mubr.f32.gmra.mxu0 %v1033
        %v1953 = vpop.f32.mrf.mxu0
        %v1954 = vadd.f32 %v1729, %v1953
        %v1955 = vpop.f32.mrf.mxu0
        %1956 = vmatprep.mubr.f32.mxu0 %v1043
        %1957 = vmatmul.mubr.f32.gmra.mxu0 %v1042
        %v1958 = vpop.f32.mrf.mxu0
        %v1959 = vadd.f32 %v1734, %v1958
        %v1960 = vpop.f32.mrf.mxu0
        %1961 = vmatprep.mubr.f32.mxu0 %v1052
        %1962 = vmatmul.mubr.f32.gmra.mxu0 %v1051
        %v1963 = vpop.f32.mrf.mxu0
        %v1964 = vadd.f32 %v1739, %v1963
        %v1965 = vpop.f32.mrf.mxu0
        %1966 = vmatprep.mubr.f32.mxu0 %v1061
        %1967 = vmatmul.mubr.f32.gmra.mxu0 %v1060
        %v1968 = vpop.f32.mrf.mxu0
        %v1969 = vadd.f32 %v1744, %v1968
        %v1970 = vpop.f32.mrf.mxu0
        %1971 = vmatprep.mubr.f32.mxu0 %v1070
        %1972 = vmatmul.mubr.f32.gmra.mxu0 %v1069
        %v1973 = vpop.f32.mrf.mxu0
        %v1974 = vadd.f32 %v1749, %v1973
        %v1975 = vpop.f32.mrf.mxu0
        %1976 = vmatprep.mubr.f32.mxu0 %v1079
        %1977 = vmatmul.mubr.f32.gmra.mxu0 %v1078
        %v1978 = vpop.f32.mrf.mxu0
        %v1979 = vadd.f32 %v1754, %v1978
        %v1980 = vpop.f32.mrf.mxu0
        %1981 = vmatprep.mubr.f32.mxu0 %v1088
        %1982 = vmatmul.mubr.f32.gmra.mxu0 %v1087
        %v1983 = vpop.f32.mrf.mxu0
        %v1984 = vadd.f32 %v1759, %v1983
        %v1985 = vpop.f32.mrf.mxu0
        %1986 = vmatprep.mubr.f32.mxu0 %v1097
        %1987 = vmatmul.mubr.f32.gmra.mxu0 %v1096
        %v1988 = vpop.f32.mrf.mxu0
        %v1989 = vadd.f32 %v1764, %v1988
        %v1990 = vpop.f32.mrf.mxu0
        %1991 = vmatprep.mubr.f32.mxu0 %v1106
        %1992 = vmatmul.mubr.f32.gmra.mxu0 %v1105
        %v1993 = vpop.f32.mrf.mxu0
        %v1994 = vadd.f32 %v1769, %v1993
        %v1995 = vpop.f32.mrf.mxu0
        %1996 = vmatprep.mubr.f32.mxu0 %v1115
        %1997 = vmatmul.mubr.f32.gmra.mxu0 %v1114
        %v1998 = vpop.f32.mrf.mxu0
        %v1999 = vadd.f32 %v1774, %v1998
        %v2000 = vpop.f32.mrf.mxu0
        %2001 = vmatprep.mubr.f32.mxu0 %v1124
        %2002 = vmatmul.mubr.f32.gmra.mxu0 %v1123
        %v2003 = vpop.f32.mrf.mxu0
        %v2004 = vadd.f32 %v1779, %v2003
        %v2005 = vpop.f32.mrf.mxu0
        %2006 = vmatprep.mubr.f32.mxu0 %v1133
        %2007 = vmatmul.mubr.f32.gmra.mxu0 %v1132
        %v2008 = vpop.f32.mrf.mxu0
        %v2009 = vadd.f32 %v1784, %v2008
        %v2010 = vpop.f32.mrf.mxu0
        %2011 = vmatprep.mubr.f32.mxu0 %v1142
        %2012 = vmatmul.mubr.f32.gmra.mxu0 %v1141
        %v2013 = vpop.f32.mrf.mxu0
        %v2014 = vadd.f32 %v1789, %v2013
        %v2015 = vpop.f32.mrf.mxu0
        %2016 = vmatprep.mubr.f32.mxu0 %v1151
        %2017 = vmatmul.mubr.f32.gmra.mxu0 %v1150
        %v2018 = vpop.f32.mrf.mxu0
        %v2019 = vadd.f32 %v1794, %v2018
        %v2020 = vpop.f32.mrf.mxu0
        %2021 = vmatprep.mubr.f32.mxu0 %v1160
        %2022 = vmatmul.mubr.f32.gmra.mxu0 %v1159
        %v2023 = vpop.f32.mrf.mxu0
        %v2024 = vadd.f32 %v1799, %v2023
        %v2025 = vpop.f32.mrf.mxu0
        %2026 = vmatprep.mubr.f32.mxu0 %v1169
        %2027 = vmatmul.mubr.f32.gmra.mxu0 %v1168
        %v2028 = vpop.f32.mrf.mxu0
        %v2029 = vadd.f32 %v1804, %v2028
        %v2030 = vpop.f32.mrf.mxu0
        %2031 = vmatprep.mubr.f32.mxu0 %v1178
        %2032 = vmatmul.mubr.f32.gmra.mxu0 %v1177
        %v2033 = vpop.f32.mrf.mxu0
        %v2034 = vadd.f32 %v1809, %v2033
        %v2035 = vpop.f32.mrf.mxu0
        %2036 = vmatprep.mubr.f32.mxu0 %v1187
        %2037 = vmatmul.mubr.f32.gmra.mxu0 %v1186
        %v2038 = vpop.f32.mrf.mxu0
        %v2039 = vadd.f32 %v1814, %v2038
        %v2040 = vpop.f32.mrf.mxu0
        %2041 = vmatprep.mubr.f32.mxu0 %v1196
        %2042 = vmatmul.mubr.f32.gmra.mxu0 %v1195
        %v2043 = vpop.f32.mrf.mxu0
        %v2044 = vadd.f32 %v1819, %v2043
        %v2045 = vpop.f32.mrf.mxu0
        %2046 = vmatprep.mubr.f32.mxu0 %v1205
        %2047 = vmatmul.mubr.f32.gmra.mxu0 %v1204
        %v2048 = vpop.f32.mrf.mxu0
        %v2049 = vadd.f32 %v1824, %v2048
        %v2050 = vpop.f32.mrf.mxu0
        %2051 = vmatprep.mubr.f32.mxu0 %v1214
        %2052 = vmatmul.mubr.f32.gmra.mxu0 %v1213
        %v2053 = vpop.f32.mrf.mxu0
        %v2054 = vadd.f32 %v1829, %v2053
        %v2055 = vpop.f32.mrf.mxu0
        %2056 = vmatprep.mubr.f32.mxu0 %v1223
        %2057 = vmatmul.mubr.f32.gmra.mxu0 %v1222
        %v2058 = vpop.f32.mrf.mxu0
        %v2059 = vadd.f32 %v1834, %v2058
        %v2060 = vpop.f32.mrf.mxu0
        %2061 = vmatprep.mubr.f32.mxu0 %v1232
        %2062 = vmatmul.mubr.f32.gmra.mxu0 %v1231
        %v2063 = vpop.f32.mrf.mxu0
        %v2064 = vadd.f32 %v1839, %v2063
        %v2065 = vpop.f32.mrf.mxu0
        %2066 = vmatprep.mubr.f32.mxu0 %v1241
        %2067 = vmatmul.mubr.f32.gmra.mxu0 %v1240
        %v2068 = vpop.f32.mrf.mxu0
        %v2069 = vadd.f32 %v1844, %v2068
        %v2070 = vpop.f32.mrf.mxu0
        %2071 = vmatprep.mubr.f32.mxu0 %v1250
        %2072 = vmatmul.mubr.f32.gmra.mxu0 %v1249
        %v2073 = vpop.f32.mrf.mxu0
        %v2074 = vadd.f32 %v1849, %v2073
        %v2075 = vpop.f32.mrf.mxu0
        %2076 = vmatprep.mubr.f32.mxu0 %v1259
        %2077 = vmatmul.mubr.f32.gmra.mxu0 %v1258
        %v2078 = vpop.f32.mrf.mxu0
        %v2079 = vadd.f32 %v1854, %v2078
        %v2080 = vpop.f32.mrf.mxu0
        %2081 = vdwg.mxu0
        %2082 = vmatprep.subr.mxu0 0.0
        %2083 = vmatpush1.msra.mxu0 %v1374
        %2084 = vmatprep.subr.mxu0 0.0
        %2085 = vmatpush1.msra.mxu0 %v1373
        %2086 = vmatprep.subr.mxu0 0.0
        %2087 = vmatpush1.msra.mxu0 %v1372
        %2088 = vmatprep.subr.mxu0 0.0
        %2089 = vmatpush1.msra.mxu0 %v1371
        %2090 = vmatprep.subr.mxu0 0.0
        %2091 = vmatpush1.msra.mxu0 %v1370
        %2092 = vmatprep.subr.mxu0 0.0
        %2093 = vmatpush1.msra.mxu0 %v1369
        %2094 = vmatprep.subr.mxu0 0.0
        %2095 = vmatpush1.msra.mxu0 %v1368
        %2096 = vmatprep.subr.mxu0 0.0
        %2097 = vmatpush1.msra.mxu0 %v1367
        %2098 = vmatprep.subr.mxu0 0.0
        %2099 = vmatpush1.msra.mxu0 %v1366
        %2100 = vmatprep.subr.mxu0 0.0
        %2101 = vmatpush1.msra.mxu0 %v1365
        %2102 = vmatprep.subr.mxu0 0.0
        %2103 = vmatpush1.msra.mxu0 %v1364
        %2104 = vmatprep.subr.mxu0 0.0
        %2105 = vmatpush1.msra.mxu0 %v1363
        %2106 = vmatprep.subr.mxu0 0.0
        %2107 = vmatpush1.msra.mxu0 %v1362
        %2108 = vmatprep.subr.mxu0 0.0
        %2109 = vmatpush1.msra.mxu0 %v1361
        %2110 = vmatprep.subr.mxu0 0.0
        %2111 = vmatpush1.msra.mxu0 %v1360
        %2112 = vmatprep.subr.mxu0 0.0
        %2113 = vmatpush1.msra.mxu0 %v1359
        %2114 = vmatprep.subr.mxu0 0.0
        %2115 = vmatpush2.msra.mxu0 %v1390
        %2116 = vmatprep.subr.mxu0 0.0
        %2117 = vmatpush2.msra.mxu0 %v1389
        %2118 = vmatprep.subr.mxu0 0.0
        %2119 = vmatpush2.msra.mxu0 %v1388
        %2120 = vmatprep.subr.mxu0 0.0
        %2121 = vmatpush2.msra.mxu0 %v1387
        %2122 = vmatprep.subr.mxu0 0.0
        %2123 = vmatpush2.msra.mxu0 %v1386
        %2124 = vmatprep.subr.mxu0 0.0
        %2125 = vmatpush2.msra.mxu0 %v1385
        %2126 = vmatprep.subr.mxu0 0.0
        %2127 = vmatpush2.msra.mxu0 %v1384
        %2128 = vmatprep.subr.mxu0 0.0
        %2129 = vmatpush2.msra.mxu0 %v1383
        %2130 = vmatprep.subr.mxu0 0.0
        %2131 = vmatpush2.msra.mxu0 %v1382
        %2132 = vmatprep.subr.mxu0 0.0
        %2133 = vmatpush2.msra.mxu0 %v1381
        %2134 = vmatprep.subr.mxu0 0.0
        %2135 = vmatpush2.msra.mxu0 %v1380
        %2136 = vmatprep.subr.mxu0 0.0
        %2137 = vmatpush2.msra.mxu0 %v1379
        %2138 = vmatprep.subr.mxu0 0.0
        %2139 = vmatpush2.msra.mxu0 %v1378
        %2140 = vmatprep.subr.mxu0 0.0
        %2141 = vmatpush2.msra.mxu0 %v1377
        %2142 = vmatprep.subr.mxu0 0.0
        %2143 = vmatpush2.msra.mxu0 %v1376
        %2144 = vmatprep.subr.mxu0 0.0
        %2145 = vmatpush2.msra.mxu0 %v1375
        %2146 = vmatprep.mubr.f32.mxu0 %v982
        %2147 = vmatmul.mubr.f32.gmra.mxu0 %v981
        %v2148 = vpop.f32.mrf.mxu0
        %v2149 = vadd.f32 %v1924, %v2148
        %v2150 = vpop.f32.mrf.mxu0
        %2151 = vmatprep.mubr.f32.mxu0 %v991
        %2152 = vmatmul.mubr.f32.gmra.mxu0 %v990
        %v2153 = vpop.f32.mrf.mxu0
        %v2154 = vadd.f32 %v1929, %v2153
        %v2155 = vpop.f32.mrf.mxu0
        %2156 = vmatprep.mubr.f32.mxu0 %v1000
        %2157 = vmatmul.mubr.f32.gmra.mxu0 %v999
        %v2158 = vpop.f32.mrf.mxu0
        %v2159 = vadd.f32 %v1934, %v2158
        %v2160 = vpop.f32.mrf.mxu0
        %2161 = vmatprep.mubr.f32.mxu0 %v1009
        %2162 = vmatmul.mubr.f32.gmra.mxu0 %v1008
        %v2163 = vpop.f32.mrf.mxu0
        %v2164 = vadd.f32 %v1939, %v2163
        %v2165 = vpop.f32.mrf.mxu0
        %2166 = vmatprep.mubr.f32.mxu0 %v1018
        %2167 = vmatmul.mubr.f32.gmra.mxu0 %v1017
        %v2168 = vpop.f32.mrf.mxu0
        %v2169 = vadd.f32 %v1944, %v2168
        %v2170 = vpop.f32.mrf.mxu0
        %2171 = vmatprep.mubr.f32.mxu0 %v1027
        %2172 = vmatmul.mubr.f32.gmra.mxu0 %v1026
        %v2173 = vpop.f32.mrf.mxu0
        %v2174 = vadd.f32 %v1949, %v2173
        %v2175 = vpop.f32.mrf.mxu0
        %2176 = vmatprep.mubr.f32.mxu0 %v1036
        %2177 = vmatmul.mubr.f32.gmra.mxu0 %v1035
        %v2178 = vpop.f32.mrf.mxu0
        %v2179 = vadd.f32 %v1954, %v2178
        %v2180 = vpop.f32.mrf.mxu0
        %2181 = vmatprep.mubr.f32.mxu0 %v1045
        %2182 = vmatmul.mubr.f32.gmra.mxu0 %v1044
        %v2183 = vpop.f32.mrf.mxu0
        %v2184 = vadd.f32 %v1959, %v2183
        %v2185 = vpop.f32.mrf.mxu0
        %2186 = vmatprep.mubr.f32.mxu0 %v1054
        %2187 = vmatmul.mubr.f32.gmra.mxu0 %v1053
        %v2188 = vpop.f32.mrf.mxu0
        %v2189 = vadd.f32 %v1964, %v2188
        %v2190 = vpop.f32.mrf.mxu0
        %2191 = vmatprep.mubr.f32.mxu0 %v1063
        %2192 = vmatmul.mubr.f32.gmra.mxu0 %v1062
        %v2193 = vpop.f32.mrf.mxu0
        %v2194 = vadd.f32 %v1969, %v2193
        %v2195 = vpop.f32.mrf.mxu0
        %2196 = vmatprep.mubr.f32.mxu0 %v1072
        %2197 = vmatmul.mubr.f32.gmra.mxu0 %v1071
        %v2198 = vpop.f32.mrf.mxu0
        %v2199 = vadd.f32 %v1974, %v2198
        %v2200 = vpop.f32.mrf.mxu0
        %2201 = vmatprep.mubr.f32.mxu0 %v1081
        %2202 = vmatmul.mubr.f32.gmra.mxu0 %v1080
        %v2203 = vpop.f32.mrf.mxu0
        %v2204 = vadd.f32 %v1979, %v2203
        %v2205 = vpop.f32.mrf.mxu0
        %2206 = vmatprep.mubr.f32.mxu0 %v1090
        %2207 = vmatmul.mubr.f32.gmra.mxu0 %v1089
        %v2208 = vpop.f32.mrf.mxu0
        %v2209 = vadd.f32 %v1984, %v2208
        %v2210 = vpop.f32.mrf.mxu0
        %2211 = vmatprep.mubr.f32.mxu0 %v1099
        %2212 = vmatmul.mubr.f32.gmra.mxu0 %v1098
        %v2213 = vpop.f32.mrf.mxu0
        %v2214 = vadd.f32 %v1989, %v2213
        %v2215 = vpop.f32.mrf.mxu0
        %2216 = vmatprep.mubr.f32.mxu0 %v1108
        %2217 = vmatmul.mubr.f32.gmra.mxu0 %v1107
        %v2218 = vpop.f32.mrf.mxu0
        %v2219 = vadd.f32 %v1994, %v2218
        %v2220 = vpop.f32.mrf.mxu0
        %2221 = vmatprep.mubr.f32.mxu0 %v1117
        %2222 = vmatmul.mubr.f32.gmra.mxu0 %v1116
        %v2223 = vpop.f32.mrf.mxu0
        %v2224 = vadd.f32 %v1999, %v2223
        %v2225 = vpop.f32.mrf.mxu0
        %2226 = vmatprep.mubr.f32.mxu0 %v1126
        %2227 = vmatmul.mubr.f32.gmra.mxu0 %v1125
        %v2228 = vpop.f32.mrf.mxu0
        %v2229 = vadd.f32 %v2004, %v2228
        %v2230 = vpop.f32.mrf.mxu0
        %2231 = vmatprep.mubr.f32.mxu0 %v1135
        %2232 = vmatmul.mubr.f32.gmra.mxu0 %v1134
        %v2233 = vpop.f32.mrf.mxu0
        %v2234 = vadd.f32 %v2009, %v2233
        %v2235 = vpop.f32.mrf.mxu0
        %2236 = vmatprep.mubr.f32.mxu0 %v1144
        %2237 = vmatmul.mubr.f32.gmra.mxu0 %v1143
        %v2238 = vpop.f32.mrf.mxu0
        %v2239 = vadd.f32 %v2014, %v2238
        %v2240 = vpop.f32.mrf.mxu0
        %2241 = vmatprep.mubr.f32.mxu0 %v1153
        %2242 = vmatmul.mubr.f32.gmra.mxu0 %v1152
        %v2243 = vpop.f32.mrf.mxu0
        %v2244 = vadd.f32 %v2019, %v2243
        %v2245 = vpop.f32.mrf.mxu0
        %2246 = vmatprep.mubr.f32.mxu0 %v1162
        %2247 = vmatmul.mubr.f32.gmra.mxu0 %v1161
        %v2248 = vpop.f32.mrf.mxu0
        %v2249 = vadd.f32 %v2024, %v2248
        %v2250 = vpop.f32.mrf.mxu0
        %2251 = vmatprep.mubr.f32.mxu0 %v1171
        %2252 = vmatmul.mubr.f32.gmra.mxu0 %v1170
        %v2253 = vpop.f32.mrf.mxu0
        %v2254 = vadd.f32 %v2029, %v2253
        %v2255 = vpop.f32.mrf.mxu0
        %2256 = vmatprep.mubr.f32.mxu0 %v1180
        %2257 = vmatmul.mubr.f32.gmra.mxu0 %v1179
        %v2258 = vpop.f32.mrf.mxu0
        %v2259 = vadd.f32 %v2034, %v2258
        %v2260 = vpop.f32.mrf.mxu0
        %2261 = vmatprep.mubr.f32.mxu0 %v1189
        %2262 = vmatmul.mubr.f32.gmra.mxu0 %v1188
        %v2263 = vpop.f32.mrf.mxu0
        %v2264 = vadd.f32 %v2039, %v2263
        %v2265 = vpop.f32.mrf.mxu0
        %2266 = vmatprep.mubr.f32.mxu0 %v1198
        %2267 = vmatmul.mubr.f32.gmra.mxu0 %v1197
        %v2268 = vpop.f32.mrf.mxu0
        %v2269 = vadd.f32 %v2044, %v2268
        %v2270 = vpop.f32.mrf.mxu0
        %2271 = vmatprep.mubr.f32.mxu0 %v1207
        %2272 = vmatmul.mubr.f32.gmra.mxu0 %v1206
        %v2273 = vpop.f32.mrf.mxu0
        %v2274 = vadd.f32 %v2049, %v2273
        %v2275 = vpop.f32.mrf.mxu0
        %2276 = vmatprep.mubr.f32.mxu0 %v1216
        %2277 = vmatmul.mubr.f32.gmra.mxu0 %v1215
        %v2278 = vpop.f32.mrf.mxu0
        %v2279 = vadd.f32 %v2054, %v2278
        %v2280 = vpop.f32.mrf.mxu0
        %2281 = vmatprep.mubr.f32.mxu0 %v1225
        %2282 = vmatmul.mubr.f32.gmra.mxu0 %v1224
        %v2283 = vpop.f32.mrf.mxu0
        %v2284 = vadd.f32 %v2059, %v2283
        %v2285 = vpop.f32.mrf.mxu0
        %2286 = vmatprep.mubr.f32.mxu0 %v1234
        %2287 = vmatmul.mubr.f32.gmra.mxu0 %v1233
        %v2288 = vpop.f32.mrf.mxu0
        %v2289 = vadd.f32 %v2064, %v2288
        %v2290 = vpop.f32.mrf.mxu0
        %2291 = vmatprep.mubr.f32.mxu0 %v1243
        %2292 = vmatmul.mubr.f32.gmra.mxu0 %v1242
        %v2293 = vpop.f32.mrf.mxu0
        %v2294 = vadd.f32 %v2069, %v2293
        %v2295 = vpop.f32.mrf.mxu0
        %2296 = vmatprep.mubr.f32.mxu0 %v1252
        %2297 = vmatmul.mubr.f32.gmra.mxu0 %v1251
        %v2298 = vpop.f32.mrf.mxu0
        %v2299 = vadd.f32 %v2074, %v2298
        %v2300 = vpop.f32.mrf.mxu0
        %2301 = vmatprep.mubr.f32.mxu0 %v1261
        %2302 = vmatmul.mubr.f32.gmra.mxu0 %v1260
        %v2303 = vpop.f32.mrf.mxu0
        %v2304 = vadd.f32 %v2079, %v2303
        %v2305 = vpop.f32.mrf.mxu0
        %2306 = vdwg.mxu0
        %2307 = vmatprep.subr.mxu0 0.0
        %2308 = vmatpush1.msra.mxu0 %v1406
        %2309 = vmatprep.subr.mxu0 0.0
        %2310 = vmatpush1.msra.mxu0 %v1405
        %2311 = vmatprep.subr.mxu0 0.0
        %2312 = vmatpush1.msra.mxu0 %v1404
        %2313 = vmatprep.subr.mxu0 0.0
        %2314 = vmatpush1.msra.mxu0 %v1403
        %2315 = vmatprep.subr.mxu0 0.0
        %2316 = vmatpush1.msra.mxu0 %v1402
        %2317 = vmatprep.subr.mxu0 0.0
        %2318 = vmatpush1.msra.mxu0 %v1401
        %2319 = vmatprep.subr.mxu0 0.0
        %2320 = vmatpush1.msra.mxu0 %v1400
        %2321 = vmatprep.subr.mxu0 0.0
        %2322 = vmatpush1.msra.mxu0 %v1399
        %2323 = vmatprep.subr.mxu0 0.0
        %2324 = vmatpush1.msra.mxu0 %v1398
        %2325 = vmatprep.subr.mxu0 0.0
        %2326 = vmatpush1.msra.mxu0 %v1397
        %2327 = vmatprep.subr.mxu0 0.0
        %2328 = vmatpush1.msra.mxu0 %v1396
        %2329 = vmatprep.subr.mxu0 0.0
        %2330 = vmatpush1.msra.mxu0 %v1395
        %2331 = vmatprep.subr.mxu0 0.0
        %2332 = vmatpush1.msra.mxu0 %v1394
        %2333 = vmatprep.subr.mxu0 0.0
        %2334 = vmatpush1.msra.mxu0 %v1393
        %2335 = vmatprep.subr.mxu0 0.0
        %2336 = vmatpush1.msra.mxu0 %v1392
        %2337 = vmatprep.subr.mxu0 0.0
        %2338 = vmatpush1.msra.mxu0 %v1391
        %2339 = vmatprep.subr.mxu0 0.0
        %2340 = vmatpush2.msra.mxu0 0.0
        %2341 = vmatprep.subr.mxu0 0.0
        %2342 = vmatpush2.msra.mxu0 0.0
        %2343 = vmatprep.subr.mxu0 0.0
        %2344 = vmatpush2.msra.mxu0 0.0
        %2345 = vmatprep.subr.mxu0 0.0
        %2346 = vmatpush2.msra.mxu0 0.0
        %2347 = vmatprep.subr.mxu0 0.0
        %2348 = vmatpush2.msra.mxu0 0.0
        %2349 = vmatprep.subr.mxu0 0.0
        %2350 = vmatpush2.msra.mxu0 0.0
        %2351 = vmatprep.subr.mxu0 0.0
        %2352 = vmatpush2.msra.mxu0 0.0
        %2353 = vmatprep.subr.mxu0 0.0
        %2354 = vmatpush2.msra.mxu0 0.0
        %2355 = vmatprep.subr.mxu0 0.0
        %2356 = vmatpush2.msra.mxu0 0.0
        %2357 = vmatprep.subr.mxu0 0.0
        %2358 = vmatpush2.msra.mxu0 0.0
        %2359 = vmatprep.subr.mxu0 0.0
        %2360 = vmatpush2.msra.mxu0 0.0
        %2361 = vmatprep.subr.mxu0 0.0
        %2362 = vmatpush2.msra.mxu0 0.0
        %2363 = vmatprep.subr.mxu0 0.0
        %2364 = vmatpush2.msra.mxu0 0.0
        %2365 = vmatprep.subr.mxu0 0.0
        %2366 = vmatpush2.msra.mxu0 0.0
        %2367 = vmatprep.subr.mxu0 0.0
        %2368 = vmatpush2.msra.mxu0 0.0
        %2369 = vmatprep.subr.mxu0 0.0
        %2370 = vmatpush2.msra.mxu0 0.0
        %2371 = vmatprep.mubr.f32.mxu0 0.0
        %2372 = vmatmul.mubr.f32.gmra.mxu0 %v983
        %v2373 = vpop.f32.mrf.mxu0
        %v2374 = vadd.f32 %v2149, %v2373
        %v2375 = vpop.f32.mrf.mxu0
        %2376 = vmatprep.mubr.f32.mxu0 0.0
        %2377 = vmatmul.mubr.f32.gmra.mxu0 %v992
        %v2378 = vpop.f32.mrf.mxu0
        %v2379 = vadd.f32 %v2154, %v2378
        %v2380 = vpop.f32.mrf.mxu0
        %2381 = vmatprep.mubr.f32.mxu0 0.0
        %2382 = vmatmul.mubr.f32.gmra.mxu0 %v1001
        %v2383 = vpop.f32.mrf.mxu0
        %v2384 = vadd.f32 %v2159, %v2383
        %v2385 = vpop.f32.mrf.mxu0
        %2386 = vmatprep.mubr.f32.mxu0 0.0
        %2387 = vmatmul.mubr.f32.gmra.mxu0 %v1010
        %v2388 = vpop.f32.mrf.mxu0
        %v2389 = vadd.f32 %v2164, %v2388
        %v2390 = vpop.f32.mrf.mxu0
        %2391 = vmatprep.mubr.f32.mxu0 0.0
        %2392 = vmatmul.mubr.f32.gmra.mxu0 %v1019
        %v2393 = vpop.f32.mrf.mxu0
        %v2394 = vadd.f32 %v2169, %v2393
        %v2395 = vpop.f32.mrf.mxu0
        %2396 = vmatprep.mubr.f32.mxu0 0.0
        %2397 = vmatmul.mubr.f32.gmra.mxu0 %v1028
        %v2398 = vpop.f32.mrf.mxu0
        %v2399 = vadd.f32 %v2174, %v2398
        %v2400 = vpop.f32.mrf.mxu0
        %2401 = vmatprep.mubr.f32.mxu0 0.0
        %2402 = vmatmul.mubr.f32.gmra.mxu0 %v1037
        %v2403 = vpop.f32.mrf.mxu0
        %v2404 = vadd.f32 %v2179, %v2403
        %v2405 = vpop.f32.mrf.mxu0
        %2406 = vmatprep.mubr.f32.mxu0 0.0
        %2407 = vmatmul.mubr.f32.gmra.mxu0 %v1046
        %v2408 = vpop.f32.mrf.mxu0
        %v2409 = vadd.f32 %v2184, %v2408
        %v2410 = vpop.f32.mrf.mxu0
        %2411 = vmatprep.mubr.f32.mxu0 0.0
        %2412 = vmatmul.mubr.f32.gmra.mxu0 %v1055
        %v2413 = vpop.f32.mrf.mxu0
        %v2414 = vadd.f32 %v2189, %v2413
        %v2415 = vpop.f32.mrf.mxu0
        %2416 = vmatprep.mubr.f32.mxu0 0.0
        %2417 = vmatmul.mubr.f32.gmra.mxu0 %v1064
        %v2418 = vpop.f32.mrf.mxu0
        %v2419 = vadd.f32 %v2194, %v2418
        %v2420 = vpop.f32.mrf.mxu0
        %2421 = vmatprep.mubr.f32.mxu0 0.0
        %2422 = vmatmul.mubr.f32.gmra.mxu0 %v1073
        %v2423 = vpop.f32.mrf.mxu0
        %v2424 = vadd.f32 %v2199, %v2423
        %v2425 = vpop.f32.mrf.mxu0
        %2426 = vmatprep.mubr.f32.mxu0 0.0
        %2427 = vmatmul.mubr.f32.gmra.mxu0 %v1082
        %v2428 = vpop.f32.mrf.mxu0
        %v2429 = vadd.f32 %v2204, %v2428
        %v2430 = vpop.f32.mrf.mxu0
        %2431 = vmatprep.mubr.f32.mxu0 0.0
        %2432 = vmatmul.mubr.f32.gmra.mxu0 %v1091
        %v2433 = vpop.f32.mrf.mxu0
        %v2434 = vadd.f32 %v2209, %v2433
        %v2435 = vpop.f32.mrf.mxu0
        %2436 = vmatprep.mubr.f32.mxu0 0.0
        %2437 = vmatmul.mubr.f32.gmra.mxu0 %v1100
        %v2438 = vpop.f32.mrf.mxu0
        %v2439 = vadd.f32 %v2214, %v2438
        %v2440 = vpop.f32.mrf.mxu0
        %2441 = vmatprep.mubr.f32.mxu0 0.0
        %2442 = vmatmul.mubr.f32.gmra.mxu0 %v1109
        %v2443 = vpop.f32.mrf.mxu0
        %v2444 = vadd.f32 %v2219, %v2443
        %v2445 = vpop.f32.mrf.mxu0
        %2446 = vmatprep.mubr.f32.mxu0 0.0
        %2447 = vmatmul.mubr.f32.gmra.mxu0 %v1118
        %v2448 = vpop.f32.mrf.mxu0
        %v2449 = vadd.f32 %v2224, %v2448
        %v2450 = vpop.f32.mrf.mxu0
        %2451 = vmatprep.mubr.f32.mxu0 0.0
        %2452 = vmatmul.mubr.f32.gmra.mxu0 %v1127
        %v2453 = vpop.f32.mrf.mxu0
        %v2454 = vadd.f32 %v2229, %v2453
        %v2455 = vpop.f32.mrf.mxu0
        %2456 = vmatprep.mubr.f32.mxu0 0.0
        %2457 = vmatmul.mubr.f32.gmra.mxu0 %v1136
        %v2458 = vpop.f32.mrf.mxu0
        %v2459 = vadd.f32 %v2234, %v2458
        %v2460 = vpop.f32.mrf.mxu0
        %2461 = vmatprep.mubr.f32.mxu0 0.0
        %2462 = vmatmul.mubr.f32.gmra.mxu0 %v1145
        %v2463 = vpop.f32.mrf.mxu0
        %v2464 = vadd.f32 %v2239, %v2463
        %v2465 = vpop.f32.mrf.mxu0
        %2466 = vmatprep.mubr.f32.mxu0 0.0
        %2467 = vmatmul.mubr.f32.gmra.mxu0 %v1154
        %v2468 = vpop.f32.mrf.mxu0
        %v2469 = vadd.f32 %v2244, %v2468
        %v2470 = vpop.f32.mrf.mxu0
        %2471 = vmatprep.mubr.f32.mxu0 0.0
        %2472 = vmatmul.mubr.f32.gmra.mxu0 %v1163
        %v2473 = vpop.f32.mrf.mxu0
        %v2474 = vadd.f32 %v2249, %v2473
        %v2475 = vpop.f32.mrf.mxu0
        %2476 = vmatprep.mubr.f32.mxu0 0.0
        %2477 = vmatmul.mubr.f32.gmra.mxu0 %v1172
        %v2478 = vpop.f32.mrf.mxu0
        %v2479 = vadd.f32 %v2254, %v2478
        %v2480 = vpop.f32.mrf.mxu0
        %2481 = vmatprep.mubr.f32.mxu0 0.0
        %2482 = vmatmul.mubr.f32.gmra.mxu0 %v1181
        %v2483 = vpop.f32.mrf.mxu0
        %v2484 = vadd.f32 %v2259, %v2483
        %v2485 = vpop.f32.mrf.mxu0
        %2486 = vmatprep.mubr.f32.mxu0 0.0
        %2487 = vmatmul.mubr.f32.gmra.mxu0 %v1190
        %v2488 = vpop.f32.mrf.mxu0
        %v2489 = vadd.f32 %v2264, %v2488
        %v2490 = vpop.f32.mrf.mxu0
        %2491 = vmatprep.mubr.f32.mxu0 0.0
        %2492 = vmatmul.mubr.f32.gmra.mxu0 %v1199
        %v2493 = vpop.f32.mrf.mxu0
        %v2494 = vadd.f32 %v2269, %v2493
        %v2495 = vpop.f32.mrf.mxu0
        %2496 = vmatprep.mubr.f32.mxu0 0.0
        %2497 = vmatmul.mubr.f32.gmra.mxu0 %v1208
        %v2498 = vpop.f32.mrf.mxu0
        %v2499 = vadd.f32 %v2274, %v2498
        %v2500 = vpop.f32.mrf.mxu0
        %2501 = vmatprep.mubr.f32.mxu0 0.0
        %2502 = vmatmul.mubr.f32.gmra.mxu0 %v1217
        %v2503 = vpop.f32.mrf.mxu0
        %v2504 = vadd.f32 %v2279, %v2503
        %v2505 = vpop.f32.mrf.mxu0
        %2506 = vmatprep.mubr.f32.mxu0 0.0
        %2507 = vmatmul.mubr.f32.gmra.mxu0 %v1226
        %v2508 = vpop.f32.mrf.mxu0
        %v2509 = vadd.f32 %v2284, %v2508
        %v2510 = vpop.f32.mrf.mxu0
        %2511 = vmatprep.mubr.f32.mxu0 0.0
        %2512 = vmatmul.mubr.f32.gmra.mxu0 %v1235
        %v2513 = vpop.f32.mrf.mxu0
        %v2514 = vadd.f32 %v2289, %v2513
        %v2515 = vpop.f32.mrf.mxu0
        %2516 = vmatprep.mubr.f32.mxu0 0.0
        %2517 = vmatmul.mubr.f32.gmra.mxu0 %v1244
        %v2518 = vpop.f32.mrf.mxu0
        %v2519 = vadd.f32 %v2294, %v2518
        %v2520 = vpop.f32.mrf.mxu0
        %2521 = vmatprep.mubr.f32.mxu0 0.0
        %2522 = vmatmul.mubr.f32.gmra.mxu0 %v1253
        %v2523 = vpop.f32.mrf.mxu0
        %v2524 = vadd.f32 %v2299, %v2523
        %v2525 = vpop.f32.mrf.mxu0
        %2526 = vmatprep.mubr.f32.mxu0 0.0
        %2527 = vmatmul.mubr.f32.gmra.mxu0 %v1262
        %v2528 = vpop.f32.mrf.mxu0
        %v2529 = vadd.f32 %v2304, %v2528
        %v2530 = vpop.f32.mrf.mxu0
        %2531 = vdwg.mxu0
        %v2532 = vld [vmem:[%s2] sm:$0x1]
        %v2534 = vlaneseq
        %v2535 = vshrl.u32 %v2534, 7
        %v2536 = vsub.s32 0, %v2535
        %v2537 = vrot.slane %v2532, %v2536
        %v2539 = vmul.f32 %v2374, %v2537
        %v2540 = vmul.f32 %v2379, %v2537
        %v2541 = vmul.f32 %v2384, %v2537
        %v2542 = vmul.f32 %v2389, %v2537
        %v2543 = vmul.f32 %v2394, %v2537
        %v2544 = vmul.f32 %v2399, %v2537
        %v2545 = vmul.f32 %v2404, %v2537
        %v2546 = vmul.f32 %v2409, %v2537
        %v2547 = vmul.f32 %v2414, %v2537
        %v2548 = vmul.f32 %v2419, %v2537
        %v2549 = vmul.f32 %v2424, %v2537
        %v2550 = vmul.f32 %v2429, %v2537
        %v2551 = vmul.f32 %v2434, %v2537
        %v2552 = vmul.f32 %v2439, %v2537
        %v2553 = vmul.f32 %v2444, %v2537
        %v2554 = vmul.f32 %v2449, %v2537
        %v2555 = vmul.f32 %v2454, %v2537
        %v2556 = vmul.f32 %v2459, %v2537
        %v2557 = vmul.f32 %v2464, %v2537
        %v2558 = vmul.f32 %v2469, %v2537
        %v2559 = vmul.f32 %v2474, %v2537
        %v2560 = vmul.f32 %v2479, %v2537
        %v2561 = vmul.f32 %v2484, %v2537
        %v2562 = vmul.f32 %v2489, %v2537
        %v2563 = vmul.f32 %v2494, %v2537
        %v2564 = vmul.f32 %v2499, %v2537
        %v2565 = vmul.f32 %v2504, %v2537
        %v2566 = vmul.f32 %v2509, %v2537
        %v2567 = vmul.f32 %v2514, %v2537
        %v2568 = vmul.f32 %v2519, %v2537
        %v2569 = vmul.f32 %v2524, %v2537
        %v2570 = vmul.f32 %v2529, %v2537
        %v2571 = vld [vmem:[%s3] sm:$0x1]
        %v2573 = vlaneseq
        %v2574 = vshrl.u32 %v2573, 7
        %v2575 = vsub.s32 0, %v2574
        %v2576 = vrot.slane %v2571, %v2575
        %v2578 = vadd.f32 %v2539, %v2576
        %v2579 = vadd.f32 %v2540, %v2576
        %v2580 = vadd.f32 %v2541, %v2576
        %v2581 = vadd.f32 %v2542, %v2576
        %v2582 = vadd.f32 %v2543, %v2576
        %v2583 = vadd.f32 %v2544, %v2576
        %v2584 = vadd.f32 %v2545, %v2576
        %v2585 = vadd.f32 %v2546, %v2576
        %v2586 = vadd.f32 %v2547, %v2576
        %v2587 = vadd.f32 %v2548, %v2576
        %v2588 = vadd.f32 %v2549, %v2576
        %v2589 = vadd.f32 %v2550, %v2576
        %v2590 = vadd.f32 %v2551, %v2576
        %v2591 = vadd.f32 %v2552, %v2576
        %v2592 = vadd.f32 %v2553, %v2576
        %v2593 = vadd.f32 %v2554, %v2576
        %v2594 = vadd.f32 %v2555, %v2576
        %v2595 = vadd.f32 %v2556, %v2576
        %v2596 = vadd.f32 %v2557, %v2576
        %v2597 = vadd.f32 %v2558, %v2576
        %v2598 = vadd.f32 %v2559, %v2576
        %v2599 = vadd.f32 %v2560, %v2576
        %v2600 = vadd.f32 %v2561, %v2576
        %v2601 = vadd.f32 %v2562, %v2576
        %v2602 = vadd.f32 %v2563, %v2576
        %v2603 = vadd.f32 %v2564, %v2576
        %v2604 = vadd.f32 %v2565, %v2576
        %v2605 = vadd.f32 %v2566, %v2576
        %v2606 = vadd.f32 %v2567, %v2576
        %v2607 = vadd.f32 %v2568, %v2576
        %v2608 = vadd.f32 %v2569, %v2576
        %v2609 = vadd.f32 %v2570, %v2576
        %v2610 = vmul.f32 %v2578, 0.1
        %v2611 = vmul.f32 %v2579, 0.1
        %v2612 = vmul.f32 %v2580, 0.1
        %v2613 = vmul.f32 %v2581, 0.1
        %v2614 = vmul.f32 %v2582, 0.1
        %v2615 = vmul.f32 %v2583, 0.1
        %v2616 = vmul.f32 %v2584, 0.1
        %v2617 = vmul.f32 %v2585, 0.1
        %v2618 = vmul.f32 %v2586, 0.1
        %v2619 = vmul.f32 %v2587, 0.1
        %v2620 = vmul.f32 %v2588, 0.1
        %v2621 = vmul.f32 %v2589, 0.1
        %v2622 = vmul.f32 %v2590, 0.1
        %v2623 = vmul.f32 %v2591, 0.1
        %v2624 = vmul.f32 %v2592, 0.1
        %v2625 = vmul.f32 %v2593, 0.1
        %v2626 = vmul.f32 %v2594, 0.1
        %v2627 = vmul.f32 %v2595, 0.1
        %v2628 = vmul.f32 %v2596, 0.1
        %v2629 = vmul.f32 %v2597, 0.1
        %v2630 = vmul.f32 %v2598, 0.1
        %v2631 = vmul.f32 %v2599, 0.1
        %v2632 = vmul.f32 %v2600, 0.1
        %v2633 = vmul.f32 %v2601, 0.1
        %v2634 = vmul.f32 %v2602, 0.1
        %v2635 = vmul.f32 %v2603, 0.1
        %v2636 = vmul.f32 %v2604, 0.1
        %v2637 = vmul.f32 %v2605, 0.1
        %v2638 = vmul.f32 %v2606, 0.1
        %v2639 = vmul.f32 %v2607, 0.1
        %v2640 = vmul.f32 %v2608, 0.1
        %v2641 = vmul.f32 %v2609, 0.1
        %v2642 = vmax.f32 %v2578, %v2610
        %v2643 = vmax.f32 %v2579, %v2611
        %v2644 = vmax.f32 %v2580, %v2612
        %v2645 = vmax.f32 %v2581, %v2613
        %v2646 = vmax.f32 %v2582, %v2614
        %v2647 = vmax.f32 %v2583, %v2615
        %v2648 = vmax.f32 %v2584, %v2616
        %v2649 = vmax.f32 %v2585, %v2617
        %v2650 = vmax.f32 %v2586, %v2618
        %v2651 = vmax.f32 %v2587, %v2619
        %v2652 = vmax.f32 %v2588, %v2620
        %v2653 = vmax.f32 %v2589, %v2621
        %v2654 = vmax.f32 %v2590, %v2622
        %v2655 = vmax.f32 %v2591, %v2623
        %v2656 = vmax.f32 %v2592, %v2624
        %v2657 = vmax.f32 %v2593, %v2625
        %v2658 = vmax.f32 %v2594, %v2626
        %v2659 = vmax.f32 %v2595, %v2627
        %v2660 = vmax.f32 %v2596, %v2628
        %v2661 = vmax.f32 %v2597, %v2629
        %v2662 = vmax.f32 %v2598, %v2630
        %v2663 = vmax.f32 %v2599, %v2631
        %v2664 = vmax.f32 %v2600, %v2632
        %v2665 = vmax.f32 %v2601, %v2633
        %v2666 = vmax.f32 %v2602, %v2634
        %v2667 = vmax.f32 %v2603, %v2635
        %v2668 = vmax.f32 %v2604, %v2636
        %v2669 = vmax.f32 %v2605, %v2637
        %v2670 = vmax.f32 %v2606, %v2638
        %v2671 = vmax.f32 %v2607, %v2639
        %v2672 = vmax.f32 %v2608, %v2640
        %v2673 = vmax.f32 %v2609, %v2641
        %2674 = vst [vmem:[%s301 + $0x1] sm:$0xff] %v2642
        %2675 = vst [vmem:[%s301 + $0x9] sm:$0xff] %v2643
        %2676 = vst [vmem:[%s301 + $0x19] sm:$0xff] %v2644
        %2677 = vst [vmem:[%s301 + $0x21] sm:$0xff] %v2645
        %2678 = vst [vmem:[%s301 + $0x31] sm:$0xff] %v2646
        %2679 = vst [vmem:[%s301 + $0x39] sm:$0xff] %v2647
        %2680 = vst [vmem:[%s301 + $0x49] sm:$0xff] %v2648
        %2681 = vst [vmem:[%s301 + $0x51] sm:$0xff] %v2649
        %2682 = vst [vmem:[%s301 + $0x61] sm:$0xff] %v2650
        %2683 = vst [vmem:[%s301 + $0x69] sm:$0xff] %v2651
        %2684 = vst [vmem:[%s301 + $0x79] sm:$0xff] %v2652
        %2685 = vst [vmem:[%s301 + $0x81] sm:$0xff] %v2653
        %2686 = vst [vmem:[%s301 + $0x91] sm:$0xff] %v2654
        %2687 = vst [vmem:[%s301 + $0x99] sm:$0xff] %v2655
        %2688 = vst [vmem:[%s301 + $0xa9] sm:$0xff] %v2656
        %2689 = vst [vmem:[%s301 + $0xb1] sm:$0xff] %v2657
        %2690 = vst [vmem:[%s301 + $0xc1] sm:$0xff] %v2658
        %2691 = vst [vmem:[%s301 + $0xc9] sm:$0xff] %v2659
        %2692 = vst [vmem:[%s301 + $0xd9] sm:$0xff] %v2660
        %2693 = vst [vmem:[%s301 + $0xe1] sm:$0xff] %v2661
        %2694 = vst [vmem:[%s301 + $0xf1] sm:$0xff] %v2662
        %2695 = vst [vmem:[%s301 + $0xf9] sm:$0xff] %v2663
        %2696 = vst [vmem:[%s301 + $0x109] sm:$0xff] %v2664
        %2697 = vst [vmem:[%s301 + $0x111] sm:$0xff] %v2665
        %2698 = vst [vmem:[%s301 + $0x121] sm:$0xff] %v2666
        %2699 = vst [vmem:[%s301 + $0x129] sm:$0xff] %v2667
        %2700 = vst [vmem:[%s301 + $0x139] sm:$0xff] %v2668
        %2701 = vst [vmem:[%s301 + $0x141] sm:$0xff] %v2669
        %2702 = vst [vmem:[%s301 + $0x151] sm:$0xff] %v2670
        %2703 = vst [vmem:[%s301 + $0x159] sm:$0xff] %v2671
        %2704 = vst [vmem:[%s301 + $0x169] sm:$0xff] %v2672
        %2705 = vst [vmem:[%s301 + $0x171] sm:$0xff] %v2673
        %v2706 = vld [vmem:[#allocation2] sm:$0xff]
        %v2707 = vld [vmem:[#allocation2 + $0x8] sm:$0xff]
        %v2708 = vld [vmem:[#allocation2 + $0x18] sm:$0xff]
        %v2709 = vld [vmem:[#allocation2 + $0x20] sm:$0xff]
        %v2710 = vld [vmem:[#allocation2 + $0x30] sm:$0xff]
        %v2711 = vld [vmem:[#allocation2 + $0x38] sm:$0xff]
        %v2712 = vld [vmem:[#allocation2 + $0x48] sm:$0xff]
        %v2713 = vld [vmem:[#allocation2 + $0x50] sm:$0xff]
        %v2714 = vld [vmem:[#allocation2 + $0x60] sm:$0xff]
        %v2715 = vld [vmem:[#allocation2 + $0x68] sm:$0xff]
        %v2716 = vld [vmem:[#allocation2 + $0x78] sm:$0xff]
        %v2717 = vld [vmem:[#allocation2 + $0x80] sm:$0xff]
        %v2718 = vld [vmem:[#allocation2 + $0x90] sm:$0xff]
        %v2719 = vld [vmem:[#allocation2 + $0x98] sm:$0xff]
        %v2720 = vld [vmem:[#allocation2 + $0xa8] sm:$0xff]
        %v2721 = vld [vmem:[#allocation2 + $0xb0] sm:$0xff]
        %v2722 = vld [vmem:[#allocation2 + $0xc0] sm:$0xff]
        %v2723 = vld [vmem:[#allocation2 + $0xc8] sm:$0xff]
        %v2724 = vld [vmem:[#allocation2 + $0xd8] sm:$0xff]
        %v2725 = vld [vmem:[#allocation2 + $0xe0] sm:$0xff]
        %v2726 = vld [vmem:[#allocation2 + $0xf0] sm:$0xff]
        %v2727 = vld [vmem:[#allocation2 + $0xf8] sm:$0xff]
        %v2728 = vld [vmem:[#allocation2 + $0x108] sm:$0xff]
        %v2729 = vld [vmem:[#allocation2 + $0x110] sm:$0xff]
        %v2730 = vld [vmem:[#allocation2 + $0x120] sm:$0xff]
        %v2731 = vld [vmem:[#allocation2 + $0x128] sm:$0xff]
        %v2732 = vld [vmem:[#allocation2 + $0x138] sm:$0xff]
        %v2733 = vld [vmem:[#allocation2 + $0x140] sm:$0xff]
        %v2734 = vld [vmem:[#allocation2 + $0x150] sm:$0xff]
        %v2735 = vld [vmem:[#allocation2 + $0x158] sm:$0xff]
        %v2736 = vld [vmem:[#allocation2 + $0x168] sm:$0xff]
        %v2737 = vld [vmem:[#allocation2 + $0x170] sm:$0xff]
        %2738 = vst [vmem:[#allocation3] sm:$0xff] %v2706
        %2739 = vst [vmem:[#allocation3 + $0x48] sm:$0xff] %v2707
        %2740 = vst [vmem:[#allocation3 + $0x90] sm:$0xff] %v2708
        %2741 = vst [vmem:[#allocation3 + $0xd8] sm:$0xff] %v2709
        %2742 = vst [vmem:[#allocation3 + $0x120] sm:$0xff] %v2710
        %2743 = vst [vmem:[#allocation3 + $0x168] sm:$0xff] %v2711
        %2744 = vst [vmem:[#allocation3 + $0x1b0] sm:$0xff] %v2712
        %2745 = vst [vmem:[#allocation3 + $0x1f8] sm:$0xff] %v2713
        %2746 = vst [vmem:[#allocation3 + $0x240] sm:$0xff] %v2714
        %2747 = vst [vmem:[#allocation3 + $0x288] sm:$0xff] %v2715
        %2748 = vst [vmem:[#allocation3 + $0x2d0] sm:$0xff] %v2716
        %2749 = vst [vmem:[#allocation3 + $0x318] sm:$0xff] %v2717
        %2750 = vst [vmem:[#allocation3 + $0x360] sm:$0xff] %v2718
        %2751 = vst [vmem:[#allocation3 + $0x3a8] sm:$0xff] %v2719
        %2752 = vst [vmem:[#allocation3 + $0x3f0] sm:$0xff] %v2720
        %2753 = vst [vmem:[#allocation3 + $0x438] sm:$0xff] %v2721
        %2754 = vst [vmem:[#allocation3 + $0x480] sm:$0xff] %v2722
        %2755 = vst [vmem:[#allocation3 + $0x4c8] sm:$0xff] %v2723
        %2756 = vst [vmem:[#allocation3 + $0x510] sm:$0xff] %v2724
        %2757 = vst [vmem:[#allocation3 + $0x558] sm:$0xff] %v2725
        %2758 = vst [vmem:[#allocation3 + $0x5a0] sm:$0xff] %v2726
        %2759 = vst [vmem:[#allocation3 + $0x5e8] sm:$0xff] %v2727
        %2760 = vst [vmem:[#allocation3 + $0x630] sm:$0xff] %v2728
        %2761 = vst [vmem:[#allocation3 + $0x678] sm:$0xff] %v2729
        %2762 = vst [vmem:[#allocation3 + $0x6c0] sm:$0xff] %v2730
        %2763 = vst [vmem:[#allocation3 + $0x708] sm:$0xff] %v2731
        %2764 = vst [vmem:[#allocation3 + $0x750] sm:$0xff] %v2732
        %2765 = vst [vmem:[#allocation3 + $0x798] sm:$0xff] %v2733
        %2766 = vst [vmem:[#allocation3 + $0x7e0] sm:$0xff] %v2734
        %2767 = vst [vmem:[#allocation3 + $0x828] sm:$0xff] %v2735
        %2768 = vst [vmem:[#allocation3 + $0x870] sm:$0xff] %v2736
        %2769 = vst [vmem:[#allocation3 + $0x8b8] sm:$0xff] %v2737
        %v2770 = vld [vmem:[#allocation2 + $0x1] sm:$0xff]
        %v2771 = vld [vmem:[#allocation2 + $0x9] sm:$0xff]
        %v2772 = vld [vmem:[#allocation2 + $0x19] sm:$0xff]
        %v2773 = vld [vmem:[#allocation2 + $0x21] sm:$0xff]
        %v2774 = vld [vmem:[#allocation2 + $0x31] sm:$0xff]
        %v2775 = vld [vmem:[#allocation2 + $0x39] sm:$0xff]
        %v2776 = vld [vmem:[#allocation2 + $0x49] sm:$0xff]
        %v2777 = vld [vmem:[#allocation2 + $0x51] sm:$0xff]
        %v2778 = vld [vmem:[#allocation2 + $0x61] sm:$0xff]
        %v2779 = vld [vmem:[#allocation2 + $0x69] sm:$0xff]
        %v2780 = vld [vmem:[#allocation2 + $0x79] sm:$0xff]
        %v2781 = vld [vmem:[#allocation2 + $0x81] sm:$0xff]
        %v2782 = vld [vmem:[#allocation2 + $0x91] sm:$0xff]
        %v2783 = vld [vmem:[#allocation2 + $0x99] sm:$0xff]
        %v2784 = vld [vmem:[#allocation2 + $0xa9] sm:$0xff]
        %v2785 = vld [vmem:[#allocation2 + $0xb1] sm:$0xff]
        %v2786 = vld [vmem:[#allocation2 + $0xc1] sm:$0xff]
        %v2787 = vld [vmem:[#allocation2 + $0xc9] sm:$0xff]
        %v2788 = vld [vmem:[#allocation2 + $0xd9] sm:$0xff]
        %v2789 = vld [vmem:[#allocation2 + $0xe1] sm:$0xff]
        %v2790 = vld [vmem:[#allocation2 + $0xf1] sm:$0xff]
        %v2791 = vld [vmem:[#allocation2 + $0xf9] sm:$0xff]
        %v2792 = vld [vmem:[#allocation2 + $0x109] sm:$0xff]
        %v2793 = vld [vmem:[#allocation2 + $0x111] sm:$0xff]
        %v2794 = vld [vmem:[#allocation2 + $0x121] sm:$0xff]
        %v2795 = vld [vmem:[#allocation2 + $0x129] sm:$0xff]
        %v2796 = vld [vmem:[#allocation2 + $0x139] sm:$0xff]
        %v2797 = vld [vmem:[#allocation2 + $0x141] sm:$0xff]
        %v2798 = vld [vmem:[#allocation2 + $0x151] sm:$0xff]
        %v2799 = vld [vmem:[#allocation2 + $0x159] sm:$0xff]
        %v2800 = vld [vmem:[#allocation2 + $0x169] sm:$0xff]
        %v2801 = vld [vmem:[#allocation2 + $0x171] sm:$0xff]
        %2802 = vst [vmem:[#allocation3 + $0x8] sm:$0xff] %v2770
        %2803 = vst [vmem:[#allocation3 + $0x50] sm:$0xff] %v2771
        %2804 = vst [vmem:[#allocation3 + $0x98] sm:$0xff] %v2772
        %2805 = vst [vmem:[#allocation3 + $0xe0] sm:$0xff] %v2773
        %2806 = vst [vmem:[#allocation3 + $0x128] sm:$0xff] %v2774
        %2807 = vst [vmem:[#allocation3 + $0x170] sm:$0xff] %v2775
        %2808 = vst [vmem:[#allocation3 + $0x1b8] sm:$0xff] %v2776
        %2809 = vst [vmem:[#allocation3 + $0x200] sm:$0xff] %v2777
        %2810 = vst [vmem:[#allocation3 + $0x248] sm:$0xff] %v2778
        %2811 = vst [vmem:[#allocation3 + $0x290] sm:$0xff] %v2779
        %2812 = vst [vmem:[#allocation3 + $0x2d8] sm:$0xff] %v2780
        %2813 = vst [vmem:[#allocation3 + $0x320] sm:$0xff] %v2781
        %2814 = vst [vmem:[#allocation3 + $0x368] sm:$0xff] %v2782
        %2815 = vst [vmem:[#allocation3 + $0x3b0] sm:$0xff] %v2783
        %2816 = vst [vmem:[#allocation3 + $0x3f8] sm:$0xff] %v2784
        %2817 = vst [vmem:[#allocation3 + $0x440] sm:$0xff] %v2785
        %2818 = vst [vmem:[#allocation3 + $0x488] sm:$0xff] %v2786
        %2819 = vst [vmem:[#allocation3 + $0x4d0] sm:$0xff] %v2787
        %2820 = vst [vmem:[#allocation3 + $0x518] sm:$0xff] %v2788
        %2821 = vst [vmem:[#allocation3 + $0x560] sm:$0xff] %v2789
        %2822 = vst [vmem:[#allocation3 + $0x5a8] sm:$0xff] %v2790
        %2823 = vst [vmem:[#allocation3 + $0x5f0] sm:$0xff] %v2791
        %2824 = vst [vmem:[#allocation3 + $0x638] sm:$0xff] %v2792
        %2825 = vst [vmem:[#allocation3 + $0x680] sm:$0xff] %v2793
        %2826 = vst [vmem:[#allocation3 + $0x6c8] sm:$0xff] %v2794
        %2827 = vst [vmem:[#allocation3 + $0x710] sm:$0xff] %v2795
        %2828 = vst [vmem:[#allocation3 + $0x758] sm:$0xff] %v2796
        %2829 = vst [vmem:[#allocation3 + $0x7a0] sm:$0xff] %v2797
        %2830 = vst [vmem:[#allocation3 + $0x7e8] sm:$0xff] %v2798
        %2831 = vst [vmem:[#allocation3 + $0x830] sm:$0xff] %v2799
        %2832 = vst [vmem:[#allocation3 + $0x878] sm:$0xff] %v2800
        %2833 = vst [vmem:[#allocation3 + $0x8c0] sm:$0xff] %v2801
        %v2834 = vld [vmem:[#allocation2 + $0x2] sm:$0xff]
        %v2835 = vld [vmem:[#allocation2 + $0xa] sm:$0xff]
        %v2836 = vld [vmem:[#allocation2 + $0x1a] sm:$0xff]
        %v2837 = vld [vmem:[#allocation2 + $0x22] sm:$0xff]
        %v2838 = vld [vmem:[#allocation2 + $0x32] sm:$0xff]
        %v2839 = vld [vmem:[#allocation2 + $0x3a] sm:$0xff]
        %v2840 = vld [vmem:[#allocation2 + $0x4a] sm:$0xff]
        %v2841 = vld [vmem:[#allocation2 + $0x52] sm:$0xff]
        %v2842 = vld [vmem:[#allocation2 + $0x62] sm:$0xff]
        %v2843 = vld [vmem:[#allocation2 + $0x6a] sm:$0xff]
        %v2844 = vld [vmem:[#allocation2 + $0x7a] sm:$0xff]
        %v2845 = vld [vmem:[#allocation2 + $0x82] sm:$0xff]
        %v2846 = vld [vmem:[#allocation2 + $0x92] sm:$0xff]
        %v2847 = vld [vmem:[#allocation2 + $0x9a] sm:$0xff]
        %v2848 = vld [vmem:[#allocation2 + $0xaa] sm:$0xff]
        %v2849 = vld [vmem:[#allocation2 + $0xb2] sm:$0xff]
        %v2850 = vld [vmem:[#allocation2 + $0xc2] sm:$0xff]
        %v2851 = vld [vmem:[#allocation2 + $0xca] sm:$0xff]
        %v2852 = vld [vmem:[#allocation2 + $0xda] sm:$0xff]
        %v2853 = vld [vmem:[#allocation2 + $0xe2] sm:$0xff]
        %v2854 = vld [vmem:[#allocation2 + $0xf2] sm:$0xff]
        %v2855 = vld [vmem:[#allocation2 + $0xfa] sm:$0xff]
        %v2856 = vld [vmem:[#allocation2 + $0x10a] sm:$0xff]
        %v2857 = vld [vmem:[#allocation2 + $0x112] sm:$0xff]
        %v2858 = vld [vmem:[#allocation2 + $0x122] sm:$0xff]
        %v2859 = vld [vmem:[#allocation2 + $0x12a] sm:$0xff]
        %v2860 = vld [vmem:[#allocation2 + $0x13a] sm:$0xff]
        %v2861 = vld [vmem:[#allocation2 + $0x142] sm:$0xff]
        %v2862 = vld [vmem:[#allocation2 + $0x152] sm:$0xff]
        %v2863 = vld [vmem:[#allocation2 + $0x15a] sm:$0xff]
        %v2864 = vld [vmem:[#allocation2 + $0x16a] sm:$0xff]
        %v2865 = vld [vmem:[#allocation2 + $0x172] sm:$0xff]
        %2866 = vst [vmem:[#allocation3 + $0x10] sm:$0xff] %v2834
        %2867 = vst [vmem:[#allocation3 + $0x58] sm:$0xff] %v2835
        %2868 = vst [vmem:[#allocation3 + $0xa0] sm:$0xff] %v2836
        %2869 = vst [vmem:[#allocation3 + $0xe8] sm:$0xff] %v2837
        %2870 = vst [vmem:[#allocation3 + $0x130] sm:$0xff] %v2838
        %2871 = vst [vmem:[#allocation3 + $0x178] sm:$0xff] %v2839
        %2872 = vst [vmem:[#allocation3 + $0x1c0] sm:$0xff] %v2840
        %2873 = vst [vmem:[#allocation3 + $0x208] sm:$0xff] %v2841
        %2874 = vst [vmem:[#allocation3 + $0x250] sm:$0xff] %v2842
        %2875 = vst [vmem:[#allocation3 + $0x298] sm:$0xff] %v2843
        %2876 = vst [vmem:[#allocation3 + $0x2e0] sm:$0xff] %v2844
        %2877 = vst [vmem:[#allocation3 + $0x328] sm:$0xff] %v2845
        %2878 = vst [vmem:[#allocation3 + $0x370] sm:$0xff] %v2846
        %2879 = vst [vmem:[#allocation3 + $0x3b8] sm:$0xff] %v2847
        %2880 = vst [vmem:[#allocation3 + $0x400] sm:$0xff] %v2848
        %2881 = vst [vmem:[#allocation3 + $0x448] sm:$0xff] %v2849
        %2882 = vst [vmem:[#allocation3 + $0x490] sm:$0xff] %v2850
        %2883 = vst [vmem:[#allocation3 + $0x4d8] sm:$0xff] %v2851
        %2884 = vst [vmem:[#allocation3 + $0x520] sm:$0xff] %v2852
        %2885 = vst [vmem:[#allocation3 + $0x568] sm:$0xff] %v2853
        %2886 = vst [vmem:[#allocation3 + $0x5b0] sm:$0xff] %v2854
        %2887 = vst [vmem:[#allocation3 + $0x5f8] sm:$0xff] %v2855
        %2888 = vst [vmem:[#allocation3 + $0x640] sm:$0xff] %v2856
        %2889 = vst [vmem:[#allocation3 + $0x688] sm:$0xff] %v2857
        %2890 = vst [vmem:[#allocation3 + $0x6d0] sm:$0xff] %v2858
        %2891 = vst [vmem:[#allocation3 + $0x718] sm:$0xff] %v2859
        %2892 = vst [vmem:[#allocation3 + $0x760] sm:$0xff] %v2860
        %2893 = vst [vmem:[#allocation3 + $0x7a8] sm:$0xff] %v2861
        %2894 = vst [vmem:[#allocation3 + $0x7f0] sm:$0xff] %v2862
        %2895 = vst [vmem:[#allocation3 + $0x838] sm:$0xff] %v2863
        %2896 = vst [vmem:[#allocation3 + $0x880] sm:$0xff] %v2864
        %2897 = vst [vmem:[#allocation3 + $0x8c8] sm:$0xff] %v2865
        %v2898 = vld [vmem:[%s301] sm:$0xff]
        %v2899 = vld [vmem:[%s301 + $0x8] sm:$0xff]
        %v2900 = vld [vmem:[%s301 + $0x18] sm:$0xff]
        %v2901 = vld [vmem:[%s301 + $0x20] sm:$0xff]
        %v2902 = vld [vmem:[%s301 + $0x30] sm:$0xff]
        %v2903 = vld [vmem:[%s301 + $0x38] sm:$0xff]
        %v2904 = vld [vmem:[%s301 + $0x48] sm:$0xff]
        %v2905 = vld [vmem:[%s301 + $0x50] sm:$0xff]
        %v2906 = vld [vmem:[%s301 + $0x60] sm:$0xff]
        %v2907 = vld [vmem:[%s301 + $0x68] sm:$0xff]
        %v2908 = vld [vmem:[%s301 + $0x78] sm:$0xff]
        %v2909 = vld [vmem:[%s301 + $0x80] sm:$0xff]
        %v2910 = vld [vmem:[%s301 + $0x90] sm:$0xff]
        %v2911 = vld [vmem:[%s301 + $0x98] sm:$0xff]
        %v2912 = vld [vmem:[%s301 + $0xa8] sm:$0xff]
        %v2913 = vld [vmem:[%s301 + $0xb0] sm:$0xff]
        %v2914 = vld [vmem:[%s301 + $0xc0] sm:$0xff]
        %v2915 = vld [vmem:[%s301 + $0xc8] sm:$0xff]
        %v2916 = vld [vmem:[%s301 + $0xd8] sm:$0xff]
        %v2917 = vld [vmem:[%s301 + $0xe0] sm:$0xff]
        %v2918 = vld [vmem:[%s301 + $0xf0] sm:$0xff]
        %v2919 = vld [vmem:[%s301 + $0xf8] sm:$0xff]
        %v2920 = vld [vmem:[%s301 + $0x108] sm:$0xff]
        %v2921 = vld [vmem:[%s301 + $0x110] sm:$0xff]
        %v2922 = vld [vmem:[%s301 + $0x120] sm:$0xff]
        %v2923 = vld [vmem:[%s301 + $0x128] sm:$0xff]
        %v2924 = vld [vmem:[%s301 + $0x138] sm:$0xff]
        %v2925 = vld [vmem:[%s301 + $0x140] sm:$0xff]
        %v2926 = vld [vmem:[%s301 + $0x150] sm:$0xff]
        %v2927 = vld [vmem:[%s301 + $0x158] sm:$0xff]
        %v2928 = vld [vmem:[%s301 + $0x168] sm:$0xff]
        %v2929 = vld [vmem:[%s301 + $0x170] sm:$0xff]
        %2930 = vst [vmem:[#allocation3 + $0x18] sm:$0xff] %v2898
        %2931 = vst [vmem:[#allocation3 + $0x60] sm:$0xff] %v2899
        %2932 = vst [vmem:[#allocation3 + $0xa8] sm:$0xff] %v2900
        %2933 = vst [vmem:[#allocation3 + $0xf0] sm:$0xff] %v2901
        %2934 = vst [vmem:[#allocation3 + $0x138] sm:$0xff] %v2902
        %2935 = vst [vmem:[#allocation3 + $0x180] sm:$0xff] %v2903
        %2936 = vst [vmem:[#allocation3 + $0x1c8] sm:$0xff] %v2904
        %2937 = vst [vmem:[#allocation3 + $0x210] sm:$0xff] %v2905
        %2938 = vst [vmem:[#allocation3 + $0x258] sm:$0xff] %v2906
        %2939 = vst [vmem:[#allocation3 + $0x2a0] sm:$0xff] %v2907
        %2940 = vst [vmem:[#allocation3 + $0x2e8] sm:$0xff] %v2908
        %2941 = vst [vmem:[#allocation3 + $0x330] sm:$0xff] %v2909
        %2942 = vst [vmem:[#allocation3 + $0x378] sm:$0xff] %v2910
        %2943 = vst [vmem:[#allocation3 + $0x3c0] sm:$0xff] %v2911
        %2944 = vst [vmem:[#allocation3 + $0x408] sm:$0xff] %v2912
        %2945 = vst [vmem:[#allocation3 + $0x450] sm:$0xff] %v2913
        %2946 = vst [vmem:[#allocation3 + $0x498] sm:$0xff] %v2914
        %2947 = vst [vmem:[#allocation3 + $0x4e0] sm:$0xff] %v2915
        %2948 = vst [vmem:[#allocation3 + $0x528] sm:$0xff] %v2916
        %2949 = vst [vmem:[#allocation3 + $0x570] sm:$0xff] %v2917
        %2950 = vst [vmem:[#allocation3 + $0x5b8] sm:$0xff] %v2918
        %2951 = vst [vmem:[#allocation3 + $0x600] sm:$0xff] %v2919
        %2952 = vst [vmem:[#allocation3 + $0x648] sm:$0xff] %v2920
        %2953 = vst [vmem:[#allocation3 + $0x690] sm:$0xff] %v2921
        %2954 = vst [vmem:[#allocation3 + $0x6d8] sm:$0xff] %v2922
        %2955 = vst [vmem:[#allocation3 + $0x720] sm:$0xff] %v2923
        %2956 = vst [vmem:[#allocation3 + $0x768] sm:$0xff] %v2924
        %2957 = vst [vmem:[#allocation3 + $0x7b0] sm:$0xff] %v2925
        %2958 = vst [vmem:[#allocation3 + $0x7f8] sm:$0xff] %v2926
        %2959 = vst [vmem:[#allocation3 + $0x840] sm:$0xff] %v2927
        %2960 = vst [vmem:[#allocation3 + $0x888] sm:$0xff] %v2928
        %2961 = vst [vmem:[#allocation3 + $0x8d0] sm:$0xff] %v2929
        %v2962 = vld [vmem:[%s301 + $0x1] sm:$0xff]
        %v2963 = vld [vmem:[%s301 + $0x9] sm:$0xff]
        %v2964 = vld [vmem:[%s301 + $0x19] sm:$0xff]
        %v2965 = vld [vmem:[%s301 + $0x21] sm:$0xff]
        %v2966 = vld [vmem:[%s301 + $0x31] sm:$0xff]
        %v2967 = vld [vmem:[%s301 + $0x39] sm:$0xff]
        %v2968 = vld [vmem:[%s301 + $0x49] sm:$0xff]
        %v2969 = vld [vmem:[%s301 + $0x51] sm:$0xff]
        %v2970 = vld [vmem:[%s301 + $0x61] sm:$0xff]
        %v2971 = vld [vmem:[%s301 + $0x69] sm:$0xff]
        %v2972 = vld [vmem:[%s301 + $0x79] sm:$0xff]
        %v2973 = vld [vmem:[%s301 + $0x81] sm:$0xff]
        %v2974 = vld [vmem:[%s301 + $0x91] sm:$0xff]
        %v2975 = vld [vmem:[%s301 + $0x99] sm:$0xff]
        %v2976 = vld [vmem:[%s301 + $0xa9] sm:$0xff]
        %v2977 = vld [vmem:[%s301 + $0xb1] sm:$0xff]
        %v2978 = vld [vmem:[%s301 + $0xc1] sm:$0xff]
        %v2979 = vld [vmem:[%s301 + $0xc9] sm:$0xff]
        %v2980 = vld [vmem:[%s301 + $0xd9] sm:$0xff]
        %v2981 = vld [vmem:[%s301 + $0xe1] sm:$0xff]
        %v2982 = vld [vmem:[%s301 + $0xf1] sm:$0xff]
        %v2983 = vld [vmem:[%s301 + $0xf9] sm:$0xff]
        %v2984 = vld [vmem:[%s301 + $0x109] sm:$0xff]
        %v2985 = vld [vmem:[%s301 + $0x111] sm:$0xff]
        %v2986 = vld [vmem:[%s301 + $0x121] sm:$0xff]
        %v2987 = vld [vmem:[%s301 + $0x129] sm:$0xff]
        %v2988 = vld [vmem:[%s301 + $0x139] sm:$0xff]
        %v2989 = vld [vmem:[%s301 + $0x141] sm:$0xff]
        %v2990 = vld [vmem:[%s301 + $0x151] sm:$0xff]
        %v2991 = vld [vmem:[%s301 + $0x159] sm:$0xff]
        %v2992 = vld [vmem:[%s301 + $0x169] sm:$0xff]
        %v2993 = vld [vmem:[%s301 + $0x171] sm:$0xff]
        %2994 = vst [vmem:[#allocation3 + $0x20] sm:$0xff] %v2962
        %2995 = vst [vmem:[#allocation3 + $0x68] sm:$0xff] %v2963
        %2996 = vst [vmem:[#allocation3 + $0xb0] sm:$0xff] %v2964
        %2997 = vst [vmem:[#allocation3 + $0xf8] sm:$0xff] %v2965
        %2998 = vst [vmem:[#allocation3 + $0x140] sm:$0xff] %v2966
        %2999 = vst [vmem:[#allocation3 + $0x188] sm:$0xff] %v2967
        %3000 = vst [vmem:[#allocation3 + $0x1d0] sm:$0xff] %v2968
        %3001 = vst [vmem:[#allocation3 + $0x218] sm:$0xff] %v2969
        %3002 = vst [vmem:[#allocation3 + $0x260] sm:$0xff] %v2970
        %3003 = vst [vmem:[#allocation3 + $0x2a8] sm:$0xff] %v2971
        %3004 = vst [vmem:[#allocation3 + $0x2f0] sm:$0xff] %v2972
        %3005 = vst [vmem:[#allocation3 + $0x338] sm:$0xff] %v2973
        %3006 = vst [vmem:[#allocation3 + $0x380] sm:$0xff] %v2974
        %3007 = vst [vmem:[#allocation3 + $0x3c8] sm:$0xff] %v2975
        %3008 = vst [vmem:[#allocation3 + $0x410] sm:$0xff] %v2976
        %3009 = vst [vmem:[#allocation3 + $0x458] sm:$0xff] %v2977
        %3010 = vst [vmem:[#allocation3 + $0x4a0] sm:$0xff] %v2978
        %3011 = vst [vmem:[#allocation3 + $0x4e8] sm:$0xff] %v2979
        %3012 = vst [vmem:[#allocation3 + $0x530] sm:$0xff] %v2980
        %3013 = vst [vmem:[#allocation3 + $0x578] sm:$0xff] %v2981
        %3014 = vst [vmem:[#allocation3 + $0x5c0] sm:$0xff] %v2982
        %3015 = vst [vmem:[#allocation3 + $0x608] sm:$0xff] %v2983
        %3016 = vst [vmem:[#allocation3 + $0x650] sm:$0xff] %v2984
        %3017 = vst [vmem:[#allocation3 + $0x698] sm:$0xff] %v2985
        %3018 = vst [vmem:[#allocation3 + $0x6e0] sm:$0xff] %v2986
        %3019 = vst [vmem:[#allocation3 + $0x728] sm:$0xff] %v2987
        %3020 = vst [vmem:[#allocation3 + $0x770] sm:$0xff] %v2988
        %3021 = vst [vmem:[#allocation3 + $0x7b8] sm:$0xff] %v2989
        %3022 = vst [vmem:[#allocation3 + $0x800] sm:$0xff] %v2990
        %3023 = vst [vmem:[#allocation3 + $0x848] sm:$0xff] %v2991
        %3024 = vst [vmem:[#allocation3 + $0x890] sm:$0xff] %v2992
        %3025 = vst [vmem:[#allocation3 + $0x8d8] sm:$0xff] %v2993
        %v3026 = vld [vmem:[%s301 + $0x2] sm:$0xff]
        %v3027 = vld [vmem:[%s301 + $0xa] sm:$0xff]
        %v3028 = vld [vmem:[%s301 + $0x1a] sm:$0xff]
        %v3029 = vld [vmem:[%s301 + $0x22] sm:$0xff]
        %v3030 = vld [vmem:[%s301 + $0x32] sm:$0xff]
        %v3031 = vld [vmem:[%s301 + $0x3a] sm:$0xff]
        %v3032 = vld [vmem:[%s301 + $0x4a] sm:$0xff]
        %v3033 = vld [vmem:[%s301 + $0x52] sm:$0xff]
        %v3034 = vld [vmem:[%s301 + $0x62] sm:$0xff]
        %v3035 = vld [vmem:[%s301 + $0x6a] sm:$0xff]
        %v3036 = vld [vmem:[%s301 + $0x7a] sm:$0xff]
        %v3037 = vld [vmem:[%s301 + $0x82] sm:$0xff]
        %v3038 = vld [vmem:[%s301 + $0x92] sm:$0xff]
        %v3039 = vld [vmem:[%s301 + $0x9a] sm:$0xff]
        %v3040 = vld [vmem:[%s301 + $0xaa] sm:$0xff]
        %v3041 = vld [vmem:[%s301 + $0xb2] sm:$0xff]
        %v3042 = vld [vmem:[%s301 + $0xc2] sm:$0xff]
        %v3043 = vld [vmem:[%s301 + $0xca] sm:$0xff]
        %v3044 = vld [vmem:[%s301 + $0xda] sm:$0xff]
        %v3045 = vld [vmem:[%s301 + $0xe2] sm:$0xff]
        %v3046 = vld [vmem:[%s301 + $0xf2] sm:$0xff]
        %v3047 = vld [vmem:[%s301 + $0xfa] sm:$0xff]
        %v3048 = vld [vmem:[%s301 + $0x10a] sm:$0xff]
        %v3049 = vld [vmem:[%s301 + $0x112] sm:$0xff]
        %v3050 = vld [vmem:[%s301 + $0x122] sm:$0xff]
        %v3051 = vld [vmem:[%s301 + $0x12a] sm:$0xff]
        %v3052 = vld [vmem:[%s301 + $0x13a] sm:$0xff]
        %v3053 = vld [vmem:[%s301 + $0x142] sm:$0xff]
        %v3054 = vld [vmem:[%s301 + $0x152] sm:$0xff]
        %v3055 = vld [vmem:[%s301 + $0x15a] sm:$0xff]
        %v3056 = vld [vmem:[%s301 + $0x16a] sm:$0xff]
        %v3057 = vld [vmem:[%s301 + $0x172] sm:$0xff]
        %3058 = vst [vmem:[#allocation3 + $0x28] sm:$0xff] %v3026
        %3059 = vst [vmem:[#allocation3 + $0x70] sm:$0xff] %v3027
        %3060 = vst [vmem:[#allocation3 + $0xb8] sm:$0xff] %v3028
        %3061 = vst [vmem:[#allocation3 + $0x100] sm:$0xff] %v3029
        %3062 = vst [vmem:[#allocation3 + $0x148] sm:$0xff] %v3030
        %3063 = vst [vmem:[#allocation3 + $0x190] sm:$0xff] %v3031
        %3064 = vst [vmem:[#allocation3 + $0x1d8] sm:$0xff] %v3032
        %3065 = vst [vmem:[#allocation3 + $0x220] sm:$0xff] %v3033
        %3066 = vst [vmem:[#allocation3 + $0x268] sm:$0xff] %v3034
        %3067 = vst [vmem:[#allocation3 + $0x2b0] sm:$0xff] %v3035
        %3068 = vst [vmem:[#allocation3 + $0x2f8] sm:$0xff] %v3036
        %3069 = vst [vmem:[#allocation3 + $0x340] sm:$0xff] %v3037
        %3070 = vst [vmem:[#allocation3 + $0x388] sm:$0xff] %v3038
        %3071 = vst [vmem:[#allocation3 + $0x3d0] sm:$0xff] %v3039
        %3072 = vst [vmem:[#allocation3 + $0x418] sm:$0xff] %v3040
        %3073 = vst [vmem:[#allocation3 + $0x460] sm:$0xff] %v3041
        %3074 = vst [vmem:[#allocation3 + $0x4a8] sm:$0xff] %v3042
        %3075 = vst [vmem:[#allocation3 + $0x4f0] sm:$0xff] %v3043
        %3076 = vst [vmem:[#allocation3 + $0x538] sm:$0xff] %v3044
        %3077 = vst [vmem:[#allocation3 + $0x580] sm:$0xff] %v3045
        %3078 = vst [vmem:[#allocation3 + $0x5c8] sm:$0xff] %v3046
        %3079 = vst [vmem:[#allocation3 + $0x610] sm:$0xff] %v3047
        %3080 = vst [vmem:[#allocation3 + $0x658] sm:$0xff] %v3048
        %3081 = vst [vmem:[#allocation3 + $0x6a0] sm:$0xff] %v3049
        %3082 = vst [vmem:[#allocation3 + $0x6e8] sm:$0xff] %v3050
        %3083 = vst [vmem:[#allocation3 + $0x730] sm:$0xff] %v3051
        %3084 = vst [vmem:[#allocation3 + $0x778] sm:$0xff] %v3052
        %3085 = vst [vmem:[#allocation3 + $0x7c0] sm:$0xff] %v3053
        %3086 = vst [vmem:[#allocation3 + $0x808] sm:$0xff] %v3054
        %3087 = vst [vmem:[#allocation3 + $0x850] sm:$0xff] %v3055
        %3088 = vst [vmem:[#allocation3 + $0x898] sm:$0xff] %v3056
        %3089 = vst [vmem:[#allocation3 + $0x8e0] sm:$0xff] %v3057
        %v3090 = vld [vmem:[%s782] sm:$0xff]
        %v3091 = vld [vmem:[%s782 + $0x8] sm:$0xff]
        %v3092 = vld [vmem:[%s782 + $0x18] sm:$0xff]
        %v3093 = vld [vmem:[%s782 + $0x20] sm:$0xff]
        %v3094 = vld [vmem:[%s782 + $0x30] sm:$0xff]
        %v3095 = vld [vmem:[%s782 + $0x38] sm:$0xff]
        %v3096 = vld [vmem:[%s782 + $0x48] sm:$0xff]
        %v3097 = vld [vmem:[%s782 + $0x50] sm:$0xff]
        %v3098 = vld [vmem:[%s782 + $0x60] sm:$0xff]
        %v3099 = vld [vmem:[%s782 + $0x68] sm:$0xff]
        %v3100 = vld [vmem:[%s782 + $0x78] sm:$0xff]
        %v3101 = vld [vmem:[%s782 + $0x80] sm:$0xff]
        %v3102 = vld [vmem:[%s782 + $0x90] sm:$0xff]
        %v3103 = vld [vmem:[%s782 + $0x98] sm:$0xff]
        %v3104 = vld [vmem:[%s782 + $0xa8] sm:$0xff]
        %v3105 = vld [vmem:[%s782 + $0xb0] sm:$0xff]
        %v3106 = vld [vmem:[%s782 + $0xc0] sm:$0xff]
        %v3107 = vld [vmem:[%s782 + $0xc8] sm:$0xff]
        %v3108 = vld [vmem:[%s782 + $0xd8] sm:$0xff]
        %v3109 = vld [vmem:[%s782 + $0xe0] sm:$0xff]
        %v3110 = vld [vmem:[%s782 + $0xf0] sm:$0xff]
        %v3111 = vld [vmem:[%s782 + $0xf8] sm:$0xff]
        %v3112 = vld [vmem:[%s782 + $0x108] sm:$0xff]
        %v3113 = vld [vmem:[%s782 + $0x110] sm:$0xff]
        %v3114 = vld [vmem:[%s782 + $0x120] sm:$0xff]
        %v3115 = vld [vmem:[%s782 + $0x128] sm:$0xff]
        %v3116 = vld [vmem:[%s782 + $0x138] sm:$0xff]
        %v3117 = vld [vmem:[%s782 + $0x140] sm:$0xff]
        %v3118 = vld [vmem:[%s782 + $0x150] sm:$0xff]
        %v3119 = vld [vmem:[%s782 + $0x158] sm:$0xff]
        %v3120 = vld [vmem:[%s782 + $0x168] sm:$0xff]
        %v3121 = vld [vmem:[%s782 + $0x170] sm:$0xff]
        %3122 = vst [vmem:[#allocation3 + $0x30] sm:$0xff] %v3090
        %3123 = vst [vmem:[#allocation3 + $0x78] sm:$0xff] %v3091
        %3124 = vst [vmem:[#allocation3 + $0xc0] sm:$0xff] %v3092
        %3125 = vst [vmem:[#allocation3 + $0x108] sm:$0xff] %v3093
        %3126 = vst [vmem:[#allocation3 + $0x150] sm:$0xff] %v3094
        %3127 = vst [vmem:[#allocation3 + $0x198] sm:$0xff] %v3095
        %3128 = vst [vmem:[#allocation3 + $0x1e0] sm:$0xff] %v3096
        %3129 = vst [vmem:[#allocation3 + $0x228] sm:$0xff] %v3097
        %3130 = vst [vmem:[#allocation3 + $0x270] sm:$0xff] %v3098
        %3131 = vst [vmem:[#allocation3 + $0x2b8] sm:$0xff] %v3099
        %3132 = vst [vmem:[#allocation3 + $0x300] sm:$0xff] %v3100
        %3133 = vst [vmem:[#allocation3 + $0x348] sm:$0xff] %v3101
        %3134 = vst [vmem:[#allocation3 + $0x390] sm:$0xff] %v3102
        %3135 = vst [vmem:[#allocation3 + $0x3d8] sm:$0xff] %v3103
        %3136 = vst [vmem:[#allocation3 + $0x420] sm:$0xff] %v3104
        %3137 = vst [vmem:[#allocation3 + $0x468] sm:$0xff] %v3105
        %3138 = vst [vmem:[#allocation3 + $0x4b0] sm:$0xff] %v3106
        %3139 = vst [vmem:[#allocation3 + $0x4f8] sm:$0xff] %v3107
        %3140 = vst [vmem:[#allocation3 + $0x540] sm:$0xff] %v3108
        %3141 = vst [vmem:[#allocation3 + $0x588] sm:$0xff] %v3109
        %3142 = vst [vmem:[#allocation3 + $0x5d0] sm:$0xff] %v3110
        %3143 = vst [vmem:[#allocation3 + $0x618] sm:$0xff] %v3111
        %3144 = vst [vmem:[#allocation3 + $0x660] sm:$0xff] %v3112
        %3145 = vst [vmem:[#allocation3 + $0x6a8] sm:$0xff] %v3113
        %3146 = vst [vmem:[#allocation3 + $0x6f0] sm:$0xff] %v3114
        %3147 = vst [vmem:[#allocation3 + $0x738] sm:$0xff] %v3115
        %3148 = vst [vmem:[#allocation3 + $0x780] sm:$0xff] %v3116
        %3149 = vst [vmem:[#allocation3 + $0x7c8] sm:$0xff] %v3117
        %3150 = vst [vmem:[#allocation3 + $0x810] sm:$0xff] %v3118
        %3151 = vst [vmem:[#allocation3 + $0x858] sm:$0xff] %v3119
        %3152 = vst [vmem:[#allocation3 + $0x8a0] sm:$0xff] %v3120
        %3153 = vst [vmem:[#allocation3 + $0x8e8] sm:$0xff] %v3121
        %v3154 = vld [vmem:[%s782 + $0x1] sm:$0xff]
        %v3155 = vld [vmem:[%s782 + $0x9] sm:$0xff]
        %v3156 = vld [vmem:[%s782 + $0x19] sm:$0xff]
        %v3157 = vld [vmem:[%s782 + $0x21] sm:$0xff]
        %v3158 = vld [vmem:[%s782 + $0x31] sm:$0xff]
        %v3159 = vld [vmem:[%s782 + $0x39] sm:$0xff]
        %v3160 = vld [vmem:[%s782 + $0x49] sm:$0xff]
        %v3161 = vld [vmem:[%s782 + $0x51] sm:$0xff]
        %v3162 = vld [vmem:[%s782 + $0x61] sm:$0xff]
        %v3163 = vld [vmem:[%s782 + $0x69] sm:$0xff]
        %v3164 = vld [vmem:[%s782 + $0x79] sm:$0xff]
        %v3165 = vld [vmem:[%s782 + $0x81] sm:$0xff]
        %v3166 = vld [vmem:[%s782 + $0x91] sm:$0xff]
        %v3167 = vld [vmem:[%s782 + $0x99] sm:$0xff]
        %v3168 = vld [vmem:[%s782 + $0xa9] sm:$0xff]
        %v3169 = vld [vmem:[%s782 + $0xb1] sm:$0xff]
        %v3170 = vld [vmem:[%s782 + $0xc1] sm:$0xff]
        %v3171 = vld [vmem:[%s782 + $0xc9] sm:$0xff]
        %v3172 = vld [vmem:[%s782 + $0xd9] sm:$0xff]
        %v3173 = vld [vmem:[%s782 + $0xe1] sm:$0xff]
        %v3174 = vld [vmem:[%s782 + $0xf1] sm:$0xff]
        %v3175 = vld [vmem:[%s782 + $0xf9] sm:$0xff]
        %v3176 = vld [vmem:[%s782 + $0x109] sm:$0xff]
        %v3177 = vld [vmem:[%s782 + $0x111] sm:$0xff]
        %v3178 = vld [vmem:[%s782 + $0x121] sm:$0xff]
        %v3179 = vld [vmem:[%s782 + $0x129] sm:$0xff]
        %v3180 = vld [vmem:[%s782 + $0x139] sm:$0xff]
        %v3181 = vld [vmem:[%s782 + $0x141] sm:$0xff]
        %v3182 = vld [vmem:[%s782 + $0x151] sm:$0xff]
        %v3183 = vld [vmem:[%s782 + $0x159] sm:$0xff]
        %v3184 = vld [vmem:[%s782 + $0x169] sm:$0xff]
        %v3185 = vld [vmem:[%s782 + $0x171] sm:$0xff]
        %3186 = vst [vmem:[#allocation3 + $0x38] sm:$0xff] %v3154
        %3187 = vst [vmem:[#allocation3 + $0x80] sm:$0xff] %v3155
        %3188 = vst [vmem:[#allocation3 + $0xc8] sm:$0xff] %v3156
        %3189 = vst [vmem:[#allocation3 + $0x110] sm:$0xff] %v3157
        %3190 = vst [vmem:[#allocation3 + $0x158] sm:$0xff] %v3158
        %3191 = vst [vmem:[#allocation3 + $0x1a0] sm:$0xff] %v3159
        %3192 = vst [vmem:[#allocation3 + $0x1e8] sm:$0xff] %v3160
        %3193 = vst [vmem:[#allocation3 + $0x230] sm:$0xff] %v3161
        %3194 = vst [vmem:[#allocation3 + $0x278] sm:$0xff] %v3162
        %3195 = vst [vmem:[#allocation3 + $0x2c0] sm:$0xff] %v3163
        %3196 = vst [vmem:[#allocation3 + $0x308] sm:$0xff] %v3164
        %3197 = vst [vmem:[#allocation3 + $0x350] sm:$0xff] %v3165
        %3198 = vst [vmem:[#allocation3 + $0x398] sm:$0xff] %v3166
        %3199 = vst [vmem:[#allocation3 + $0x3e0] sm:$0xff] %v3167
        %3200 = vst [vmem:[#allocation3 + $0x428] sm:$0xff] %v3168
        %3201 = vst [vmem:[#allocation3 + $0x470] sm:$0xff] %v3169
        %3202 = vst [vmem:[#allocation3 + $0x4b8] sm:$0xff] %v3170
        %3203 = vst [vmem:[#allocation3 + $0x500] sm:$0xff] %v3171
        %3204 = vst [vmem:[#allocation3 + $0x548] sm:$0xff] %v3172
        %3205 = vst [vmem:[#allocation3 + $0x590] sm:$0xff] %v3173
        %3206 = vst [vmem:[#allocation3 + $0x5d8] sm:$0xff] %v3174
        %3207 = vst [vmem:[#allocation3 + $0x620] sm:$0xff] %v3175
        %3208 = vst [vmem:[#allocation3 + $0x668] sm:$0xff] %v3176
        %3209 = vst [vmem:[#allocation3 + $0x6b0] sm:$0xff] %v3177
        %3210 = vst [vmem:[#allocation3 + $0x6f8] sm:$0xff] %v3178
        %3211 = vst [vmem:[#allocation3 + $0x740] sm:$0xff] %v3179
        %3212 = vst [vmem:[#allocation3 + $0x788] sm:$0xff] %v3180
        %3213 = vst [vmem:[#allocation3 + $0x7d0] sm:$0xff] %v3181
        %3214 = vst [vmem:[#allocation3 + $0x818] sm:$0xff] %v3182
        %3215 = vst [vmem:[#allocation3 + $0x860] sm:$0xff] %v3183
        %3216 = vst [vmem:[#allocation3 + $0x8a8] sm:$0xff] %v3184
        %3217 = vst [vmem:[#allocation3 + $0x8f0] sm:$0xff] %v3185
        %v3218 = vld [vmem:[%s782 + $0x2] sm:$0xff]
        %v3219 = vld [vmem:[%s782 + $0xa] sm:$0xff]
        %v3220 = vld [vmem:[%s782 + $0x1a] sm:$0xff]
        %v3221 = vld [vmem:[%s782 + $0x22] sm:$0xff]
        %v3222 = vld [vmem:[%s782 + $0x32] sm:$0xff]
        %v3223 = vld [vmem:[%s782 + $0x3a] sm:$0xff]
        %v3224 = vld [vmem:[%s782 + $0x4a] sm:$0xff]
        %v3225 = vld [vmem:[%s782 + $0x52] sm:$0xff]
        %v3226 = vld [vmem:[%s782 + $0x62] sm:$0xff]
        %v3227 = vld [vmem:[%s782 + $0x6a] sm:$0xff]
        %v3228 = vld [vmem:[%s782 + $0x7a] sm:$0xff]
        %v3229 = vld [vmem:[%s782 + $0x82] sm:$0xff]
        %v3230 = vld [vmem:[%s782 + $0x92] sm:$0xff]
        %v3231 = vld [vmem:[%s782 + $0x9a] sm:$0xff]
        %v3232 = vld [vmem:[%s782 + $0xaa] sm:$0xff]
        %v3233 = vld [vmem:[%s782 + $0xb2] sm:$0xff]
        %v3234 = vld [vmem:[%s782 + $0xc2] sm:$0xff]
        %v3235 = vld [vmem:[%s782 + $0xca] sm:$0xff]
        %v3236 = vld [vmem:[%s782 + $0xda] sm:$0xff]
        %v3237 = vld [vmem:[%s782 + $0xe2] sm:$0xff]
        %v3238 = vld [vmem:[%s782 + $0xf2] sm:$0xff]
        %v3239 = vld [vmem:[%s782 + $0xfa] sm:$0xff]
        %v3240 = vld [vmem:[%s782 + $0x10a] sm:$0xff]
        %v3241 = vld [vmem:[%s782 + $0x112] sm:$0xff]
        %v3242 = vld [vmem:[%s782 + $0x122] sm:$0xff]
        %v3243 = vld [vmem:[%s782 + $0x12a] sm:$0xff]
        %v3244 = vld [vmem:[%s782 + $0x13a] sm:$0xff]
        %v3245 = vld [vmem:[%s782 + $0x142] sm:$0xff]
        %v3246 = vld [vmem:[%s782 + $0x152] sm:$0xff]
        %v3247 = vld [vmem:[%s782 + $0x15a] sm:$0xff]
        %v3248 = vld [vmem:[%s782 + $0x16a] sm:$0xff]
        %v3249 = vld [vmem:[%s782 + $0x172] sm:$0xff]
        %3250 = vst [vmem:[#allocation3 + $0x40] sm:$0xff] %v3218
        %3251 = vst [vmem:[#allocation3 + $0x88] sm:$0xff] %v3219
        %3252 = vst [vmem:[#allocation3 + $0xd0] sm:$0xff] %v3220
        %3253 = vst [vmem:[#allocation3 + $0x118] sm:$0xff] %v3221
        %3254 = vst [vmem:[#allocation3 + $0x160] sm:$0xff] %v3222
        %3255 = vst [vmem:[#allocation3 + $0x1a8] sm:$0xff] %v3223
        %3256 = vst [vmem:[#allocation3 + $0x1f0] sm:$0xff] %v3224
        %3257 = vst [vmem:[#allocation3 + $0x238] sm:$0xff] %v3225
        %3258 = vst [vmem:[#allocation3 + $0x280] sm:$0xff] %v3226
        %3259 = vst [vmem:[#allocation3 + $0x2c8] sm:$0xff] %v3227
        %3260 = vst [vmem:[#allocation3 + $0x310] sm:$0xff] %v3228
        %3261 = vst [vmem:[#allocation3 + $0x358] sm:$0xff] %v3229
        %3262 = vst [vmem:[#allocation3 + $0x3a0] sm:$0xff] %v3230
        %3263 = vst [vmem:[#allocation3 + $0x3e8] sm:$0xff] %v3231
        %3264 = vst [vmem:[#allocation3 + $0x430] sm:$0xff] %v3232
        %3265 = vst [vmem:[#allocation3 + $0x478] sm:$0xff] %v3233
        %3266 = vst [vmem:[#allocation3 + $0x4c0] sm:$0xff] %v3234
        %3267 = vst [vmem:[#allocation3 + $0x508] sm:$0xff] %v3235
        %3268 = vst [vmem:[#allocation3 + $0x550] sm:$0xff] %v3236
        %3269 = vst [vmem:[#allocation3 + $0x598] sm:$0xff] %v3237
        %3270 = vst [vmem:[#allocation3 + $0x5e0] sm:$0xff] %v3238
        %3271 = vst [vmem:[#allocation3 + $0x628] sm:$0xff] %v3239
        %3272 = vst [vmem:[#allocation3 + $0x670] sm:$0xff] %v3240
        %3273 = vst [vmem:[#allocation3 + $0x6b8] sm:$0xff] %v3241
        %3274 = vst [vmem:[#allocation3 + $0x700] sm:$0xff] %v3242
        %3275 = vst [vmem:[#allocation3 + $0x748] sm:$0xff] %v3243
        %3276 = vst [vmem:[#allocation3 + $0x790] sm:$0xff] %v3244
        %3277 = vst [vmem:[#allocation3 + $0x7d8] sm:$0xff] %v3245
        %3278 = vst [vmem:[#allocation3 + $0x820] sm:$0xff] %v3246
        %3279 = vst [vmem:[#allocation3 + $0x868] sm:$0xff] %v3247
        %3280 = vst [vmem:[#allocation3 + $0x8b0] sm:$0xff] %v3248
        %3281 = vst [vmem:[#allocation3 + $0x8f8] sm:$0xff] %v3249
        %v3282 = vld [vmem:[#allocation3] sm:$0xff]
        %v3283 = vld [vmem:[#allocation3 + $0x8] sm:$0xff]
        %v3284 = vld [vmem:[#allocation3 + $0x10] sm:$0xff]
        %v3285 = vld [vmem:[#allocation3 + $0x18] sm:$0xff]
        %v3286 = vld [vmem:[#allocation3 + $0x20] sm:$0xff]
        %v3287 = vld [vmem:[#allocation3 + $0x28] sm:$0xff]
        %v3288 = vld [vmem:[#allocation3 + $0x30] sm:$0xff]
        %v3289 = vld [vmem:[#allocation3 + $0x38] sm:$0xff]
        %v3290 = vld [vmem:[#allocation3 + $0x40] sm:$0xff]
        %v3291 = vld [vmem:[#allocation3 + $0x48] sm:$0xff]
        %v3292 = vld [vmem:[#allocation3 + $0x50] sm:$0xff]
        %v3293 = vld [vmem:[#allocation3 + $0x58] sm:$0xff]
        %v3294 = vld [vmem:[#allocation3 + $0x60] sm:$0xff]
        %v3295 = vld [vmem:[#allocation3 + $0x68] sm:$0xff]
        %v3296 = vld [vmem:[#allocation3 + $0x70] sm:$0xff]
        %v3297 = vld [vmem:[#allocation3 + $0x78] sm:$0xff]
        %v3298 = vld [vmem:[#allocation3 + $0x80] sm:$0xff]
        %v3299 = vld [vmem:[#allocation3 + $0x88] sm:$0xff]
        %v3300 = vld [vmem:[#allocation3 + $0x90] sm:$0xff]
        %v3301 = vld [vmem:[#allocation3 + $0x98] sm:$0xff]
        %v3302 = vld [vmem:[#allocation3 + $0xa0] sm:$0xff]
        %v3303 = vld [vmem:[#allocation3 + $0xa8] sm:$0xff]
        %v3304 = vld [vmem:[#allocation3 + $0xb0] sm:$0xff]
        %v3305 = vld [vmem:[#allocation3 + $0xb8] sm:$0xff]
        %v3306 = vld [vmem:[#allocation3 + $0xc0] sm:$0xff]
        %v3307 = vld [vmem:[#allocation3 + $0xc8] sm:$0xff]
        %v3308 = vld [vmem:[#allocation3 + $0xd0] sm:$0xff]
        %v3309 = vld [vmem:[#allocation3 + $0xd8] sm:$0xff]
        %v3310 = vld [vmem:[#allocation3 + $0xe0] sm:$0xff]
        %v3311 = vld [vmem:[#allocation3 + $0xe8] sm:$0xff]
        %v3312 = vld [vmem:[#allocation3 + $0xf0] sm:$0xff]
        %v3313 = vld [vmem:[#allocation3 + $0xf8] sm:$0xff]
        %v3314 = vld [vmem:[#allocation3 + $0x100] sm:$0xff]
        %v3315 = vld [vmem:[#allocation3 + $0x108] sm:$0xff]
        %v3316 = vld [vmem:[#allocation3 + $0x110] sm:$0xff]
        %v3317 = vld [vmem:[#allocation3 + $0x118] sm:$0xff]
        %v3318 = vld [vmem:[#allocation3 + $0x120] sm:$0xff]
        %v3319 = vld [vmem:[#allocation3 + $0x128] sm:$0xff]
        %v3320 = vld [vmem:[#allocation3 + $0x130] sm:$0xff]
        %v3321 = vld [vmem:[#allocation3 + $0x138] sm:$0xff]
        %v3322 = vld [vmem:[#allocation3 + $0x140] sm:$0xff]
        %v3323 = vld [vmem:[#allocation3 + $0x148] sm:$0xff]
        %v3324 = vld [vmem:[#allocation3 + $0x150] sm:$0xff]
        %v3325 = vld [vmem:[#allocation3 + $0x158] sm:$0xff]
        %v3326 = vld [vmem:[#allocation3 + $0x160] sm:$0xff]
        %v3327 = vld [vmem:[#allocation3 + $0x168] sm:$0xff]
        %v3328 = vld [vmem:[#allocation3 + $0x170] sm:$0xff]
        %v3329 = vld [vmem:[#allocation3 + $0x178] sm:$0xff]
        %v3330 = vld [vmem:[#allocation3 + $0x180] sm:$0xff]
        %v3331 = vld [vmem:[#allocation3 + $0x188] sm:$0xff]
        %v3332 = vld [vmem:[#allocation3 + $0x190] sm:$0xff]
        %v3333 = vld [vmem:[#allocation3 + $0x198] sm:$0xff]
        %v3334 = vld [vmem:[#allocation3 + $0x1a0] sm:$0xff]
        %v3335 = vld [vmem:[#allocation3 + $0x1a8] sm:$0xff]
        %v3336 = vld [vmem:[#allocation3 + $0x1b0] sm:$0xff]
        %v3337 = vld [vmem:[#allocation3 + $0x1b8] sm:$0xff]
        %v3338 = vld [vmem:[#allocation3 + $0x1c0] sm:$0xff]
        %v3339 = vld [vmem:[#allocation3 + $0x1c8] sm:$0xff]
        %v3340 = vld [vmem:[#allocation3 + $0x1d0] sm:$0xff]
        %v3341 = vld [vmem:[#allocation3 + $0x1d8] sm:$0xff]
        %v3342 = vld [vmem:[#allocation3 + $0x1e0] sm:$0xff]
        %v3343 = vld [vmem:[#allocation3 + $0x1e8] sm:$0xff]
        %v3344 = vld [vmem:[#allocation3 + $0x1f0] sm:$0xff]
        %v3345 = vld [vmem:[#allocation3 + $0x1f8] sm:$0xff]
        %v3346 = vld [vmem:[#allocation3 + $0x200] sm:$0xff]
        %v3347 = vld [vmem:[#allocation3 + $0x208] sm:$0xff]
        %v3348 = vld [vmem:[#allocation3 + $0x210] sm:$0xff]
        %v3349 = vld [vmem:[#allocation3 + $0x218] sm:$0xff]
        %v3350 = vld [vmem:[#allocation3 + $0x220] sm:$0xff]
        %v3351 = vld [vmem:[#allocation3 + $0x228] sm:$0xff]
        %v3352 = vld [vmem:[#allocation3 + $0x230] sm:$0xff]
        %v3353 = vld [vmem:[#allocation3 + $0x238] sm:$0xff]
        %v3354 = vld [vmem:[#allocation3 + $0x240] sm:$0xff]
        %v3355 = vld [vmem:[#allocation3 + $0x248] sm:$0xff]
        %v3356 = vld [vmem:[#allocation3 + $0x250] sm:$0xff]
        %v3357 = vld [vmem:[#allocation3 + $0x258] sm:$0xff]
        %v3358 = vld [vmem:[#allocation3 + $0x260] sm:$0xff]
        %v3359 = vld [vmem:[#allocation3 + $0x268] sm:$0xff]
        %v3360 = vld [vmem:[#allocation3 + $0x270] sm:$0xff]
        %v3361 = vld [vmem:[#allocation3 + $0x278] sm:$0xff]
        %v3362 = vld [vmem:[#allocation3 + $0x280] sm:$0xff]
        %v3363 = vld [vmem:[#allocation3 + $0x288] sm:$0xff]
        %v3364 = vld [vmem:[#allocation3 + $0x290] sm:$0xff]
        %v3365 = vld [vmem:[#allocation3 + $0x298] sm:$0xff]
        %v3366 = vld [vmem:[#allocation3 + $0x2a0] sm:$0xff]
        %v3367 = vld [vmem:[#allocation3 + $0x2a8] sm:$0xff]
        %v3368 = vld [vmem:[#allocation3 + $0x2b0] sm:$0xff]
        %v3369 = vld [vmem:[#allocation3 + $0x2b8] sm:$0xff]
        %v3370 = vld [vmem:[#allocation3 + $0x2c0] sm:$0xff]
        %v3371 = vld [vmem:[#allocation3 + $0x2c8] sm:$0xff]
        %v3372 = vld [vmem:[#allocation3 + $0x2d0] sm:$0xff]
        %v3373 = vld [vmem:[#allocation3 + $0x2d8] sm:$0xff]
        %v3374 = vld [vmem:[#allocation3 + $0x2e0] sm:$0xff]
        %v3375 = vld [vmem:[#allocation3 + $0x2e8] sm:$0xff]
        %v3376 = vld [vmem:[#allocation3 + $0x2f0] sm:$0xff]
        %v3377 = vld [vmem:[#allocation3 + $0x2f8] sm:$0xff]
        %v3378 = vld [vmem:[#allocation3 + $0x300] sm:$0xff]
        %v3379 = vld [vmem:[#allocation3 + $0x308] sm:$0xff]
        %v3380 = vld [vmem:[#allocation3 + $0x310] sm:$0xff]
        %v3381 = vld [vmem:[#allocation3 + $0x318] sm:$0xff]
        %v3382 = vld [vmem:[#allocation3 + $0x320] sm:$0xff]
        %v3383 = vld [vmem:[#allocation3 + $0x328] sm:$0xff]
        %v3384 = vld [vmem:[#allocation3 + $0x330] sm:$0xff]
        %v3385 = vld [vmem:[#allocation3 + $0x338] sm:$0xff]
        %v3386 = vld [vmem:[#allocation3 + $0x340] sm:$0xff]
        %v3387 = vld [vmem:[#allocation3 + $0x348] sm:$0xff]
        %v3388 = vld [vmem:[#allocation3 + $0x350] sm:$0xff]
        %v3389 = vld [vmem:[#allocation3 + $0x358] sm:$0xff]
        %v3390 = vld [vmem:[#allocation3 + $0x360] sm:$0xff]
        %v3391 = vld [vmem:[#allocation3 + $0x368] sm:$0xff]
        %v3392 = vld [vmem:[#allocation3 + $0x370] sm:$0xff]
        %v3393 = vld [vmem:[#allocation3 + $0x378] sm:$0xff]
        %v3394 = vld [vmem:[#allocation3 + $0x380] sm:$0xff]
        %v3395 = vld [vmem:[#allocation3 + $0x388] sm:$0xff]
        %v3396 = vld [vmem:[#allocation3 + $0x390] sm:$0xff]
        %v3397 = vld [vmem:[#allocation3 + $0x398] sm:$0xff]
        %v3398 = vld [vmem:[#allocation3 + $0x3a0] sm:$0xff]
        %v3399 = vld [vmem:[#allocation3 + $0x3a8] sm:$0xff]
        %v3400 = vld [vmem:[#allocation3 + $0x3b0] sm:$0xff]
        %v3401 = vld [vmem:[#allocation3 + $0x3b8] sm:$0xff]
        %v3402 = vld [vmem:[#allocation3 + $0x3c0] sm:$0xff]
        %v3403 = vld [vmem:[#allocation3 + $0x3c8] sm:$0xff]
        %v3404 = vld [vmem:[#allocation3 + $0x3d0] sm:$0xff]
        %v3405 = vld [vmem:[#allocation3 + $0x3d8] sm:$0xff]
        %v3406 = vld [vmem:[#allocation3 + $0x3e0] sm:$0xff]
        %v3407 = vld [vmem:[#allocation3 + $0x3e8] sm:$0xff]
        %v3408 = vld [vmem:[#allocation3 + $0x3f0] sm:$0xff]
        %v3409 = vld [vmem:[#allocation3 + $0x3f8] sm:$0xff]
        %v3410 = vld [vmem:[#allocation3 + $0x400] sm:$0xff]
        %v3411 = vld [vmem:[#allocation3 + $0x408] sm:$0xff]
        %v3412 = vld [vmem:[#allocation3 + $0x410] sm:$0xff]
        %v3413 = vld [vmem:[#allocation3 + $0x418] sm:$0xff]
        %v3414 = vld [vmem:[#allocation3 + $0x420] sm:$0xff]
        %v3415 = vld [vmem:[#allocation3 + $0x428] sm:$0xff]
        %v3416 = vld [vmem:[#allocation3 + $0x430] sm:$0xff]
        %v3417 = vld [vmem:[#allocation3 + $0x438] sm:$0xff]
        %v3418 = vld [vmem:[#allocation3 + $0x440] sm:$0xff]
        %v3419 = vld [vmem:[#allocation3 + $0x448] sm:$0xff]
        %v3420 = vld [vmem:[#allocation3 + $0x450] sm:$0xff]
        %v3421 = vld [vmem:[#allocation3 + $0x458] sm:$0xff]
        %v3422 = vld [vmem:[#allocation3 + $0x460] sm:$0xff]
        %v3423 = vld [vmem:[#allocation3 + $0x468] sm:$0xff]
        %v3424 = vld [vmem:[#allocation3 + $0x470] sm:$0xff]
        %v3425 = vld [vmem:[#allocation3 + $0x478] sm:$0xff]
        %v3426 = vld [vmem:[#allocation3 + $0x480] sm:$0xff]
        %v3427 = vld [vmem:[#allocation3 + $0x488] sm:$0xff]
        %v3428 = vld [vmem:[#allocation3 + $0x490] sm:$0xff]
        %v3429 = vld [vmem:[#allocation3 + $0x498] sm:$0xff]
        %v3430 = vld [vmem:[#allocation3 + $0x4a0] sm:$0xff]
        %v3431 = vld [vmem:[#allocation3 + $0x4a8] sm:$0xff]
        %v3432 = vld [vmem:[#allocation3 + $0x4b0] sm:$0xff]
        %v3433 = vld [vmem:[#allocation3 + $0x4b8] sm:$0xff]
        %v3434 = vld [vmem:[#allocation3 + $0x4c0] sm:$0xff]
        %v3435 = vld [vmem:[#allocation3 + $0x4c8] sm:$0xff]
        %v3436 = vld [vmem:[#allocation3 + $0x4d0] sm:$0xff]
        %v3437 = vld [vmem:[#allocation3 + $0x4d8] sm:$0xff]
        %v3438 = vld [vmem:[#allocation3 + $0x4e0] sm:$0xff]
        %v3439 = vld [vmem:[#allocation3 + $0x4e8] sm:$0xff]
        %v3440 = vld [vmem:[#allocation3 + $0x4f0] sm:$0xff]
        %v3441 = vld [vmem:[#allocation3 + $0x4f8] sm:$0xff]
        %v3442 = vld [vmem:[#allocation3 + $0x500] sm:$0xff]
        %v3443 = vld [vmem:[#allocation3 + $0x508] sm:$0xff]
        %v3444 = vld [vmem:[#allocation3 + $0x510] sm:$0xff]
        %v3445 = vld [vmem:[#allocation3 + $0x518] sm:$0xff]
        %v3446 = vld [vmem:[#allocation3 + $0x520] sm:$0xff]
        %v3447 = vld [vmem:[#allocation3 + $0x528] sm:$0xff]
        %v3448 = vld [vmem:[#allocation3 + $0x530] sm:$0xff]
        %v3449 = vld [vmem:[#allocation3 + $0x538] sm:$0xff]
        %v3450 = vld [vmem:[#allocation3 + $0x540] sm:$0xff]
        %v3451 = vld [vmem:[#allocation3 + $0x548] sm:$0xff]
        %v3452 = vld [vmem:[#allocation3 + $0x550] sm:$0xff]
        %v3453 = vld [vmem:[#allocation3 + $0x558] sm:$0xff]
        %v3454 = vld [vmem:[#allocation3 + $0x560] sm:$0xff]
        %v3455 = vld [vmem:[#allocation3 + $0x568] sm:$0xff]
        %v3456 = vld [vmem:[#allocation3 + $0x570] sm:$0xff]
        %v3457 = vld [vmem:[#allocation3 + $0x578] sm:$0xff]
        %v3458 = vld [vmem:[#allocation3 + $0x580] sm:$0xff]
        %v3459 = vld [vmem:[#allocation3 + $0x588] sm:$0xff]
        %v3460 = vld [vmem:[#allocation3 + $0x590] sm:$0xff]
        %v3461 = vld [vmem:[#allocation3 + $0x598] sm:$0xff]
        %v3462 = vld [vmem:[#allocation3 + $0x5a0] sm:$0xff]
        %v3463 = vld [vmem:[#allocation3 + $0x5a8] sm:$0xff]
        %v3464 = vld [vmem:[#allocation3 + $0x5b0] sm:$0xff]
        %v3465 = vld [vmem:[#allocation3 + $0x5b8] sm:$0xff]
        %v3466 = vld [vmem:[#allocation3 + $0x5c0] sm:$0xff]
        %v3467 = vld [vmem:[#allocation3 + $0x5c8] sm:$0xff]
        %v3468 = vld [vmem:[#allocation3 + $0x5d0] sm:$0xff]
        %v3469 = vld [vmem:[#allocation3 + $0x5d8] sm:$0xff]
        %v3470 = vld [vmem:[#allocation3 + $0x5e0] sm:$0xff]
        %v3471 = vld [vmem:[#allocation3 + $0x5e8] sm:$0xff]
        %v3472 = vld [vmem:[#allocation3 + $0x5f0] sm:$0xff]
        %v3473 = vld [vmem:[#allocation3 + $0x5f8] sm:$0xff]
        %v3474 = vld [vmem:[#allocation3 + $0x600] sm:$0xff]
        %v3475 = vld [vmem:[#allocation3 + $0x608] sm:$0xff]
        %v3476 = vld [vmem:[#allocation3 + $0x610] sm:$0xff]
        %v3477 = vld [vmem:[#allocation3 + $0x618] sm:$0xff]
        %v3478 = vld [vmem:[#allocation3 + $0x620] sm:$0xff]
        %v3479 = vld [vmem:[#allocation3 + $0x628] sm:$0xff]
        %v3480 = vld [vmem:[#allocation3 + $0x630] sm:$0xff]
        %v3481 = vld [vmem:[#allocation3 + $0x638] sm:$0xff]
        %v3482 = vld [vmem:[#allocation3 + $0x640] sm:$0xff]
        %v3483 = vld [vmem:[#allocation3 + $0x648] sm:$0xff]
        %v3484 = vld [vmem:[#allocation3 + $0x650] sm:$0xff]
        %v3485 = vld [vmem:[#allocation3 + $0x658] sm:$0xff]
        %v3486 = vld [vmem:[#allocation3 + $0x660] sm:$0xff]
        %v3487 = vld [vmem:[#allocation3 + $0x668] sm:$0xff]
        %v3488 = vld [vmem:[#allocation3 + $0x670] sm:$0xff]
        %v3489 = vld [vmem:[#allocation3 + $0x678] sm:$0xff]
        %v3490 = vld [vmem:[#allocation3 + $0x680] sm:$0xff]
        %v3491 = vld [vmem:[#allocation3 + $0x688] sm:$0xff]
        %v3492 = vld [vmem:[#allocation3 + $0x690] sm:$0xff]
        %v3493 = vld [vmem:[#allocation3 + $0x698] sm:$0xff]
        %v3494 = vld [vmem:[#allocation3 + $0x6a0] sm:$0xff]
        %v3495 = vld [vmem:[#allocation3 + $0x6a8] sm:$0xff]
        %v3496 = vld [vmem:[#allocation3 + $0x6b0] sm:$0xff]
        %v3497 = vld [vmem:[#allocation3 + $0x6b8] sm:$0xff]
        %v3498 = vld [vmem:[#allocation3 + $0x6c0] sm:$0xff]
        %v3499 = vld [vmem:[#allocation3 + $0x6c8] sm:$0xff]
        %v3500 = vld [vmem:[#allocation3 + $0x6d0] sm:$0xff]
        %v3501 = vld [vmem:[#allocation3 + $0x6d8] sm:$0xff]
        %v3502 = vld [vmem:[#allocation3 + $0x6e0] sm:$0xff]
        %v3503 = vld [vmem:[#allocation3 + $0x6e8] sm:$0xff]
        %v3504 = vld [vmem:[#allocation3 + $0x6f0] sm:$0xff]
        %v3505 = vld [vmem:[#allocation3 + $0x6f8] sm:$0xff]
        %v3506 = vld [vmem:[#allocation3 + $0x700] sm:$0xff]
        %v3507 = vld [vmem:[#allocation3 + $0x708] sm:$0xff]
        %v3508 = vld [vmem:[#allocation3 + $0x710] sm:$0xff]
        %v3509 = vld [vmem:[#allocation3 + $0x718] sm:$0xff]
        %v3510 = vld [vmem:[#allocation3 + $0x720] sm:$0xff]
        %v3511 = vld [vmem:[#allocation3 + $0x728] sm:$0xff]
        %v3512 = vld [vmem:[#allocation3 + $0x730] sm:$0xff]
        %v3513 = vld [vmem:[#allocation3 + $0x738] sm:$0xff]
        %v3514 = vld [vmem:[#allocation3 + $0x740] sm:$0xff]
        %v3515 = vld [vmem:[#allocation3 + $0x748] sm:$0xff]
        %v3516 = vld [vmem:[#allocation3 + $0x750] sm:$0xff]
        %v3517 = vld [vmem:[#allocation3 + $0x758] sm:$0xff]
        %v3518 = vld [vmem:[#allocation3 + $0x760] sm:$0xff]
        %v3519 = vld [vmem:[#allocation3 + $0x768] sm:$0xff]
        %v3520 = vld [vmem:[#allocation3 + $0x770] sm:$0xff]
        %v3521 = vld [vmem:[#allocation3 + $0x778] sm:$0xff]
        %v3522 = vld [vmem:[#allocation3 + $0x780] sm:$0xff]
        %v3523 = vld [vmem:[#allocation3 + $0x788] sm:$0xff]
        %v3524 = vld [vmem:[#allocation3 + $0x790] sm:$0xff]
        %v3525 = vld [vmem:[#allocation3 + $0x798] sm:$0xff]
        %v3526 = vld [vmem:[#allocation3 + $0x7a0] sm:$0xff]
        %v3527 = vld [vmem:[#allocation3 + $0x7a8] sm:$0xff]
        %v3528 = vld [vmem:[#allocation3 + $0x7b0] sm:$0xff]
        %v3529 = vld [vmem:[#allocation3 + $0x7b8] sm:$0xff]
        %v3530 = vld [vmem:[#allocation3 + $0x7c0] sm:$0xff]
        %v3531 = vld [vmem:[#allocation3 + $0x7c8] sm:$0xff]
        %v3532 = vld [vmem:[#allocation3 + $0x7d0] sm:$0xff]
        %v3533 = vld [vmem:[#allocation3 + $0x7d8] sm:$0xff]
        %v3534 = vld [vmem:[#allocation3 + $0x7e0] sm:$0xff]
        %v3535 = vld [vmem:[#allocation3 + $0x7e8] sm:$0xff]
        %v3536 = vld [vmem:[#allocation3 + $0x7f0] sm:$0xff]
        %v3537 = vld [vmem:[#allocation3 + $0x7f8] sm:$0xff]
        %v3538 = vld [vmem:[#allocation3 + $0x800] sm:$0xff]
        %v3539 = vld [vmem:[#allocation3 + $0x808] sm:$0xff]
        %v3540 = vld [vmem:[#allocation3 + $0x810] sm:$0xff]
        %v3541 = vld [vmem:[#allocation3 + $0x818] sm:$0xff]
        %v3542 = vld [vmem:[#allocation3 + $0x820] sm:$0xff]
        %v3543 = vld [vmem:[#allocation3 + $0x828] sm:$0xff]
        %v3544 = vld [vmem:[#allocation3 + $0x830] sm:$0xff]
        %v3545 = vld [vmem:[#allocation3 + $0x838] sm:$0xff]
        %v3546 = vld [vmem:[#allocation3 + $0x840] sm:$0xff]
        %v3547 = vld [vmem:[#allocation3 + $0x848] sm:$0xff]
        %v3548 = vld [vmem:[#allocation3 + $0x850] sm:$0xff]
        %v3549 = vld [vmem:[#allocation3 + $0x858] sm:$0xff]
        %v3550 = vld [vmem:[#allocation3 + $0x860] sm:$0xff]
        %v3551 = vld [vmem:[#allocation3 + $0x868] sm:$0xff]
        %v3552 = vld [vmem:[#allocation3 + $0x870] sm:$0xff]
        %v3553 = vld [vmem:[#allocation3 + $0x878] sm:$0xff]
        %v3554 = vld [vmem:[#allocation3 + $0x880] sm:$0xff]
        %v3555 = vld [vmem:[#allocation3 + $0x888] sm:$0xff]
        %v3556 = vld [vmem:[#allocation3 + $0x890] sm:$0xff]
        %v3557 = vld [vmem:[#allocation3 + $0x898] sm:$0xff]
        %v3558 = vld [vmem:[#allocation3 + $0x8a0] sm:$0xff]
        %v3559 = vld [vmem:[#allocation3 + $0x8a8] sm:$0xff]
        %v3560 = vld [vmem:[#allocation3 + $0x8b0] sm:$0xff]
        %v3561 = vld [vmem:[#allocation3 + $0x8b8] sm:$0xff]
        %v3562 = vld [vmem:[#allocation3 + $0x8c0] sm:$0xff]
        %v3563 = vld [vmem:[#allocation3 + $0x8c8] sm:$0xff]
        %v3564 = vld [vmem:[#allocation3 + $0x8d0] sm:$0xff]
        %v3565 = vld [vmem:[#allocation3 + $0x8d8] sm:$0xff]
        %v3566 = vld [vmem:[#allocation3 + $0x8e0] sm:$0xff]
        %v3567 = vld [vmem:[#allocation3 + $0x8e8] sm:$0xff]
        %v3568 = vld [vmem:[#allocation3 + $0x8f0] sm:$0xff]
        %v3569 = vld [vmem:[#allocation3 + $0x8f8] sm:$0xff]
        %v3570 = vld [vmem:[#allocation4] sm:$0xff]
        %v3571 = vld [vmem:[#allocation4 + $0x8] sm:$0xff]
        %v3572 = vld [vmem:[#allocation4 + $0x10] sm:$0xff]
        %v3573 = vld [vmem:[#allocation4 + $0x18] sm:$0xff]
        %v3574 = vld [vmem:[#allocation4 + $0x20] sm:$0xff]
        %v3575 = vld [vmem:[#allocation4 + $0x28] sm:$0xff]
        %v3576 = vld [vmem:[#allocation4 + $0x30] sm:$0xff]
        %v3577 = vld [vmem:[#allocation4 + $0x38] sm:$0xff]
        %v3578 = vld [vmem:[#allocation4 + $0x40] sm:$0xff]
        %v3579 = vld [vmem:[#allocation4 + $0x48] sm:$0xff]
        %v3580 = vld [vmem:[#allocation4 + $0x50] sm:$0xff]
        %v3581 = vld [vmem:[#allocation4 + $0x58] sm:$0xff]
        %v3582 = vld [vmem:[#allocation4 + $0x60] sm:$0xff]
        %v3583 = vld [vmem:[#allocation4 + $0x68] sm:$0xff]
        %v3584 = vld [vmem:[#allocation4 + $0x70] sm:$0xff]
        %v3585 = vld [vmem:[#allocation4 + $0x78] sm:$0xff]
        %v3586 = vld [vmem:[#allocation4 + $0x80] sm:$0xff]
        %v3587 = vld [vmem:[#allocation4 + $0x88] sm:$0xff]
        %v3588 = vld [vmem:[#allocation4 + $0x90] sm:$0xff]
        %v3589 = vld [vmem:[#allocation4 + $0x98] sm:$0xff]
        %v3590 = vld [vmem:[#allocation4 + $0xa0] sm:$0xff]
        %v3591 = vld [vmem:[#allocation4 + $0xa8] sm:$0xff]
        %v3592 = vld [vmem:[#allocation4 + $0xb0] sm:$0xff]
        %v3593 = vld [vmem:[#allocation4 + $0xb8] sm:$0xff]
        %v3594 = vld [vmem:[#allocation4 + $0xc0] sm:$0xff]
        %v3595 = vld [vmem:[#allocation4 + $0xc8] sm:$0xff]
        %v3596 = vld [vmem:[#allocation4 + $0xd0] sm:$0xff]
        %v3597 = vld [vmem:[#allocation4 + $0xd8] sm:$0xff]
        %v3598 = vld [vmem:[#allocation4 + $0xe0] sm:$0xff]
        %v3599 = vld [vmem:[#allocation4 + $0xe8] sm:$0xff]
        %v3600 = vld [vmem:[#allocation4 + $0xf0] sm:$0xff]
        %v3601 = vld [vmem:[#allocation4 + $0xf8] sm:$0xff]
        %v3602 = vld [vmem:[#allocation4 + $0x100] sm:$0xff]
        %v3603 = vld [vmem:[#allocation4 + $0x108] sm:$0xff]
        %v3604 = vld [vmem:[#allocation4 + $0x110] sm:$0xff]
        %v3605 = vld [vmem:[#allocation4 + $0x118] sm:$0xff]
        %v3606 = vld [vmem:[#allocation4 + $0x120] sm:$0xff]
        %v3607 = vld [vmem:[#allocation4 + $0x128] sm:$0xff]
        %v3608 = vld [vmem:[#allocation4 + $0x130] sm:$0xff]
        %v3609 = vld [vmem:[#allocation4 + $0x138] sm:$0xff]
        %v3610 = vld [vmem:[#allocation4 + $0x140] sm:$0xff]
        %v3611 = vld [vmem:[#allocation4 + $0x148] sm:$0xff]
        %v3612 = vld [vmem:[#allocation4 + $0x150] sm:$0xff]
        %v3613 = vld [vmem:[#allocation4 + $0x158] sm:$0xff]
        %v3614 = vld [vmem:[#allocation4 + $0x160] sm:$0xff]
        %v3615 = vld [vmem:[#allocation4 + $0x168] sm:$0xff]
        %v3616 = vld [vmem:[#allocation4 + $0x170] sm:$0xff]
        %v3617 = vld [vmem:[#allocation4 + $0x178] sm:$0xff]
        %v3618 = vld [vmem:[#allocation4 + $0x180] sm:$0xff]
        %v3619 = vld [vmem:[#allocation4 + $0x188] sm:$0xff]
        %v3620 = vld [vmem:[#allocation4 + $0x190] sm:$0xff]
        %v3621 = vld [vmem:[#allocation4 + $0x198] sm:$0xff]
        %v3622 = vld [vmem:[#allocation4 + $0x1a0] sm:$0xff]
        %v3623 = vld [vmem:[#allocation4 + $0x1a8] sm:$0xff]
        %v3624 = vld [vmem:[#allocation4 + $0x1b0] sm:$0xff]
        %v3625 = vld [vmem:[#allocation4 + $0x1b8] sm:$0xff]
        %v3626 = vld [vmem:[#allocation4 + $0x1c0] sm:$0xff]
        %v3627 = vld [vmem:[#allocation4 + $0x1c8] sm:$0xff]
        %v3628 = vld [vmem:[#allocation4 + $0x1d0] sm:$0xff]
        %v3629 = vld [vmem:[#allocation4 + $0x1d8] sm:$0xff]
        %v3630 = vld [vmem:[#allocation4 + $0x1e0] sm:$0xff]
        %v3631 = vld [vmem:[#allocation4 + $0x1e8] sm:$0xff]
        %v3632 = vld [vmem:[#allocation4 + $0x1f0] sm:$0xff]
        %v3633 = vld [vmem:[#allocation4 + $0x1f8] sm:$0xff]
        %v3634 = vld [vmem:[#allocation4 + $0x200] sm:$0xff]
        %v3635 = vld [vmem:[#allocation4 + $0x208] sm:$0xff]
        %v3636 = vld [vmem:[#allocation4 + $0x210] sm:$0xff]
        %v3637 = vld [vmem:[#allocation4 + $0x218] sm:$0xff]
        %v3638 = vld [vmem:[#allocation4 + $0x220] sm:$0xff]
        %v3639 = vld [vmem:[#allocation4 + $0x228] sm:$0xff]
        %v3640 = vld [vmem:[#allocation4 + $0x230] sm:$0xff]
        %v3641 = vld [vmem:[#allocation4 + $0x238] sm:$0xff]
        %v3642 = vld [vmem:[#allocation4 + $0x240] sm:$0xff]
        %v3643 = vld [vmem:[#allocation4 + $0x248] sm:$0xff]
        %v3644 = vld [vmem:[#allocation4 + $0x250] sm:$0xff]
        %v3645 = vld [vmem:[#allocation4 + $0x258] sm:$0xff]
        %v3646 = vld [vmem:[#allocation4 + $0x260] sm:$0xff]
        %v3647 = vld [vmem:[#allocation4 + $0x268] sm:$0xff]
        %v3648 = vld [vmem:[#allocation4 + $0x270] sm:$0xff]
        %v3649 = vld [vmem:[#allocation4 + $0x278] sm:$0xff]
        %v3650 = vld [vmem:[#allocation4 + $0x280] sm:$0xff]
        %v3651 = vld [vmem:[#allocation4 + $0x288] sm:$0xff]
        %v3652 = vld [vmem:[#allocation4 + $0x290] sm:$0xff]
        %v3653 = vld [vmem:[#allocation4 + $0x298] sm:$0xff]
        %v3654 = vld [vmem:[#allocation4 + $0x2a0] sm:$0xff]
        %v3655 = vld [vmem:[#allocation4 + $0x2a8] sm:$0xff]
        %v3656 = vld [vmem:[#allocation4 + $0x2b0] sm:$0xff]
        %v3657 = vld [vmem:[#allocation4 + $0x2b8] sm:$0xff]
        %v3658 = vld [vmem:[#allocation4 + $0x2c0] sm:$0xff]
        %v3659 = vld [vmem:[#allocation4 + $0x2c8] sm:$0xff]
        %v3660 = vld [vmem:[#allocation4 + $0x2d0] sm:$0xff]
        %v3661 = vld [vmem:[#allocation4 + $0x2d8] sm:$0xff]
        %v3662 = vld [vmem:[#allocation4 + $0x2e0] sm:$0xff]
        %v3663 = vld [vmem:[#allocation4 + $0x2e8] sm:$0xff]
        %v3664 = vld [vmem:[#allocation4 + $0x2f0] sm:$0xff]
        %v3665 = vld [vmem:[#allocation4 + $0x2f8] sm:$0xff]
        %v3666 = vld [vmem:[#allocation4 + $0x300] sm:$0xff]
        %v3667 = vld [vmem:[#allocation4 + $0x308] sm:$0xff]
        %v3668 = vld [vmem:[#allocation4 + $0x310] sm:$0xff]
        %v3669 = vld [vmem:[#allocation4 + $0x318] sm:$0xff]
        %v3670 = vld [vmem:[#allocation4 + $0x320] sm:$0xff]
        %v3671 = vld [vmem:[#allocation4 + $0x328] sm:$0xff]
        %v3672 = vld [vmem:[#allocation4 + $0x330] sm:$0xff]
        %v3673 = vld [vmem:[#allocation4 + $0x338] sm:$0xff]
        %v3674 = vld [vmem:[#allocation4 + $0x340] sm:$0xff]
        %v3675 = vld [vmem:[#allocation4 + $0x348] sm:$0xff]
        %v3676 = vld [vmem:[#allocation4 + $0x350] sm:$0xff]
        %v3677 = vld [vmem:[#allocation4 + $0x358] sm:$0xff]
        %v3678 = vld [vmem:[#allocation4 + $0x360] sm:$0xff]
        %v3679 = vld [vmem:[#allocation4 + $0x368] sm:$0xff]
        %v3680 = vld [vmem:[#allocation4 + $0x370] sm:$0xff]
        %v3681 = vld [vmem:[#allocation4 + $0x378] sm:$0xff]
        %v3682 = vld [vmem:[#allocation4 + $0x380] sm:$0xff]
        %v3683 = vld [vmem:[#allocation4 + $0x388] sm:$0xff]
        %v3684 = vld [vmem:[#allocation4 + $0x390] sm:$0xff]
        %v3685 = vld [vmem:[#allocation4 + $0x398] sm:$0xff]
        %v3686 = vld [vmem:[#allocation4 + $0x3a0] sm:$0xff]
        %v3687 = vld [vmem:[#allocation4 + $0x3a8] sm:$0xff]
        %v3688 = vld [vmem:[#allocation4 + $0x3b0] sm:$0xff]
        %v3689 = vld [vmem:[#allocation4 + $0x3b8] sm:$0xff]
        %v3690 = vld [vmem:[#allocation4 + $0x3c0] sm:$0xff]
        %v3691 = vld [vmem:[#allocation4 + $0x3c8] sm:$0xff]
        %v3692 = vld [vmem:[#allocation4 + $0x3d0] sm:$0xff]
        %v3693 = vld [vmem:[#allocation4 + $0x3d8] sm:$0xff]
        %v3694 = vld [vmem:[#allocation4 + $0x3e0] sm:$0xff]
        %v3695 = vld [vmem:[#allocation4 + $0x3e8] sm:$0xff]
        %v3696 = vld [vmem:[#allocation4 + $0x3f0] sm:$0xff]
        %v3697 = vld [vmem:[#allocation4 + $0x3f8] sm:$0xff]
        %v3698 = vld [vmem:[#allocation4 + $0x400] sm:$0xff]
        %v3699 = vld [vmem:[#allocation4 + $0x408] sm:$0xff]
        %v3700 = vld [vmem:[#allocation4 + $0x410] sm:$0xff]
        %v3701 = vld [vmem:[#allocation4 + $0x418] sm:$0xff]
        %v3702 = vld [vmem:[#allocation4 + $0x420] sm:$0xff]
        %v3703 = vld [vmem:[#allocation4 + $0x428] sm:$0xff]
        %v3704 = vld [vmem:[#allocation4 + $0x430] sm:$0xff]
        %v3705 = vld [vmem:[#allocation4 + $0x438] sm:$0xff]
        %v3706 = vld [vmem:[#allocation4 + $0x440] sm:$0xff]
        %v3707 = vld [vmem:[#allocation4 + $0x448] sm:$0xff]
        %v3708 = vld [vmem:[#allocation4 + $0x450] sm:$0xff]
        %v3709 = vld [vmem:[#allocation4 + $0x458] sm:$0xff]
        %v3710 = vld [vmem:[#allocation4 + $0x460] sm:$0xff]
        %v3711 = vld [vmem:[#allocation4 + $0x468] sm:$0xff]
        %v3712 = vld [vmem:[#allocation4 + $0x470] sm:$0xff]
        %v3713 = vld [vmem:[#allocation4 + $0x478] sm:$0xff]
        %3714 = vmatprep.subr.mxu0 0.0
        %3715 = vmatpush1.msra.mxu0 %v3585
        %3716 = vmatprep.subr.mxu0 0.0
        %3717 = vmatpush1.msra.mxu0 %v3584
        %3718 = vmatprep.subr.mxu0 0.0
        %3719 = vmatpush1.msra.mxu0 %v3583
        %3720 = vmatprep.subr.mxu0 0.0
        %3721 = vmatpush1.msra.mxu0 %v3582
        %3722 = vmatprep.subr.mxu0 0.0
        %3723 = vmatpush1.msra.mxu0 %v3581
        %3724 = vmatprep.subr.mxu0 0.0
        %3725 = vmatpush1.msra.mxu0 %v3580
        %3726 = vmatprep.subr.mxu0 0.0
        %3727 = vmatpush1.msra.mxu0 %v3579
        %3728 = vmatprep.subr.mxu0 0.0
        %3729 = vmatpush1.msra.mxu0 %v3578
        %3730 = vmatprep.subr.mxu0 0.0
        %3731 = vmatpush1.msra.mxu0 %v3577
        %3732 = vmatprep.subr.mxu0 0.0
        %3733 = vmatpush1.msra.mxu0 %v3576
        %3734 = vmatprep.subr.mxu0 0.0
        %3735 = vmatpush1.msra.mxu0 %v3575
        %3736 = vmatprep.subr.mxu0 0.0
        %3737 = vmatpush1.msra.mxu0 %v3574
        %3738 = vmatprep.subr.mxu0 0.0
        %3739 = vmatpush1.msra.mxu0 %v3573
        %3740 = vmatprep.subr.mxu0 0.0
        %3741 = vmatpush1.msra.mxu0 %v3572
        %3742 = vmatprep.subr.mxu0 0.0
        %3743 = vmatpush1.msra.mxu0 %v3571
        %3744 = vmatprep.subr.mxu0 0.0
        %3745 = vmatpush1.msra.mxu0 %v3570
        %3746 = vmatprep.subr.mxu0 0.0
        %3747 = vmatpush2.msra.mxu0 %v3601
        %3748 = vmatprep.subr.mxu0 0.0
        %3749 = vmatpush2.msra.mxu0 %v3600
        %3750 = vmatprep.subr.mxu0 0.0
        %3751 = vmatpush2.msra.mxu0 %v3599
        %3752 = vmatprep.subr.mxu0 0.0
        %3753 = vmatpush2.msra.mxu0 %v3598
        %3754 = vmatprep.subr.mxu0 0.0
        %3755 = vmatpush2.msra.mxu0 %v3597
        %3756 = vmatprep.subr.mxu0 0.0
        %3757 = vmatpush2.msra.mxu0 %v3596
        %3758 = vmatprep.subr.mxu0 0.0
        %3759 = vmatpush2.msra.mxu0 %v3595
        %3760 = vmatprep.subr.mxu0 0.0
        %3761 = vmatpush2.msra.mxu0 %v3594
        %3762 = vmatprep.subr.mxu0 0.0
        %3763 = vmatpush2.msra.mxu0 %v3593
        %3764 = vmatprep.subr.mxu0 0.0
        %3765 = vmatpush2.msra.mxu0 %v3592
        %3766 = vmatprep.subr.mxu0 0.0
        %3767 = vmatpush2.msra.mxu0 %v3591
        %3768 = vmatprep.subr.mxu0 0.0
        %3769 = vmatpush2.msra.mxu0 %v3590
        %3770 = vmatprep.subr.mxu0 0.0
        %3771 = vmatpush2.msra.mxu0 %v3589
        %3772 = vmatprep.subr.mxu0 0.0
        %3773 = vmatpush2.msra.mxu0 %v3588
        %3774 = vmatprep.subr.mxu0 0.0
        %3775 = vmatpush2.msra.mxu0 %v3587
        %3776 = vmatprep.subr.mxu0 0.0
        %3777 = vmatpush2.msra.mxu0 %v3586
        %3778 = vmatprep.mubr.f32.mxu0 %v3283
        %3779 = vmatmul.mubr.f32.gmra.mxu0 %v3282
        %v3780 = vpop.f32.mrf.mxu0
        %v3781 = vadd.f32 0.0, %v3780
        %v3782 = vpop.f32.mrf.mxu0
        %3783 = vmatprep.mubr.f32.mxu0 %v3292
        %3784 = vmatmul.mubr.f32.gmra.mxu0 %v3291
        %v3785 = vpop.f32.mrf.mxu0
        %v3786 = vadd.f32 0.0, %v3785
        %v3787 = vpop.f32.mrf.mxu0
        %3788 = vmatprep.mubr.f32.mxu0 %v3301
        %3789 = vmatmul.mubr.f32.gmra.mxu0 %v3300
        %v3790 = vpop.f32.mrf.mxu0
        %v3791 = vadd.f32 0.0, %v3790
        %v3792 = vpop.f32.mrf.mxu0
        %3793 = vmatprep.mubr.f32.mxu0 %v3310
        %3794 = vmatmul.mubr.f32.gmra.mxu0 %v3309
        %v3795 = vpop.f32.mrf.mxu0
        %v3796 = vadd.f32 0.0, %v3795
        %v3797 = vpop.f32.mrf.mxu0
        %3798 = vmatprep.mubr.f32.mxu0 %v3319
        %3799 = vmatmul.mubr.f32.gmra.mxu0 %v3318
        %v3800 = vpop.f32.mrf.mxu0
        %v3801 = vadd.f32 0.0, %v3800
        %v3802 = vpop.f32.mrf.mxu0
        %3803 = vmatprep.mubr.f32.mxu0 %v3328
        %3804 = vmatmul.mubr.f32.gmra.mxu0 %v3327
        %v3805 = vpop.f32.mrf.mxu0
        %v3806 = vadd.f32 0.0, %v3805
        %v3807 = vpop.f32.mrf.mxu0
        %3808 = vmatprep.mubr.f32.mxu0 %v3337
        %3809 = vmatmul.mubr.f32.gmra.mxu0 %v3336
        %v3810 = vpop.f32.mrf.mxu0
        %v3811 = vadd.f32 0.0, %v3810
        %v3812 = vpop.f32.mrf.mxu0
        %3813 = vmatprep.mubr.f32.mxu0 %v3346
        %3814 = vmatmul.mubr.f32.gmra.mxu0 %v3345
        %v3815 = vpop.f32.mrf.mxu0
        %v3816 = vadd.f32 0.0, %v3815
        %v3817 = vpop.f32.mrf.mxu0
        %3818 = vmatprep.mubr.f32.mxu0 %v3355
        %3819 = vmatmul.mubr.f32.gmra.mxu0 %v3354
        %v3820 = vpop.f32.mrf.mxu0
        %v3821 = vadd.f32 0.0, %v3820
        %v3822 = vpop.f32.mrf.mxu0
        %3823 = vmatprep.mubr.f32.mxu0 %v3364
        %3824 = vmatmul.mubr.f32.gmra.mxu0 %v3363
        %v3825 = vpop.f32.mrf.mxu0
        %v3826 = vadd.f32 0.0, %v3825
        %v3827 = vpop.f32.mrf.mxu0
        %3828 = vmatprep.mubr.f32.mxu0 %v3373
        %3829 = vmatmul.mubr.f32.gmra.mxu0 %v3372
        %v3830 = vpop.f32.mrf.mxu0
        %v3831 = vadd.f32 0.0, %v3830
        %v3832 = vpop.f32.mrf.mxu0
        %3833 = vmatprep.mubr.f32.mxu0 %v3382
        %3834 = vmatmul.mubr.f32.gmra.mxu0 %v3381
        %v3835 = vpop.f32.mrf.mxu0
        %v3836 = vadd.f32 0.0, %v3835
        %v3837 = vpop.f32.mrf.mxu0
        %3838 = vmatprep.mubr.f32.mxu0 %v3391
        %3839 = vmatmul.mubr.f32.gmra.mxu0 %v3390
        %v3840 = vpop.f32.mrf.mxu0
        %v3841 = vadd.f32 0.0, %v3840
        %v3842 = vpop.f32.mrf.mxu0
        %3843 = vmatprep.mubr.f32.mxu0 %v3400
        %3844 = vmatmul.mubr.f32.gmra.mxu0 %v3399
        %v3845 = vpop.f32.mrf.mxu0
        %v3846 = vadd.f32 0.0, %v3845
        %v3847 = vpop.f32.mrf.mxu0
        %3848 = vmatprep.mubr.f32.mxu0 %v3409
        %3849 = vmatmul.mubr.f32.gmra.mxu0 %v3408
        %v3850 = vpop.f32.mrf.mxu0
        %v3851 = vadd.f32 0.0, %v3850
        %v3852 = vpop.f32.mrf.mxu0
        %3853 = vmatprep.mubr.f32.mxu0 %v3418
        %3854 = vmatmul.mubr.f32.gmra.mxu0 %v3417
        %v3855 = vpop.f32.mrf.mxu0
        %v3856 = vadd.f32 0.0, %v3855
        %v3857 = vpop.f32.mrf.mxu0
        %3858 = vmatprep.mubr.f32.mxu0 %v3427
        %3859 = vmatmul.mubr.f32.gmra.mxu0 %v3426
        %v3860 = vpop.f32.mrf.mxu0
        %v3861 = vadd.f32 0.0, %v3860
        %v3862 = vpop.f32.mrf.mxu0
        %3863 = vmatprep.mubr.f32.mxu0 %v3436
        %3864 = vmatmul.mubr.f32.gmra.mxu0 %v3435
        %v3865 = vpop.f32.mrf.mxu0
        %v3866 = vadd.f32 0.0, %v3865
        %v3867 = vpop.f32.mrf.mxu0
        %3868 = vmatprep.mubr.f32.mxu0 %v3445
        %3869 = vmatmul.mubr.f32.gmra.mxu0 %v3444
        %v3870 = vpop.f32.mrf.mxu0
        %v3871 = vadd.f32 0.0, %v3870
        %v3872 = vpop.f32.mrf.mxu0
        %3873 = vmatprep.mubr.f32.mxu0 %v3454
        %3874 = vmatmul.mubr.f32.gmra.mxu0 %v3453
        %v3875 = vpop.f32.mrf.mxu0
        %v3876 = vadd.f32 0.0, %v3875
        %v3877 = vpop.f32.mrf.mxu0
        %3878 = vmatprep.mubr.f32.mxu0 %v3463
        %3879 = vmatmul.mubr.f32.gmra.mxu0 %v3462
        %v3880 = vpop.f32.mrf.mxu0
        %v3881 = vadd.f32 0.0, %v3880
        %v3882 = vpop.f32.mrf.mxu0
        %3883 = vmatprep.mubr.f32.mxu0 %v3472
        %3884 = vmatmul.mubr.f32.gmra.mxu0 %v3471
        %v3885 = vpop.f32.mrf.mxu0
        %v3886 = vadd.f32 0.0, %v3885
        %v3887 = vpop.f32.mrf.mxu0
        %3888 = vmatprep.mubr.f32.mxu0 %v3481
        %3889 = vmatmul.mubr.f32.gmra.mxu0 %v3480
        %v3890 = vpop.f32.mrf.mxu0
        %v3891 = vadd.f32 0.0, %v3890
        %v3892 = vpop.f32.mrf.mxu0
        %3893 = vmatprep.mubr.f32.mxu0 %v3490
        %3894 = vmatmul.mubr.f32.gmra.mxu0 %v3489
        %v3895 = vpop.f32.mrf.mxu0
        %v3896 = vadd.f32 0.0, %v3895
        %v3897 = vpop.f32.mrf.mxu0
        %3898 = vmatprep.mubr.f32.mxu0 %v3499
        %3899 = vmatmul.mubr.f32.gmra.mxu0 %v3498
        %v3900 = vpop.f32.mrf.mxu0
        %v3901 = vadd.f32 0.0, %v3900
        %v3902 = vpop.f32.mrf.mxu0
        %3903 = vmatprep.mubr.f32.mxu0 %v3508
        %3904 = vmatmul.mubr.f32.gmra.mxu0 %v3507
        %v3905 = vpop.f32.mrf.mxu0
        %v3906 = vadd.f32 0.0, %v3905
        %v3907 = vpop.f32.mrf.mxu0
        %3908 = vmatprep.mubr.f32.mxu0 %v3517
        %3909 = vmatmul.mubr.f32.gmra.mxu0 %v3516
        %v3910 = vpop.f32.mrf.mxu0
        %v3911 = vadd.f32 0.0, %v3910
        %v3912 = vpop.f32.mrf.mxu0
        %3913 = vmatprep.mubr.f32.mxu0 %v3526
        %3914 = vmatmul.mubr.f32.gmra.mxu0 %v3525
        %v3915 = vpop.f32.mrf.mxu0
        %v3916 = vadd.f32 0.0, %v3915
        %v3917 = vpop.f32.mrf.mxu0
        %3918 = vmatprep.mubr.f32.mxu0 %v3535
        %3919 = vmatmul.mubr.f32.gmra.mxu0 %v3534
        %v3920 = vpop.f32.mrf.mxu0
        %v3921 = vadd.f32 0.0, %v3920
        %v3922 = vpop.f32.mrf.mxu0
        %3923 = vmatprep.mubr.f32.mxu0 %v3544
        %3924 = vmatmul.mubr.f32.gmra.mxu0 %v3543
        %v3925 = vpop.f32.mrf.mxu0
        %v3926 = vadd.f32 0.0, %v3925
        %v3927 = vpop.f32.mrf.mxu0
        %3928 = vmatprep.mubr.f32.mxu0 %v3553
        %3929 = vmatmul.mubr.f32.gmra.mxu0 %v3552
        %v3930 = vpop.f32.mrf.mxu0
        %v3931 = vadd.f32 0.0, %v3930
        %v3932 = vpop.f32.mrf.mxu0
        %3933 = vmatprep.mubr.f32.mxu0 %v3562
        %3934 = vmatmul.mubr.f32.gmra.mxu0 %v3561
        %v3935 = vpop.f32.mrf.mxu0
        %v3936 = vadd.f32 0.0, %v3935
        %v3937 = vpop.f32.mrf.mxu0
        %3938 = vdwg.mxu0
        %3939 = vmatprep.subr.mxu0 0.0
        %3940 = vmatpush1.msra.mxu0 %v3617
        %3941 = vmatprep.subr.mxu0 0.0
        %3942 = vmatpush1.msra.mxu0 %v3616
        %3943 = vmatprep.subr.mxu0 0.0
        %3944 = vmatpush1.msra.mxu0 %v3615
        %3945 = vmatprep.subr.mxu0 0.0
        %3946 = vmatpush1.msra.mxu0 %v3614
        %3947 = vmatprep.subr.mxu0 0.0
        %3948 = vmatpush1.msra.mxu0 %v3613
        %3949 = vmatprep.subr.mxu0 0.0
        %3950 = vmatpush1.msra.mxu0 %v3612
        %3951 = vmatprep.subr.mxu0 0.0
        %3952 = vmatpush1.msra.mxu0 %v3611
        %3953 = vmatprep.subr.mxu0 0.0
        %3954 = vmatpush1.msra.mxu0 %v3610
        %3955 = vmatprep.subr.mxu0 0.0
        %3956 = vmatpush1.msra.mxu0 %v3609
        %3957 = vmatprep.subr.mxu0 0.0
        %3958 = vmatpush1.msra.mxu0 %v3608
        %3959 = vmatprep.subr.mxu0 0.0
        %3960 = vmatpush1.msra.mxu0 %v3607
        %3961 = vmatprep.subr.mxu0 0.0
        %3962 = vmatpush1.msra.mxu0 %v3606
        %3963 = vmatprep.subr.mxu0 0.0
        %3964 = vmatpush1.msra.mxu0 %v3605
        %3965 = vmatprep.subr.mxu0 0.0
        %3966 = vmatpush1.msra.mxu0 %v3604
        %3967 = vmatprep.subr.mxu0 0.0
        %3968 = vmatpush1.msra.mxu0 %v3603
        %3969 = vmatprep.subr.mxu0 0.0
        %3970 = vmatpush1.msra.mxu0 %v3602
        %3971 = vmatprep.subr.mxu0 0.0
        %3972 = vmatpush2.msra.mxu0 %v3633
        %3973 = vmatprep.subr.mxu0 0.0
        %3974 = vmatpush2.msra.mxu0 %v3632
        %3975 = vmatprep.subr.mxu0 0.0
        %3976 = vmatpush2.msra.mxu0 %v3631
        %3977 = vmatprep.subr.mxu0 0.0
        %3978 = vmatpush2.msra.mxu0 %v3630
        %3979 = vmatprep.subr.mxu0 0.0
        %3980 = vmatpush2.msra.mxu0 %v3629
        %3981 = vmatprep.subr.mxu0 0.0
        %3982 = vmatpush2.msra.mxu0 %v3628
        %3983 = vmatprep.subr.mxu0 0.0
        %3984 = vmatpush2.msra.mxu0 %v3627
        %3985 = vmatprep.subr.mxu0 0.0
        %3986 = vmatpush2.msra.mxu0 %v3626
        %3987 = vmatprep.subr.mxu0 0.0
        %3988 = vmatpush2.msra.mxu0 %v3625
        %3989 = vmatprep.subr.mxu0 0.0
        %3990 = vmatpush2.msra.mxu0 %v3624
        %3991 = vmatprep.subr.mxu0 0.0
        %3992 = vmatpush2.msra.mxu0 %v3623
        %3993 = vmatprep.subr.mxu0 0.0
        %3994 = vmatpush2.msra.mxu0 %v3622
        %3995 = vmatprep.subr.mxu0 0.0
        %3996 = vmatpush2.msra.mxu0 %v3621
        %3997 = vmatprep.subr.mxu0 0.0
        %3998 = vmatpush2.msra.mxu0 %v3620
        %3999 = vmatprep.subr.mxu0 0.0
        %4000 = vmatpush2.msra.mxu0 %v3619
        %4001 = vmatprep.subr.mxu0 0.0
        %4002 = vmatpush2.msra.mxu0 %v3618
        %4003 = vmatprep.mubr.f32.mxu0 %v3285
        %4004 = vmatmul.mubr.f32.gmra.mxu0 %v3284
        %v4005 = vpop.f32.mrf.mxu0
        %v4006 = vadd.f32 %v3781, %v4005
        %v4007 = vpop.f32.mrf.mxu0
        %4008 = vmatprep.mubr.f32.mxu0 %v3294
        %4009 = vmatmul.mubr.f32.gmra.mxu0 %v3293
        %v4010 = vpop.f32.mrf.mxu0
        %v4011 = vadd.f32 %v3786, %v4010
        %v4012 = vpop.f32.mrf.mxu0
        %4013 = vmatprep.mubr.f32.mxu0 %v3303
        %4014 = vmatmul.mubr.f32.gmra.mxu0 %v3302
        %v4015 = vpop.f32.mrf.mxu0
        %v4016 = vadd.f32 %v3791, %v4015
        %v4017 = vpop.f32.mrf.mxu0
        %4018 = vmatprep.mubr.f32.mxu0 %v3312
        %4019 = vmatmul.mubr.f32.gmra.mxu0 %v3311
        %v4020 = vpop.f32.mrf.mxu0
        %v4021 = vadd.f32 %v3796, %v4020
        %v4022 = vpop.f32.mrf.mxu0
        %4023 = vmatprep.mubr.f32.mxu0 %v3321
        %4024 = vmatmul.mubr.f32.gmra.mxu0 %v3320
        %v4025 = vpop.f32.mrf.mxu0
        %v4026 = vadd.f32 %v3801, %v4025
        %v4027 = vpop.f32.mrf.mxu0
        %4028 = vmatprep.mubr.f32.mxu0 %v3330
        %4029 = vmatmul.mubr.f32.gmra.mxu0 %v3329
        %v4030 = vpop.f32.mrf.mxu0
        %v4031 = vadd.f32 %v3806, %v4030
        %v4032 = vpop.f32.mrf.mxu0
        %4033 = vmatprep.mubr.f32.mxu0 %v3339
        %4034 = vmatmul.mubr.f32.gmra.mxu0 %v3338
        %v4035 = vpop.f32.mrf.mxu0
        %v4036 = vadd.f32 %v3811, %v4035
        %v4037 = vpop.f32.mrf.mxu0
        %4038 = vmatprep.mubr.f32.mxu0 %v3348
        %4039 = vmatmul.mubr.f32.gmra.mxu0 %v3347
        %v4040 = vpop.f32.mrf.mxu0
        %v4041 = vadd.f32 %v3816, %v4040
        %v4042 = vpop.f32.mrf.mxu0
        %4043 = vmatprep.mubr.f32.mxu0 %v3357
        %4044 = vmatmul.mubr.f32.gmra.mxu0 %v3356
        %v4045 = vpop.f32.mrf.mxu0
        %v4046 = vadd.f32 %v3821, %v4045
        %v4047 = vpop.f32.mrf.mxu0
        %4048 = vmatprep.mubr.f32.mxu0 %v3366
        %4049 = vmatmul.mubr.f32.gmra.mxu0 %v3365
        %v4050 = vpop.f32.mrf.mxu0
        %v4051 = vadd.f32 %v3826, %v4050
        %v4052 = vpop.f32.mrf.mxu0
        %4053 = vmatprep.mubr.f32.mxu0 %v3375
        %4054 = vmatmul.mubr.f32.gmra.mxu0 %v3374
        %v4055 = vpop.f32.mrf.mxu0
        %v4056 = vadd.f32 %v3831, %v4055
        %v4057 = vpop.f32.mrf.mxu0
        %4058 = vmatprep.mubr.f32.mxu0 %v3384
        %4059 = vmatmul.mubr.f32.gmra.mxu0 %v3383
        %v4060 = vpop.f32.mrf.mxu0
        %v4061 = vadd.f32 %v3836, %v4060
        %v4062 = vpop.f32.mrf.mxu0
        %4063 = vmatprep.mubr.f32.mxu0 %v3393
        %4064 = vmatmul.mubr.f32.gmra.mxu0 %v3392
        %v4065 = vpop.f32.mrf.mxu0
        %v4066 = vadd.f32 %v3841, %v4065
        %v4067 = vpop.f32.mrf.mxu0
        %4068 = vmatprep.mubr.f32.mxu0 %v3402
        %4069 = vmatmul.mubr.f32.gmra.mxu0 %v3401
        %v4070 = vpop.f32.mrf.mxu0
        %v4071 = vadd.f32 %v3846, %v4070
        %v4072 = vpop.f32.mrf.mxu0
        %4073 = vmatprep.mubr.f32.mxu0 %v3411
        %4074 = vmatmul.mubr.f32.gmra.mxu0 %v3410
        %v4075 = vpop.f32.mrf.mxu0
        %v4076 = vadd.f32 %v3851, %v4075
        %v4077 = vpop.f32.mrf.mxu0
        %4078 = vmatprep.mubr.f32.mxu0 %v3420
        %4079 = vmatmul.mubr.f32.gmra.mxu0 %v3419
        %v4080 = vpop.f32.mrf.mxu0
        %v4081 = vadd.f32 %v3856, %v4080
        %v4082 = vpop.f32.mrf.mxu0
        %4083 = vmatprep.mubr.f32.mxu0 %v3429
        %4084 = vmatmul.mubr.f32.gmra.mxu0 %v3428
        %v4085 = vpop.f32.mrf.mxu0
        %v4086 = vadd.f32 %v3861, %v4085
        %v4087 = vpop.f32.mrf.mxu0
        %4088 = vmatprep.mubr.f32.mxu0 %v3438
        %4089 = vmatmul.mubr.f32.gmra.mxu0 %v3437
        %v4090 = vpop.f32.mrf.mxu0
        %v4091 = vadd.f32 %v3866, %v4090
        %v4092 = vpop.f32.mrf.mxu0
        %4093 = vmatprep.mubr.f32.mxu0 %v3447
        %4094 = vmatmul.mubr.f32.gmra.mxu0 %v3446
        %v4095 = vpop.f32.mrf.mxu0
        %v4096 = vadd.f32 %v3871, %v4095
        %v4097 = vpop.f32.mrf.mxu0
        %4098 = vmatprep.mubr.f32.mxu0 %v3456
        %4099 = vmatmul.mubr.f32.gmra.mxu0 %v3455
        %v4100 = vpop.f32.mrf.mxu0
        %v4101 = vadd.f32 %v3876, %v4100
        %v4102 = vpop.f32.mrf.mxu0
        %4103 = vmatprep.mubr.f32.mxu0 %v3465
        %4104 = vmatmul.mubr.f32.gmra.mxu0 %v3464
        %v4105 = vpop.f32.mrf.mxu0
        %v4106 = vadd.f32 %v3881, %v4105
        %v4107 = vpop.f32.mrf.mxu0
        %4108 = vmatprep.mubr.f32.mxu0 %v3474
        %4109 = vmatmul.mubr.f32.gmra.mxu0 %v3473
        %v4110 = vpop.f32.mrf.mxu0
        %v4111 = vadd.f32 %v3886, %v4110
        %v4112 = vpop.f32.mrf.mxu0
        %4113 = vmatprep.mubr.f32.mxu0 %v3483
        %4114 = vmatmul.mubr.f32.gmra.mxu0 %v3482
        %v4115 = vpop.f32.mrf.mxu0
        %v4116 = vadd.f32 %v3891, %v4115
        %v4117 = vpop.f32.mrf.mxu0
        %4118 = vmatprep.mubr.f32.mxu0 %v3492
        %4119 = vmatmul.mubr.f32.gmra.mxu0 %v3491
        %v4120 = vpop.f32.mrf.mxu0
        %v4121 = vadd.f32 %v3896, %v4120
        %v4122 = vpop.f32.mrf.mxu0
        %4123 = vmatprep.mubr.f32.mxu0 %v3501
        %4124 = vmatmul.mubr.f32.gmra.mxu0 %v3500
        %v4125 = vpop.f32.mrf.mxu0
        %v4126 = vadd.f32 %v3901, %v4125
        %v4127 = vpop.f32.mrf.mxu0
        %4128 = vmatprep.mubr.f32.mxu0 %v3510
        %4129 = vmatmul.mubr.f32.gmra.mxu0 %v3509
        %v4130 = vpop.f32.mrf.mxu0
        %v4131 = vadd.f32 %v3906, %v4130
        %v4132 = vpop.f32.mrf.mxu0
        %4133 = vmatprep.mubr.f32.mxu0 %v3519
        %4134 = vmatmul.mubr.f32.gmra.mxu0 %v3518
        %v4135 = vpop.f32.mrf.mxu0
        %v4136 = vadd.f32 %v3911, %v4135
        %v4137 = vpop.f32.mrf.mxu0
        %4138 = vmatprep.mubr.f32.mxu0 %v3528
        %4139 = vmatmul.mubr.f32.gmra.mxu0 %v3527
        %v4140 = vpop.f32.mrf.mxu0
        %v4141 = vadd.f32 %v3916, %v4140
        %v4142 = vpop.f32.mrf.mxu0
        %4143 = vmatprep.mubr.f32.mxu0 %v3537
        %4144 = vmatmul.mubr.f32.gmra.mxu0 %v3536
        %v4145 = vpop.f32.mrf.mxu0
        %v4146 = vadd.f32 %v3921, %v4145
        %v4147 = vpop.f32.mrf.mxu0
        %4148 = vmatprep.mubr.f32.mxu0 %v3546
        %4149 = vmatmul.mubr.f32.gmra.mxu0 %v3545
        %v4150 = vpop.f32.mrf.mxu0
        %v4151 = vadd.f32 %v3926, %v4150
        %v4152 = vpop.f32.mrf.mxu0
        %4153 = vmatprep.mubr.f32.mxu0 %v3555
        %4154 = vmatmul.mubr.f32.gmra.mxu0 %v3554
        %v4155 = vpop.f32.mrf.mxu0
        %v4156 = vadd.f32 %v3931, %v4155
        %v4157 = vpop.f32.mrf.mxu0
        %4158 = vmatprep.mubr.f32.mxu0 %v3564
        %4159 = vmatmul.mubr.f32.gmra.mxu0 %v3563
        %v4160 = vpop.f32.mrf.mxu0
        %v4161 = vadd.f32 %v3936, %v4160
        %v4162 = vpop.f32.mrf.mxu0
        %4163 = vdwg.mxu0
        %4164 = vmatprep.subr.mxu0 0.0
        %4165 = vmatpush1.msra.mxu0 %v3649
        %4166 = vmatprep.subr.mxu0 0.0
        %4167 = vmatpush1.msra.mxu0 %v3648
        %4168 = vmatprep.subr.mxu0 0.0
        %4169 = vmatpush1.msra.mxu0 %v3647
        %4170 = vmatprep.subr.mxu0 0.0
        %4171 = vmatpush1.msra.mxu0 %v3646
        %4172 = vmatprep.subr.mxu0 0.0
        %4173 = vmatpush1.msra.mxu0 %v3645
        %4174 = vmatprep.subr.mxu0 0.0
        %4175 = vmatpush1.msra.mxu0 %v3644
        %4176 = vmatprep.subr.mxu0 0.0
        %4177 = vmatpush1.msra.mxu0 %v3643
        %4178 = vmatprep.subr.mxu0 0.0
        %4179 = vmatpush1.msra.mxu0 %v3642
        %4180 = vmatprep.subr.mxu0 0.0
        %4181 = vmatpush1.msra.mxu0 %v3641
        %4182 = vmatprep.subr.mxu0 0.0
        %4183 = vmatpush1.msra.mxu0 %v3640
        %4184 = vmatprep.subr.mxu0 0.0
        %4185 = vmatpush1.msra.mxu0 %v3639
        %4186 = vmatprep.subr.mxu0 0.0
        %4187 = vmatpush1.msra.mxu0 %v3638
        %4188 = vmatprep.subr.mxu0 0.0
        %4189 = vmatpush1.msra.mxu0 %v3637
        %4190 = vmatprep.subr.mxu0 0.0
        %4191 = vmatpush1.msra.mxu0 %v3636
        %4192 = vmatprep.subr.mxu0 0.0
        %4193 = vmatpush1.msra.mxu0 %v3635
        %4194 = vmatprep.subr.mxu0 0.0
        %4195 = vmatpush1.msra.mxu0 %v3634
        %4196 = vmatprep.subr.mxu0 0.0
        %4197 = vmatpush2.msra.mxu0 %v3665
        %4198 = vmatprep.subr.mxu0 0.0
        %4199 = vmatpush2.msra.mxu0 %v3664
        %4200 = vmatprep.subr.mxu0 0.0
        %4201 = vmatpush2.msra.mxu0 %v3663
        %4202 = vmatprep.subr.mxu0 0.0
        %4203 = vmatpush2.msra.mxu0 %v3662
        %4204 = vmatprep.subr.mxu0 0.0
        %4205 = vmatpush2.msra.mxu0 %v3661
        %4206 = vmatprep.subr.mxu0 0.0
        %4207 = vmatpush2.msra.mxu0 %v3660
        %4208 = vmatprep.subr.mxu0 0.0
        %4209 = vmatpush2.msra.mxu0 %v3659
        %4210 = vmatprep.subr.mxu0 0.0
        %4211 = vmatpush2.msra.mxu0 %v3658
        %4212 = vmatprep.subr.mxu0 0.0
        %4213 = vmatpush2.msra.mxu0 %v3657
        %4214 = vmatprep.subr.mxu0 0.0
        %4215 = vmatpush2.msra.mxu0 %v3656
        %4216 = vmatprep.subr.mxu0 0.0
        %4217 = vmatpush2.msra.mxu0 %v3655
        %4218 = vmatprep.subr.mxu0 0.0
        %4219 = vmatpush2.msra.mxu0 %v3654
        %4220 = vmatprep.subr.mxu0 0.0
        %4221 = vmatpush2.msra.mxu0 %v3653
        %4222 = vmatprep.subr.mxu0 0.0
        %4223 = vmatpush2.msra.mxu0 %v3652
        %4224 = vmatprep.subr.mxu0 0.0
        %4225 = vmatpush2.msra.mxu0 %v3651
        %4226 = vmatprep.subr.mxu0 0.0
        %4227 = vmatpush2.msra.mxu0 %v3650
        %4228 = vmatprep.mubr.f32.mxu0 %v3287
        %4229 = vmatmul.mubr.f32.gmra.mxu0 %v3286
        %v4230 = vpop.f32.mrf.mxu0
        %v4231 = vadd.f32 %v4006, %v4230
        %v4232 = vpop.f32.mrf.mxu0
        %4233 = vmatprep.mubr.f32.mxu0 %v3296
        %4234 = vmatmul.mubr.f32.gmra.mxu0 %v3295
        %v4235 = vpop.f32.mrf.mxu0
        %v4236 = vadd.f32 %v4011, %v4235
        %v4237 = vpop.f32.mrf.mxu0
        %4238 = vmatprep.mubr.f32.mxu0 %v3305
        %4239 = vmatmul.mubr.f32.gmra.mxu0 %v3304
        %v4240 = vpop.f32.mrf.mxu0
        %v4241 = vadd.f32 %v4016, %v4240
        %v4242 = vpop.f32.mrf.mxu0
        %4243 = vmatprep.mubr.f32.mxu0 %v3314
        %4244 = vmatmul.mubr.f32.gmra.mxu0 %v3313
        %v4245 = vpop.f32.mrf.mxu0
        %v4246 = vadd.f32 %v4021, %v4245
        %v4247 = vpop.f32.mrf.mxu0
        %4248 = vmatprep.mubr.f32.mxu0 %v3323
        %4249 = vmatmul.mubr.f32.gmra.mxu0 %v3322
        %v4250 = vpop.f32.mrf.mxu0
        %v4251 = vadd.f32 %v4026, %v4250
        %v4252 = vpop.f32.mrf.mxu0
        %4253 = vmatprep.mubr.f32.mxu0 %v3332
        %4254 = vmatmul.mubr.f32.gmra.mxu0 %v3331
        %v4255 = vpop.f32.mrf.mxu0
        %v4256 = vadd.f32 %v4031, %v4255
        %v4257 = vpop.f32.mrf.mxu0
        %4258 = vmatprep.mubr.f32.mxu0 %v3341
        %4259 = vmatmul.mubr.f32.gmra.mxu0 %v3340
        %v4260 = vpop.f32.mrf.mxu0
        %v4261 = vadd.f32 %v4036, %v4260
        %v4262 = vpop.f32.mrf.mxu0
        %4263 = vmatprep.mubr.f32.mxu0 %v3350
        %4264 = vmatmul.mubr.f32.gmra.mxu0 %v3349
        %v4265 = vpop.f32.mrf.mxu0
        %v4266 = vadd.f32 %v4041, %v4265
        %v4267 = vpop.f32.mrf.mxu0
        %4268 = vmatprep.mubr.f32.mxu0 %v3359
        %4269 = vmatmul.mubr.f32.gmra.mxu0 %v3358
        %v4270 = vpop.f32.mrf.mxu0
        %v4271 = vadd.f32 %v4046, %v4270
        %v4272 = vpop.f32.mrf.mxu0
        %4273 = vmatprep.mubr.f32.mxu0 %v3368
        %4274 = vmatmul.mubr.f32.gmra.mxu0 %v3367
        %v4275 = vpop.f32.mrf.mxu0
        %v4276 = vadd.f32 %v4051, %v4275
        %v4277 = vpop.f32.mrf.mxu0
        %4278 = vmatprep.mubr.f32.mxu0 %v3377
        %4279 = vmatmul.mubr.f32.gmra.mxu0 %v3376
        %v4280 = vpop.f32.mrf.mxu0
        %v4281 = vadd.f32 %v4056, %v4280
        %v4282 = vpop.f32.mrf.mxu0
        %4283 = vmatprep.mubr.f32.mxu0 %v3386
        %4284 = vmatmul.mubr.f32.gmra.mxu0 %v3385
        %v4285 = vpop.f32.mrf.mxu0
        %v4286 = vadd.f32 %v4061, %v4285
        %v4287 = vpop.f32.mrf.mxu0
        %4288 = vmatprep.mubr.f32.mxu0 %v3395
        %4289 = vmatmul.mubr.f32.gmra.mxu0 %v3394
        %v4290 = vpop.f32.mrf.mxu0
        %v4291 = vadd.f32 %v4066, %v4290
        %v4292 = vpop.f32.mrf.mxu0
        %4293 = vmatprep.mubr.f32.mxu0 %v3404
        %4294 = vmatmul.mubr.f32.gmra.mxu0 %v3403
        %v4295 = vpop.f32.mrf.mxu0
        %v4296 = vadd.f32 %v4071, %v4295
        %v4297 = vpop.f32.mrf.mxu0
        %4298 = vmatprep.mubr.f32.mxu0 %v3413
        %4299 = vmatmul.mubr.f32.gmra.mxu0 %v3412
        %v4300 = vpop.f32.mrf.mxu0
        %v4301 = vadd.f32 %v4076, %v4300
        %v4302 = vpop.f32.mrf.mxu0
        %4303 = vmatprep.mubr.f32.mxu0 %v3422
        %4304 = vmatmul.mubr.f32.gmra.mxu0 %v3421
        %v4305 = vpop.f32.mrf.mxu0
        %v4306 = vadd.f32 %v4081, %v4305
        %v4307 = vpop.f32.mrf.mxu0
        %4308 = vmatprep.mubr.f32.mxu0 %v3431
        %4309 = vmatmul.mubr.f32.gmra.mxu0 %v3430
        %v4310 = vpop.f32.mrf.mxu0
        %v4311 = vadd.f32 %v4086, %v4310
        %v4312 = vpop.f32.mrf.mxu0
        %4313 = vmatprep.mubr.f32.mxu0 %v3440
        %4314 = vmatmul.mubr.f32.gmra.mxu0 %v3439
        %v4315 = vpop.f32.mrf.mxu0
        %v4316 = vadd.f32 %v4091, %v4315
        %v4317 = vpop.f32.mrf.mxu0
        %4318 = vmatprep.mubr.f32.mxu0 %v3449
        %4319 = vmatmul.mubr.f32.gmra.mxu0 %v3448
        %v4320 = vpop.f32.mrf.mxu0
        %v4321 = vadd.f32 %v4096, %v4320
        %v4322 = vpop.f32.mrf.mxu0
        %4323 = vmatprep.mubr.f32.mxu0 %v3458
        %4324 = vmatmul.mubr.f32.gmra.mxu0 %v3457
        %v4325 = vpop.f32.mrf.mxu0
        %v4326 = vadd.f32 %v4101, %v4325
        %v4327 = vpop.f32.mrf.mxu0
        %4328 = vmatprep.mubr.f32.mxu0 %v3467
        %4329 = vmatmul.mubr.f32.gmra.mxu0 %v3466
        %v4330 = vpop.f32.mrf.mxu0
        %v4331 = vadd.f32 %v4106, %v4330
        %v4332 = vpop.f32.mrf.mxu0
        %4333 = vmatprep.mubr.f32.mxu0 %v3476
        %4334 = vmatmul.mubr.f32.gmra.mxu0 %v3475
        %v4335 = vpop.f32.mrf.mxu0
        %v4336 = vadd.f32 %v4111, %v4335
        %v4337 = vpop.f32.mrf.mxu0
        %4338 = vmatprep.mubr.f32.mxu0 %v3485
        %4339 = vmatmul.mubr.f32.gmra.mxu0 %v3484
        %v4340 = vpop.f32.mrf.mxu0
        %v4341 = vadd.f32 %v4116, %v4340
        %v4342 = vpop.f32.mrf.mxu0
        %4343 = vmatprep.mubr.f32.mxu0 %v3494
        %4344 = vmatmul.mubr.f32.gmra.mxu0 %v3493
        %v4345 = vpop.f32.mrf.mxu0
        %v4346 = vadd.f32 %v4121, %v4345
        %v4347 = vpop.f32.mrf.mxu0
        %4348 = vmatprep.mubr.f32.mxu0 %v3503
        %4349 = vmatmul.mubr.f32.gmra.mxu0 %v3502
        %v4350 = vpop.f32.mrf.mxu0
        %v4351 = vadd.f32 %v4126, %v4350
        %v4352 = vpop.f32.mrf.mxu0
        %4353 = vmatprep.mubr.f32.mxu0 %v3512
        %4354 = vmatmul.mubr.f32.gmra.mxu0 %v3511
        %v4355 = vpop.f32.mrf.mxu0
        %v4356 = vadd.f32 %v4131, %v4355
        %v4357 = vpop.f32.mrf.mxu0
        %4358 = vmatprep.mubr.f32.mxu0 %v3521
        %4359 = vmatmul.mubr.f32.gmra.mxu0 %v3520
        %v4360 = vpop.f32.mrf.mxu0
        %v4361 = vadd.f32 %v4136, %v4360
        %v4362 = vpop.f32.mrf.mxu0
        %4363 = vmatprep.mubr.f32.mxu0 %v3530
        %4364 = vmatmul.mubr.f32.gmra.mxu0 %v3529
        %v4365 = vpop.f32.mrf.mxu0
        %v4366 = vadd.f32 %v4141, %v4365
        %v4367 = vpop.f32.mrf.mxu0
        %4368 = vmatprep.mubr.f32.mxu0 %v3539
        %4369 = vmatmul.mubr.f32.gmra.mxu0 %v3538
        %v4370 = vpop.f32.mrf.mxu0
        %v4371 = vadd.f32 %v4146, %v4370
        %v4372 = vpop.f32.mrf.mxu0
        %4373 = vmatprep.mubr.f32.mxu0 %v3548
        %4374 = vmatmul.mubr.f32.gmra.mxu0 %v3547
        %v4375 = vpop.f32.mrf.mxu0
        %v4376 = vadd.f32 %v4151, %v4375
        %v4377 = vpop.f32.mrf.mxu0
        %4378 = vmatprep.mubr.f32.mxu0 %v3557
        %4379 = vmatmul.mubr.f32.gmra.mxu0 %v3556
        %v4380 = vpop.f32.mrf.mxu0
        %v4381 = vadd.f32 %v4156, %v4380
        %v4382 = vpop.f32.mrf.mxu0
        %4383 = vmatprep.mubr.f32.mxu0 %v3566
        %4384 = vmatmul.mubr.f32.gmra.mxu0 %v3565
        %v4385 = vpop.f32.mrf.mxu0
        %v4386 = vadd.f32 %v4161, %v4385
        %v4387 = vpop.f32.mrf.mxu0
        %4388 = vdwg.mxu0
        %4389 = vmatprep.subr.mxu0 0.0
        %4390 = vmatpush1.msra.mxu0 %v3681
        %4391 = vmatprep.subr.mxu0 0.0
        %4392 = vmatpush1.msra.mxu0 %v3680
        %4393 = vmatprep.subr.mxu0 0.0
        %4394 = vmatpush1.msra.mxu0 %v3679
        %4395 = vmatprep.subr.mxu0 0.0
        %4396 = vmatpush1.msra.mxu0 %v3678
        %4397 = vmatprep.subr.mxu0 0.0
        %4398 = vmatpush1.msra.mxu0 %v3677
        %4399 = vmatprep.subr.mxu0 0.0
        %4400 = vmatpush1.msra.mxu0 %v3676
        %4401 = vmatprep.subr.mxu0 0.0
        %4402 = vmatpush1.msra.mxu0 %v3675
        %4403 = vmatprep.subr.mxu0 0.0
        %4404 = vmatpush1.msra.mxu0 %v3674
        %4405 = vmatprep.subr.mxu0 0.0
        %4406 = vmatpush1.msra.mxu0 %v3673
        %4407 = vmatprep.subr.mxu0 0.0
        %4408 = vmatpush1.msra.mxu0 %v3672
        %4409 = vmatprep.subr.mxu0 0.0
        %4410 = vmatpush1.msra.mxu0 %v3671
        %4411 = vmatprep.subr.mxu0 0.0
        %4412 = vmatpush1.msra.mxu0 %v3670
        %4413 = vmatprep.subr.mxu0 0.0
        %4414 = vmatpush1.msra.mxu0 %v3669
        %4415 = vmatprep.subr.mxu0 0.0
        %4416 = vmatpush1.msra.mxu0 %v3668
        %4417 = vmatprep.subr.mxu0 0.0
        %4418 = vmatpush1.msra.mxu0 %v3667
        %4419 = vmatprep.subr.mxu0 0.0
        %4420 = vmatpush1.msra.mxu0 %v3666
        %4421 = vmatprep.subr.mxu0 0.0
        %4422 = vmatpush2.msra.mxu0 %v3697
        %4423 = vmatprep.subr.mxu0 0.0
        %4424 = vmatpush2.msra.mxu0 %v3696
        %4425 = vmatprep.subr.mxu0 0.0
        %4426 = vmatpush2.msra.mxu0 %v3695
        %4427 = vmatprep.subr.mxu0 0.0
        %4428 = vmatpush2.msra.mxu0 %v3694
        %4429 = vmatprep.subr.mxu0 0.0
        %4430 = vmatpush2.msra.mxu0 %v3693
        %4431 = vmatprep.subr.mxu0 0.0
        %4432 = vmatpush2.msra.mxu0 %v3692
        %4433 = vmatprep.subr.mxu0 0.0
        %4434 = vmatpush2.msra.mxu0 %v3691
        %4435 = vmatprep.subr.mxu0 0.0
        %4436 = vmatpush2.msra.mxu0 %v3690
        %4437 = vmatprep.subr.mxu0 0.0
        %4438 = vmatpush2.msra.mxu0 %v3689
        %4439 = vmatprep.subr.mxu0 0.0
        %4440 = vmatpush2.msra.mxu0 %v3688
        %4441 = vmatprep.subr.mxu0 0.0
        %4442 = vmatpush2.msra.mxu0 %v3687
        %4443 = vmatprep.subr.mxu0 0.0
        %4444 = vmatpush2.msra.mxu0 %v3686
        %4445 = vmatprep.subr.mxu0 0.0
        %4446 = vmatpush2.msra.mxu0 %v3685
        %4447 = vmatprep.subr.mxu0 0.0
        %4448 = vmatpush2.msra.mxu0 %v3684
        %4449 = vmatprep.subr.mxu0 0.0
        %4450 = vmatpush2.msra.mxu0 %v3683
        %4451 = vmatprep.subr.mxu0 0.0
        %4452 = vmatpush2.msra.mxu0 %v3682
        %4453 = vmatprep.mubr.f32.mxu0 %v3289
        %4454 = vmatmul.mubr.f32.gmra.mxu0 %v3288
        %v4455 = vpop.f32.mrf.mxu0
        %v4456 = vadd.f32 %v4231, %v4455
        %v4457 = vpop.f32.mrf.mxu0
        %4458 = vmatprep.mubr.f32.mxu0 %v3298
        %4459 = vmatmul.mubr.f32.gmra.mxu0 %v3297
        %v4460 = vpop.f32.mrf.mxu0
        %v4461 = vadd.f32 %v4236, %v4460
        %v4462 = vpop.f32.mrf.mxu0
        %4463 = vmatprep.mubr.f32.mxu0 %v3307
        %4464 = vmatmul.mubr.f32.gmra.mxu0 %v3306
        %v4465 = vpop.f32.mrf.mxu0
        %v4466 = vadd.f32 %v4241, %v4465
        %v4467 = vpop.f32.mrf.mxu0
        %4468 = vmatprep.mubr.f32.mxu0 %v3316
        %4469 = vmatmul.mubr.f32.gmra.mxu0 %v3315
        %v4470 = vpop.f32.mrf.mxu0
        %v4471 = vadd.f32 %v4246, %v4470
        %v4472 = vpop.f32.mrf.mxu0
        %4473 = vmatprep.mubr.f32.mxu0 %v3325
        %4474 = vmatmul.mubr.f32.gmra.mxu0 %v3324
        %v4475 = vpop.f32.mrf.mxu0
        %v4476 = vadd.f32 %v4251, %v4475
        %v4477 = vpop.f32.mrf.mxu0
        %4478 = vmatprep.mubr.f32.mxu0 %v3334
        %4479 = vmatmul.mubr.f32.gmra.mxu0 %v3333
        %v4480 = vpop.f32.mrf.mxu0
        %v4481 = vadd.f32 %v4256, %v4480
        %v4482 = vpop.f32.mrf.mxu0
        %4483 = vmatprep.mubr.f32.mxu0 %v3343
        %4484 = vmatmul.mubr.f32.gmra.mxu0 %v3342
        %v4485 = vpop.f32.mrf.mxu0
        %v4486 = vadd.f32 %v4261, %v4485
        %v4487 = vpop.f32.mrf.mxu0
        %4488 = vmatprep.mubr.f32.mxu0 %v3352
        %4489 = vmatmul.mubr.f32.gmra.mxu0 %v3351
        %v4490 = vpop.f32.mrf.mxu0
        %v4491 = vadd.f32 %v4266, %v4490
        %v4492 = vpop.f32.mrf.mxu0
        %4493 = vmatprep.mubr.f32.mxu0 %v3361
        %4494 = vmatmul.mubr.f32.gmra.mxu0 %v3360
        %v4495 = vpop.f32.mrf.mxu0
        %v4496 = vadd.f32 %v4271, %v4495
        %v4497 = vpop.f32.mrf.mxu0
        %4498 = vmatprep.mubr.f32.mxu0 %v3370
        %4499 = vmatmul.mubr.f32.gmra.mxu0 %v3369
        %v4500 = vpop.f32.mrf.mxu0
        %v4501 = vadd.f32 %v4276, %v4500
        %v4502 = vpop.f32.mrf.mxu0
        %4503 = vmatprep.mubr.f32.mxu0 %v3379
        %4504 = vmatmul.mubr.f32.gmra.mxu0 %v3378
        %v4505 = vpop.f32.mrf.mxu0
        %v4506 = vadd.f32 %v4281, %v4505
        %v4507 = vpop.f32.mrf.mxu0
        %4508 = vmatprep.mubr.f32.mxu0 %v3388
        %4509 = vmatmul.mubr.f32.gmra.mxu0 %v3387
        %v4510 = vpop.f32.mrf.mxu0
        %v4511 = vadd.f32 %v4286, %v4510
        %v4512 = vpop.f32.mrf.mxu0
        %4513 = vmatprep.mubr.f32.mxu0 %v3397
        %4514 = vmatmul.mubr.f32.gmra.mxu0 %v3396
        %v4515 = vpop.f32.mrf.mxu0
        %v4516 = vadd.f32 %v4291, %v4515
        %v4517 = vpop.f32.mrf.mxu0
        %4518 = vmatprep.mubr.f32.mxu0 %v3406
        %4519 = vmatmul.mubr.f32.gmra.mxu0 %v3405
        %v4520 = vpop.f32.mrf.mxu0
        %v4521 = vadd.f32 %v4296, %v4520
        %v4522 = vpop.f32.mrf.mxu0
        %4523 = vmatprep.mubr.f32.mxu0 %v3415
        %4524 = vmatmul.mubr.f32.gmra.mxu0 %v3414
        %v4525 = vpop.f32.mrf.mxu0
        %v4526 = vadd.f32 %v4301, %v4525
        %v4527 = vpop.f32.mrf.mxu0
        %4528 = vmatprep.mubr.f32.mxu0 %v3424
        %4529 = vmatmul.mubr.f32.gmra.mxu0 %v3423
        %v4530 = vpop.f32.mrf.mxu0
        %v4531 = vadd.f32 %v4306, %v4530
        %v4532 = vpop.f32.mrf.mxu0
        %4533 = vmatprep.mubr.f32.mxu0 %v3433
        %4534 = vmatmul.mubr.f32.gmra.mxu0 %v3432
        %v4535 = vpop.f32.mrf.mxu0
        %v4536 = vadd.f32 %v4311, %v4535
        %v4537 = vpop.f32.mrf.mxu0
        %4538 = vmatprep.mubr.f32.mxu0 %v3442
        %4539 = vmatmul.mubr.f32.gmra.mxu0 %v3441
        %v4540 = vpop.f32.mrf.mxu0
        %v4541 = vadd.f32 %v4316, %v4540
        %v4542 = vpop.f32.mrf.mxu0
        %4543 = vmatprep.mubr.f32.mxu0 %v3451
        %4544 = vmatmul.mubr.f32.gmra.mxu0 %v3450
        %v4545 = vpop.f32.mrf.mxu0
        %v4546 = vadd.f32 %v4321, %v4545
        %v4547 = vpop.f32.mrf.mxu0
        %4548 = vmatprep.mubr.f32.mxu0 %v3460
        %4549 = vmatmul.mubr.f32.gmra.mxu0 %v3459
        %v4550 = vpop.f32.mrf.mxu0
        %v4551 = vadd.f32 %v4326, %v4550
        %v4552 = vpop.f32.mrf.mxu0
        %4553 = vmatprep.mubr.f32.mxu0 %v3469
        %4554 = vmatmul.mubr.f32.gmra.mxu0 %v3468
        %v4555 = vpop.f32.mrf.mxu0
        %v4556 = vadd.f32 %v4331, %v4555
        %v4557 = vpop.f32.mrf.mxu0
        %4558 = vmatprep.mubr.f32.mxu0 %v3478
        %4559 = vmatmul.mubr.f32.gmra.mxu0 %v3477
        %v4560 = vpop.f32.mrf.mxu0
        %v4561 = vadd.f32 %v4336, %v4560
        %v4562 = vpop.f32.mrf.mxu0
        %4563 = vmatprep.mubr.f32.mxu0 %v3487
        %4564 = vmatmul.mubr.f32.gmra.mxu0 %v3486
        %v4565 = vpop.f32.mrf.mxu0
        %v4566 = vadd.f32 %v4341, %v4565
        %v4567 = vpop.f32.mrf.mxu0
        %4568 = vmatprep.mubr.f32.mxu0 %v3496
        %4569 = vmatmul.mubr.f32.gmra.mxu0 %v3495
        %v4570 = vpop.f32.mrf.mxu0
        %v4571 = vadd.f32 %v4346, %v4570
        %v4572 = vpop.f32.mrf.mxu0
        %4573 = vmatprep.mubr.f32.mxu0 %v3505
        %4574 = vmatmul.mubr.f32.gmra.mxu0 %v3504
        %v4575 = vpop.f32.mrf.mxu0
        %v4576 = vadd.f32 %v4351, %v4575
        %v4577 = vpop.f32.mrf.mxu0
        %4578 = vmatprep.mubr.f32.mxu0 %v3514
        %4579 = vmatmul.mubr.f32.gmra.mxu0 %v3513
        %v4580 = vpop.f32.mrf.mxu0
        %v4581 = vadd.f32 %v4356, %v4580
        %v4582 = vpop.f32.mrf.mxu0
        %4583 = vmatprep.mubr.f32.mxu0 %v3523
        %4584 = vmatmul.mubr.f32.gmra.mxu0 %v3522
        %v4585 = vpop.f32.mrf.mxu0
        %v4586 = vadd.f32 %v4361, %v4585
        %v4587 = vpop.f32.mrf.mxu0
        %4588 = vmatprep.mubr.f32.mxu0 %v3532
        %4589 = vmatmul.mubr.f32.gmra.mxu0 %v3531
        %v4590 = vpop.f32.mrf.mxu0
        %v4591 = vadd.f32 %v4366, %v4590
        %v4592 = vpop.f32.mrf.mxu0
        %4593 = vmatprep.mubr.f32.mxu0 %v3541
        %4594 = vmatmul.mubr.f32.gmra.mxu0 %v3540
        %v4595 = vpop.f32.mrf.mxu0
        %v4596 = vadd.f32 %v4371, %v4595
        %v4597 = vpop.f32.mrf.mxu0
        %4598 = vmatprep.mubr.f32.mxu0 %v3550
        %4599 = vmatmul.mubr.f32.gmra.mxu0 %v3549
        %v4600 = vpop.f32.mrf.mxu0
        %v4601 = vadd.f32 %v4376, %v4600
        %v4602 = vpop.f32.mrf.mxu0
        %4603 = vmatprep.mubr.f32.mxu0 %v3559
        %4604 = vmatmul.mubr.f32.gmra.mxu0 %v3558
        %v4605 = vpop.f32.mrf.mxu0
        %v4606 = vadd.f32 %v4381, %v4605
        %v4607 = vpop.f32.mrf.mxu0
        %4608 = vmatprep.mubr.f32.mxu0 %v3568
        %4609 = vmatmul.mubr.f32.gmra.mxu0 %v3567
        %v4610 = vpop.f32.mrf.mxu0
        %v4611 = vadd.f32 %v4386, %v4610
        %v4612 = vpop.f32.mrf.mxu0
        %4613 = vdwg.mxu0
        %4614 = vmatprep.subr.mxu0 0.0
        %4615 = vmatpush1.msra.mxu0 %v3713
        %4616 = vmatprep.subr.mxu0 0.0
        %4617 = vmatpush1.msra.mxu0 %v3712
        %4618 = vmatprep.subr.mxu0 0.0
        %4619 = vmatpush1.msra.mxu0 %v3711
        %4620 = vmatprep.subr.mxu0 0.0
        %4621 = vmatpush1.msra.mxu0 %v3710
        %4622 = vmatprep.subr.mxu0 0.0
        %4623 = vmatpush1.msra.mxu0 %v3709
        %4624 = vmatprep.subr.mxu0 0.0
        %4625 = vmatpush1.msra.mxu0 %v3708
        %4626 = vmatprep.subr.mxu0 0.0
        %4627 = vmatpush1.msra.mxu0 %v3707
        %4628 = vmatprep.subr.mxu0 0.0
        %4629 = vmatpush1.msra.mxu0 %v3706
        %4630 = vmatprep.subr.mxu0 0.0
        %4631 = vmatpush1.msra.mxu0 %v3705
        %4632 = vmatprep.subr.mxu0 0.0
        %4633 = vmatpush1.msra.mxu0 %v3704
        %4634 = vmatprep.subr.mxu0 0.0
        %4635 = vmatpush1.msra.mxu0 %v3703
        %4636 = vmatprep.subr.mxu0 0.0
        %4637 = vmatpush1.msra.mxu0 %v3702
        %4638 = vmatprep.subr.mxu0 0.0
        %4639 = vmatpush1.msra.mxu0 %v3701
        %4640 = vmatprep.subr.mxu0 0.0
        %4641 = vmatpush1.msra.mxu0 %v3700
        %4642 = vmatprep.subr.mxu0 0.0
        %4643 = vmatpush1.msra.mxu0 %v3699
        %4644 = vmatprep.subr.mxu0 0.0
        %4645 = vmatpush1.msra.mxu0 %v3698
        %4646 = vmatprep.subr.mxu0 0.0
        %4647 = vmatpush2.msra.mxu0 0.0
        %4648 = vmatprep.subr.mxu0 0.0
        %4649 = vmatpush2.msra.mxu0 0.0
        %4650 = vmatprep.subr.mxu0 0.0
        %4651 = vmatpush2.msra.mxu0 0.0
        %4652 = vmatprep.subr.mxu0 0.0
        %4653 = vmatpush2.msra.mxu0 0.0
        %4654 = vmatprep.subr.mxu0 0.0
        %4655 = vmatpush2.msra.mxu0 0.0
        %4656 = vmatprep.subr.mxu0 0.0
        %4657 = vmatpush2.msra.mxu0 0.0
        %4658 = vmatprep.subr.mxu0 0.0
        %4659 = vmatpush2.msra.mxu0 0.0
        %4660 = vmatprep.subr.mxu0 0.0
        %4661 = vmatpush2.msra.mxu0 0.0
        %4662 = vmatprep.subr.mxu0 0.0
        %4663 = vmatpush2.msra.mxu0 0.0
        %4664 = vmatprep.subr.mxu0 0.0
        %4665 = vmatpush2.msra.mxu0 0.0
        %4666 = vmatprep.subr.mxu0 0.0
        %4667 = vmatpush2.msra.mxu0 0.0
        %4668 = vmatprep.subr.mxu0 0.0
        %4669 = vmatpush2.msra.mxu0 0.0
        %4670 = vmatprep.subr.mxu0 0.0
        %4671 = vmatpush2.msra.mxu0 0.0
        %4672 = vmatprep.subr.mxu0 0.0
        %4673 = vmatpush2.msra.mxu0 0.0
        %4674 = vmatprep.subr.mxu0 0.0
        %4675 = vmatpush2.msra.mxu0 0.0
        %4676 = vmatprep.subr.mxu0 0.0
        %4677 = vmatpush2.msra.mxu0 0.0
        %4678 = vmatprep.mubr.f32.mxu0 0.0
        %4679 = vmatmul.mubr.f32.gmra.mxu0 %v3290
        %v4680 = vpop.f32.mrf.mxu0
        %v4681 = vadd.f32 %v4456, %v4680
        %v4682 = vpop.f32.mrf.mxu0
        %4683 = vmatprep.mubr.f32.mxu0 0.0
        %4684 = vmatmul.mubr.f32.gmra.mxu0 %v3299
        %v4685 = vpop.f32.mrf.mxu0
        %v4686 = vadd.f32 %v4461, %v4685
        %v4687 = vpop.f32.mrf.mxu0
        %4688 = vmatprep.mubr.f32.mxu0 0.0
        %4689 = vmatmul.mubr.f32.gmra.mxu0 %v3308
        %v4690 = vpop.f32.mrf.mxu0
        %v4691 = vadd.f32 %v4466, %v4690
        %v4692 = vpop.f32.mrf.mxu0
        %4693 = vmatprep.mubr.f32.mxu0 0.0
        %4694 = vmatmul.mubr.f32.gmra.mxu0 %v3317
        %v4695 = vpop.f32.mrf.mxu0
        %v4696 = vadd.f32 %v4471, %v4695
        %v4697 = vpop.f32.mrf.mxu0
        %4698 = vmatprep.mubr.f32.mxu0 0.0
        %4699 = vmatmul.mubr.f32.gmra.mxu0 %v3326
        %v4700 = vpop.f32.mrf.mxu0
        %v4701 = vadd.f32 %v4476, %v4700
        %v4702 = vpop.f32.mrf.mxu0
        %4703 = vmatprep.mubr.f32.mxu0 0.0
        %4704 = vmatmul.mubr.f32.gmra.mxu0 %v3335
        %v4705 = vpop.f32.mrf.mxu0
        %v4706 = vadd.f32 %v4481, %v4705
        %v4707 = vpop.f32.mrf.mxu0
        %4708 = vmatprep.mubr.f32.mxu0 0.0
        %4709 = vmatmul.mubr.f32.gmra.mxu0 %v3344
        %v4710 = vpop.f32.mrf.mxu0
        %v4711 = vadd.f32 %v4486, %v4710
        %v4712 = vpop.f32.mrf.mxu0
        %4713 = vmatprep.mubr.f32.mxu0 0.0
        %4714 = vmatmul.mubr.f32.gmra.mxu0 %v3353
        %v4715 = vpop.f32.mrf.mxu0
        %v4716 = vadd.f32 %v4491, %v4715
        %v4717 = vpop.f32.mrf.mxu0
        %4718 = vmatprep.mubr.f32.mxu0 0.0
        %4719 = vmatmul.mubr.f32.gmra.mxu0 %v3362
        %v4720 = vpop.f32.mrf.mxu0
        %v4721 = vadd.f32 %v4496, %v4720
        %v4722 = vpop.f32.mrf.mxu0
        %4723 = vmatprep.mubr.f32.mxu0 0.0
        %4724 = vmatmul.mubr.f32.gmra.mxu0 %v3371
        %v4725 = vpop.f32.mrf.mxu0
        %v4726 = vadd.f32 %v4501, %v4725
        %v4727 = vpop.f32.mrf.mxu0
        %4728 = vmatprep.mubr.f32.mxu0 0.0
        %4729 = vmatmul.mubr.f32.gmra.mxu0 %v3380
        %v4730 = vpop.f32.mrf.mxu0
        %v4731 = vadd.f32 %v4506, %v4730
        %v4732 = vpop.f32.mrf.mxu0
        %4733 = vmatprep.mubr.f32.mxu0 0.0
        %4734 = vmatmul.mubr.f32.gmra.mxu0 %v3389
        %v4735 = vpop.f32.mrf.mxu0
        %v4736 = vadd.f32 %v4511, %v4735
        %v4737 = vpop.f32.mrf.mxu0
        %4738 = vmatprep.mubr.f32.mxu0 0.0
        %4739 = vmatmul.mubr.f32.gmra.mxu0 %v3398
        %v4740 = vpop.f32.mrf.mxu0
        %v4741 = vadd.f32 %v4516, %v4740
        %v4742 = vpop.f32.mrf.mxu0
        %4743 = vmatprep.mubr.f32.mxu0 0.0
        %4744 = vmatmul.mubr.f32.gmra.mxu0 %v3407
        %v4745 = vpop.f32.mrf.mxu0
        %v4746 = vadd.f32 %v4521, %v4745
        %v4747 = vpop.f32.mrf.mxu0
        %4748 = vmatprep.mubr.f32.mxu0 0.0
        %4749 = vmatmul.mubr.f32.gmra.mxu0 %v3416
        %v4750 = vpop.f32.mrf.mxu0
        %v4751 = vadd.f32 %v4526, %v4750
        %v4752 = vpop.f32.mrf.mxu0
        %4753 = vmatprep.mubr.f32.mxu0 0.0
        %4754 = vmatmul.mubr.f32.gmra.mxu0 %v3425
        %v4755 = vpop.f32.mrf.mxu0
        %v4756 = vadd.f32 %v4531, %v4755
        %v4757 = vpop.f32.mrf.mxu0
        %4758 = vmatprep.mubr.f32.mxu0 0.0
        %4759 = vmatmul.mubr.f32.gmra.mxu0 %v3434
        %v4760 = vpop.f32.mrf.mxu0
        %v4761 = vadd.f32 %v4536, %v4760
        %v4762 = vpop.f32.mrf.mxu0
        %4763 = vmatprep.mubr.f32.mxu0 0.0
        %4764 = vmatmul.mubr.f32.gmra.mxu0 %v3443
        %v4765 = vpop.f32.mrf.mxu0
        %v4766 = vadd.f32 %v4541, %v4765
        %v4767 = vpop.f32.mrf.mxu0
        %4768 = vmatprep.mubr.f32.mxu0 0.0
        %4769 = vmatmul.mubr.f32.gmra.mxu0 %v3452
        %v4770 = vpop.f32.mrf.mxu0
        %v4771 = vadd.f32 %v4546, %v4770
        %v4772 = vpop.f32.mrf.mxu0
        %4773 = vmatprep.mubr.f32.mxu0 0.0
        %4774 = vmatmul.mubr.f32.gmra.mxu0 %v3461
        %v4775 = vpop.f32.mrf.mxu0
        %v4776 = vadd.f32 %v4551, %v4775
        %v4777 = vpop.f32.mrf.mxu0
        %4778 = vmatprep.mubr.f32.mxu0 0.0
        %4779 = vmatmul.mubr.f32.gmra.mxu0 %v3470
        %v4780 = vpop.f32.mrf.mxu0
        %v4781 = vadd.f32 %v4556, %v4780
        %v4782 = vpop.f32.mrf.mxu0
        %4783 = vmatprep.mubr.f32.mxu0 0.0
        %4784 = vmatmul.mubr.f32.gmra.mxu0 %v3479
        %v4785 = vpop.f32.mrf.mxu0
        %v4786 = vadd.f32 %v4561, %v4785
        %v4787 = vpop.f32.mrf.mxu0
        %4788 = vmatprep.mubr.f32.mxu0 0.0
        %4789 = vmatmul.mubr.f32.gmra.mxu0 %v3488
        %v4790 = vpop.f32.mrf.mxu0
        %v4791 = vadd.f32 %v4566, %v4790
        %v4792 = vpop.f32.mrf.mxu0
        %4793 = vmatprep.mubr.f32.mxu0 0.0
        %4794 = vmatmul.mubr.f32.gmra.mxu0 %v3497
        %v4795 = vpop.f32.mrf.mxu0
        %v4796 = vadd.f32 %v4571, %v4795
        %v4797 = vpop.f32.mrf.mxu0
        %4798 = vmatprep.mubr.f32.mxu0 0.0
        %4799 = vmatmul.mubr.f32.gmra.mxu0 %v3506
        %v4800 = vpop.f32.mrf.mxu0
        %v4801 = vadd.f32 %v4576, %v4800
        %v4802 = vpop.f32.mrf.mxu0
        %4803 = vmatprep.mubr.f32.mxu0 0.0
        %4804 = vmatmul.mubr.f32.gmra.mxu0 %v3515
        %v4805 = vpop.f32.mrf.mxu0
        %v4806 = vadd.f32 %v4581, %v4805
        %v4807 = vpop.f32.mrf.mxu0
        %4808 = vmatprep.mubr.f32.mxu0 0.0
        %4809 = vmatmul.mubr.f32.gmra.mxu0 %v3524
        %v4810 = vpop.f32.mrf.mxu0
        %v4811 = vadd.f32 %v4586, %v4810
        %v4812 = vpop.f32.mrf.mxu0
        %4813 = vmatprep.mubr.f32.mxu0 0.0
        %4814 = vmatmul.mubr.f32.gmra.mxu0 %v3533
        %v4815 = vpop.f32.mrf.mxu0
        %v4816 = vadd.f32 %v4591, %v4815
        %v4817 = vpop.f32.mrf.mxu0
        %4818 = vmatprep.mubr.f32.mxu0 0.0
        %4819 = vmatmul.mubr.f32.gmra.mxu0 %v3542
        %v4820 = vpop.f32.mrf.mxu0
        %v4821 = vadd.f32 %v4596, %v4820
        %v4822 = vpop.f32.mrf.mxu0
        %4823 = vmatprep.mubr.f32.mxu0 0.0
        %4824 = vmatmul.mubr.f32.gmra.mxu0 %v3551
        %v4825 = vpop.f32.mrf.mxu0
        %v4826 = vadd.f32 %v4601, %v4825
        %v4827 = vpop.f32.mrf.mxu0
        %4828 = vmatprep.mubr.f32.mxu0 0.0
        %4829 = vmatmul.mubr.f32.gmra.mxu0 %v3560
        %v4830 = vpop.f32.mrf.mxu0
        %v4831 = vadd.f32 %v4606, %v4830
        %v4832 = vpop.f32.mrf.mxu0
        %4833 = vmatprep.mubr.f32.mxu0 0.0
        %4834 = vmatmul.mubr.f32.gmra.mxu0 %v3569
        %v4835 = vpop.f32.mrf.mxu0
        %v4836 = vadd.f32 %v4611, %v4835
        %v4837 = vpop.f32.mrf.mxu0
        %4838 = vdwg.mxu0
        %v4839 = vld [vmem:[%s5] sm:$0x1]
        %v4841 = vlaneseq
        %v4842 = vshrl.u32 %v4841, 7
        %v4843 = vsub.s32 0, %v4842
        %v4844 = vrot.slane %v4839, %v4843
        %v4846 = vmul.f32 %v4681, %v4844
        %v4847 = vmul.f32 %v4686, %v4844
        %v4848 = vmul.f32 %v4691, %v4844
        %v4849 = vmul.f32 %v4696, %v4844
        %v4850 = vmul.f32 %v4701, %v4844
        %v4851 = vmul.f32 %v4706, %v4844
        %v4852 = vmul.f32 %v4711, %v4844
        %v4853 = vmul.f32 %v4716, %v4844
        %v4854 = vmul.f32 %v4721, %v4844
        %v4855 = vmul.f32 %v4726, %v4844
        %v4856 = vmul.f32 %v4731, %v4844
        %v4857 = vmul.f32 %v4736, %v4844
        %v4858 = vmul.f32 %v4741, %v4844
        %v4859 = vmul.f32 %v4746, %v4844
        %v4860 = vmul.f32 %v4751, %v4844
        %v4861 = vmul.f32 %v4756, %v4844
        %v4862 = vmul.f32 %v4761, %v4844
        %v4863 = vmul.f32 %v4766, %v4844
        %v4864 = vmul.f32 %v4771, %v4844
        %v4865 = vmul.f32 %v4776, %v4844
        %v4866 = vmul.f32 %v4781, %v4844
        %v4867 = vmul.f32 %v4786, %v4844
        %v4868 = vmul.f32 %v4791, %v4844
        %v4869 = vmul.f32 %v4796, %v4844
        %v4870 = vmul.f32 %v4801, %v4844
        %v4871 = vmul.f32 %v4806, %v4844
        %v4872 = vmul.f32 %v4811, %v4844
        %v4873 = vmul.f32 %v4816, %v4844
        %v4874 = vmul.f32 %v4821, %v4844
        %v4875 = vmul.f32 %v4826, %v4844
        %v4876 = vmul.f32 %v4831, %v4844
        %v4877 = vmul.f32 %v4836, %v4844
        %v4878 = vld [vmem:[%s6] sm:$0x1]
        %v4880 = vlaneseq
        %v4881 = vshrl.u32 %v4880, 7
        %v4882 = vsub.s32 0, %v4881
        %v4883 = vrot.slane %v4878, %v4882
        %v4885 = vadd.f32 %v4846, %v4883
        %v4886 = vadd.f32 %v4847, %v4883
        %v4887 = vadd.f32 %v4848, %v4883
        %v4888 = vadd.f32 %v4849, %v4883
        %v4889 = vadd.f32 %v4850, %v4883
        %v4890 = vadd.f32 %v4851, %v4883
        %v4891 = vadd.f32 %v4852, %v4883
        %v4892 = vadd.f32 %v4853, %v4883
        %v4893 = vadd.f32 %v4854, %v4883
        %v4894 = vadd.f32 %v4855, %v4883
        %v4895 = vadd.f32 %v4856, %v4883
        %v4896 = vadd.f32 %v4857, %v4883
        %v4897 = vadd.f32 %v4858, %v4883
        %v4898 = vadd.f32 %v4859, %v4883
        %v4899 = vadd.f32 %v4860, %v4883
        %v4900 = vadd.f32 %v4861, %v4883
        %v4901 = vadd.f32 %v4862, %v4883
        %v4902 = vadd.f32 %v4863, %v4883
        %v4903 = vadd.f32 %v4864, %v4883
        %v4904 = vadd.f32 %v4865, %v4883
        %v4905 = vadd.f32 %v4866, %v4883
        %v4906 = vadd.f32 %v4867, %v4883
        %v4907 = vadd.f32 %v4868, %v4883
        %v4908 = vadd.f32 %v4869, %v4883
        %v4909 = vadd.f32 %v4870, %v4883
        %v4910 = vadd.f32 %v4871, %v4883
        %v4911 = vadd.f32 %v4872, %v4883
        %v4912 = vadd.f32 %v4873, %v4883
        %v4913 = vadd.f32 %v4874, %v4883
        %v4914 = vadd.f32 %v4875, %v4883
        %v4915 = vadd.f32 %v4876, %v4883
        %v4916 = vadd.f32 %v4877, %v4883
        %v4917 = vadd.f32 %v4885, %v334
        %v4918 = vadd.f32 %v4886, %v335
        %v4919 = vadd.f32 %v4887, %v336
        %v4920 = vadd.f32 %v4888, %v337
        %v4921 = vadd.f32 %v4889, %v338
        %v4922 = vadd.f32 %v4890, %v339
        %v4923 = vadd.f32 %v4891, %v340
        %v4924 = vadd.f32 %v4892, %v341
        %v4925 = vadd.f32 %v4893, %v342
        %v4926 = vadd.f32 %v4894, %v343
        %v4927 = vadd.f32 %v4895, %v344
        %v4928 = vadd.f32 %v4896, %v345
        %v4929 = vadd.f32 %v4897, %v346
        %v4930 = vadd.f32 %v4898, %v347
        %v4931 = vadd.f32 %v4899, %v348
        %v4932 = vadd.f32 %v4900, %v349
        %v4933 = vadd.f32 %v4901, %v350
        %v4934 = vadd.f32 %v4902, %v351
        %v4935 = vadd.f32 %v4903, %v352
        %v4936 = vadd.f32 %v4904, %v353
        %v4937 = vadd.f32 %v4905, %v354
        %v4938 = vadd.f32 %v4906, %v355
        %v4939 = vadd.f32 %v4907, %v356
        %v4940 = vadd.f32 %v4908, %v357
        %v4941 = vadd.f32 %v4909, %v358
        %v4942 = vadd.f32 %v4910, %v359
        %v4943 = vadd.f32 %v4911, %v360
        %v4944 = vadd.f32 %v4912, %v361
        %v4945 = vadd.f32 %v4913, %v362
        %v4946 = vadd.f32 %v4914, %v363
        %v4947 = vadd.f32 %v4915, %v364
        %v4948 = vadd.f32 %v4916, %v365
        %v4949 = vmul.f32 %v4917, 0.1
        %v4950 = vmul.f32 %v4918, 0.1
        %v4951 = vmul.f32 %v4919, 0.1
        %v4952 = vmul.f32 %v4920, 0.1
        %v4953 = vmul.f32 %v4921, 0.1
        %v4954 = vmul.f32 %v4922, 0.1
        %v4955 = vmul.f32 %v4923, 0.1
        %v4956 = vmul.f32 %v4924, 0.1
        %v4957 = vmul.f32 %v4925, 0.1
        %v4958 = vmul.f32 %v4926, 0.1
        %v4959 = vmul.f32 %v4927, 0.1
        %v4960 = vmul.f32 %v4928, 0.1
        %v4961 = vmul.f32 %v4929, 0.1
        %v4962 = vmul.f32 %v4930, 0.1
        %v4963 = vmul.f32 %v4931, 0.1
        %v4964 = vmul.f32 %v4932, 0.1
        %v4965 = vmul.f32 %v4933, 0.1
        %v4966 = vmul.f32 %v4934, 0.1
        %v4967 = vmul.f32 %v4935, 0.1
        %v4968 = vmul.f32 %v4936, 0.1
        %v4969 = vmul.f32 %v4937, 0.1
        %v4970 = vmul.f32 %v4938, 0.1
        %v4971 = vmul.f32 %v4939, 0.1
        %v4972 = vmul.f32 %v4940, 0.1
        %v4973 = vmul.f32 %v4941, 0.1
        %v4974 = vmul.f32 %v4942, 0.1
        %v4975 = vmul.f32 %v4943, 0.1
        %v4976 = vmul.f32 %v4944, 0.1
        %v4977 = vmul.f32 %v4945, 0.1
        %v4978 = vmul.f32 %v4946, 0.1
        %v4979 = vmul.f32 %v4947, 0.1
        %v4980 = vmul.f32 %v4948, 0.1
        %v4981 = vmax.f32 %v4917, %v4949
        %v4982 = vmax.f32 %v4918, %v4950
        %v4983 = vmax.f32 %v4919, %v4951
        %v4984 = vmax.f32 %v4920, %v4952
        %v4985 = vmax.f32 %v4921, %v4953
        %v4986 = vmax.f32 %v4922, %v4954
        %v4987 = vmax.f32 %v4923, %v4955
        %v4988 = vmax.f32 %v4924, %v4956
        %v4989 = vmax.f32 %v4925, %v4957
        %v4990 = vmax.f32 %v4926, %v4958
        %v4991 = vmax.f32 %v4927, %v4959
        %v4992 = vmax.f32 %v4928, %v4960
        %v4993 = vmax.f32 %v4929, %v4961
        %v4994 = vmax.f32 %v4930, %v4962
        %v4995 = vmax.f32 %v4931, %v4963
        %v4996 = vmax.f32 %v4932, %v4964
        %v4997 = vmax.f32 %v4933, %v4965
        %v4998 = vmax.f32 %v4934, %v4966
        %v4999 = vmax.f32 %v4935, %v4967
        %v5000 = vmax.f32 %v4936, %v4968
        %v5001 = vmax.f32 %v4937, %v4969
        %v5002 = vmax.f32 %v4938, %v4970
        %v5003 = vmax.f32 %v4939, %v4971
        %v5004 = vmax.f32 %v4940, %v4972
        %v5005 = vmax.f32 %v4941, %v4973
        %v5006 = vmax.f32 %v4942, %v4974
        %v5007 = vmax.f32 %v4943, %v4975
        %v5008 = vmax.f32 %v4944, %v4976
        %v5009 = vmax.f32 %v4945, %v4977
        %v5010 = vmax.f32 %v4946, %v4978
        %v5011 = vmax.f32 %v4947, %v4979
        %v5012 = vmax.f32 %v4948, %v4980
        %5013 = vst [vmem:[%s293] sm:$0xff] %v4981
        %5014 = vst [vmem:[%s293 + $0x8] sm:$0xff] %v4982
        %5015 = vst [vmem:[%s293 + $0x10] sm:$0xff] %v4983
        %5016 = vst [vmem:[%s293 + $0x18] sm:$0xff] %v4984
        %5017 = vst [vmem:[%s293 + $0x20] sm:$0xff] %v4985
        %5018 = vst [vmem:[%s293 + $0x28] sm:$0xff] %v4986
        %5019 = vst [vmem:[%s293 + $0x30] sm:$0xff] %v4987
        %5020 = vst [vmem:[%s293 + $0x38] sm:$0xff] %v4988
        %5021 = vst [vmem:[%s293 + $0x40] sm:$0xff] %v4989
        %5022 = vst [vmem:[%s293 + $0x48] sm:$0xff] %v4990
        %5023 = vst [vmem:[%s293 + $0x50] sm:$0xff] %v4991
        %5024 = vst [vmem:[%s293 + $0x58] sm:$0xff] %v4992
        %5025 = vst [vmem:[%s293 + $0x60] sm:$0xff] %v4993
        %5026 = vst [vmem:[%s293 + $0x68] sm:$0xff] %v4994
        %5027 = vst [vmem:[%s293 + $0x70] sm:$0xff] %v4995
        %5028 = vst [vmem:[%s293 + $0x78] sm:$0xff] %v4996
        %5029 = vst [vmem:[%s293 + $0x80] sm:$0xff] %v4997
        %5030 = vst [vmem:[%s293 + $0x88] sm:$0xff] %v4998
        %5031 = vst [vmem:[%s293 + $0x90] sm:$0xff] %v4999
        %5032 = vst [vmem:[%s293 + $0x98] sm:$0xff] %v5000
        %5033 = vst [vmem:[%s293 + $0xa0] sm:$0xff] %v5001
        %5034 = vst [vmem:[%s293 + $0xa8] sm:$0xff] %v5002
        %5035 = vst [vmem:[%s293 + $0xb0] sm:$0xff] %v5003
        %5036 = vst [vmem:[%s293 + $0xb8] sm:$0xff] %v5004
        %5037 = vst [vmem:[%s293 + $0xc0] sm:$0xff] %v5005
        %5038 = vst [vmem:[%s293 + $0xc8] sm:$0xff] %v5006
        %5039 = vst [vmem:[%s293 + $0xd0] sm:$0xff] %v5007
        %5040 = vst [vmem:[%s293 + $0xd8] sm:$0xff] %v5008
        %5041 = vst [vmem:[%s293 + $0xe0] sm:$0xff] %v5009
        %5042 = vst [vmem:[%s293 + $0xe8] sm:$0xff] %v5010
        %5043 = vst [vmem:[%s293 + $0xf0] sm:$0xff] %v5011
        %5044 = vst [vmem:[%s293 + $0xf8] sm:$0xff] %v5012
        %p5045 = scmp.lt.s32.totalorder %s19, 1
        %s5046 = scalar_select %p5045, %s19, 1
        %s5047 = smul.addr %s5046, 32
        %s5048 = smul.addr %s5047, 8
        %s5049 = scalar_lea.vmem %s7, %s5048
        // Predicated region
        $region53: #{basic_block_forward.1} parent=47 // pred_check
          %p5050 = pneg %p189
        $region54: #{basic_block_forward.1} parent=47 // pred_check_branch
          %5052 = sbr.rel (%p5050) target = $region56
        $region55: #{basic_block_forward.1} parent=47 // pred_region
          _
        $region56: #{basic_block_forward.1} parent=47 // pred_fallthru
          _
      $region48: #{basic_block_forward.1} parent=5 // pred_fallthru
        _
      %p5053 = scmp.le.s32.totalorder 2, %s14
      // Predicated region
      $region57: #{basic_block_forward.1} parent=5 // pred_check
        %p5054 = pneg %p5053
      $region58: #{basic_block_forward.1} parent=5 // pred_check_branch
        %5056 = sbr.rel (%p5054) target = $region60
      $region59: #{basic_block_forward.1} parent=5 // pred_region
        %s5057 = ssub.s32 %s14, 2
        // Predicated region
        $region61: #{basic_block_forward.1} parent=59 // pred_check
          %p5058 = pneg %p195
        $region62: #{basic_block_forward.1} parent=59 // pred_check_branch
          %5060 = sbr.rel (%p5058) target = $region64
        $region63: #{basic_block_forward.1} parent=59 // pred_region
          %p5061 = scmp.lt.s32.totalorder %s20, 1
          %s5062 = scalar_select %p5061, %s20, 1
          %s5063 = smul.addr %s5062, 32
          %s5064 = smul.addr %s5063, 8
          %s5065 = scalar_lea.vmem %s7, %s5064
        $region64: #{basic_block_forward.1} parent=59 // pred_fallthru
          _
      $region60: #{basic_block_forward.1} parent=5 // pred_fallthru
        _
    $region6: #{basic_block_forward.1} parent=1 // loop_footer
      %s18 = sadd.s32 1, %s14
    $region7: #{basic_block_forward.1} parent=1 // loop_footer_branch
      %13 = sbr.rel target = $region3
    $region8: #{basic_block_forward.1} parent=1 // loop_exit
      _
    %5066 = vsyncpa [#allocation5], 1
    %s5067 = scalar_lea.sflag [#allocation5], 1
    %5068 = vsyncpa %s5067, 1

</llo_original>
